<compile_context>
chip_gen: v5e
topology: v5e:2x2
jax: 0.10.0
libtpu: 0.0.40
codegen_flags: <defaults>
</compile_context>

<pallas_src>
import functools

import jax
import jax.numpy as jnp
from jax import lax
from jax.experimental import pallas as pl
from jax.experimental.pallas import tpu as pltpu

GROUPS = 8      # nn.GroupNorm(num_groups=8, ...)
EPS = 1e-5      # PyTorch GroupNorm default eps


# ----------------------------------------------------------------------------
# Pallas kernel: full AttenBlock forward for one batch element
# ----------------------------------------------------------------------------
def _atten_block_kernel(x_ref, m_ref, g_ref,
                        w1_ref, b1_ref, ga1_ref, be1_ref,
                        w2_ref, b2_ref, ga2_ref, be2_ref,
                        o_ref, h_ref, *, Hp, Wp, groups, eps):
    """x_ref:  (1, Hp*Wp, C) f32 zero-padded input canvas
       m_ref:  (Lc, 1)       f32 interior mask (0 on the junk/pad columns)
       g_ref:  (C, C)        f32 group-indicator matrix (1 if same GN group)
       w*_ref: (3, 3, C, C)  bf16 HWIO conv weights
       b*/ga*/be*_ref: (1, C) f32 bias / GN gamma / GN beta
       o_ref:  (1, Lc, C)    f32 residual output (interior rows of the canvas)
       h_ref:  (Hp*Wp, C)    bf16 VMEM scratch canvas for the intermediate act
    """
    C = o_ref.shape[-1]
    Lp = Hp * Wp
    Lc = Lp - 2 * (Wp + 1)
    H, W = Hp - 2, Wp - 2
    n_per_group = float((C // groups) * H * W)

    mask = m_ref[...]          # (Lc, 1)
    gmat = g_ref[...]          # (C, C)

    def conv3x3(load_tap, w_ref):
        # 9 taps -> 9 bf16 MXU matmuls, f32 accumulation.
        acc = jnp.zeros((Lc, C), jnp.float32)
        for ky in range(3):
            for kx in range(3):
                acc = acc + jnp.dot(load_tap(ky * Wp + kx),       # (Lc, C) bf16
                                    w_ref[ky, kx],                # (C, C)  bf16
                                    preferred_element_type=jnp.float32)
        return acc

    def gn_relu(y, b_ref, ga_ref, be_ref):
        # bias, then zero the junk/pad columns so spatial stats are exact.
        y = (y + b_ref[...]) * mask                               # (Lc, C)
        s = jnp.sum(y, axis=0, keepdims=True)                     # (1, C)
        ss = jnp.sum(y * y, axis=0, keepdims=True)                # (1, C)
        # broadcast per-channel sums to per-group sums (tiny f32 matmul)
        gsum = jnp.dot(s, gmat, preferred_element_type=jnp.float32,
                       precision=lax.Precision.HIGHEST)
        gsq = jnp.dot(ss, gmat, preferred_element_type=jnp.float32,
                      precision=lax.Precision.HIGHEST)
        mean = gsum / n_per_group
        var = gsq / n_per_group - mean * mean
        inv = lax.rsqrt(var + eps)
        y = (y - mean) * (inv * ga_ref[...]) + be_ref[...]
        return jnp.maximum(y, 0.0) * mask                         # ReLU + re-zero pads

    # ---- conv1 + GroupNorm + ReLU ------------------------------------------
    y1 = conv3x3(lambda off: x_ref[0, pl.ds(off, Lc), :].astype(jnp.bfloat16),
                 w1_ref)
    y1 = gn_relu(y1, b1_ref, ga1_ref, be1_ref)

    # intermediate canvas for conv2 (bf16, borders zero = conv padding)
    h_ref[...] = jnp.zeros(h_ref.shape, h_ref.dtype)
    h_ref[pl.ds(Wp + 1, Lc), :] = y1.astype(h_ref.dtype)

    # ---- conv2 + GroupNorm + ReLU ------------------------------------------
    y2 = conv3x3(lambda off: h_ref[pl.ds(off, Lc), :], w2_ref)
    y2 = gn_relu(y2, b2_ref, ga2_ref, be2_ref)

    # ---- residual: out = x + conv_block(x) ----------------------------------
    o_ref[0, :, :] = x_ref[0, pl.ds(Wp + 1, Lc), :] + y2


# ----------------------------------------------------------------------------
# Host-side glue
# ----------------------------------------------------------------------------
def to_canvas(x_nchw):
    x = jnp.transpose(x_nchw, (0, 2, 3, 1))                       # NHWC
    x = jnp.pad(x, ((0, 0), (1, 1), (1, 1), (0, 0)))
    N, Hp, Wp, C = x.shape
    return x.reshape(N, Hp * Wp, C)


def interior_mask(H, W):
    Wp = W + 2
    Lc = H * Wp - 2
    cols = (jnp.arange(Lc) + Wp + 1) % Wp
    return ((cols != 0) & (cols != Wp - 1)).astype(jnp.float32).reshape(Lc, 1)


def group_matrix(C, groups):
    gidx = jnp.arange(C) // (C // groups)
    return (gidx[:, None] == gidx[None, :]).astype(jnp.float32)


def atten_block_pallas(x_nchw, params):
    w1, b1, ga1, be1, w2, b2, ga2, be2 = params
    N, C, H, W = x_nchw.shape
    Hp, Wp = H + 2, W + 2
    Lp = Hp * Wp
    Lc = Lp - 2 * (Wp + 1)

    xc = to_canvas(x_nchw)                                        # (N, Lp, C) f32
    mask = interior_mask(H, W)                                    # (Lc, 1)
    gmat = group_matrix(C, GROUPS)                                # (C, C)

    kernel = functools.partial(_atten_block_kernel, Hp=Hp, Wp=Wp,
                               groups=GROUPS, eps=EPS)

    out = pl.pallas_call(
        kernel,
        out_shape=jax.ShapeDtypeStruct((N, Lc, C), jnp.float32),
        grid_spec=pltpu.PrefetchScalarGridSpec(
            num_scalar_prefetch=0,
            grid=(N,),
            in_specs=[
                pl.BlockSpec((1, Lp, C), lambda n: (n, 0, 0)),       # x canvas
                pl.BlockSpec((Lc, 1), lambda n: (0, 0)),             # interior mask
                pl.BlockSpec((C, C), lambda n: (0, 0)),              # group matrix
                pl.BlockSpec((3, 3, C, C), lambda n: (0, 0, 0, 0)),  # w1 (bf16)
                pl.BlockSpec((1, C), lambda n: (0, 0)),              # b1
                pl.BlockSpec((1, C), lambda n: (0, 0)),              # gamma1
                pl.BlockSpec((1, C), lambda n: (0, 0)),              # beta1
                pl.BlockSpec((3, 3, C, C), lambda n: (0, 0, 0, 0)),  # w2 (bf16)
                pl.BlockSpec((1, C), lambda n: (0, 0)),              # b2
                pl.BlockSpec((1, C), lambda n: (0, 0)),              # gamma2
                pl.BlockSpec((1, C), lambda n: (0, 0)),              # beta2
            ],
            out_specs=pl.BlockSpec((1, Lc, C), lambda n: (n, 0, 0)),
            scratch_shapes=[pltpu.VMEM((Lp, C), jnp.bfloat16)],
        ),
        compiler_params=pltpu.CompilerParams(
            dimension_semantics=("parallel",),
        ),
    )(xc, mask, gmat,
      w1.astype(jnp.bfloat16), b1, ga1, be1,
      w2.astype(jnp.bfloat16), b2, ga2, be2)

    # (N, Lc, C) interior rows -> NCHW
    y = jnp.pad(out, ((0, 0), (1, 1), (0, 0))).reshape(N, H, Wp, C)
    y = y[:, :, 1:W + 1, :]
    return jnp.transpose(y, (0, 3, 1, 2))


# ----------------------------------------------------------------------------
# Parameters (synthetic, deterministic) and pure-JAX reference
# ----------------------------------------------------------------------------
def init_params(key, dim):
    ks = jax.random.split(key, 8)

    def conv_init(kw, kb):
        w = jax.random.normal(kw, (3, 3, dim, dim), jnp.float32) * jnp.sqrt(2.0 / (9.0 * dim))
        b = jax.random.normal(kb, (1, dim), jnp.float32) * 0.01
        return w, b

    w1, b1 = conv_init(ks[0], ks[1])
    w2, b2 = conv_init(ks[2], ks[3])
    ga1 = 1.0 + 0.1 * jax.random.normal(ks[4], (1, dim), jnp.float32)
    be1 = 0.1 * jax.random.normal(ks[5], (1, dim), jnp.float32)
    ga2 = 1.0 + 0.1 * jax.random.normal(ks[6], (1, dim), jnp.float32)
    be2 = 0.1 * jax.random.normal(ks[7], (1, dim), jnp.float32)
    return (w1, b1, ga1, be1, w2, b2, ga2, be2)


def reference_forward(x, params):
    w1, b1, ga1, be1, w2, b2, ga2, be2 = params

    def conv(h, w, b):
        y = lax.conv_general_dilated(
            h, w, (1, 1), "SAME",
            dimension_numbers=("NCHW", "HWIO", "NCHW"),
            precision=lax.Precision.HIGHEST)
        return y + b.reshape(1, -1, 1, 1)

    def group_norm(h, gamma, beta):
        N, C, H, W = h.shape
        hg = h.reshape(N, GROUPS, C // GROUPS, H, W)
        mean = hg.mean(axis=(2, 3, 4), keepdims=True)
        var = hg.var(axis=(2, 3, 4), keepdims=True)
        hn = ((hg - mean) / jnp.sqrt(var + EPS)).reshape(N, C, H, W)
        return hn * gamma.reshape(1, -1, 1, 1) + beta.reshape(1, -1, 1, 1)

    h = jnp.maximum(group_norm(conv(x, w1, b1), ga1, be1), 0.0)
    h = jnp.maximum(group_norm(conv(h, w2, b2), ga2, be2), 0.0)
    return x + h


if __name__ == "__main__":
    key = jax.random.PRNGKey(0)
    kx, kp = jax.random.split(key)

    dim = 128   # GroupNorm(num_groups=8, num_channels=128) in the module pins dim=128
    x = jax.random.normal(kx, (2, dim, 16, 16), jnp.float32)      # NCHW like PyTorch
    params = init_params(kp, dim)

    fwd = jax.jit(atten_block_pallas)
    out = jax.block_until_ready(fwd(x, params))

    ref = reference_forward(x, params)
    assert out.shape == ref.shape, (out.shape, ref.shape)

    err = float(jnp.max(jnp.abs(out - ref)))
    # bf16 MXU operands vs. f32 HIGHEST reference -> relaxed tolerance
    tol = 5e-2 + 2e-2 * float(jnp.max(jnp.abs(ref)))
    if err > tol:
        raise SystemExit(f"mismatch: max abs err {err} > {tol}")

    print("KERNEL_OK")
</pallas_src>

<mosaic_0001>
module attributes {stable_mosaic.version = 11 : i64} {
  func.func @_atten_block_kernel(%arg0: i32, %arg1: memref<1x324x128xf32, #tpu.memory_space<vmem>>, %arg2: memref<286x1xf32, #tpu.memory_space<vmem>>, %arg3: memref<128x128xf32, #tpu.memory_space<vmem>>, %arg4: memref<3x3x128x128xbf16, #tpu.memory_space<vmem>>, %arg5: memref<1x128xf32, #tpu.memory_space<vmem>>, %arg6: memref<1x128xf32, #tpu.memory_space<vmem>>, %arg7: memref<1x128xf32, #tpu.memory_space<vmem>>, %arg8: memref<3x3x128x128xbf16, #tpu.memory_space<vmem>>, %arg9: memref<1x128xf32, #tpu.memory_space<vmem>>, %arg10: memref<1x128xf32, #tpu.memory_space<vmem>>, %arg11: memref<1x128xf32, #tpu.memory_space<vmem>>, %arg12: memref<1x286x128xf32, #tpu.memory_space<vmem>>, %arg13: memref<324x128xbf16, #tpu.memory_space<vmem>>) attributes {dimension_semantics = [#tpu.dimension_semantics<parallel>], iteration_bounds = array<i64: 2>, scalar_prefetch = 0 : i64, scratch_operands = 1 : i64, tpu.core_type = #tpu.core_type<tc>, window_params = [{transform_indices = @transform_0, window_bounds = array<i64: 1, 324, 128>}, {pipeline_mode = #tpu.pipeline_mode<synchronous>, transform_indices = @transform_1, window_bounds = array<i64: 286, 1>}, {pipeline_mode = #tpu.pipeline_mode<synchronous>, transform_indices = @transform_2, window_bounds = array<i64: 128, 128>}, {pipeline_mode = #tpu.pipeline_mode<synchronous>, transform_indices = @transform_3, window_bounds = array<i64: 3, 3, 128, 128>}, {pipeline_mode = #tpu.pipeline_mode<synchronous>, transform_indices = @transform_4, window_bounds = array<i64: 1, 128>}, {pipeline_mode = #tpu.pipeline_mode<synchronous>, transform_indices = @transform_5, window_bounds = array<i64: 1, 128>}, {pipeline_mode = #tpu.pipeline_mode<synchronous>, transform_indices = @transform_6, window_bounds = array<i64: 1, 128>}, {pipeline_mode = #tpu.pipeline_mode<synchronous>, transform_indices = @transform_7, window_bounds = array<i64: 3, 3, 128, 128>}, {pipeline_mode = #tpu.pipeline_mode<synchronous>, transform_indices = @transform_8, window_bounds = array<i64: 1, 128>}, {pipeline_mode = #tpu.pipeline_mode<synchronous>, transform_indices = @transform_9, window_bounds = array<i64: 1, 128>}, {pipeline_mode = #tpu.pipeline_mode<synchronous>, transform_indices = @transform_10, window_bounds = array<i64: 1, 128>}, {transform_indices = @transform_11, window_bounds = array<i64: 1, 286, 128>}]} {
    %c0 = arith.constant 0 : index
    %c0_0 = arith.constant 0 : index
    %0 = vector.load %arg2[%c0, %c0_0] : memref<286x1xf32, #tpu.memory_space<vmem>>, vector<286x1xf32>
    %c0_1 = arith.constant 0 : index
    %c0_2 = arith.constant 0 : index
    %1 = vector.load %arg3[%c0_1, %c0_2] : memref<128x128xf32, #tpu.memory_space<vmem>>, vector<128x128xf32>
    %cst = arith.constant 0.000000e+00 : f32
    %2 = vector.broadcast %cst : f32 to vector<286x128xf32>
    %c0_3 = arith.constant 0 : index
    %c0_4 = arith.constant 0 : index
    %c0_5 = arith.constant 0 : index
    %3 = vector.load %arg1[%c0_3, %c0_4, %c0_5] : memref<1x324x128xf32, #tpu.memory_space<vmem>>, vector<1x286x128xf32>
    %4 = vector.shape_cast %3 : vector<1x286x128xf32> to vector<286x128xf32>
    %5 = arith.truncf %4 : vector<286x128xf32> to vector<286x128xbf16>
    %c0_6 = arith.constant 0 : index
    %c0_7 = arith.constant 0 : index
    %c0_8 = arith.constant 0 : index
    %c0_9 = arith.constant 0 : index
    %6 = vector.load %arg4[%c0_6, %c0_7, %c0_8, %c0_9] : memref<3x3x128x128xbf16, #tpu.memory_space<vmem>>, vector<1x1x128x128xbf16>
    %7 = vector.shape_cast %6 : vector<1x1x128x128xbf16> to vector<128x128xbf16>
    %cst_10 = arith.constant dense<0.000000e+00> : vector<286x128xf32>
    %8 = tpu.matmul %5, %7, %cst_10 {dimension_numbers = #tpu.dot_dimension_numbers<[1], [0], [0], [1], [0, 0, 1, 1], [], []>} : vector<286x128xbf16>, vector<128x128xbf16>, vector<286x128xf32> -> vector<286x128xf32>
    %9 = arith.addf %2, %8 : vector<286x128xf32>
    %c0_11 = arith.constant 0 : index
    %c1 = arith.constant 1 : index
    %c0_12 = arith.constant 0 : index
    %10 = vector.load %arg1[%c0_11, %c1, %c0_12] : memref<1x324x128xf32, #tpu.memory_space<vmem>>, vector<1x286x128xf32>
    %11 = vector.shape_cast %10 : vector<1x286x128xf32> to vector<286x128xf32>
    %12 = arith.truncf %11 : vector<286x128xf32> to vector<286x128xbf16>
    %c0_13 = arith.constant 0 : index
    %c1_14 = arith.constant 1 : index
    %c0_15 = arith.constant 0 : index
    %c0_16 = arith.constant 0 : index
    %13 = vector.load %arg4[%c0_13, %c1_14, %c0_15, %c0_16] : memref<3x3x128x128xbf16, #tpu.memory_space<vmem>>, vector<1x1x128x128xbf16>
    %14 = vector.shape_cast %13 : vector<1x1x128x128xbf16> to vector<128x128xbf16>
    %cst_17 = arith.constant dense<0.000000e+00> : vector<286x128xf32>
    %15 = tpu.matmul %12, %14, %cst_17 {dimension_numbers = #tpu.dot_dimension_numbers<[1], [0], [0], [1], [0, 0, 1, 1], [], []>} : vector<286x128xbf16>, vector<128x128xbf16>, vector<286x128xf32> -> vector<286x128xf32>
    %16 = arith.addf %9, %15 : vector<286x128xf32>
    %c0_18 = arith.constant 0 : index
    %c2 = arith.constant 2 : index
    %c0_19 = arith.constant 0 : index
    %17 = vector.load %arg1[%c0_18, %c2, %c0_19] : memref<1x324x128xf32, #tpu.memory_space<vmem>>, vector<1x286x128xf32>
    %18 = vector.shape_cast %17 : vector<1x286x128xf32> to vector<286x128xf32>
    %19 = arith.truncf %18 : vector<286x128xf32> to vector<286x128xbf16>
    %c0_20 = arith.constant 0 : index
    %c2_21 = arith.constant 2 : index
    %c0_22 = arith.constant 0 : index
    %c0_23 = arith.constant 0 : index
    %20 = vector.load %arg4[%c0_20, %c2_21, %c0_22, %c0_23] : memref<3x3x128x128xbf16, #tpu.memory_space<vmem>>, vector<1x1x128x128xbf16>
    %21 = vector.shape_cast %20 : vector<1x1x128x128xbf16> to vector<128x128xbf16>
    %cst_24 = arith.constant dense<0.000000e+00> : vector<286x128xf32>
    %22 = tpu.matmul %19, %21, %cst_24 {dimension_numbers = #tpu.dot_dimension_numbers<[1], [0], [0], [1], [0, 0, 1, 1], [], []>} : vector<286x128xbf16>, vector<128x128xbf16>, vector<286x128xf32> -> vector<286x128xf32>
    %23 = arith.addf %16, %22 : vector<286x128xf32>
    %c0_25 = arith.constant 0 : index
    %c18 = arith.constant 18 : index
    %c0_26 = arith.constant 0 : index
    %24 = vector.load %arg1[%c0_25, %c18, %c0_26] : memref<1x324x128xf32, #tpu.memory_space<vmem>>, vector<1x286x128xf32>
    %25 = vector.shape_cast %24 : vector<1x286x128xf32> to vector<286x128xf32>
    %26 = arith.truncf %25 : vector<286x128xf32> to vector<286x128xbf16>
    %c1_27 = arith.constant 1 : index
    %c0_28 = arith.constant 0 : index
    %c0_29 = arith.constant 0 : index
    %c0_30 = arith.constant 0 : index
    %27 = vector.load %arg4[%c1_27, %c0_28, %c0_29, %c0_30] : memref<3x3x128x128xbf16, #tpu.memory_space<vmem>>, vector<1x1x128x128xbf16>
    %28 = vector.shape_cast %27 : vector<1x1x128x128xbf16> to vector<128x128xbf16>
    %cst_31 = arith.constant dense<0.000000e+00> : vector<286x128xf32>
    %29 = tpu.matmul %26, %28, %cst_31 {dimension_numbers = #tpu.dot_dimension_numbers<[1], [0], [0], [1], [0, 0, 1, 1], [], []>} : vector<286x128xbf16>, vector<128x128xbf16>, vector<286x128xf32> -> vector<286x128xf32>
    %30 = arith.addf %23, %29 : vector<286x128xf32>
    %c0_32 = arith.constant 0 : index
    %c19 = arith.constant 19 : index
    %c0_33 = arith.constant 0 : index
    %31 = vector.load %arg1[%c0_32, %c19, %c0_33] : memref<1x324x128xf32, #tpu.memory_space<vmem>>, vector<1x286x128xf32>
    %32 = vector.shape_cast %31 : vector<1x286x128xf32> to vector<286x128xf32>
    %33 = arith.truncf %32 : vector<286x128xf32> to vector<286x128xbf16>
    %c1_34 = arith.constant 1 : index
    %c1_35 = arith.constant 1 : index
    %c0_36 = arith.constant 0 : index
    %c0_37 = arith.constant 0 : index
    %34 = vector.load %arg4[%c1_34, %c1_35, %c0_36, %c0_37] : memref<3x3x128x128xbf16, #tpu.memory_space<vmem>>, vector<1x1x128x128xbf16>
    %35 = vector.shape_cast %34 : vector<1x1x128x128xbf16> to vector<128x128xbf16>
    %cst_38 = arith.constant dense<0.000000e+00> : vector<286x128xf32>
    %36 = tpu.matmul %33, %35, %cst_38 {dimension_numbers = #tpu.dot_dimension_numbers<[1], [0], [0], [1], [0, 0, 1, 1], [], []>} : vector<286x128xbf16>, vector<128x128xbf16>, vector<286x128xf32> -> vector<286x128xf32>
    %37 = arith.addf %30, %36 : vector<286x128xf32>
    %c0_39 = arith.constant 0 : index
    %c20 = arith.constant 20 : index
    %c0_40 = arith.constant 0 : index
    %38 = vector.load %arg1[%c0_39, %c20, %c0_40] : memref<1x324x128xf32, #tpu.memory_space<vmem>>, vector<1x286x128xf32>
    %39 = vector.shape_cast %38 : vector<1x286x128xf32> to vector<286x128xf32>
    %40 = arith.truncf %39 : vector<286x128xf32> to vector<286x128xbf16>
    %c1_41 = arith.constant 1 : index
    %c2_42 = arith.constant 2 : index
    %c0_43 = arith.constant 0 : index
    %c0_44 = arith.constant 0 : index
    %41 = vector.load %arg4[%c1_41, %c2_42, %c0_43, %c0_44] : memref<3x3x128x128xbf16, #tpu.memory_space<vmem>>, vector<1x1x128x128xbf16>
    %42 = vector.shape_cast %41 : vector<1x1x128x128xbf16> to vector<128x128xbf16>
    %cst_45 = arith.constant dense<0.000000e+00> : vector<286x128xf32>
    %43 = tpu.matmul %40, %42, %cst_45 {dimension_numbers = #tpu.dot_dimension_numbers<[1], [0], [0], [1], [0, 0, 1, 1], [], []>} : vector<286x128xbf16>, vector<128x128xbf16>, vector<286x128xf32> -> vector<286x128xf32>
    %44 = arith.addf %37, %43 : vector<286x128xf32>
    %c0_46 = arith.constant 0 : index
    %c36 = arith.constant 36 : index
    %c0_47 = arith.constant 0 : index
    %45 = vector.load %arg1[%c0_46, %c36, %c0_47] : memref<1x324x128xf32, #tpu.memory_space<vmem>>, vector<1x286x128xf32>
    %46 = vector.shape_cast %45 : vector<1x286x128xf32> to vector<286x128xf32>
    %47 = arith.truncf %46 : vector<286x128xf32> to vector<286x128xbf16>
    %c2_48 = arith.constant 2 : index
    %c0_49 = arith.constant 0 : index
    %c0_50 = arith.constant 0 : index
    %c0_51 = arith.constant 0 : index
    %48 = vector.load %arg4[%c2_48, %c0_49, %c0_50, %c0_51] : memref<3x3x128x128xbf16, #tpu.memory_space<vmem>>, vector<1x1x128x128xbf16>
    %49 = vector.shape_cast %48 : vector<1x1x128x128xbf16> to vector<128x128xbf16>
    %cst_52 = arith.constant dense<0.000000e+00> : vector<286x128xf32>
    %50 = tpu.matmul %47, %49, %cst_52 {dimension_numbers = #tpu.dot_dimension_numbers<[1], [0], [0], [1], [0, 0, 1, 1], [], []>} : vector<286x128xbf16>, vector<128x128xbf16>, vector<286x128xf32> -> vector<286x128xf32>
    %51 = arith.addf %44, %50 : vector<286x128xf32>
    %c0_53 = arith.constant 0 : index
    %c37 = arith.constant 37 : index
    %c0_54 = arith.constant 0 : index
    %52 = vector.load %arg1[%c0_53, %c37, %c0_54] : memref<1x324x128xf32, #tpu.memory_space<vmem>>, vector<1x286x128xf32>
    %53 = vector.shape_cast %52 : vector<1x286x128xf32> to vector<286x128xf32>
    %54 = arith.truncf %53 : vector<286x128xf32> to vector<286x128xbf16>
    %c2_55 = arith.constant 2 : index
    %c1_56 = arith.constant 1 : index
    %c0_57 = arith.constant 0 : index
    %c0_58 = arith.constant 0 : index
    %55 = vector.load %arg4[%c2_55, %c1_56, %c0_57, %c0_58] : memref<3x3x128x128xbf16, #tpu.memory_space<vmem>>, vector<1x1x128x128xbf16>
    %56 = vector.shape_cast %55 : vector<1x1x128x128xbf16> to vector<128x128xbf16>
    %cst_59 = arith.constant dense<0.000000e+00> : vector<286x128xf32>
    %57 = tpu.matmul %54, %56, %cst_59 {dimension_numbers = #tpu.dot_dimension_numbers<[1], [0], [0], [1], [0, 0, 1, 1], [], []>} : vector<286x128xbf16>, vector<128x128xbf16>, vector<286x128xf32> -> vector<286x128xf32>
    %58 = arith.addf %51, %57 : vector<286x128xf32>
    %c0_60 = arith.constant 0 : index
    %c38 = arith.constant 38 : index
    %c0_61 = arith.constant 0 : index
    %59 = vector.load %arg1[%c0_60, %c38, %c0_61] : memref<1x324x128xf32, #tpu.memory_space<vmem>>, vector<1x286x128xf32>
    %60 = vector.shape_cast %59 : vector<1x286x128xf32> to vector<286x128xf32>
    %61 = arith.truncf %60 : vector<286x128xf32> to vector<286x128xbf16>
    %c2_62 = arith.constant 2 : index
    %c2_63 = arith.constant 2 : index
    %c0_64 = arith.constant 0 : index
    %c0_65 = arith.constant 0 : index
    %62 = vector.load %arg4[%c2_62, %c2_63, %c0_64, %c0_65] : memref<3x3x128x128xbf16, #tpu.memory_space<vmem>>, vector<1x1x128x128xbf16>
    %63 = vector.shape_cast %62 : vector<1x1x128x128xbf16> to vector<128x128xbf16>
    %cst_66 = arith.constant dense<0.000000e+00> : vector<286x128xf32>
    %64 = tpu.matmul %61, %63, %cst_66 {dimension_numbers = #tpu.dot_dimension_numbers<[1], [0], [0], [1], [0, 0, 1, 1], [], []>} : vector<286x128xbf16>, vector<128x128xbf16>, vector<286x128xf32> -> vector<286x128xf32>
    %65 = arith.addf %58, %64 : vector<286x128xf32>
    %c0_67 = arith.constant 0 : index
    %c0_68 = arith.constant 0 : index
    %66 = vector.load %arg5[%c0_67, %c0_68] : memref<1x128xf32, #tpu.memory_space<vmem>>, vector<1x128xf32>
    %67 = vector.broadcast %66 : vector<1x128xf32> to vector<286x128xf32>
    %68 = arith.addf %65, %67 : vector<286x128xf32>
    %69 = vector.broadcast %0 : vector<286x1xf32> to vector<286x128xf32>
    %70 = arith.mulf %68, %69 : vector<286x128xf32>
    %cst_69 = arith.constant dense<0.000000e+00> : vector<128xf32>
    %71 = vector.multi_reduction <add>, %70, %cst_69 [0] : vector<286x128xf32> to vector<128xf32>
    %72 = vector.shape_cast %71 : vector<128xf32> to vector<1x128xf32>
    %73 = arith.mulf %70, %70 : vector<286x128xf32>
    %cst_70 = arith.constant dense<0.000000e+00> : vector<128xf32>
    %74 = vector.multi_reduction <add>, %73, %cst_70 [0] : vector<286x128xf32> to vector<128xf32>
    %75 = vector.shape_cast %74 : vector<128xf32> to vector<1x128xf32>
    %cst_71 = arith.constant dense<0.000000e+00> : vector<1x128xf32>
    %76 = tpu.matmul %72, %1, %cst_71 {dimension_numbers = #tpu.dot_dimension_numbers<[1], [0], [0], [1], [0, 0, 1, 1], [], []>, precision = #tpu.contract_precision<fp32>} : vector<1x128xf32>, vector<128x128xf32>, vector<1x128xf32> -> vector<1x128xf32>
    %cst_72 = arith.constant dense<0.000000e+00> : vector<1x128xf32>
    %77 = tpu.matmul %75, %1, %cst_72 {dimension_numbers = #tpu.dot_dimension_numbers<[1], [0], [0], [1], [0, 0, 1, 1], [], []>, precision = #tpu.contract_precision<fp32>} : vector<1x128xf32>, vector<128x128xf32>, vector<1x128xf32> -> vector<1x128xf32>
    %cst_73 = arith.constant 4.096000e+03 : f32
    %78 = vector.broadcast %cst_73 : f32 to vector<1x128xf32>
    %79 = arith.divf %76, %78 : vector<1x128xf32>
    %cst_74 = arith.constant 4.096000e+03 : f32
    %80 = vector.broadcast %cst_74 : f32 to vector<1x128xf32>
    %81 = arith.divf %77, %80 : vector<1x128xf32>
    %82 = arith.mulf %79, %79 : vector<1x128xf32>
    %83 = arith.subf %81, %82 : vector<1x128xf32>
    %cst_75 = arith.constant 9.99999974E-6 : f32
    %84 = vector.broadcast %cst_75 : f32 to vector<1x128xf32>
    %85 = arith.addf %83, %84 : vector<1x128xf32>
    %86 = math.rsqrt %85 : vector<1x128xf32>
    %87 = vector.broadcast %79 : vector<1x128xf32> to vector<286x128xf32>
    %88 = arith.subf %70, %87 : vector<286x128xf32>
    %c0_76 = arith.constant 0 : index
    %c0_77 = arith.constant 0 : index
    %89 = vector.load %arg6[%c0_76, %c0_77] : memref<1x128xf32, #tpu.memory_space<vmem>>, vector<1x128xf32>
    %90 = arith.mulf %86, %89 : vector<1x128xf32>
    %91 = vector.broadcast %90 : vector<1x128xf32> to vector<286x128xf32>
    %92 = arith.mulf %88, %91 : vector<286x128xf32>
    %c0_78 = arith.constant 0 : index
    %c0_79 = arith.constant 0 : index
    %93 = vector.load %arg7[%c0_78, %c0_79] : memref<1x128xf32, #tpu.memory_space<vmem>>, vector<1x128xf32>
    %94 = vector.broadcast %93 : vector<1x128xf32> to vector<286x128xf32>
    %95 = arith.addf %92, %94 : vector<286x128xf32>
    %cst_80 = arith.constant 0.000000e+00 : f32
    %96 = vector.broadcast %cst_80 : f32 to vector<286x128xf32>
    %97 = arith.maximumf %95, %96 : vector<286x128xf32>
    %98 = vector.broadcast %0 : vector<286x1xf32> to vector<286x128xf32>
    %99 = arith.mulf %97, %98 : vector<286x128xf32>
    %cst_81 = arith.constant 0.000000e+00 : bf16
    %100 = vector.broadcast %cst_81 : bf16 to vector<324x128xbf16>
    %c0_82 = arith.constant 0 : index
    %c0_83 = arith.constant 0 : index
    %101 = vector.load %arg13[%c0_82, %c0_83] : memref<324x128xbf16, #tpu.memory_space<vmem>>, vector<324x128xbf16>
    tpu.vector_store %arg13[%c0_82, %c0_83], %100 {strides = array<i32>} : memref<324x128xbf16, #tpu.memory_space<vmem>>, vector<324x128xbf16>,
    %102 = arith.truncf %99 : vector<286x128xf32> to vector<286x128xbf16>
    %c19_84 = arith.constant 19 : index
    %c0_85 = arith.constant 0 : index
    %103 = vector.load %arg13[%c19_84, %c0_85] : memref<324x128xbf16, #tpu.memory_space<vmem>>, vector<286x128xbf16>
    tpu.vector_store %arg13[%c19_84, %c0_85], %102 {strides = array<i32>} : memref<324x128xbf16, #tpu.memory_space<vmem>>, vector<286x128xbf16>,
    %cst_86 = arith.constant 0.000000e+00 : f32
    %104 = vector.broadcast %cst_86 : f32 to vector<286x128xf32>
    %c0_87 = arith.constant 0 : index
    %c0_88 = arith.constant 0 : index
    %105 = vector.load %arg13[%c0_87, %c0_88] : memref<324x128xbf16, #tpu.memory_space<vmem>>, vector<286x128xbf16>
    %c0_89 = arith.constant 0 : index
    %c0_90 = arith.constant 0 : index
    %c0_91 = arith.constant 0 : index
    %c0_92 = arith.constant 0 : index
    %106 = vector.load %arg8[%c0_89, %c0_90, %c0_91, %c0_92] : memref<3x3x128x128xbf16, #tpu.memory_space<vmem>>, vector<1x1x128x128xbf16>
    %107 = vector.shape_cast %106 : vector<1x1x128x128xbf16> to vector<128x128xbf16>
    %cst_93 = arith.constant dense<0.000000e+00> : vector<286x128xf32>
    %108 = tpu.matmul %105, %107, %cst_93 {dimension_numbers = #tpu.dot_dimension_numbers<[1], [0], [0], [1], [0, 0, 1, 1], [], []>} : vector<286x128xbf16>, vector<128x128xbf16>, vector<286x128xf32> -> vector<286x128xf32>
    %109 = arith.addf %104, %108 : vector<286x128xf32>
    %c1_94 = arith.constant 1 : index
    %c0_95 = arith.constant 0 : index
    %110 = vector.load %arg13[%c1_94, %c0_95] : memref<324x128xbf16, #tpu.memory_space<vmem>>, vector<286x128xbf16>
    %c0_96 = arith.constant 0 : index
    %c1_97 = arith.constant 1 : index
    %c0_98 = arith.constant 0 : index
    %c0_99 = arith.constant 0 : index
    %111 = vector.load %arg8[%c0_96, %c1_97, %c0_98, %c0_99] : memref<3x3x128x128xbf16, #tpu.memory_space<vmem>>, vector<1x1x128x128xbf16>
    %112 = vector.shape_cast %111 : vector<1x1x128x128xbf16> to vector<128x128xbf16>
    %cst_100 = arith.constant dense<0.000000e+00> : vector<286x128xf32>
    %113 = tpu.matmul %110, %112, %cst_100 {dimension_numbers = #tpu.dot_dimension_numbers<[1], [0], [0], [1], [0, 0, 1, 1], [], []>} : vector<286x128xbf16>, vector<128x128xbf16>, vector<286x128xf32> -> vector<286x128xf32>
    %114 = arith.addf %109, %113 : vector<286x128xf32>
    %c2_101 = arith.constant 2 : index
    %c0_102 = arith.constant 0 : index
    %115 = vector.load %arg13[%c2_101, %c0_102] : memref<324x128xbf16, #tpu.memory_space<vmem>>, vector<286x128xbf16>
    %c0_103 = arith.constant 0 : index
    %c2_104 = arith.constant 2 : index
    %c0_105 = arith.constant 0 : index
    %c0_106 = arith.constant 0 : index
    %116 = vector.load %arg8[%c0_103, %c2_104, %c0_105, %c0_106] : memref<3x3x128x128xbf16, #tpu.memory_space<vmem>>, vector<1x1x128x128xbf16>
    %117 = vector.shape_cast %116 : vector<1x1x128x128xbf16> to vector<128x128xbf16>
    %cst_107 = arith.constant dense<0.000000e+00> : vector<286x128xf32>
    %118 = tpu.matmul %115, %117, %cst_107 {dimension_numbers = #tpu.dot_dimension_numbers<[1], [0], [0], [1], [0, 0, 1, 1], [], []>} : vector<286x128xbf16>, vector<128x128xbf16>, vector<286x128xf32> -> vector<286x128xf32>
    %119 = arith.addf %114, %118 : vector<286x128xf32>
    %c18_108 = arith.constant 18 : index
    %c0_109 = arith.constant 0 : index
    %120 = vector.load %arg13[%c18_108, %c0_109] : memref<324x128xbf16, #tpu.memory_space<vmem>>, vector<286x128xbf16>
    %c1_110 = arith.constant 1 : index
    %c0_111 = arith.constant 0 : index
    %c0_112 = arith.constant 0 : index
    %c0_113 = arith.constant 0 : index
    %121 = vector.load %arg8[%c1_110, %c0_111, %c0_112, %c0_113] : memref<3x3x128x128xbf16, #tpu.memory_space<vmem>>, vector<1x1x128x128xbf16>
    %122 = vector.shape_cast %121 : vector<1x1x128x128xbf16> to vector<128x128xbf16>
    %cst_114 = arith.constant dense<0.000000e+00> : vector<286x128xf32>
    %123 = tpu.matmul %120, %122, %cst_114 {dimension_numbers = #tpu.dot_dimension_numbers<[1], [0], [0], [1], [0, 0, 1, 1], [], []>} : vector<286x128xbf16>, vector<128x128xbf16>, vector<286x128xf32> -> vector<286x128xf32>
    %124 = arith.addf %119, %123 : vector<286x128xf32>
    %c19_115 = arith.constant 19 : index
    %c0_116 = arith.constant 0 : index
    %125 = vector.load %arg13[%c19_115, %c0_116] : memref<324x128xbf16, #tpu.memory_space<vmem>>, vector<286x128xbf16>
    %c1_117 = arith.constant 1 : index
    %c1_118 = arith.constant 1 : index
    %c0_119 = arith.constant 0 : index
    %c0_120 = arith.constant 0 : index
    %126 = vector.load %arg8[%c1_117, %c1_118, %c0_119, %c0_120] : memref<3x3x128x128xbf16, #tpu.memory_space<vmem>>, vector<1x1x128x128xbf16>
    %127 = vector.shape_cast %126 : vector<1x1x128x128xbf16> to vector<128x128xbf16>
    %cst_121 = arith.constant dense<0.000000e+00> : vector<286x128xf32>
    %128 = tpu.matmul %125, %127, %cst_121 {dimension_numbers = #tpu.dot_dimension_numbers<[1], [0], [0], [1], [0, 0, 1, 1], [], []>} : vector<286x128xbf16>, vector<128x128xbf16>, vector<286x128xf32> -> vector<286x128xf32>
    %129 = arith.addf %124, %128 : vector<286x128xf32>
    %c20_122 = arith.constant 20 : index
    %c0_123 = arith.constant 0 : index
    %130 = vector.load %arg13[%c20_122, %c0_123] : memref<324x128xbf16, #tpu.memory_space<vmem>>, vector<286x128xbf16>
    %c1_124 = arith.constant 1 : index
    %c2_125 = arith.constant 2 : index
    %c0_126 = arith.constant 0 : index
    %c0_127 = arith.constant 0 : index
    %131 = vector.load %arg8[%c1_124, %c2_125, %c0_126, %c0_127] : memref<3x3x128x128xbf16, #tpu.memory_space<vmem>>, vector<1x1x128x128xbf16>
    %132 = vector.shape_cast %131 : vector<1x1x128x128xbf16> to vector<128x128xbf16>
    %cst_128 = arith.constant dense<0.000000e+00> : vector<286x128xf32>
    %133 = tpu.matmul %130, %132, %cst_128 {dimension_numbers = #tpu.dot_dimension_numbers<[1], [0], [0], [1], [0, 0, 1, 1], [], []>} : vector<286x128xbf16>, vector<128x128xbf16>, vector<286x128xf32> -> vector<286x128xf32>
    %134 = arith.addf %129, %133 : vector<286x128xf32>
    %c36_129 = arith.constant 36 : index
    %c0_130 = arith.constant 0 : index
    %135 = vector.load %arg13[%c36_129, %c0_130] : memref<324x128xbf16, #tpu.memory_space<vmem>>, vector<286x128xbf16>
    %c2_131 = arith.constant 2 : index
    %c0_132 = arith.constant 0 : index
    %c0_133 = arith.constant 0 : index
    %c0_134 = arith.constant 0 : index
    %136 = vector.load %arg8[%c2_131, %c0_132, %c0_133, %c0_134] : memref<3x3x128x128xbf16, #tpu.memory_space<vmem>>, vector<1x1x128x128xbf16>
    %137 = vector.shape_cast %136 : vector<1x1x128x128xbf16> to vector<128x128xbf16>
    %cst_135 = arith.constant dense<0.000000e+00> : vector<286x128xf32>
    %138 = tpu.matmul %135, %137, %cst_135 {dimension_numbers = #tpu.dot_dimension_numbers<[1], [0], [0], [1], [0, 0, 1, 1], [], []>} : vector<286x128xbf16>, vector<128x128xbf16>, vector<286x128xf32> -> vector<286x128xf32>
    %139 = arith.addf %134, %138 : vector<286x128xf32>
    %c37_136 = arith.constant 37 : index
    %c0_137 = arith.constant 0 : index
    %140 = vector.load %arg13[%c37_136, %c0_137] : memref<324x128xbf16, #tpu.memory_space<vmem>>, vector<286x128xbf16>
    %c2_138 = arith.constant 2 : index
    %c1_139 = arith.constant 1 : index
    %c0_140 = arith.constant 0 : index
    %c0_141 = arith.constant 0 : index
    %141 = vector.load %arg8[%c2_138, %c1_139, %c0_140, %c0_141] : memref<3x3x128x128xbf16, #tpu.memory_space<vmem>>, vector<1x1x128x128xbf16>
    %142 = vector.shape_cast %141 : vector<1x1x128x128xbf16> to vector<128x128xbf16>
    %cst_142 = arith.constant dense<0.000000e+00> : vector<286x128xf32>
    %143 = tpu.matmul %140, %142, %cst_142 {dimension_numbers = #tpu.dot_dimension_numbers<[1], [0], [0], [1], [0, 0, 1, 1], [], []>} : vector<286x128xbf16>, vector<128x128xbf16>, vector<286x128xf32> -> vector<286x128xf32>
    %144 = arith.addf %139, %143 : vector<286x128xf32>
    %c38_143 = arith.constant 38 : index
    %c0_144 = arith.constant 0 : index
    %145 = vector.load %arg13[%c38_143, %c0_144] : memref<324x128xbf16, #tpu.memory_space<vmem>>, vector<286x128xbf16>
    %c2_145 = arith.constant 2 : index
    %c2_146 = arith.constant 2 : index
    %c0_147 = arith.constant 0 : index
    %c0_148 = arith.constant 0 : index
    %146 = vector.load %arg8[%c2_145, %c2_146, %c0_147, %c0_148] : memref<3x3x128x128xbf16, #tpu.memory_space<vmem>>, vector<1x1x128x128xbf16>
    %147 = vector.shape_cast %146 : vector<1x1x128x128xbf16> to vector<128x128xbf16>
    %cst_149 = arith.constant dense<0.000000e+00> : vector<286x128xf32>
    %148 = tpu.matmul %145, %147, %cst_149 {dimension_numbers = #tpu.dot_dimension_numbers<[1], [0], [0], [1], [0, 0, 1, 1], [], []>} : vector<286x128xbf16>, vector<128x128xbf16>, vector<286x128xf32> -> vector<286x128xf32>
    %149 = arith.addf %144, %148 : vector<286x128xf32>
    %c0_150 = arith.constant 0 : index
    %c0_151 = arith.constant 0 : index
    %150 = vector.load %arg9[%c0_150, %c0_151] : memref<1x128xf32, #tpu.memory_space<vmem>>, vector<1x128xf32>
    %151 = vector.broadcast %150 : vector<1x128xf32> to vector<286x128xf32>
    %152 = arith.addf %149, %151 : vector<286x128xf32>
    %153 = vector.broadcast %0 : vector<286x1xf32> to vector<286x128xf32>
    %154 = arith.mulf %152, %153 : vector<286x128xf32>
    %cst_152 = arith.constant dense<0.000000e+00> : vector<128xf32>
    %155 = vector.multi_reduction <add>, %154, %cst_152 [0] : vector<286x128xf32> to vector<128xf32>
    %156 = vector.shape_cast %155 : vector<128xf32> to vector<1x128xf32>
    %157 = arith.mulf %154, %154 : vector<286x128xf32>
    %cst_153 = arith.constant dense<0.000000e+00> : vector<128xf32>
    %158 = vector.multi_reduction <add>, %157, %cst_153 [0] : vector<286x128xf32> to vector<128xf32>
    %159 = vector.shape_cast %158 : vector<128xf32> to vector<1x128xf32>
    %cst_154 = arith.constant dense<0.000000e+00> : vector<1x128xf32>
    %160 = tpu.matmul %156, %1, %cst_154 {dimension_numbers = #tpu.dot_dimension_numbers<[1], [0], [0], [1], [0, 0, 1, 1], [], []>, precision = #tpu.contract_precision<fp32>} : vector<1x128xf32>, vector<128x128xf32>, vector<1x128xf32> -> vector<1x128xf32>
    %cst_155 = arith.constant dense<0.000000e+00> : vector<1x128xf32>
    %161 = tpu.matmul %159, %1, %cst_155 {dimension_numbers = #tpu.dot_dimension_numbers<[1], [0], [0], [1], [0, 0, 1, 1], [], []>, precision = #tpu.contract_precision<fp32>} : vector<1x128xf32>, vector<128x128xf32>, vector<1x128xf32> -> vector<1x128xf32>
    %cst_156 = arith.constant 4.096000e+03 : f32
    %162 = vector.broadcast %cst_156 : f32 to vector<1x128xf32>
    %163 = arith.divf %160, %162 : vector<1x128xf32>
    %cst_157 = arith.constant 4.096000e+03 : f32
    %164 = vector.broadcast %cst_157 : f32 to vector<1x128xf32>
    %165 = arith.divf %161, %164 : vector<1x128xf32>
    %166 = arith.mulf %163, %163 : vector<1x128xf32>
    %167 = arith.subf %165, %166 : vector<1x128xf32>
    %cst_158 = arith.constant 9.99999974E-6 : f32
    %168 = vector.broadcast %cst_158 : f32 to vector<1x128xf32>
    %169 = arith.addf %167, %168 : vector<1x128xf32>
    %170 = math.rsqrt %169 : vector<1x128xf32>
    %171 = vector.broadcast %163 : vector<1x128xf32> to vector<286x128xf32>
    %172 = arith.subf %154, %171 : vector<286x128xf32>
    %c0_159 = arith.constant 0 : index
    %c0_160 = arith.constant 0 : index
    %173 = vector.load %arg10[%c0_159, %c0_160] : memref<1x128xf32, #tpu.memory_space<vmem>>, vector<1x128xf32>
    %174 = arith.mulf %170, %173 : vector<1x128xf32>
    %175 = vector.broadcast %174 : vector<1x128xf32> to vector<286x128xf32>
    %176 = arith.mulf %172, %175 : vector<286x128xf32>
    %c0_161 = arith.constant 0 : index
    %c0_162 = arith.constant 0 : index
    %177 = vector.load %arg11[%c0_161, %c0_162] : memref<1x128xf32, #tpu.memory_space<vmem>>, vector<1x128xf32>
    %178 = vector.broadcast %177 : vector<1x128xf32> to vector<286x128xf32>
    %179 = arith.addf %176, %178 : vector<286x128xf32>
    %cst_163 = arith.constant 0.000000e+00 : f32
    %180 = vector.broadcast %cst_163 : f32 to vector<286x128xf32>
    %181 = arith.maximumf %179, %180 : vector<286x128xf32>
    %182 = vector.broadcast %0 : vector<286x1xf32> to vector<286x128xf32>
    %183 = arith.mulf %181, %182 : vector<286x128xf32>
    %c0_164 = arith.constant 0 : index
    %c19_165 = arith.constant 19 : index
    %c0_166 = arith.constant 0 : index
    %184 = vector.load %arg1[%c0_164, %c19_165, %c0_166] : memref<1x324x128xf32, #tpu.memory_space<vmem>>, vector<1x286x128xf32>
    %185 = vector.shape_cast %184 : vector<1x286x128xf32> to vector<286x128xf32>
    %186 = arith.addf %185, %183 : vector<286x128xf32>
    %c0_167 = arith.constant 0 : index
    %c0_168 = arith.constant 0 : index
    %c0_169 = arith.constant 0 : index
    %187 = vector.load %arg12[%c0_167, %c0_168, %c0_169] : memref<1x286x128xf32, #tpu.memory_space<vmem>>, vector<1x286x128xf32>
    %188 = vector.shape_cast %187 : vector<1x286x128xf32> to vector<286x128xf32>
    %189 = vector.shape_cast %186 : vector<286x128xf32> to vector<1x286x128xf32>
    tpu.vector_store %arg12[%c0_167, %c0_168, %c0_169], %189 {strides = array<i32>} : memref<1x286x128xf32, #tpu.memory_space<vmem>>, vector<1x286x128xf32>,
    return
  }
  func.func @transform_0(%arg0: i32) -> (i32, i32, i32) {
    %c0_i32 = arith.constant 0 : i32
    %c0_i32_0 = arith.constant 0 : i32
    %c0_i32_1 = arith.constant 0 : i32
    return %arg0, %c0_i32, %c0_i32_0 : i32, i32, i32
  }
  func.func @transform_1(%arg0: i32) -> (i32, i32) {
    %c0_i32 = arith.constant 0 : i32
    %c0_i32_0 = arith.constant 0 : i32
    %c0_i32_1 = arith.constant 0 : i32
    return %c0_i32, %c0_i32_0 : i32, i32
  }
  func.func @transform_2(%arg0: i32) -> (i32, i32) {
    %c0_i32 = arith.constant 0 : i32
    %c0_i32_0 = arith.constant 0 : i32
    %c0_i32_1 = arith.constant 0 : i32
    return %c0_i32, %c0_i32_0 : i32, i32
  }
  func.func @transform_3(%arg0: i32) -> (i32, i32, i32, i32) {
    %c0_i32 = arith.constant 0 : i32
    %c0_i32_0 = arith.constant 0 : i32
    %c0_i32_1 = arith.constant 0 : i32
    %c0_i32_2 = arith.constant 0 : i32
    %c0_i32_3 = arith.constant 0 : i32
    return %c0_i32, %c0_i32_0, %c0_i32_1, %c0_i32_2 : i32, i32, i32, i32
  }
  func.func @transform_4(%arg0: i32) -> (i32, i32) {
    %c0_i32 = arith.constant 0 : i32
    %c0_i32_0 = arith.constant 0 : i32
    %c0_i32_1 = arith.constant 0 : i32
    return %c0_i32, %c0_i32_0 : i32, i32
  }
  func.func @transform_5(%arg0: i32) -> (i32, i32) {
    %c0_i32 = arith.constant 0 : i32
    %c0_i32_0 = arith.constant 0 : i32
    %c0_i32_1 = arith.constant 0 : i32
    return %c0_i32, %c0_i32_0 : i32, i32
  }
  func.func @transform_6(%arg0: i32) -> (i32, i32) {
    %c0_i32 = arith.constant 0 : i32
    %c0_i32_0 = arith.constant 0 : i32
    %c0_i32_1 = arith.constant 0 : i32
    return %c0_i32, %c0_i32_0 : i32, i32
  }
  func.func @transform_7(%arg0: i32) -> (i32, i32, i32, i32) {
    %c0_i32 = arith.constant 0 : i32
    %c0_i32_0 = arith.constant 0 : i32
    %c0_i32_1 = arith.constant 0 : i32
    %c0_i32_2 = arith.constant 0 : i32
    %c0_i32_3 = arith.constant 0 : i32
    return %c0_i32, %c0_i32_0, %c0_i32_1, %c0_i32_2 : i32, i32, i32, i32
  }
  func.func @transform_8(%arg0: i32) -> (i32, i32) {
    %c0_i32 = arith.constant 0 : i32
    %c0_i32_0 = arith.constant 0 : i32
    %c0_i32_1 = arith.constant 0 : i32
    return %c0_i32, %c0_i32_0 : i32, i32
  }
  func.func @transform_9(%arg0: i32) -> (i32, i32) {
    %c0_i32 = arith.constant 0 : i32
    %c0_i32_0 = arith.constant 0 : i32
    %c0_i32_1 = arith.constant 0 : i32
    return %c0_i32, %c0_i32_0 : i32, i32
  }
  func.func @transform_10(%arg0: i32) -> (i32, i32) {
    %c0_i32 = arith.constant 0 : i32
    %c0_i32_0 = arith.constant 0 : i32
    %c0_i32_1 = arith.constant 0 : i32
    return %c0_i32, %c0_i32_0 : i32, i32
  }
  func.func @transform_11(%arg0: i32) -> (i32, i32, i32) {
    %c0_i32 = arith.constant 0 : i32
    %c0_i32_0 = arith.constant 0 : i32
    %c0_i32_1 = arith.constant 0 : i32
    return %arg0, %c0_i32, %c0_i32_0 : i32, i32, i32
  }
}

</mosaic_0001>

<llo_original>
// kernel: atten_block_pallas.1
$region0: #{atten_block_pallas.1}
  #allocation0 [shape = 'u32[]', space=smem, size = 0x4, offset = 0x4, fixed_abs, tag = 'smem constant byte address 0x4 - core index']
  #allocation1 [shape = 'u32[72,128]{1,0:T(1,128)}', space=vmem, size = 0x9000, scoped, tag = 'internal scratch']
  #allocation2 [shape = 'bf16[324,128]{1,0:T(8,128)(2,1)}', space=vmem, size = 0x14800, scoped, tag = 'scratch operand']
  %s0 = inlined_call_operand.vmem [shape: f32[2,324,128], index: 0, kind: input, shape index: {}]
  %s1 = inlined_call_operand.vmem [shape: f32[286,1], index: 1, kind: input, shape index: {}]
  %s2 = inlined_call_operand.vmem [shape: f32[128,128], index: 2, kind: input, shape index: {}]
  %s3 = inlined_call_operand.vmem [shape: bf16[3,3,128,128], index: 3, kind: input, shape index: {}]
  %s4 = inlined_call_operand.vmem [shape: f32[1,128], index: 4, kind: input, shape index: {}]
  %s5 = inlined_call_operand.vmem [shape: f32[1,128], index: 5, kind: input, shape index: {}]
  %s6 = inlined_call_operand.vmem [shape: f32[1,128], index: 6, kind: input, shape index: {}]
  %s7 = inlined_call_operand.vmem [shape: bf16[3,3,128,128], index: 7, kind: input, shape index: {}]
  %s8 = inlined_call_operand.vmem [shape: f32[1,128], index: 8, kind: input, shape index: {}]
  %s9 = inlined_call_operand.vmem [shape: f32[1,128], index: 9, kind: input, shape index: {}]
  %s10 = inlined_call_operand.vmem [shape: f32[1,128], index: 10, kind: input, shape index: {}]
  %s11 = inlined_call_operand.vmem [shape: f32[2,286,128], index: 11, kind: output, shape index: {}]
  %s12 = sld [smem:[#allocation0]]
  $region77: #{atten_block_pallas.1} parent=0
    _
  %s14 = ssub.s32 1, %s12
  %s15 = scalar_select 0, %s14, %s12
  loop: start=0, step=1, limit=4
  $region2: #{atten_block_pallas.1} parent=0 // loop_pre_header
    _
  $region3: #{atten_block_pallas.1} parent=0 // loop_header
    %s17 = sphi 0, %s21
    %p18 = scmp.ge.s32.totalorder %s17, 4
    %s27 = sphi 0, %s29
    %s30 = sphi 0, %s27
    %s31 = sphi 0, %s30
    %s47 = sphi 0, %s31
    %s51 = sphi 0, %s51
    %s53 = sphi 0, %s51
    %s54 = sphi 0, %s53
    %s68 = sphi 0, %s54
    %s72 = sphi 0, %s72
    %s74 = sphi 0, %s72
    %s75 = sphi 0, %s74
    %s89 = sphi 0, %s75
    %s93 = sphi 0, %s93
    %s95 = sphi 0, %s93
    %s96 = sphi 0, %s95
    %s110 = sphi 0, %s96
    %s114 = sphi 0, %s114
    %s116 = sphi 0, %s114
    %s117 = sphi 0, %s116
    %s131 = sphi 0, %s117
    %s135 = sphi 0, %s135
    %s137 = sphi 0, %s135
    %s138 = sphi 0, %s137
    %s152 = sphi 0, %s138
    %s156 = sphi 0, %s156
    %s158 = sphi 0, %s156
    %s159 = sphi 0, %s158
    %s173 = sphi 0, %s159
    %s177 = sphi 0, %s177
    %s179 = sphi 0, %s177
    %s180 = sphi 0, %s179
    %s194 = sphi 0, %s180
    %s198 = sphi 0, %s198
    %s200 = sphi 0, %s198
    %s201 = sphi 0, %s200
    %s215 = sphi 0, %s201
    %s219 = sphi 0, %s219
    %s221 = sphi 0, %s219
    %s222 = sphi 0, %s221
    %s236 = sphi 0, %s222
    %s240 = sphi 0, %s240
    %s242 = sphi 0, %s240
    %s243 = sphi 0, %s242
    %s257 = sphi 0, %s243
    %s263 = sphi 0, %s265
    %s266 = sphi 0, %s263
    %s267 = sphi 0, %s266
    %s283 = sphi 0, %s267
  $region4: #{atten_block_pallas.1} parent=0 // loop_header_branch
    %20 = sbr.rel (%p18) target = $region8
  $region5: #{atten_block_pallas.1} parent=0 // loop_body
    %s22 = ssub.s32 %s17, 1
    %s23 = ssub.s32 %s17, 2
    %s24 = sadd.s32 %s17, 1
    %s25 = ssub.s32 %s17, %s24
    %p26 = scmp.eq.s32.totalorder %s25, 0
    %s28 = sadd.s32 %s27, 1
    %s29 = scalar_select %p26, %s27, %s28
    %p32 = pneg %p26
    %p33 = scmp.eq.s32.totalorder %s17, 1
    %p34 = por %p32, %p33
    %p35 = scmp.ne.s32.totalorder %s27, %s30
    %p36 = scmp.eq.s32.totalorder %s17, 0
    %p37 = por %p35, %p36
    %p38 = scmp.ne.s32.totalorder %s27, %s30
    %p39 = scmp.eq.s32.totalorder %s22, 1
    %p40 = por %p38, %p39
    %p41 = scmp.ne.s32.totalorder %s30, %s31
    %p42 = scmp.eq.s32.totalorder %s22, 0
    %p43 = por %p41, %p42
    %p44 = scmp.ne.s32.totalorder %s30, %s31
    %p45 = scmp.eq.s32.totalorder %s23, 1
    %p46 = por %p44, %p45
    %p48 = scmp.ne.s32.totalorder %s31, %s47
    %p49 = scmp.eq.s32.totalorder %s23, 0
    %p50 = por %p48, %p49
    %s52 = sadd.s32 %s51, 1
    %p55 = scmp.eq.s32.totalorder %s17, 1
    %p56 = scmp.ne.s32.totalorder %s51, %s53
    %p57 = scmp.eq.s32.totalorder %s17, 0
    %p58 = por %p56, %p57
    %p59 = scmp.ne.s32.totalorder %s51, %s53
    %p60 = scmp.eq.s32.totalorder %s22, 1
    %p61 = por %p59, %p60
    %p62 = scmp.ne.s32.totalorder %s53, %s54
    %p63 = scmp.eq.s32.totalorder %s22, 0
    %p64 = por %p62, %p63
    %p65 = scmp.ne.s32.totalorder %s53, %s54
    %p66 = scmp.eq.s32.totalorder %s23, 1
    %p67 = por %p65, %p66
    %p69 = scmp.ne.s32.totalorder %s54, %s68
    %p70 = scmp.eq.s32.totalorder %s23, 0
    %p71 = por %p69, %p70
    %s73 = sadd.s32 %s72, 1
    %p76 = scmp.eq.s32.totalorder %s17, 1
    %p77 = scmp.ne.s32.totalorder %s72, %s74
    %p78 = scmp.eq.s32.totalorder %s17, 0
    %p79 = por %p77, %p78
    %p80 = scmp.ne.s32.totalorder %s72, %s74
    %p81 = scmp.eq.s32.totalorder %s22, 1
    %p82 = por %p80, %p81
    %p83 = scmp.ne.s32.totalorder %s74, %s75
    %p84 = scmp.eq.s32.totalorder %s22, 0
    %p85 = por %p83, %p84
    %p86 = scmp.ne.s32.totalorder %s74, %s75
    %p87 = scmp.eq.s32.totalorder %s23, 1
    %p88 = por %p86, %p87
    %p90 = scmp.ne.s32.totalorder %s75, %s89
    %p91 = scmp.eq.s32.totalorder %s23, 0
    %p92 = por %p90, %p91
    %s94 = sadd.s32 %s93, 1
    %p97 = scmp.eq.s32.totalorder %s17, 1
    %p98 = scmp.ne.s32.totalorder %s93, %s95
    %p99 = scmp.eq.s32.totalorder %s17, 0
    %p100 = por %p98, %p99
    %p101 = scmp.ne.s32.totalorder %s93, %s95
    %p102 = scmp.eq.s32.totalorder %s22, 1
    %p103 = por %p101, %p102
    %p104 = scmp.ne.s32.totalorder %s95, %s96
    %p105 = scmp.eq.s32.totalorder %s22, 0
    %p106 = por %p104, %p105
    %p107 = scmp.ne.s32.totalorder %s95, %s96
    %p108 = scmp.eq.s32.totalorder %s23, 1
    %p109 = por %p107, %p108
    %p111 = scmp.ne.s32.totalorder %s96, %s110
    %p112 = scmp.eq.s32.totalorder %s23, 0
    %p113 = por %p111, %p112
    %s115 = sadd.s32 %s114, 1
    %p118 = scmp.eq.s32.totalorder %s17, 1
    %p119 = scmp.ne.s32.totalorder %s114, %s116
    %p120 = scmp.eq.s32.totalorder %s17, 0
    %p121 = por %p119, %p120
    %p122 = scmp.ne.s32.totalorder %s114, %s116
    %p123 = scmp.eq.s32.totalorder %s22, 1
    %p124 = por %p122, %p123
    %p125 = scmp.ne.s32.totalorder %s116, %s117
    %p126 = scmp.eq.s32.totalorder %s22, 0
    %p127 = por %p125, %p126
    %p128 = scmp.ne.s32.totalorder %s116, %s117
    %p129 = scmp.eq.s32.totalorder %s23, 1
    %p130 = por %p128, %p129
    %p132 = scmp.ne.s32.totalorder %s117, %s131
    %p133 = scmp.eq.s32.totalorder %s23, 0
    %p134 = por %p132, %p133
    %s136 = sadd.s32 %s135, 1
    %p139 = scmp.eq.s32.totalorder %s17, 1
    %p140 = scmp.ne.s32.totalorder %s135, %s137
    %p141 = scmp.eq.s32.totalorder %s17, 0
    %p142 = por %p140, %p141
    %p143 = scmp.ne.s32.totalorder %s135, %s137
    %p144 = scmp.eq.s32.totalorder %s22, 1
    %p145 = por %p143, %p144
    %p146 = scmp.ne.s32.totalorder %s137, %s138
    %p147 = scmp.eq.s32.totalorder %s22, 0
    %p148 = por %p146, %p147
    %p149 = scmp.ne.s32.totalorder %s137, %s138
    %p150 = scmp.eq.s32.totalorder %s23, 1
    %p151 = por %p149, %p150
    %p153 = scmp.ne.s32.totalorder %s138, %s152
    %p154 = scmp.eq.s32.totalorder %s23, 0
    %p155 = por %p153, %p154
    %s157 = sadd.s32 %s156, 1
    %p160 = scmp.eq.s32.totalorder %s17, 1
    %p161 = scmp.ne.s32.totalorder %s156, %s158
    %p162 = scmp.eq.s32.totalorder %s17, 0
    %p163 = por %p161, %p162
    %p164 = scmp.ne.s32.totalorder %s156, %s158
    %p165 = scmp.eq.s32.totalorder %s22, 1
    %p166 = por %p164, %p165
    %p167 = scmp.ne.s32.totalorder %s158, %s159
    %p168 = scmp.eq.s32.totalorder %s22, 0
    %p169 = por %p167, %p168
    %p170 = scmp.ne.s32.totalorder %s158, %s159
    %p171 = scmp.eq.s32.totalorder %s23, 1
    %p172 = por %p170, %p171
    %p174 = scmp.ne.s32.totalorder %s159, %s173
    %p175 = scmp.eq.s32.totalorder %s23, 0
    %p176 = por %p174, %p175
    %s178 = sadd.s32 %s177, 1
    %p181 = scmp.eq.s32.totalorder %s17, 1
    %p182 = scmp.ne.s32.totalorder %s177, %s179
    %p183 = scmp.eq.s32.totalorder %s17, 0
    %p184 = por %p182, %p183
    %p185 = scmp.ne.s32.totalorder %s177, %s179
    %p186 = scmp.eq.s32.totalorder %s22, 1
    %p187 = por %p185, %p186
    %p188 = scmp.ne.s32.totalorder %s179, %s180
    %p189 = scmp.eq.s32.totalorder %s22, 0
    %p190 = por %p188, %p189
    %p191 = scmp.ne.s32.totalorder %s179, %s180
    %p192 = scmp.eq.s32.totalorder %s23, 1
    %p193 = por %p191, %p192
    %p195 = scmp.ne.s32.totalorder %s180, %s194
    %p196 = scmp.eq.s32.totalorder %s23, 0
    %p197 = por %p195, %p196
    %s199 = sadd.s32 %s198, 1
    %p202 = scmp.eq.s32.totalorder %s17, 1
    %p203 = scmp.ne.s32.totalorder %s198, %s200
    %p204 = scmp.eq.s32.totalorder %s17, 0
    %p205 = por %p203, %p204
    %p206 = scmp.ne.s32.totalorder %s198, %s200
    %p207 = scmp.eq.s32.totalorder %s22, 1
    %p208 = por %p206, %p207
    %p209 = scmp.ne.s32.totalorder %s200, %s201
    %p210 = scmp.eq.s32.totalorder %s22, 0
    %p211 = por %p209, %p210
    %p212 = scmp.ne.s32.totalorder %s200, %s201
    %p213 = scmp.eq.s32.totalorder %s23, 1
    %p214 = por %p212, %p213
    %p216 = scmp.ne.s32.totalorder %s201, %s215
    %p217 = scmp.eq.s32.totalorder %s23, 0
    %p218 = por %p216, %p217
    %s220 = sadd.s32 %s219, 1
    %p223 = scmp.eq.s32.totalorder %s17, 1
    %p224 = scmp.ne.s32.totalorder %s219, %s221
    %p225 = scmp.eq.s32.totalorder %s17, 0
    %p226 = por %p224, %p225
    %p227 = scmp.ne.s32.totalorder %s219, %s221
    %p228 = scmp.eq.s32.totalorder %s22, 1
    %p229 = por %p227, %p228
    %p230 = scmp.ne.s32.totalorder %s221, %s222
    %p231 = scmp.eq.s32.totalorder %s22, 0
    %p232 = por %p230, %p231
    %p233 = scmp.ne.s32.totalorder %s221, %s222
    %p234 = scmp.eq.s32.totalorder %s23, 1
    %p235 = por %p233, %p234
    %p237 = scmp.ne.s32.totalorder %s222, %s236
    %p238 = scmp.eq.s32.totalorder %s23, 0
    %p239 = por %p237, %p238
    %s241 = sadd.s32 %s240, 1
    %p244 = scmp.eq.s32.totalorder %s17, 1
    %p245 = scmp.ne.s32.totalorder %s240, %s242
    %p246 = scmp.eq.s32.totalorder %s17, 0
    %p247 = por %p245, %p246
    %p248 = scmp.ne.s32.totalorder %s240, %s242
    %p249 = scmp.eq.s32.totalorder %s22, 1
    %p250 = por %p248, %p249
    %p251 = scmp.ne.s32.totalorder %s242, %s243
    %p252 = scmp.eq.s32.totalorder %s22, 0
    %p253 = por %p251, %p252
    %p254 = scmp.ne.s32.totalorder %s242, %s243
    %p255 = scmp.eq.s32.totalorder %s23, 1
    %p256 = por %p254, %p255
    %p258 = scmp.ne.s32.totalorder %s243, %s257
    %p259 = scmp.eq.s32.totalorder %s23, 0
    %p260 = por %p258, %p259
    %s261 = ssub.s32 %s17, %s24
    %p262 = scmp.eq.s32.totalorder %s261, 0
    %s264 = sadd.s32 %s263, 1
    %s265 = scalar_select %p262, %s263, %s264
    %p268 = pneg %p262
    %p269 = scmp.eq.s32.totalorder %s17, 1
    %p270 = por %p268, %p269
    %p271 = scmp.ne.s32.totalorder %s263, %s266
    %p272 = scmp.eq.s32.totalorder %s17, 0
    %p273 = por %p271, %p272
    %p274 = scmp.ne.s32.totalorder %s263, %s266
    %p275 = scmp.eq.s32.totalorder %s22, 1
    %p276 = por %p274, %p275
    %p277 = scmp.ne.s32.totalorder %s266, %s267
    %p278 = scmp.eq.s32.totalorder %s22, 0
    %p279 = por %p277, %p278
    %p280 = scmp.ne.s32.totalorder %s266, %s267
    %p281 = scmp.eq.s32.totalorder %s23, 1
    %p282 = por %p280, %p281
    %p284 = scmp.ne.s32.totalorder %s267, %s283
    %p285 = scmp.eq.s32.totalorder %s23, 0
    %p286 = por %p284, %p285
    %p287 = scmp.le.s32.totalorder 1, %s17
    %p288 = scmp.lt.s32.totalorder %s17, 3
    %p289 = pnand %p287, %p288
    %p290 = pneg %p289
    // Predicated region
    $region9: #{atten_block_pallas.1} parent=5 // pred_check
      _
    $region10: #{atten_block_pallas.1} parent=5 // pred_check_branch
      %292 = sbr.rel (%p289) target = $region12
    $region11: #{atten_block_pallas.1} parent=5 // pred_region
      %s293 = ssub.s32 %s17, 1
      // Predicated region
      $region13: #{atten_block_pallas.1} parent=11 // pred_check
        %p294 = pneg %p64
      $region14: #{atten_block_pallas.1} parent=11 // pred_check_branch
        %296 = sbr.rel (%p294) target = $region16
      $region15: #{atten_block_pallas.1} parent=11 // pred_region
        _
      $region16: #{atten_block_pallas.1} parent=11 // pred_fallthru
        _
      // Predicated region
      $region17: #{atten_block_pallas.1} parent=11 // pred_check
        %p297 = pneg %p85
      $region18: #{atten_block_pallas.1} parent=11 // pred_check_branch
        %299 = sbr.rel (%p297) target = $region20
      $region19: #{atten_block_pallas.1} parent=11 // pred_region
        _
      $region20: #{atten_block_pallas.1} parent=11 // pred_fallthru
        _
      // Predicated region
      $region21: #{atten_block_pallas.1} parent=11 // pred_check
        %p300 = pneg %p106
      $region22: #{atten_block_pallas.1} parent=11 // pred_check_branch
        %302 = sbr.rel (%p300) target = $region24
      $region23: #{atten_block_pallas.1} parent=11 // pred_region
        _
      $region24: #{atten_block_pallas.1} parent=11 // pred_fallthru
        _
      // Predicated region
      $region25: #{atten_block_pallas.1} parent=11 // pred_check
        %p303 = pneg %p127
      $region26: #{atten_block_pallas.1} parent=11 // pred_check_branch
        %305 = sbr.rel (%p303) target = $region28
      $region27: #{atten_block_pallas.1} parent=11 // pred_region
        _
      $region28: #{atten_block_pallas.1} parent=11 // pred_fallthru
        _
      // Predicated region
      $region29: #{atten_block_pallas.1} parent=11 // pred_check
        %p306 = pneg %p148
      $region30: #{atten_block_pallas.1} parent=11 // pred_check_branch
        %308 = sbr.rel (%p306) target = $region32
      $region31: #{atten_block_pallas.1} parent=11 // pred_region
        _
      $region32: #{atten_block_pallas.1} parent=11 // pred_fallthru
        _
      // Predicated region
      $region33: #{atten_block_pallas.1} parent=11 // pred_check
        %p309 = pneg %p169
      $region34: #{atten_block_pallas.1} parent=11 // pred_check_branch
        %311 = sbr.rel (%p309) target = $region36
      $region35: #{atten_block_pallas.1} parent=11 // pred_region
        _
      $region36: #{atten_block_pallas.1} parent=11 // pred_fallthru
        _
      // Predicated region
      $region37: #{atten_block_pallas.1} parent=11 // pred_check
        %p312 = pneg %p190
      $region38: #{atten_block_pallas.1} parent=11 // pred_check_branch
        %314 = sbr.rel (%p312) target = $region40
      $region39: #{atten_block_pallas.1} parent=11 // pred_region
        _
      $region40: #{atten_block_pallas.1} parent=11 // pred_fallthru
        _
      // Predicated region
      $region41: #{atten_block_pallas.1} parent=11 // pred_check
        %p315 = pneg %p211
      $region42: #{atten_block_pallas.1} parent=11 // pred_check_branch
        %317 = sbr.rel (%p315) target = $region44
      $region43: #{atten_block_pallas.1} parent=11 // pred_region
        _
      $region44: #{atten_block_pallas.1} parent=11 // pred_fallthru
        _
      // Predicated region
      $region45: #{atten_block_pallas.1} parent=11 // pred_check
        %p318 = pneg %p232
      $region46: #{atten_block_pallas.1} parent=11 // pred_check_branch
        %320 = sbr.rel (%p318) target = $region48
      $region47: #{atten_block_pallas.1} parent=11 // pred_region
        _
      $region48: #{atten_block_pallas.1} parent=11 // pred_fallthru
        _
      // Predicated region
      $region49: #{atten_block_pallas.1} parent=11 // pred_check
        %p321 = pneg %p253
      $region50: #{atten_block_pallas.1} parent=11 // pred_check_branch
        %323 = sbr.rel (%p321) target = $region52
      $region51: #{atten_block_pallas.1} parent=11 // pred_region
        _
      $region52: #{atten_block_pallas.1} parent=11 // pred_fallthru
        _
    $region12: #{atten_block_pallas.1} parent=5 // pred_fallthru
      _
    %p324 = scmp.lt.s32.totalorder %s17, 2
    // Predicated region
    $region53: #{atten_block_pallas.1} parent=5 // pred_check
      %p325 = pneg %p324
    $region54: #{atten_block_pallas.1} parent=5 // pred_check_branch
      %327 = sbr.rel (%p325) target = $region56
    $region55: #{atten_block_pallas.1} parent=5 // pred_region
      // Predicated region
      $region57: #{atten_block_pallas.1} parent=55 // pred_check
        %p328 = pneg %p37
      $region58: #{atten_block_pallas.1} parent=55 // pred_check_branch
        %330 = sbr.rel (%p328) target = $region60
      $region59: #{atten_block_pallas.1} parent=55 // pred_region
        %p331 = scmp.lt.s32.totalorder %s17, 1
        %s332 = scalar_select %p331, %s17, 1
        %s333 = smul.addr %s332, 41
        %s334 = smul.addr %s333, 8
        %s335 = scalar_lea.vmem %s0, %s334
      $region60: #{atten_block_pallas.1} parent=55 // pred_fallthru
        _
    $region56: #{atten_block_pallas.1} parent=5 // pred_fallthru
      _
    %p336 = scmp.le.s32.totalorder 1, %s17
    %p337 = scmp.lt.s32.totalorder %s17, 3
    %p338 = pnand %p336, %p337
    %p339 = pneg %p338
    // Predicated region
    $region61: #{atten_block_pallas.1} parent=5 // pred_check
      _
    $region62: #{atten_block_pallas.1} parent=5 // pred_check_branch
      %341 = sbr.rel (%p338) target = $region64
    $region63: #{atten_block_pallas.1} parent=5 // pred_region
      %s342 = ssub.s32 %s17, 1
      %p343 = scmp.lt.s32.totalorder %s22, 1
      %s344 = scalar_select %p343, %s22, 1
      %s345 = smul.addr %s344, 41
      %s346 = smul.addr %s345, 8
      %s347 = scalar_lea.vmem %s0, %s346
      %p348 = pneg %p43
      %p349 = pneg %p40
      %p350 = pneg %p64
      %p351 = pneg %p61
      %p352 = pneg %p85
      %p353 = pneg %p82
      %p354 = pneg %p106
      %p355 = pneg %p103
      %p356 = pneg %p127
      %p357 = pneg %p124
      %p358 = pneg %p148
      %p359 = pneg %p145
      %p360 = pneg %p169
      %p361 = pneg %p166
      %p362 = pneg %p190
      %p363 = pneg %p187
      %p364 = pneg %p211
      %p365 = pneg %p208
      %p366 = pneg %p232
      %p367 = pneg %p229
      %p368 = pneg %p253
      %p369 = pneg %p250
      %p370 = pneg %p279
      %p371 = pneg %p276
      %p372 = scmp.lt.s32.totalorder %s22, 1
      %s373 = scalar_select %p372, %s22, 1
      %s374 = smul.addr %s373, 36
      %s375 = smul.addr %s374, 8
      %s376 = scalar_lea.vmem %s11, %s375
      %p377 = scmp.lt.s32.totalorder %s22, 1
      %s378 = scalar_select %p377, %s22, 1
      %s379 = smul.addr %s378, 41
      %s380 = smul.addr %s379, 8
      %s381 = scalar_lea.vmem %s0, %s380
      %p382 = scmp.lt.s32.totalorder %s22, 1
      %s383 = scalar_select %p382, %s22, 1
      %s384 = smul.addr %s383, 36
      %s385 = smul.addr %s384, 8
      %s386 = scalar_lea.vmem %s11, %s385
      %v388 = vld [vmem:[%s1] sm:$0xff]
      %v389 = vld [vmem:[%s1 + $0x8] sm:$0xff]
      %v390 = vld [vmem:[%s1 + $0x10] sm:$0xff]
      %v391 = vld [vmem:[%s1 + $0x18] sm:$0xff]
      %v392 = vld [vmem:[%s1 + $0x20] sm:$0xff]
      %v393 = vld [vmem:[%s1 + $0x28] sm:$0xff]
      %v394 = vld [vmem:[%s1 + $0x30] sm:$0xff]
      %v395 = vld [vmem:[%s1 + $0x38] sm:$0xff]
      %v396 = vld [vmem:[%s1 + $0x40] sm:$0xff]
      %v397 = vld [vmem:[%s1 + $0x48] sm:$0xff]
      %v398 = vld [vmem:[%s1 + $0x50] sm:$0xff]
      %v399 = vld [vmem:[%s1 + $0x58] sm:$0xff]
      %v400 = vld [vmem:[%s1 + $0x60] sm:$0xff]
      %v401 = vld [vmem:[%s1 + $0x68] sm:$0xff]
      %v402 = vld [vmem:[%s1 + $0x70] sm:$0xff]
      %v403 = vld [vmem:[%s1 + $0x78] sm:$0xff]
      %v404 = vld [vmem:[%s1 + $0x80] sm:$0xff]
      %v405 = vld [vmem:[%s1 + $0x88] sm:$0xff]
      %v406 = vld [vmem:[%s1 + $0x90] sm:$0xff]
      %v407 = vld [vmem:[%s1 + $0x98] sm:$0xff]
      %v408 = vld [vmem:[%s1 + $0xa0] sm:$0xff]
      %v409 = vld [vmem:[%s1 + $0xa8] sm:$0xff]
      %v410 = vld [vmem:[%s1 + $0xb0] sm:$0xff]
      %v411 = vld [vmem:[%s1 + $0xb8] sm:$0xff]
      %v412 = vld [vmem:[%s1 + $0xc0] sm:$0xff]
      %v413 = vld [vmem:[%s1 + $0xc8] sm:$0xff]
      %v414 = vld [vmem:[%s1 + $0xd0] sm:$0xff]
      %v415 = vld [vmem:[%s1 + $0xd8] sm:$0xff]
      %v416 = vld [vmem:[%s1 + $0xe0] sm:$0xff]
      %v417 = vld [vmem:[%s1 + $0xe8] sm:$0xff]
      %v418 = vld [vmem:[%s1 + $0xf0] sm:$0xff]
      %v419 = vld [vmem:[%s1 + $0xf8] sm:$0xff]
      %v420 = vld [vmem:[%s1 + $0x100] sm:$0xff]
      %v421 = vld [vmem:[%s1 + $0x108] sm:$0xff]
      %v422 = vld [vmem:[%s1 + $0x110] sm:$0xff]
      %v423 = vld [vmem:[%s1 + $0x118] sm:$0x3f]
      %v424 = vld [vmem:[%s2] sm:$0xff]
      %v425 = vld [vmem:[%s2 + $0x8] sm:$0xff]
      %v426 = vld [vmem:[%s2 + $0x10] sm:$0xff]
      %v427 = vld [vmem:[%s2 + $0x18] sm:$0xff]
      %v428 = vld [vmem:[%s2 + $0x20] sm:$0xff]
      %v429 = vld [vmem:[%s2 + $0x28] sm:$0xff]
      %v430 = vld [vmem:[%s2 + $0x30] sm:$0xff]
      %v431 = vld [vmem:[%s2 + $0x38] sm:$0xff]
      %v432 = vld [vmem:[%s2 + $0x40] sm:$0xff]
      %v433 = vld [vmem:[%s2 + $0x48] sm:$0xff]
      %v434 = vld [vmem:[%s2 + $0x50] sm:$0xff]
      %v435 = vld [vmem:[%s2 + $0x58] sm:$0xff]
      %v436 = vld [vmem:[%s2 + $0x60] sm:$0xff]
      %v437 = vld [vmem:[%s2 + $0x68] sm:$0xff]
      %v438 = vld [vmem:[%s2 + $0x70] sm:$0xff]
      %v439 = vld [vmem:[%s2 + $0x78] sm:$0xff]
      %v440 = vld [vmem:[%s381] sm:$0xff]
      %v441 = vld [vmem:[%s381 + $0x8] sm:$0xff]
      %v442 = vld [vmem:[%s381 + $0x10] sm:$0xff]
      %v443 = vld [vmem:[%s381 + $0x18] sm:$0xff]
      %v444 = vld [vmem:[%s381 + $0x20] sm:$0xff]
      %v445 = vld [vmem:[%s381 + $0x28] sm:$0xff]
      %v446 = vld [vmem:[%s381 + $0x30] sm:$0xff]
      %v447 = vld [vmem:[%s381 + $0x38] sm:$0xff]
      %v448 = vld [vmem:[%s381 + $0x40] sm:$0xff]
      %v449 = vld [vmem:[%s381 + $0x48] sm:$0xff]
      %v450 = vld [vmem:[%s381 + $0x50] sm:$0xff]
      %v451 = vld [vmem:[%s381 + $0x58] sm:$0xff]
      %v452 = vld [vmem:[%s381 + $0x60] sm:$0xff]
      %v453 = vld [vmem:[%s381 + $0x68] sm:$0xff]
      %v454 = vld [vmem:[%s381 + $0x70] sm:$0xff]
      %v455 = vld [vmem:[%s381 + $0x78] sm:$0xff]
      %v456 = vld [vmem:[%s381 + $0x80] sm:$0xff]
      %v457 = vld [vmem:[%s381 + $0x88] sm:$0xff]
      %v458 = vld [vmem:[%s381 + $0x90] sm:$0xff]
      %v459 = vld [vmem:[%s381 + $0x98] sm:$0xff]
      %v460 = vld [vmem:[%s381 + $0xa0] sm:$0xff]
      %v461 = vld [vmem:[%s381 + $0xa8] sm:$0xff]
      %v462 = vld [vmem:[%s381 + $0xb0] sm:$0xff]
      %v463 = vld [vmem:[%s381 + $0xb8] sm:$0xff]
      %v464 = vld [vmem:[%s381 + $0xc0] sm:$0xff]
      %v465 = vld [vmem:[%s381 + $0xc8] sm:$0xff]
      %v466 = vld [vmem:[%s381 + $0xd0] sm:$0xff]
      %v467 = vld [vmem:[%s381 + $0xd8] sm:$0xff]
      %v468 = vld [vmem:[%s381 + $0xe0] sm:$0xff]
      %v469 = vld [vmem:[%s381 + $0xe8] sm:$0xff]
      %v470 = vld [vmem:[%s381 + $0xf0] sm:$0xff]
      %v471 = vld [vmem:[%s381 + $0xf8] sm:$0xff]
      %v472 = vld [vmem:[%s381 + $0x100] sm:$0xff]
      %v473 = vld [vmem:[%s381 + $0x108] sm:$0xff]
      %v474 = vld [vmem:[%s381 + $0x110] sm:$0xff]
      %v475 = vld [vmem:[%s381 + $0x118] sm:$0x3f]
      %v476 = vpack.c.bf16 %v441, %v440
      %v477 = vpack.c.bf16 %v443, %v442
      %v478 = vpack.c.bf16 %v445, %v444
      %v479 = vpack.c.bf16 %v447, %v446
      %v480 = vpack.c.bf16 %v449, %v448
      %v481 = vpack.c.bf16 %v451, %v450
      %v482 = vpack.c.bf16 %v453, %v452
      %v483 = vpack.c.bf16 %v455, %v454
      %v484 = vpack.c.bf16 %v457, %v456
      %v485 = vpack.c.bf16 %v459, %v458
      %v486 = vpack.c.bf16 %v461, %v460
      %v487 = vpack.c.bf16 %v463, %v462
      %v488 = vpack.c.bf16 %v465, %v464
      %v489 = vpack.c.bf16 %v467, %v466
      %v490 = vpack.c.bf16 %v469, %v468
      %v491 = vpack.c.bf16 %v471, %v470
      %v492 = vpack.c.bf16 %v473, %v472
      %v493 = vpack.c.bf16 %v475, %v474
      %v494 = vld [vmem:[%s3] sm:$0xf]
      %v495 = vld [vmem:[%s3 + $0x4] sm:$0xf]
      %v496 = vld [vmem:[%s3 + $0x8] sm:$0xf]
      %v497 = vld [vmem:[%s3 + $0xc] sm:$0xf]
      %v498 = vld [vmem:[%s3 + $0x10] sm:$0xf]
      %v499 = vld [vmem:[%s3 + $0x14] sm:$0xf]
      %v500 = vld [vmem:[%s3 + $0x18] sm:$0xf]
      %v501 = vld [vmem:[%s3 + $0x1c] sm:$0xf]
      %v502 = vld [vmem:[%s3 + $0x20] sm:$0xf]
      %v503 = vld [vmem:[%s3 + $0x24] sm:$0xf]
      %v504 = vld [vmem:[%s3 + $0x28] sm:$0xf]
      %v505 = vld [vmem:[%s3 + $0x2c] sm:$0xf]
      %v506 = vld [vmem:[%s3 + $0x30] sm:$0xf]
      %v507 = vld [vmem:[%s3 + $0x34] sm:$0xf]
      %v508 = vld [vmem:[%s3 + $0x38] sm:$0xf]
      %v509 = vld [vmem:[%s3 + $0x3c] sm:$0xf]
      %v510 = vld [vmem:[%s381 + $0x1] sm:$0xff]
      %v511 = vld [vmem:[%s381 + $0x9] sm:$0xff]
      %v512 = vld [vmem:[%s381 + $0x11] sm:$0xff]
      %v513 = vld [vmem:[%s381 + $0x19] sm:$0xff]
      %v514 = vld [vmem:[%s381 + $0x21] sm:$0xff]
      %v515 = vld [vmem:[%s381 + $0x29] sm:$0xff]
      %v516 = vld [vmem:[%s381 + $0x31] sm:$0xff]
      %v517 = vld [vmem:[%s381 + $0x39] sm:$0xff]
      %v518 = vld [vmem:[%s381 + $0x41] sm:$0xff]
      %v519 = vld [vmem:[%s381 + $0x49] sm:$0xff]
      %v520 = vld [vmem:[%s381 + $0x51] sm:$0xff]
      %v521 = vld [vmem:[%s381 + $0x59] sm:$0xff]
      %v522 = vld [vmem:[%s381 + $0x61] sm:$0xff]
      %v523 = vld [vmem:[%s381 + $0x69] sm:$0xff]
      %v524 = vld [vmem:[%s381 + $0x71] sm:$0xff]
      %v525 = vld [vmem:[%s381 + $0x79] sm:$0xff]
      %v526 = vld [vmem:[%s381 + $0x81] sm:$0xff]
      %v527 = vld [vmem:[%s381 + $0x89] sm:$0xff]
      %v528 = vld [vmem:[%s381 + $0x91] sm:$0xff]
      %v529 = vld [vmem:[%s381 + $0x99] sm:$0xff]
      %v530 = vld [vmem:[%s381 + $0xa1] sm:$0xff]
      %v531 = vld [vmem:[%s381 + $0xa9] sm:$0xff]
      %v532 = vld [vmem:[%s381 + $0xb1] sm:$0xff]
      %v533 = vld [vmem:[%s381 + $0xb9] sm:$0xff]
      %v534 = vld [vmem:[%s381 + $0xc1] sm:$0xff]
      %v535 = vld [vmem:[%s381 + $0xc9] sm:$0xff]
      %v536 = vld [vmem:[%s381 + $0xd1] sm:$0xff]
      %v537 = vld [vmem:[%s381 + $0xd9] sm:$0xff]
      %v538 = vld [vmem:[%s381 + $0xe1] sm:$0xff]
      %v539 = vld [vmem:[%s381 + $0xe9] sm:$0xff]
      %v540 = vld [vmem:[%s381 + $0xf1] sm:$0xff]
      %v541 = vld [vmem:[%s381 + $0xf9] sm:$0xff]
      %v542 = vld [vmem:[%s381 + $0x101] sm:$0xff]
      %v543 = vld [vmem:[%s381 + $0x109] sm:$0xff]
      %v544 = vld [vmem:[%s381 + $0x111] sm:$0xff]
      %v545 = vld [vmem:[%s381 + $0x119] sm:$0x3f]
      %v546 = vpack.c.bf16 %v511, %v510
      %v547 = vpack.c.bf16 %v513, %v512
      %v548 = vpack.c.bf16 %v515, %v514
      %v549 = vpack.c.bf16 %v517, %v516
      %v550 = vpack.c.bf16 %v519, %v518
      %v551 = vpack.c.bf16 %v521, %v520
      %v552 = vpack.c.bf16 %v523, %v522
      %v553 = vpack.c.bf16 %v525, %v524
      %v554 = vpack.c.bf16 %v527, %v526
      %v555 = vpack.c.bf16 %v529, %v528
      %v556 = vpack.c.bf16 %v531, %v530
      %v557 = vpack.c.bf16 %v533, %v532
      %v558 = vpack.c.bf16 %v535, %v534
      %v559 = vpack.c.bf16 %v537, %v536
      %v560 = vpack.c.bf16 %v539, %v538
      %v561 = vpack.c.bf16 %v541, %v540
      %v562 = vpack.c.bf16 %v543, %v542
      %v563 = vpack.c.bf16 %v545, %v544
      %s564 = scalar_lea.vmem %s3, 64
      %v565 = vld [vmem:[%s564] sm:$0xf]
      %v566 = vld [vmem:[%s564 + $0x4] sm:$0xf]
      %v567 = vld [vmem:[%s564 + $0x8] sm:$0xf]
      %v568 = vld [vmem:[%s564 + $0xc] sm:$0xf]
      %v569 = vld [vmem:[%s564 + $0x10] sm:$0xf]
      %v570 = vld [vmem:[%s564 + $0x14] sm:$0xf]
      %v571 = vld [vmem:[%s564 + $0x18] sm:$0xf]
      %v572 = vld [vmem:[%s564 + $0x1c] sm:$0xf]
      %v573 = vld [vmem:[%s564 + $0x20] sm:$0xf]
      %v574 = vld [vmem:[%s564 + $0x24] sm:$0xf]
      %v575 = vld [vmem:[%s564 + $0x28] sm:$0xf]
      %v576 = vld [vmem:[%s564 + $0x2c] sm:$0xf]
      %v577 = vld [vmem:[%s564 + $0x30] sm:$0xf]
      %v578 = vld [vmem:[%s564 + $0x34] sm:$0xf]
      %v579 = vld [vmem:[%s564 + $0x38] sm:$0xf]
      %v580 = vld [vmem:[%s564 + $0x3c] sm:$0xf]
      %v597 = vunpack.c.l.b16 %v565
      %v598 = vunpack.c.l.b16 %v566
      %v599 = vunpack.c.l.b16 %v567
      %v600 = vunpack.c.l.b16 %v568
      %v601 = vunpack.c.l.b16 %v569
      %v602 = vunpack.c.l.b16 %v570
      %v603 = vunpack.c.l.b16 %v571
      %v604 = vunpack.c.l.b16 %v572
      %v605 = vunpack.c.l.b16 %v573
      %v606 = vunpack.c.l.b16 %v574
      %v607 = vunpack.c.l.b16 %v575
      %v608 = vunpack.c.l.b16 %v576
      %v609 = vunpack.c.l.b16 %v577
      %v610 = vunpack.c.l.b16 %v578
      %v611 = vunpack.c.l.b16 %v579
      %v612 = vunpack.c.l.b16 %v580
      %v613 = vpack.c.b16 %v598, %v597
      %v614 = vpack.c.b16 %v600, %v599
      %v615 = vpack.c.b16 %v602, %v601
      %v616 = vpack.c.b16 %v604, %v603
      %v617 = vpack.c.b16 %v606, %v605
      %v618 = vpack.c.b16 %v608, %v607
      %v619 = vpack.c.b16 %v610, %v609
      %v620 = vpack.c.b16 %v612, %v611
      %629 = vmatpush.bf16.msra.mxu0 %v620
      %630 = vmatpush.bf16.msra.mxu0 %v619
      %631 = vmatpush.bf16.msra.mxu0 %v618
      %632 = vmatpush.bf16.msra.mxu0 %v617
      %633 = vmatpush.bf16.msra.mxu0 %v616
      %634 = vmatpush.bf16.msra.mxu0 %v615
      %635 = vmatpush.bf16.msra.mxu0 %v614
      %636 = vmatpush.bf16.msra.mxu0 %v613
      %637 = vmatmul.bf16.gmra.mxu0 %v546
      %v638 = vpop.f32.mrf.mxu0
      %v639 = vadd.f32 0.0, %v638
      %v640 = vpop.f32.mrf.mxu0
      %v641 = vadd.f32 0.0, %v640
      %642 = vmatmul.bf16.gmra.mxu0 %v547
      %v643 = vpop.f32.mrf.mxu0
      %v644 = vadd.f32 0.0, %v643
      %v645 = vpop.f32.mrf.mxu0
      %v646 = vadd.f32 0.0, %v645
      %647 = vmatmul.bf16.gmra.mxu0 %v548
      %v648 = vpop.f32.mrf.mxu0
      %v649 = vadd.f32 0.0, %v648
      %v650 = vpop.f32.mrf.mxu0
      %v651 = vadd.f32 0.0, %v650
      %652 = vmatmul.bf16.gmra.mxu0 %v549
      %v653 = vpop.f32.mrf.mxu0
      %v654 = vadd.f32 0.0, %v653
      %v655 = vpop.f32.mrf.mxu0
      %v656 = vadd.f32 0.0, %v655
      %657 = vmatmul.bf16.gmra.mxu0 %v550
      %v658 = vpop.f32.mrf.mxu0
      %v659 = vadd.f32 0.0, %v658
      %v660 = vpop.f32.mrf.mxu0
      %v661 = vadd.f32 0.0, %v660
      %662 = vmatmul.bf16.gmra.mxu0 %v551
      %v663 = vpop.f32.mrf.mxu0
      %v664 = vadd.f32 0.0, %v663
      %v665 = vpop.f32.mrf.mxu0
      %v666 = vadd.f32 0.0, %v665
      %667 = vmatmul.bf16.gmra.mxu0 %v552
      %v668 = vpop.f32.mrf.mxu0
      %v669 = vadd.f32 0.0, %v668
      %v670 = vpop.f32.mrf.mxu0
      %v671 = vadd.f32 0.0, %v670
      %672 = vmatmul.bf16.gmra.mxu0 %v553
      %v673 = vpop.f32.mrf.mxu0
      %v674 = vadd.f32 0.0, %v673
      %v675 = vpop.f32.mrf.mxu0
      %v676 = vadd.f32 0.0, %v675
      %677 = vmatmul.bf16.gmra.mxu0 %v554
      %v678 = vpop.f32.mrf.mxu0
      %v679 = vadd.f32 0.0, %v678
      %v680 = vpop.f32.mrf.mxu0
      %v681 = vadd.f32 0.0, %v680
      %682 = vmatmul.bf16.gmra.mxu0 %v555
      %v683 = vpop.f32.mrf.mxu0
      %v684 = vadd.f32 0.0, %v683
      %v685 = vpop.f32.mrf.mxu0
      %v686 = vadd.f32 0.0, %v685
      %687 = vmatmul.bf16.gmra.mxu0 %v556
      %v688 = vpop.f32.mrf.mxu0
      %v689 = vadd.f32 0.0, %v688
      %v690 = vpop.f32.mrf.mxu0
      %v691 = vadd.f32 0.0, %v690
      %692 = vmatmul.bf16.gmra.mxu0 %v557
      %v693 = vpop.f32.mrf.mxu0
      %v694 = vadd.f32 0.0, %v693
      %v695 = vpop.f32.mrf.mxu0
      %v696 = vadd.f32 0.0, %v695
      %697 = vmatmul.bf16.gmra.mxu0 %v558
      %v698 = vpop.f32.mrf.mxu0
      %v699 = vadd.f32 0.0, %v698
      %v700 = vpop.f32.mrf.mxu0
      %v701 = vadd.f32 0.0, %v700
      %702 = vmatmul.bf16.gmra.mxu0 %v559
      %v703 = vpop.f32.mrf.mxu0
      %v704 = vadd.f32 0.0, %v703
      %v705 = vpop.f32.mrf.mxu0
      %v706 = vadd.f32 0.0, %v705
      %707 = vmatmul.bf16.gmra.mxu0 %v560
      %v708 = vpop.f32.mrf.mxu0
      %v709 = vadd.f32 0.0, %v708
      %v710 = vpop.f32.mrf.mxu0
      %v711 = vadd.f32 0.0, %v710
      %712 = vmatmul.bf16.gmra.mxu0 %v561
      %v713 = vpop.f32.mrf.mxu0
      %v714 = vadd.f32 0.0, %v713
      %v715 = vpop.f32.mrf.mxu0
      %v716 = vadd.f32 0.0, %v715
      %717 = vmatmul.bf16.gmra.mxu0 %v562
      %v718 = vpop.f32.mrf.mxu0
      %v719 = vadd.f32 0.0, %v718
      %v720 = vpop.f32.mrf.mxu0
      %v721 = vadd.f32 0.0, %v720
      %722 = vmatmul.bf16.gmra.mxu0 %v563
      %v723 = vpop.f32.mrf.mxu0
      %v724 = vadd.f32 0.0, %v723
      %v725 = vpop.f32.mrf.mxu0
      %v726 = vadd.f32 0.0, %v725
      %727 = vdwg.mxu0
      %v744 = vunpack.c.l.b16 %v494
      %v745 = vunpack.c.l.b16 %v495
      %v746 = vunpack.c.l.b16 %v496
      %v747 = vunpack.c.l.b16 %v497
      %v748 = vunpack.c.l.b16 %v498
      %v749 = vunpack.c.l.b16 %v499
      %v750 = vunpack.c.l.b16 %v500
      %v751 = vunpack.c.l.b16 %v501
      %v752 = vunpack.c.l.b16 %v502
      %v753 = vunpack.c.l.b16 %v503
      %v754 = vunpack.c.l.b16 %v504
      %v755 = vunpack.c.l.b16 %v505
      %v756 = vunpack.c.l.b16 %v506
      %v757 = vunpack.c.l.b16 %v507
      %v758 = vunpack.c.l.b16 %v508
      %v759 = vunpack.c.l.b16 %v509
      %v760 = vpack.c.b16 %v745, %v744
      %v761 = vpack.c.b16 %v747, %v746
      %v762 = vpack.c.b16 %v749, %v748
      %v763 = vpack.c.b16 %v751, %v750
      %v764 = vpack.c.b16 %v753, %v752
      %v765 = vpack.c.b16 %v755, %v754
      %v766 = vpack.c.b16 %v757, %v756
      %v767 = vpack.c.b16 %v759, %v758
      %776 = vmatpush.bf16.msra.mxu0 %v767
      %777 = vmatpush.bf16.msra.mxu0 %v766
      %778 = vmatpush.bf16.msra.mxu0 %v765
      %779 = vmatpush.bf16.msra.mxu0 %v764
      %780 = vmatpush.bf16.msra.mxu0 %v763
      %781 = vmatpush.bf16.msra.mxu0 %v762
      %782 = vmatpush.bf16.msra.mxu0 %v761
      %783 = vmatpush.bf16.msra.mxu0 %v760
      %784 = vmatmul.bf16.gmra.mxu0 %v476
      %v785 = vpop.f32.mrf.mxu0
      %v786 = vadd.f32 %v639, %v785
      %v787 = vpop.f32.mrf.mxu0
      %v788 = vadd.f32 %v641, %v787
      %789 = vmatmul.bf16.gmra.mxu0 %v477
      %v790 = vpop.f32.mrf.mxu0
      %v791 = vadd.f32 %v644, %v790
      %v792 = vpop.f32.mrf.mxu0
      %v793 = vadd.f32 %v646, %v792
      %794 = vmatmul.bf16.gmra.mxu0 %v478
      %v795 = vpop.f32.mrf.mxu0
      %v796 = vadd.f32 %v649, %v795
      %v797 = vpop.f32.mrf.mxu0
      %v798 = vadd.f32 %v651, %v797
      %799 = vmatmul.bf16.gmra.mxu0 %v479
      %v800 = vpop.f32.mrf.mxu0
      %v801 = vadd.f32 %v654, %v800
      %v802 = vpop.f32.mrf.mxu0
      %v803 = vadd.f32 %v656, %v802
      %804 = vmatmul.bf16.gmra.mxu0 %v480
      %v805 = vpop.f32.mrf.mxu0
      %v806 = vadd.f32 %v659, %v805
      %v807 = vpop.f32.mrf.mxu0
      %v808 = vadd.f32 %v661, %v807
      %809 = vmatmul.bf16.gmra.mxu0 %v481
      %v810 = vpop.f32.mrf.mxu0
      %v811 = vadd.f32 %v664, %v810
      %v812 = vpop.f32.mrf.mxu0
      %v813 = vadd.f32 %v666, %v812
      %814 = vmatmul.bf16.gmra.mxu0 %v482
      %v815 = vpop.f32.mrf.mxu0
      %v816 = vadd.f32 %v669, %v815
      %v817 = vpop.f32.mrf.mxu0
      %v818 = vadd.f32 %v671, %v817
      %819 = vmatmul.bf16.gmra.mxu0 %v483
      %v820 = vpop.f32.mrf.mxu0
      %v821 = vadd.f32 %v674, %v820
      %v822 = vpop.f32.mrf.mxu0
      %v823 = vadd.f32 %v676, %v822
      %824 = vmatmul.bf16.gmra.mxu0 %v484
      %v825 = vpop.f32.mrf.mxu0
      %v826 = vadd.f32 %v679, %v825
      %v827 = vpop.f32.mrf.mxu0
      %v828 = vadd.f32 %v681, %v827
      %829 = vmatmul.bf16.gmra.mxu0 %v485
      %v830 = vpop.f32.mrf.mxu0
      %v831 = vadd.f32 %v684, %v830
      %v832 = vpop.f32.mrf.mxu0
      %v833 = vadd.f32 %v686, %v832
      %834 = vmatmul.bf16.gmra.mxu0 %v486
      %v835 = vpop.f32.mrf.mxu0
      %v836 = vadd.f32 %v689, %v835
      %v837 = vpop.f32.mrf.mxu0
      %v838 = vadd.f32 %v691, %v837
      %839 = vmatmul.bf16.gmra.mxu0 %v487
      %v840 = vpop.f32.mrf.mxu0
      %v841 = vadd.f32 %v694, %v840
      %v842 = vpop.f32.mrf.mxu0
      %v843 = vadd.f32 %v696, %v842
      %844 = vmatmul.bf16.gmra.mxu0 %v488
      %v845 = vpop.f32.mrf.mxu0
      %v846 = vadd.f32 %v699, %v845
      %v847 = vpop.f32.mrf.mxu0
      %v848 = vadd.f32 %v701, %v847
      %849 = vmatmul.bf16.gmra.mxu0 %v489
      %v850 = vpop.f32.mrf.mxu0
      %v851 = vadd.f32 %v704, %v850
      %v852 = vpop.f32.mrf.mxu0
      %v853 = vadd.f32 %v706, %v852
      %854 = vmatmul.bf16.gmra.mxu0 %v490
      %v855 = vpop.f32.mrf.mxu0
      %v856 = vadd.f32 %v709, %v855
      %v857 = vpop.f32.mrf.mxu0
      %v858 = vadd.f32 %v711, %v857
      %859 = vmatmul.bf16.gmra.mxu0 %v491
      %v860 = vpop.f32.mrf.mxu0
      %v861 = vadd.f32 %v714, %v860
      %v862 = vpop.f32.mrf.mxu0
      %v863 = vadd.f32 %v716, %v862
      %864 = vmatmul.bf16.gmra.mxu0 %v492
      %v865 = vpop.f32.mrf.mxu0
      %v866 = vadd.f32 %v719, %v865
      %v867 = vpop.f32.mrf.mxu0
      %v868 = vadd.f32 %v721, %v867
      %869 = vmatmul.bf16.gmra.mxu0 %v493
      %v870 = vpop.f32.mrf.mxu0
      %v871 = vadd.f32 %v724, %v870
      %v872 = vpop.f32.mrf.mxu0
      %v873 = vadd.f32 %v726, %v872
      %874 = vdwg.mxu0
      %v875 = vld [vmem:[%s381 + $0x2] sm:$0xff]
      %v876 = vld [vmem:[%s381 + $0xa] sm:$0xff]
      %v877 = vld [vmem:[%s381 + $0x12] sm:$0xff]
      %v878 = vld [vmem:[%s381 + $0x1a] sm:$0xff]
      %v879 = vld [vmem:[%s381 + $0x22] sm:$0xff]
      %v880 = vld [vmem:[%s381 + $0x2a] sm:$0xff]
      %v881 = vld [vmem:[%s381 + $0x32] sm:$0xff]
      %v882 = vld [vmem:[%s381 + $0x3a] sm:$0xff]
      %v883 = vld [vmem:[%s381 + $0x42] sm:$0xff]
      %v884 = vld [vmem:[%s381 + $0x4a] sm:$0xff]
      %v885 = vld [vmem:[%s381 + $0x52] sm:$0xff]
      %v886 = vld [vmem:[%s381 + $0x5a] sm:$0xff]
      %v887 = vld [vmem:[%s381 + $0x62] sm:$0xff]
      %v888 = vld [vmem:[%s381 + $0x6a] sm:$0xff]
      %v889 = vld [vmem:[%s381 + $0x72] sm:$0xff]
      %v890 = vld [vmem:[%s381 + $0x7a] sm:$0xff]
      %v891 = vld [vmem:[%s381 + $0x82] sm:$0xff]
      %v892 = vld [vmem:[%s381 + $0x8a] sm:$0xff]
      %v893 = vld [vmem:[%s381 + $0x92] sm:$0xff]
      %v894 = vld [vmem:[%s381 + $0x9a] sm:$0xff]
      %v895 = vld [vmem:[%s381 + $0xa2] sm:$0xff]
      %v896 = vld [vmem:[%s381 + $0xaa] sm:$0xff]
      %v897 = vld [vmem:[%s381 + $0xb2] sm:$0xff]
      %v898 = vld [vmem:[%s381 + $0xba] sm:$0xff]
      %v899 = vld [vmem:[%s381 + $0xc2] sm:$0xff]
      %v900 = vld [vmem:[%s381 + $0xca] sm:$0xff]
      %v901 = vld [vmem:[%s381 + $0xd2] sm:$0xff]
      %v902 = vld [vmem:[%s381 + $0xda] sm:$0xff]
      %v903 = vld [vmem:[%s381 + $0xe2] sm:$0xff]
      %v904 = vld [vmem:[%s381 + $0xea] sm:$0xff]
      %v905 = vld [vmem:[%s381 + $0xf2] sm:$0xff]
      %v906 = vld [vmem:[%s381 + $0xfa] sm:$0xff]
      %v907 = vld [vmem:[%s381 + $0x102] sm:$0xff]
      %v908 = vld [vmem:[%s381 + $0x10a] sm:$0xff]
      %v909 = vld [vmem:[%s381 + $0x112] sm:$0xff]
      %v910 = vld [vmem:[%s381 + $0x11a] sm:$0x3f]
      %v911 = vpack.c.bf16 %v876, %v875
      %v912 = vpack.c.bf16 %v878, %v877
      %v913 = vpack.c.bf16 %v880, %v879
      %v914 = vpack.c.bf16 %v882, %v881
      %v915 = vpack.c.bf16 %v884, %v883
      %v916 = vpack.c.bf16 %v886, %v885
      %v917 = vpack.c.bf16 %v888, %v887
      %v918 = vpack.c.bf16 %v890, %v889
      %v919 = vpack.c.bf16 %v892, %v891
      %v920 = vpack.c.bf16 %v894, %v893
      %v921 = vpack.c.bf16 %v896, %v895
      %v922 = vpack.c.bf16 %v898, %v897
      %v923 = vpack.c.bf16 %v900, %v899
      %v924 = vpack.c.bf16 %v902, %v901
      %v925 = vpack.c.bf16 %v904, %v903
      %v926 = vpack.c.bf16 %v906, %v905
      %v927 = vpack.c.bf16 %v908, %v907
      %v928 = vpack.c.bf16 %v910, %v909
      %s929 = scalar_lea.vmem %s3, 128
      %v930 = vld [vmem:[%s929] sm:$0xf]
      %v931 = vld [vmem:[%s929 + $0x4] sm:$0xf]
      %v932 = vld [vmem:[%s929 + $0x8] sm:$0xf]
      %v933 = vld [vmem:[%s929 + $0xc] sm:$0xf]
      %v934 = vld [vmem:[%s929 + $0x10] sm:$0xf]
      %v935 = vld [vmem:[%s929 + $0x14] sm:$0xf]
      %v936 = vld [vmem:[%s929 + $0x18] sm:$0xf]
      %v937 = vld [vmem:[%s929 + $0x1c] sm:$0xf]
      %v938 = vld [vmem:[%s929 + $0x20] sm:$0xf]
      %v939 = vld [vmem:[%s929 + $0x24] sm:$0xf]
      %v940 = vld [vmem:[%s929 + $0x28] sm:$0xf]
      %v941 = vld [vmem:[%s929 + $0x2c] sm:$0xf]
      %v942 = vld [vmem:[%s929 + $0x30] sm:$0xf]
      %v943 = vld [vmem:[%s929 + $0x34] sm:$0xf]
      %v944 = vld [vmem:[%s929 + $0x38] sm:$0xf]
      %v945 = vld [vmem:[%s929 + $0x3c] sm:$0xf]
      %v962 = vunpack.c.l.b16 %v930
      %v963 = vunpack.c.l.b16 %v931
      %v964 = vunpack.c.l.b16 %v932
      %v965 = vunpack.c.l.b16 %v933
      %v966 = vunpack.c.l.b16 %v934
      %v967 = vunpack.c.l.b16 %v935
      %v968 = vunpack.c.l.b16 %v936
      %v969 = vunpack.c.l.b16 %v937
      %v970 = vunpack.c.l.b16 %v938
      %v971 = vunpack.c.l.b16 %v939
      %v972 = vunpack.c.l.b16 %v940
      %v973 = vunpack.c.l.b16 %v941
      %v974 = vunpack.c.l.b16 %v942
      %v975 = vunpack.c.l.b16 %v943
      %v976 = vunpack.c.l.b16 %v944
      %v977 = vunpack.c.l.b16 %v945
      %v978 = vpack.c.b16 %v963, %v962
      %v979 = vpack.c.b16 %v965, %v964
      %v980 = vpack.c.b16 %v967, %v966
      %v981 = vpack.c.b16 %v969, %v968
      %v982 = vpack.c.b16 %v971, %v970
      %v983 = vpack.c.b16 %v973, %v972
      %v984 = vpack.c.b16 %v975, %v974
      %v985 = vpack.c.b16 %v977, %v976
      %994 = vmatpush.bf16.msra.mxu0 %v985
      %995 = vmatpush.bf16.msra.mxu0 %v984
      %996 = vmatpush.bf16.msra.mxu0 %v983
      %997 = vmatpush.bf16.msra.mxu0 %v982
      %998 = vmatpush.bf16.msra.mxu0 %v981
      %999 = vmatpush.bf16.msra.mxu0 %v980
      %1000 = vmatpush.bf16.msra.mxu0 %v979
      %1001 = vmatpush.bf16.msra.mxu0 %v978
      %1002 = vmatmul.bf16.gmra.mxu0 %v911
      %v1003 = vpop.f32.mrf.mxu0
      %v1004 = vadd.f32 0.0, %v1003
      %v1005 = vpop.f32.mrf.mxu0
      %v1006 = vadd.f32 0.0, %v1005
      %1007 = vmatmul.bf16.gmra.mxu0 %v912
      %v1008 = vpop.f32.mrf.mxu0
      %v1009 = vadd.f32 0.0, %v1008
      %v1010 = vpop.f32.mrf.mxu0
      %v1011 = vadd.f32 0.0, %v1010
      %1012 = vmatmul.bf16.gmra.mxu0 %v913
      %v1013 = vpop.f32.mrf.mxu0
      %v1014 = vadd.f32 0.0, %v1013
      %v1015 = vpop.f32.mrf.mxu0
      %v1016 = vadd.f32 0.0, %v1015
      %1017 = vmatmul.bf16.gmra.mxu0 %v914
      %v1018 = vpop.f32.mrf.mxu0
      %v1019 = vadd.f32 0.0, %v1018
      %v1020 = vpop.f32.mrf.mxu0
      %v1021 = vadd.f32 0.0, %v1020
      %1022 = vmatmul.bf16.gmra.mxu0 %v915
      %v1023 = vpop.f32.mrf.mxu0
      %v1024 = vadd.f32 0.0, %v1023
      %v1025 = vpop.f32.mrf.mxu0
      %v1026 = vadd.f32 0.0, %v1025
      %1027 = vmatmul.bf16.gmra.mxu0 %v916
      %v1028 = vpop.f32.mrf.mxu0
      %v1029 = vadd.f32 0.0, %v1028
      %v1030 = vpop.f32.mrf.mxu0
      %v1031 = vadd.f32 0.0, %v1030
      %1032 = vmatmul.bf16.gmra.mxu0 %v917
      %v1033 = vpop.f32.mrf.mxu0
      %v1034 = vadd.f32 0.0, %v1033
      %v1035 = vpop.f32.mrf.mxu0
      %v1036 = vadd.f32 0.0, %v1035
      %1037 = vmatmul.bf16.gmra.mxu0 %v918
      %v1038 = vpop.f32.mrf.mxu0
      %v1039 = vadd.f32 0.0, %v1038
      %v1040 = vpop.f32.mrf.mxu0
      %v1041 = vadd.f32 0.0, %v1040
      %1042 = vmatmul.bf16.gmra.mxu0 %v919
      %v1043 = vpop.f32.mrf.mxu0
      %v1044 = vadd.f32 0.0, %v1043
      %v1045 = vpop.f32.mrf.mxu0
      %v1046 = vadd.f32 0.0, %v1045
      %1047 = vmatmul.bf16.gmra.mxu0 %v920
      %v1048 = vpop.f32.mrf.mxu0
      %v1049 = vadd.f32 0.0, %v1048
      %v1050 = vpop.f32.mrf.mxu0
      %v1051 = vadd.f32 0.0, %v1050
      %1052 = vmatmul.bf16.gmra.mxu0 %v921
      %v1053 = vpop.f32.mrf.mxu0
      %v1054 = vadd.f32 0.0, %v1053
      %v1055 = vpop.f32.mrf.mxu0
      %v1056 = vadd.f32 0.0, %v1055
      %1057 = vmatmul.bf16.gmra.mxu0 %v922
      %v1058 = vpop.f32.mrf.mxu0
      %v1059 = vadd.f32 0.0, %v1058
      %v1060 = vpop.f32.mrf.mxu0
      %v1061 = vadd.f32 0.0, %v1060
      %1062 = vmatmul.bf16.gmra.mxu0 %v923
      %v1063 = vpop.f32.mrf.mxu0
      %v1064 = vadd.f32 0.0, %v1063
      %v1065 = vpop.f32.mrf.mxu0
      %v1066 = vadd.f32 0.0, %v1065
      %1067 = vmatmul.bf16.gmra.mxu0 %v924
      %v1068 = vpop.f32.mrf.mxu0
      %v1069 = vadd.f32 0.0, %v1068
      %v1070 = vpop.f32.mrf.mxu0
      %v1071 = vadd.f32 0.0, %v1070
      %1072 = vmatmul.bf16.gmra.mxu0 %v925
      %v1073 = vpop.f32.mrf.mxu0
      %v1074 = vadd.f32 0.0, %v1073
      %v1075 = vpop.f32.mrf.mxu0
      %v1076 = vadd.f32 0.0, %v1075
      %1077 = vmatmul.bf16.gmra.mxu0 %v926
      %v1078 = vpop.f32.mrf.mxu0
      %v1079 = vadd.f32 0.0, %v1078
      %v1080 = vpop.f32.mrf.mxu0
      %v1081 = vadd.f32 0.0, %v1080
      %1082 = vmatmul.bf16.gmra.mxu0 %v927
      %v1083 = vpop.f32.mrf.mxu0
      %v1084 = vadd.f32 0.0, %v1083
      %v1085 = vpop.f32.mrf.mxu0
      %v1086 = vadd.f32 0.0, %v1085
      %1087 = vmatmul.bf16.gmra.mxu0 %v928
      %v1088 = vpop.f32.mrf.mxu0
      %v1089 = vadd.f32 0.0, %v1088
      %v1090 = vpop.f32.mrf.mxu0
      %v1091 = vadd.f32 0.0, %v1090
      %1092 = vdwg.mxu0
      %v1093 = vadd.f32 %v786, %v1004
      %v1094 = vadd.f32 %v788, %v1006
      %v1095 = vadd.f32 %v791, %v1009
      %v1096 = vadd.f32 %v793, %v1011
      %v1097 = vadd.f32 %v796, %v1014
      %v1098 = vadd.f32 %v798, %v1016
      %v1099 = vadd.f32 %v801, %v1019
      %v1100 = vadd.f32 %v803, %v1021
      %v1101 = vadd.f32 %v806, %v1024
      %v1102 = vadd.f32 %v808, %v1026
      %v1103 = vadd.f32 %v811, %v1029
      %v1104 = vadd.f32 %v813, %v1031
      %v1105 = vadd.f32 %v816, %v1034
      %v1106 = vadd.f32 %v818, %v1036
      %v1107 = vadd.f32 %v821, %v1039
      %v1108 = vadd.f32 %v823, %v1041
      %v1109 = vadd.f32 %v826, %v1044
      %v1110 = vadd.f32 %v828, %v1046
      %v1111 = vadd.f32 %v831, %v1049
      %v1112 = vadd.f32 %v833, %v1051
      %v1113 = vadd.f32 %v836, %v1054
      %v1114 = vadd.f32 %v838, %v1056
      %v1115 = vadd.f32 %v841, %v1059
      %v1116 = vadd.f32 %v843, %v1061
      %v1117 = vadd.f32 %v846, %v1064
      %v1118 = vadd.f32 %v848, %v1066
      %v1119 = vadd.f32 %v851, %v1069
      %v1120 = vadd.f32 %v853, %v1071
      %v1121 = vadd.f32 %v856, %v1074
      %v1122 = vadd.f32 %v858, %v1076
      %v1123 = vadd.f32 %v861, %v1079
      %v1124 = vadd.f32 %v863, %v1081
      %v1125 = vadd.f32 %v866, %v1084
      %v1126 = vadd.f32 %v868, %v1086
      %v1127 = vadd.f32 %v871, %v1089
      %v1128 = vadd.f32 %v873, %v1091
      %v1129 = vld [vmem:[%s381 + $0x12] sm:$0xff]
      %v1130 = vld [vmem:[%s381 + $0x1a] sm:$0xff]
      %v1131 = vld [vmem:[%s381 + $0x22] sm:$0xff]
      %v1132 = vld [vmem:[%s381 + $0x2a] sm:$0xff]
      %v1133 = vld [vmem:[%s381 + $0x32] sm:$0xff]
      %v1134 = vld [vmem:[%s381 + $0x3a] sm:$0xff]
      %v1135 = vld [vmem:[%s381 + $0x42] sm:$0xff]
      %v1136 = vld [vmem:[%s381 + $0x4a] sm:$0xff]
      %v1137 = vld [vmem:[%s381 + $0x52] sm:$0xff]
      %v1138 = vld [vmem:[%s381 + $0x5a] sm:$0xff]
      %v1139 = vld [vmem:[%s381 + $0x62] sm:$0xff]
      %v1140 = vld [vmem:[%s381 + $0x6a] sm:$0xff]
      %v1141 = vld [vmem:[%s381 + $0x72] sm:$0xff]
      %v1142 = vld [vmem:[%s381 + $0x7a] sm:$0xff]
      %v1143 = vld [vmem:[%s381 + $0x82] sm:$0xff]
      %v1144 = vld [vmem:[%s381 + $0x8a] sm:$0xff]
      %v1145 = vld [vmem:[%s381 + $0x92] sm:$0xff]
      %v1146 = vld [vmem:[%s381 + $0x9a] sm:$0xff]
      %v1147 = vld [vmem:[%s381 + $0xa2] sm:$0xff]
      %v1148 = vld [vmem:[%s381 + $0xaa] sm:$0xff]
      %v1149 = vld [vmem:[%s381 + $0xb2] sm:$0xff]
      %v1150 = vld [vmem:[%s381 + $0xba] sm:$0xff]
      %v1151 = vld [vmem:[%s381 + $0xc2] sm:$0xff]
      %v1152 = vld [vmem:[%s381 + $0xca] sm:$0xff]
      %v1153 = vld [vmem:[%s381 + $0xd2] sm:$0xff]
      %v1154 = vld [vmem:[%s381 + $0xda] sm:$0xff]
      %v1155 = vld [vmem:[%s381 + $0xe2] sm:$0xff]
      %v1156 = vld [vmem:[%s381 + $0xea] sm:$0xff]
      %v1157 = vld [vmem:[%s381 + $0xf2] sm:$0xff]
      %v1158 = vld [vmem:[%s381 + $0xfa] sm:$0xff]
      %v1159 = vld [vmem:[%s381 + $0x102] sm:$0xff]
      %v1160 = vld [vmem:[%s381 + $0x10a] sm:$0xff]
      %v1161 = vld [vmem:[%s381 + $0x112] sm:$0xff]
      %v1162 = vld [vmem:[%s381 + $0x11a] sm:$0xff]
      %v1163 = vld [vmem:[%s381 + $0x122] sm:$0xff]
      %v1164 = vld [vmem:[%s381 + $0x12a] sm:$0x3f]
      %v1165 = vpack.c.bf16 %v1130, %v1129
      %v1166 = vpack.c.bf16 %v1132, %v1131
      %v1167 = vpack.c.bf16 %v1134, %v1133
      %v1168 = vpack.c.bf16 %v1136, %v1135
      %v1169 = vpack.c.bf16 %v1138, %v1137
      %v1170 = vpack.c.bf16 %v1140, %v1139
      %v1171 = vpack.c.bf16 %v1142, %v1141
      %v1172 = vpack.c.bf16 %v1144, %v1143
      %v1173 = vpack.c.bf16 %v1146, %v1145
      %v1174 = vpack.c.bf16 %v1148, %v1147
      %v1175 = vpack.c.bf16 %v1150, %v1149
      %v1176 = vpack.c.bf16 %v1152, %v1151
      %v1177 = vpack.c.bf16 %v1154, %v1153
      %v1178 = vpack.c.bf16 %v1156, %v1155
      %v1179 = vpack.c.bf16 %v1158, %v1157
      %v1180 = vpack.c.bf16 %v1160, %v1159
      %v1181 = vpack.c.bf16 %v1162, %v1161
      %v1182 = vpack.c.bf16 %v1164, %v1163
      %s1183 = scalar_lea.vmem %s3, 192
      %v1184 = vld [vmem:[%s1183] sm:$0xf]
      %v1185 = vld [vmem:[%s1183 + $0x4] sm:$0xf]
      %v1186 = vld [vmem:[%s1183 + $0x8] sm:$0xf]
      %v1187 = vld [vmem:[%s1183 + $0xc] sm:$0xf]
      %v1188 = vld [vmem:[%s1183 + $0x10] sm:$0xf]
      %v1189 = vld [vmem:[%s1183 + $0x14] sm:$0xf]
      %v1190 = vld [vmem:[%s1183 + $0x18] sm:$0xf]
      %v1191 = vld [vmem:[%s1183 + $0x1c] sm:$0xf]
      %v1192 = vld [vmem:[%s1183 + $0x20] sm:$0xf]
      %v1193 = vld [vmem:[%s1183 + $0x24] sm:$0xf]
      %v1194 = vld [vmem:[%s1183 + $0x28] sm:$0xf]
      %v1195 = vld [vmem:[%s1183 + $0x2c] sm:$0xf]
      %v1196 = vld [vmem:[%s1183 + $0x30] sm:$0xf]
      %v1197 = vld [vmem:[%s1183 + $0x34] sm:$0xf]
      %v1198 = vld [vmem:[%s1183 + $0x38] sm:$0xf]
      %v1199 = vld [vmem:[%s1183 + $0x3c] sm:$0xf]
      %v1216 = vunpack.c.l.b16 %v1184
      %v1217 = vunpack.c.l.b16 %v1185
      %v1218 = vunpack.c.l.b16 %v1186
      %v1219 = vunpack.c.l.b16 %v1187
      %v1220 = vunpack.c.l.b16 %v1188
      %v1221 = vunpack.c.l.b16 %v1189
      %v1222 = vunpack.c.l.b16 %v1190
      %v1223 = vunpack.c.l.b16 %v1191
      %v1224 = vunpack.c.l.b16 %v1192
      %v1225 = vunpack.c.l.b16 %v1193
      %v1226 = vunpack.c.l.b16 %v1194
      %v1227 = vunpack.c.l.b16 %v1195
      %v1228 = vunpack.c.l.b16 %v1196
      %v1229 = vunpack.c.l.b16 %v1197
      %v1230 = vunpack.c.l.b16 %v1198
      %v1231 = vunpack.c.l.b16 %v1199
      %v1232 = vpack.c.b16 %v1217, %v1216
      %v1233 = vpack.c.b16 %v1219, %v1218
      %v1234 = vpack.c.b16 %v1221, %v1220
      %v1235 = vpack.c.b16 %v1223, %v1222
      %v1236 = vpack.c.b16 %v1225, %v1224
      %v1237 = vpack.c.b16 %v1227, %v1226
      %v1238 = vpack.c.b16 %v1229, %v1228
      %v1239 = vpack.c.b16 %v1231, %v1230
      %1248 = vmatpush.bf16.msra.mxu0 %v1239
      %1249 = vmatpush.bf16.msra.mxu0 %v1238
      %1250 = vmatpush.bf16.msra.mxu0 %v1237
      %1251 = vmatpush.bf16.msra.mxu0 %v1236
      %1252 = vmatpush.bf16.msra.mxu0 %v1235
      %1253 = vmatpush.bf16.msra.mxu0 %v1234
      %1254 = vmatpush.bf16.msra.mxu0 %v1233
      %1255 = vmatpush.bf16.msra.mxu0 %v1232
      %1256 = vmatmul.bf16.gmra.mxu0 %v1165
      %v1257 = vpop.f32.mrf.mxu0
      %v1258 = vadd.f32 0.0, %v1257
      %v1259 = vpop.f32.mrf.mxu0
      %v1260 = vadd.f32 0.0, %v1259
      %1261 = vmatmul.bf16.gmra.mxu0 %v1166
      %v1262 = vpop.f32.mrf.mxu0
      %v1263 = vadd.f32 0.0, %v1262
      %v1264 = vpop.f32.mrf.mxu0
      %v1265 = vadd.f32 0.0, %v1264
      %1266 = vmatmul.bf16.gmra.mxu0 %v1167
      %v1267 = vpop.f32.mrf.mxu0
      %v1268 = vadd.f32 0.0, %v1267
      %v1269 = vpop.f32.mrf.mxu0
      %v1270 = vadd.f32 0.0, %v1269
      %1271 = vmatmul.bf16.gmra.mxu0 %v1168
      %v1272 = vpop.f32.mrf.mxu0
      %v1273 = vadd.f32 0.0, %v1272
      %v1274 = vpop.f32.mrf.mxu0
      %v1275 = vadd.f32 0.0, %v1274
      %1276 = vmatmul.bf16.gmra.mxu0 %v1169
      %v1277 = vpop.f32.mrf.mxu0
      %v1278 = vadd.f32 0.0, %v1277
      %v1279 = vpop.f32.mrf.mxu0
      %v1280 = vadd.f32 0.0, %v1279
      %1281 = vmatmul.bf16.gmra.mxu0 %v1170
      %v1282 = vpop.f32.mrf.mxu0
      %v1283 = vadd.f32 0.0, %v1282
      %v1284 = vpop.f32.mrf.mxu0
      %v1285 = vadd.f32 0.0, %v1284
      %1286 = vmatmul.bf16.gmra.mxu0 %v1171
      %v1287 = vpop.f32.mrf.mxu0
      %v1288 = vadd.f32 0.0, %v1287
      %v1289 = vpop.f32.mrf.mxu0
      %v1290 = vadd.f32 0.0, %v1289
      %1291 = vmatmul.bf16.gmra.mxu0 %v1172
      %v1292 = vpop.f32.mrf.mxu0
      %v1293 = vadd.f32 0.0, %v1292
      %v1294 = vpop.f32.mrf.mxu0
      %v1295 = vadd.f32 0.0, %v1294
      %1296 = vmatmul.bf16.gmra.mxu0 %v1173
      %v1297 = vpop.f32.mrf.mxu0
      %v1298 = vadd.f32 0.0, %v1297
      %v1299 = vpop.f32.mrf.mxu0
      %v1300 = vadd.f32 0.0, %v1299
      %1301 = vmatmul.bf16.gmra.mxu0 %v1174
      %v1302 = vpop.f32.mrf.mxu0
      %v1303 = vadd.f32 0.0, %v1302
      %v1304 = vpop.f32.mrf.mxu0
      %v1305 = vadd.f32 0.0, %v1304
      %1306 = vmatmul.bf16.gmra.mxu0 %v1175
      %v1307 = vpop.f32.mrf.mxu0
      %v1308 = vadd.f32 0.0, %v1307
      %v1309 = vpop.f32.mrf.mxu0
      %v1310 = vadd.f32 0.0, %v1309
      %1311 = vmatmul.bf16.gmra.mxu0 %v1176
      %v1312 = vpop.f32.mrf.mxu0
      %v1313 = vadd.f32 0.0, %v1312
      %v1314 = vpop.f32.mrf.mxu0
      %v1315 = vadd.f32 0.0, %v1314
      %1316 = vmatmul.bf16.gmra.mxu0 %v1177
      %v1317 = vpop.f32.mrf.mxu0
      %v1318 = vadd.f32 0.0, %v1317
      %v1319 = vpop.f32.mrf.mxu0
      %v1320 = vadd.f32 0.0, %v1319
      %1321 = vmatmul.bf16.gmra.mxu0 %v1178
      %v1322 = vpop.f32.mrf.mxu0
      %v1323 = vadd.f32 0.0, %v1322
      %v1324 = vpop.f32.mrf.mxu0
      %v1325 = vadd.f32 0.0, %v1324
      %1326 = vmatmul.bf16.gmra.mxu0 %v1179
      %v1327 = vpop.f32.mrf.mxu0
      %v1328 = vadd.f32 0.0, %v1327
      %v1329 = vpop.f32.mrf.mxu0
      %v1330 = vadd.f32 0.0, %v1329
      %1331 = vmatmul.bf16.gmra.mxu0 %v1180
      %v1332 = vpop.f32.mrf.mxu0
      %v1333 = vadd.f32 0.0, %v1332
      %v1334 = vpop.f32.mrf.mxu0
      %v1335 = vadd.f32 0.0, %v1334
      %1336 = vmatmul.bf16.gmra.mxu0 %v1181
      %v1337 = vpop.f32.mrf.mxu0
      %v1338 = vadd.f32 0.0, %v1337
      %v1339 = vpop.f32.mrf.mxu0
      %v1340 = vadd.f32 0.0, %v1339
      %1341 = vmatmul.bf16.gmra.mxu0 %v1182
      %v1342 = vpop.f32.mrf.mxu0
      %v1343 = vadd.f32 0.0, %v1342
      %v1344 = vpop.f32.mrf.mxu0
      %v1345 = vadd.f32 0.0, %v1344
      %1346 = vdwg.mxu0
      %v1347 = vadd.f32 %v1093, %v1258
      %v1348 = vadd.f32 %v1094, %v1260
      %v1349 = vadd.f32 %v1095, %v1263
      %v1350 = vadd.f32 %v1096, %v1265
      %v1351 = vadd.f32 %v1097, %v1268
      %v1352 = vadd.f32 %v1098, %v1270
      %v1353 = vadd.f32 %v1099, %v1273
      %v1354 = vadd.f32 %v1100, %v1275
      %v1355 = vadd.f32 %v1101, %v1278
      %v1356 = vadd.f32 %v1102, %v1280
      %v1357 = vadd.f32 %v1103, %v1283
      %v1358 = vadd.f32 %v1104, %v1285
      %v1359 = vadd.f32 %v1105, %v1288
      %v1360 = vadd.f32 %v1106, %v1290
      %v1361 = vadd.f32 %v1107, %v1293
      %v1362 = vadd.f32 %v1108, %v1295
      %v1363 = vadd.f32 %v1109, %v1298
      %v1364 = vadd.f32 %v1110, %v1300
      %v1365 = vadd.f32 %v1111, %v1303
      %v1366 = vadd.f32 %v1112, %v1305
      %v1367 = vadd.f32 %v1113, %v1308
      %v1368 = vadd.f32 %v1114, %v1310
      %v1369 = vadd.f32 %v1115, %v1313
      %v1370 = vadd.f32 %v1116, %v1315
      %v1371 = vadd.f32 %v1117, %v1318
      %v1372 = vadd.f32 %v1118, %v1320
      %v1373 = vadd.f32 %v1119, %v1323
      %v1374 = vadd.f32 %v1120, %v1325
      %v1375 = vadd.f32 %v1121, %v1328
      %v1376 = vadd.f32 %v1122, %v1330
      %v1377 = vadd.f32 %v1123, %v1333
      %v1378 = vadd.f32 %v1124, %v1335
      %v1379 = vadd.f32 %v1125, %v1338
      %v1380 = vadd.f32 %v1126, %v1340
      %v1381 = vadd.f32 %v1127, %v1343
      %v1382 = vadd.f32 %v1128, %v1345
      %v1383 = vld [vmem:[%s381 + $0x13] sm:$0xff]
      %v1384 = vld [vmem:[%s381 + $0x1b] sm:$0xff]
      %v1385 = vld [vmem:[%s381 + $0x23] sm:$0xff]
      %v1386 = vld [vmem:[%s381 + $0x2b] sm:$0xff]
      %v1387 = vld [vmem:[%s381 + $0x33] sm:$0xff]
      %v1388 = vld [vmem:[%s381 + $0x3b] sm:$0xff]
      %v1389 = vld [vmem:[%s381 + $0x43] sm:$0xff]
      %v1390 = vld [vmem:[%s381 + $0x4b] sm:$0xff]
      %v1391 = vld [vmem:[%s381 + $0x53] sm:$0xff]
      %v1392 = vld [vmem:[%s381 + $0x5b] sm:$0xff]
      %v1393 = vld [vmem:[%s381 + $0x63] sm:$0xff]
      %v1394 = vld [vmem:[%s381 + $0x6b] sm:$0xff]
      %v1395 = vld [vmem:[%s381 + $0x73] sm:$0xff]
      %v1396 = vld [vmem:[%s381 + $0x7b] sm:$0xff]
      %v1397 = vld [vmem:[%s381 + $0x83] sm:$0xff]
      %v1398 = vld [vmem:[%s381 + $0x8b] sm:$0xff]
      %v1399 = vld [vmem:[%s381 + $0x93] sm:$0xff]
      %v1400 = vld [vmem:[%s381 + $0x9b] sm:$0xff]
      %v1401 = vld [vmem:[%s381 + $0xa3] sm:$0xff]
      %v1402 = vld [vmem:[%s381 + $0xab] sm:$0xff]
      %v1403 = vld [vmem:[%s381 + $0xb3] sm:$0xff]
      %v1404 = vld [vmem:[%s381 + $0xbb] sm:$0xff]
      %v1405 = vld [vmem:[%s381 + $0xc3] sm:$0xff]
      %v1406 = vld [vmem:[%s381 + $0xcb] sm:$0xff]
      %v1407 = vld [vmem:[%s381 + $0xd3] sm:$0xff]
      %v1408 = vld [vmem:[%s381 + $0xdb] sm:$0xff]
      %v1409 = vld [vmem:[%s381 + $0xe3] sm:$0xff]
      %v1410 = vld [vmem:[%s381 + $0xeb] sm:$0xff]
      %v1411 = vld [vmem:[%s381 + $0xf3] sm:$0xff]
      %v1412 = vld [vmem:[%s381 + $0xfb] sm:$0xff]
      %v1413 = vld [vmem:[%s381 + $0x103] sm:$0xff]
      %v1414 = vld [vmem:[%s381 + $0x10b] sm:$0xff]
      %v1415 = vld [vmem:[%s381 + $0x113] sm:$0xff]
      %v1416 = vld [vmem:[%s381 + $0x11b] sm:$0xff]
      %v1417 = vld [vmem:[%s381 + $0x123] sm:$0xff]
      %v1418 = vld [vmem:[%s381 + $0x12b] sm:$0x3f]
      %v1419 = vpack.c.bf16 %v1384, %v1383
      %v1420 = vpack.c.bf16 %v1386, %v1385
      %v1421 = vpack.c.bf16 %v1388, %v1387
      %v1422 = vpack.c.bf16 %v1390, %v1389
      %v1423 = vpack.c.bf16 %v1392, %v1391
      %v1424 = vpack.c.bf16 %v1394, %v1393
      %v1425 = vpack.c.bf16 %v1396, %v1395
      %v1426 = vpack.c.bf16 %v1398, %v1397
      %v1427 = vpack.c.bf16 %v1400, %v1399
      %v1428 = vpack.c.bf16 %v1402, %v1401
      %v1429 = vpack.c.bf16 %v1404, %v1403
      %v1430 = vpack.c.bf16 %v1406, %v1405
      %v1431 = vpack.c.bf16 %v1408, %v1407
      %v1432 = vpack.c.bf16 %v1410, %v1409
      %v1433 = vpack.c.bf16 %v1412, %v1411
      %v1434 = vpack.c.bf16 %v1414, %v1413
      %v1435 = vpack.c.bf16 %v1416, %v1415
      %v1436 = vpack.c.bf16 %v1418, %v1417
      %s1437 = scalar_lea.vmem %s3, 256
      %v1438 = vld [vmem:[%s1437] sm:$0xf]
      %v1439 = vld [vmem:[%s1437 + $0x4] sm:$0xf]
      %v1440 = vld [vmem:[%s1437 + $0x8] sm:$0xf]
      %v1441 = vld [vmem:[%s1437 + $0xc] sm:$0xf]
      %v1442 = vld [vmem:[%s1437 + $0x10] sm:$0xf]
      %v1443 = vld [vmem:[%s1437 + $0x14] sm:$0xf]
      %v1444 = vld [vmem:[%s1437 + $0x18] sm:$0xf]
      %v1445 = vld [vmem:[%s1437 + $0x1c] sm:$0xf]
      %v1446 = vld [vmem:[%s1437 + $0x20] sm:$0xf]
      %v1447 = vld [vmem:[%s1437 + $0x24] sm:$0xf]
      %v1448 = vld [vmem:[%s1437 + $0x28] sm:$0xf]
      %v1449 = vld [vmem:[%s1437 + $0x2c] sm:$0xf]
      %v1450 = vld [vmem:[%s1437 + $0x30] sm:$0xf]
      %v1451 = vld [vmem:[%s1437 + $0x34] sm:$0xf]
      %v1452 = vld [vmem:[%s1437 + $0x38] sm:$0xf]
      %v1453 = vld [vmem:[%s1437 + $0x3c] sm:$0xf]
      %v1470 = vunpack.c.l.b16 %v1438
      %v1471 = vunpack.c.l.b16 %v1439
      %v1472 = vunpack.c.l.b16 %v1440
      %v1473 = vunpack.c.l.b16 %v1441
      %v1474 = vunpack.c.l.b16 %v1442
      %v1475 = vunpack.c.l.b16 %v1443
      %v1476 = vunpack.c.l.b16 %v1444
      %v1477 = vunpack.c.l.b16 %v1445
      %v1478 = vunpack.c.l.b16 %v1446
      %v1479 = vunpack.c.l.b16 %v1447
      %v1480 = vunpack.c.l.b16 %v1448
      %v1481 = vunpack.c.l.b16 %v1449
      %v1482 = vunpack.c.l.b16 %v1450
      %v1483 = vunpack.c.l.b16 %v1451
      %v1484 = vunpack.c.l.b16 %v1452
      %v1485 = vunpack.c.l.b16 %v1453
      %v1486 = vpack.c.b16 %v1471, %v1470
      %v1487 = vpack.c.b16 %v1473, %v1472
      %v1488 = vpack.c.b16 %v1475, %v1474
      %v1489 = vpack.c.b16 %v1477, %v1476
      %v1490 = vpack.c.b16 %v1479, %v1478
      %v1491 = vpack.c.b16 %v1481, %v1480
      %v1492 = vpack.c.b16 %v1483, %v1482
      %v1493 = vpack.c.b16 %v1485, %v1484
      %1502 = vmatpush.bf16.msra.mxu0 %v1493
      %1503 = vmatpush.bf16.msra.mxu0 %v1492
      %1504 = vmatpush.bf16.msra.mxu0 %v1491
      %1505 = vmatpush.bf16.msra.mxu0 %v1490
      %1506 = vmatpush.bf16.msra.mxu0 %v1489
      %1507 = vmatpush.bf16.msra.mxu0 %v1488
      %1508 = vmatpush.bf16.msra.mxu0 %v1487
      %1509 = vmatpush.bf16.msra.mxu0 %v1486
      %1510 = vmatmul.bf16.gmra.mxu0 %v1419
      %v1511 = vpop.f32.mrf.mxu0
      %v1512 = vadd.f32 0.0, %v1511
      %v1513 = vpop.f32.mrf.mxu0
      %v1514 = vadd.f32 0.0, %v1513
      %1515 = vmatmul.bf16.gmra.mxu0 %v1420
      %v1516 = vpop.f32.mrf.mxu0
      %v1517 = vadd.f32 0.0, %v1516
      %v1518 = vpop.f32.mrf.mxu0
      %v1519 = vadd.f32 0.0, %v1518
      %1520 = vmatmul.bf16.gmra.mxu0 %v1421
      %v1521 = vpop.f32.mrf.mxu0
      %v1522 = vadd.f32 0.0, %v1521
      %v1523 = vpop.f32.mrf.mxu0
      %v1524 = vadd.f32 0.0, %v1523
      %1525 = vmatmul.bf16.gmra.mxu0 %v1422
      %v1526 = vpop.f32.mrf.mxu0
      %v1527 = vadd.f32 0.0, %v1526
      %v1528 = vpop.f32.mrf.mxu0
      %v1529 = vadd.f32 0.0, %v1528
      %1530 = vmatmul.bf16.gmra.mxu0 %v1423
      %v1531 = vpop.f32.mrf.mxu0
      %v1532 = vadd.f32 0.0, %v1531
      %v1533 = vpop.f32.mrf.mxu0
      %v1534 = vadd.f32 0.0, %v1533
      %1535 = vmatmul.bf16.gmra.mxu0 %v1424
      %v1536 = vpop.f32.mrf.mxu0
      %v1537 = vadd.f32 0.0, %v1536
      %v1538 = vpop.f32.mrf.mxu0
      %v1539 = vadd.f32 0.0, %v1538
      %1540 = vmatmul.bf16.gmra.mxu0 %v1425
      %v1541 = vpop.f32.mrf.mxu0
      %v1542 = vadd.f32 0.0, %v1541
      %v1543 = vpop.f32.mrf.mxu0
      %v1544 = vadd.f32 0.0, %v1543
      %1545 = vmatmul.bf16.gmra.mxu0 %v1426
      %v1546 = vpop.f32.mrf.mxu0
      %v1547 = vadd.f32 0.0, %v1546
      %v1548 = vpop.f32.mrf.mxu0
      %v1549 = vadd.f32 0.0, %v1548
      %1550 = vmatmul.bf16.gmra.mxu0 %v1427
      %v1551 = vpop.f32.mrf.mxu0
      %v1552 = vadd.f32 0.0, %v1551
      %v1553 = vpop.f32.mrf.mxu0
      %v1554 = vadd.f32 0.0, %v1553
      %1555 = vmatmul.bf16.gmra.mxu0 %v1428
      %v1556 = vpop.f32.mrf.mxu0
      %v1557 = vadd.f32 0.0, %v1556
      %v1558 = vpop.f32.mrf.mxu0
      %v1559 = vadd.f32 0.0, %v1558
      %1560 = vmatmul.bf16.gmra.mxu0 %v1429
      %v1561 = vpop.f32.mrf.mxu0
      %v1562 = vadd.f32 0.0, %v1561
      %v1563 = vpop.f32.mrf.mxu0
      %v1564 = vadd.f32 0.0, %v1563
      %1565 = vmatmul.bf16.gmra.mxu0 %v1430
      %v1566 = vpop.f32.mrf.mxu0
      %v1567 = vadd.f32 0.0, %v1566
      %v1568 = vpop.f32.mrf.mxu0
      %v1569 = vadd.f32 0.0, %v1568
      %1570 = vmatmul.bf16.gmra.mxu0 %v1431
      %v1571 = vpop.f32.mrf.mxu0
      %v1572 = vadd.f32 0.0, %v1571
      %v1573 = vpop.f32.mrf.mxu0
      %v1574 = vadd.f32 0.0, %v1573
      %1575 = vmatmul.bf16.gmra.mxu0 %v1432
      %v1576 = vpop.f32.mrf.mxu0
      %v1577 = vadd.f32 0.0, %v1576
      %v1578 = vpop.f32.mrf.mxu0
      %v1579 = vadd.f32 0.0, %v1578
      %1580 = vmatmul.bf16.gmra.mxu0 %v1433
      %v1581 = vpop.f32.mrf.mxu0
      %v1582 = vadd.f32 0.0, %v1581
      %v1583 = vpop.f32.mrf.mxu0
      %v1584 = vadd.f32 0.0, %v1583
      %1585 = vmatmul.bf16.gmra.mxu0 %v1434
      %v1586 = vpop.f32.mrf.mxu0
      %v1587 = vadd.f32 0.0, %v1586
      %v1588 = vpop.f32.mrf.mxu0
      %v1589 = vadd.f32 0.0, %v1588
      %1590 = vmatmul.bf16.gmra.mxu0 %v1435
      %v1591 = vpop.f32.mrf.mxu0
      %v1592 = vadd.f32 0.0, %v1591
      %v1593 = vpop.f32.mrf.mxu0
      %v1594 = vadd.f32 0.0, %v1593
      %1595 = vmatmul.bf16.gmra.mxu0 %v1436
      %v1596 = vpop.f32.mrf.mxu0
      %v1597 = vadd.f32 0.0, %v1596
      %v1598 = vpop.f32.mrf.mxu0
      %v1599 = vadd.f32 0.0, %v1598
      %1600 = vdwg.mxu0
      %v1601 = vadd.f32 %v1347, %v1512
      %v1602 = vadd.f32 %v1348, %v1514
      %v1603 = vadd.f32 %v1349, %v1517
      %v1604 = vadd.f32 %v1350, %v1519
      %v1605 = vadd.f32 %v1351, %v1522
      %v1606 = vadd.f32 %v1352, %v1524
      %v1607 = vadd.f32 %v1353, %v1527
      %v1608 = vadd.f32 %v1354, %v1529
      %v1609 = vadd.f32 %v1355, %v1532
      %v1610 = vadd.f32 %v1356, %v1534
      %v1611 = vadd.f32 %v1357, %v1537
      %v1612 = vadd.f32 %v1358, %v1539
      %v1613 = vadd.f32 %v1359, %v1542
      %v1614 = vadd.f32 %v1360, %v1544
      %v1615 = vadd.f32 %v1361, %v1547
      %v1616 = vadd.f32 %v1362, %v1549
      %v1617 = vadd.f32 %v1363, %v1552
      %v1618 = vadd.f32 %v1364, %v1554
      %v1619 = vadd.f32 %v1365, %v1557
      %v1620 = vadd.f32 %v1366, %v1559
      %v1621 = vadd.f32 %v1367, %v1562
      %v1622 = vadd.f32 %v1368, %v1564
      %v1623 = vadd.f32 %v1369, %v1567
      %v1624 = vadd.f32 %v1370, %v1569
      %v1625 = vadd.f32 %v1371, %v1572
      %v1626 = vadd.f32 %v1372, %v1574
      %v1627 = vadd.f32 %v1373, %v1577
      %v1628 = vadd.f32 %v1374, %v1579
      %v1629 = vadd.f32 %v1375, %v1582
      %v1630 = vadd.f32 %v1376, %v1584
      %v1631 = vadd.f32 %v1377, %v1587
      %v1632 = vadd.f32 %v1378, %v1589
      %v1633 = vadd.f32 %v1379, %v1592
      %v1634 = vadd.f32 %v1380, %v1594
      %v1635 = vadd.f32 %v1381, %v1597
      %v1636 = vadd.f32 %v1382, %v1599
      %v1637 = vld [vmem:[%s381 + $0x14] sm:$0xff]
      %v1638 = vld [vmem:[%s381 + $0x1c] sm:$0xff]
      %v1639 = vld [vmem:[%s381 + $0x24] sm:$0xff]
      %v1640 = vld [vmem:[%s381 + $0x2c] sm:$0xff]
      %v1641 = vld [vmem:[%s381 + $0x34] sm:$0xff]
      %v1642 = vld [vmem:[%s381 + $0x3c] sm:$0xff]
      %v1643 = vld [vmem:[%s381 + $0x44] sm:$0xff]
      %v1644 = vld [vmem:[%s381 + $0x4c] sm:$0xff]
      %v1645 = vld [vmem:[%s381 + $0x54] sm:$0xff]
      %v1646 = vld [vmem:[%s381 + $0x5c] sm:$0xff]
      %v1647 = vld [vmem:[%s381 + $0x64] sm:$0xff]
      %v1648 = vld [vmem:[%s381 + $0x6c] sm:$0xff]
      %v1649 = vld [vmem:[%s381 + $0x74] sm:$0xff]
      %v1650 = vld [vmem:[%s381 + $0x7c] sm:$0xff]
      %v1651 = vld [vmem:[%s381 + $0x84] sm:$0xff]
      %v1652 = vld [vmem:[%s381 + $0x8c] sm:$0xff]
      %v1653 = vld [vmem:[%s381 + $0x94] sm:$0xff]
      %v1654 = vld [vmem:[%s381 + $0x9c] sm:$0xff]
      %v1655 = vld [vmem:[%s381 + $0xa4] sm:$0xff]
      %v1656 = vld [vmem:[%s381 + $0xac] sm:$0xff]
      %v1657 = vld [vmem:[%s381 + $0xb4] sm:$0xff]
      %v1658 = vld [vmem:[%s381 + $0xbc] sm:$0xff]
      %v1659 = vld [vmem:[%s381 + $0xc4] sm:$0xff]
      %v1660 = vld [vmem:[%s381 + $0xcc] sm:$0xff]
      %v1661 = vld [vmem:[%s381 + $0xd4] sm:$0xff]
      %v1662 = vld [vmem:[%s381 + $0xdc] sm:$0xff]
      %v1663 = vld [vmem:[%s381 + $0xe4] sm:$0xff]
      %v1664 = vld [vmem:[%s381 + $0xec] sm:$0xff]
      %v1665 = vld [vmem:[%s381 + $0xf4] sm:$0xff]
      %v1666 = vld [vmem:[%s381 + $0xfc] sm:$0xff]
      %v1667 = vld [vmem:[%s381 + $0x104] sm:$0xff]
      %v1668 = vld [vmem:[%s381 + $0x10c] sm:$0xff]
      %v1669 = vld [vmem:[%s381 + $0x114] sm:$0xff]
      %v1670 = vld [vmem:[%s381 + $0x11c] sm:$0xff]
      %v1671 = vld [vmem:[%s381 + $0x124] sm:$0xff]
      %v1672 = vld [vmem:[%s381 + $0x12c] sm:$0x3f]
      %v1673 = vpack.c.bf16 %v1638, %v1637
      %v1674 = vpack.c.bf16 %v1640, %v1639
      %v1675 = vpack.c.bf16 %v1642, %v1641
      %v1676 = vpack.c.bf16 %v1644, %v1643
      %v1677 = vpack.c.bf16 %v1646, %v1645
      %v1678 = vpack.c.bf16 %v1648, %v1647
      %v1679 = vpack.c.bf16 %v1650, %v1649
      %v1680 = vpack.c.bf16 %v1652, %v1651
      %v1681 = vpack.c.bf16 %v1654, %v1653
      %v1682 = vpack.c.bf16 %v1656, %v1655
      %v1683 = vpack.c.bf16 %v1658, %v1657
      %v1684 = vpack.c.bf16 %v1660, %v1659
      %v1685 = vpack.c.bf16 %v1662, %v1661
      %v1686 = vpack.c.bf16 %v1664, %v1663
      %v1687 = vpack.c.bf16 %v1666, %v1665
      %v1688 = vpack.c.bf16 %v1668, %v1667
      %v1689 = vpack.c.bf16 %v1670, %v1669
      %v1690 = vpack.c.bf16 %v1672, %v1671
      %s1691 = scalar_lea.vmem %s3, 320
      %v1692 = vld [vmem:[%s1691] sm:$0xf]
      %v1693 = vld [vmem:[%s1691 + $0x4] sm:$0xf]
      %v1694 = vld [vmem:[%s1691 + $0x8] sm:$0xf]
      %v1695 = vld [vmem:[%s1691 + $0xc] sm:$0xf]
      %v1696 = vld [vmem:[%s1691 + $0x10] sm:$0xf]
      %v1697 = vld [vmem:[%s1691 + $0x14] sm:$0xf]
      %v1698 = vld [vmem:[%s1691 + $0x18] sm:$0xf]
      %v1699 = vld [vmem:[%s1691 + $0x1c] sm:$0xf]
      %v1700 = vld [vmem:[%s1691 + $0x20] sm:$0xf]
      %v1701 = vld [vmem:[%s1691 + $0x24] sm:$0xf]
      %v1702 = vld [vmem:[%s1691 + $0x28] sm:$0xf]
      %v1703 = vld [vmem:[%s1691 + $0x2c] sm:$0xf]
      %v1704 = vld [vmem:[%s1691 + $0x30] sm:$0xf]
      %v1705 = vld [vmem:[%s1691 + $0x34] sm:$0xf]
      %v1706 = vld [vmem:[%s1691 + $0x38] sm:$0xf]
      %v1707 = vld [vmem:[%s1691 + $0x3c] sm:$0xf]
      %v1724 = vunpack.c.l.b16 %v1692
      %v1725 = vunpack.c.l.b16 %v1693
      %v1726 = vunpack.c.l.b16 %v1694
      %v1727 = vunpack.c.l.b16 %v1695
      %v1728 = vunpack.c.l.b16 %v1696
      %v1729 = vunpack.c.l.b16 %v1697
      %v1730 = vunpack.c.l.b16 %v1698
      %v1731 = vunpack.c.l.b16 %v1699
      %v1732 = vunpack.c.l.b16 %v1700
      %v1733 = vunpack.c.l.b16 %v1701
      %v1734 = vunpack.c.l.b16 %v1702
      %v1735 = vunpack.c.l.b16 %v1703
      %v1736 = vunpack.c.l.b16 %v1704
      %v1737 = vunpack.c.l.b16 %v1705
      %v1738 = vunpack.c.l.b16 %v1706
      %v1739 = vunpack.c.l.b16 %v1707
      %v1740 = vpack.c.b16 %v1725, %v1724
      %v1741 = vpack.c.b16 %v1727, %v1726
      %v1742 = vpack.c.b16 %v1729, %v1728
      %v1743 = vpack.c.b16 %v1731, %v1730
      %v1744 = vpack.c.b16 %v1733, %v1732
      %v1745 = vpack.c.b16 %v1735, %v1734
      %v1746 = vpack.c.b16 %v1737, %v1736
      %v1747 = vpack.c.b16 %v1739, %v1738
      %1756 = vmatpush.bf16.msra.mxu0 %v1747
      %1757 = vmatpush.bf16.msra.mxu0 %v1746
      %1758 = vmatpush.bf16.msra.mxu0 %v1745
      %1759 = vmatpush.bf16.msra.mxu0 %v1744
      %1760 = vmatpush.bf16.msra.mxu0 %v1743
      %1761 = vmatpush.bf16.msra.mxu0 %v1742
      %1762 = vmatpush.bf16.msra.mxu0 %v1741
      %1763 = vmatpush.bf16.msra.mxu0 %v1740
      %1764 = vmatmul.bf16.gmra.mxu0 %v1673
      %v1765 = vpop.f32.mrf.mxu0
      %v1766 = vadd.f32 0.0, %v1765
      %v1767 = vpop.f32.mrf.mxu0
      %v1768 = vadd.f32 0.0, %v1767
      %1769 = vmatmul.bf16.gmra.mxu0 %v1674
      %v1770 = vpop.f32.mrf.mxu0
      %v1771 = vadd.f32 0.0, %v1770
      %v1772 = vpop.f32.mrf.mxu0
      %v1773 = vadd.f32 0.0, %v1772
      %1774 = vmatmul.bf16.gmra.mxu0 %v1675
      %v1775 = vpop.f32.mrf.mxu0
      %v1776 = vadd.f32 0.0, %v1775
      %v1777 = vpop.f32.mrf.mxu0
      %v1778 = vadd.f32 0.0, %v1777
      %1779 = vmatmul.bf16.gmra.mxu0 %v1676
      %v1780 = vpop.f32.mrf.mxu0
      %v1781 = vadd.f32 0.0, %v1780
      %v1782 = vpop.f32.mrf.mxu0
      %v1783 = vadd.f32 0.0, %v1782
      %1784 = vmatmul.bf16.gmra.mxu0 %v1677
      %v1785 = vpop.f32.mrf.mxu0
      %v1786 = vadd.f32 0.0, %v1785
      %v1787 = vpop.f32.mrf.mxu0
      %v1788 = vadd.f32 0.0, %v1787
      %1789 = vmatmul.bf16.gmra.mxu0 %v1678
      %v1790 = vpop.f32.mrf.mxu0
      %v1791 = vadd.f32 0.0, %v1790
      %v1792 = vpop.f32.mrf.mxu0
      %v1793 = vadd.f32 0.0, %v1792
      %1794 = vmatmul.bf16.gmra.mxu0 %v1679
      %v1795 = vpop.f32.mrf.mxu0
      %v1796 = vadd.f32 0.0, %v1795
      %v1797 = vpop.f32.mrf.mxu0
      %v1798 = vadd.f32 0.0, %v1797
      %1799 = vmatmul.bf16.gmra.mxu0 %v1680
      %v1800 = vpop.f32.mrf.mxu0
      %v1801 = vadd.f32 0.0, %v1800
      %v1802 = vpop.f32.mrf.mxu0
      %v1803 = vadd.f32 0.0, %v1802
      %1804 = vmatmul.bf16.gmra.mxu0 %v1681
      %v1805 = vpop.f32.mrf.mxu0
      %v1806 = vadd.f32 0.0, %v1805
      %v1807 = vpop.f32.mrf.mxu0
      %v1808 = vadd.f32 0.0, %v1807
      %1809 = vmatmul.bf16.gmra.mxu0 %v1682
      %v1810 = vpop.f32.mrf.mxu0
      %v1811 = vadd.f32 0.0, %v1810
      %v1812 = vpop.f32.mrf.mxu0
      %v1813 = vadd.f32 0.0, %v1812
      %1814 = vmatmul.bf16.gmra.mxu0 %v1683
      %v1815 = vpop.f32.mrf.mxu0
      %v1816 = vadd.f32 0.0, %v1815
      %v1817 = vpop.f32.mrf.mxu0
      %v1818 = vadd.f32 0.0, %v1817
      %1819 = vmatmul.bf16.gmra.mxu0 %v1684
      %v1820 = vpop.f32.mrf.mxu0
      %v1821 = vadd.f32 0.0, %v1820
      %v1822 = vpop.f32.mrf.mxu0
      %v1823 = vadd.f32 0.0, %v1822
      %1824 = vmatmul.bf16.gmra.mxu0 %v1685
      %v1825 = vpop.f32.mrf.mxu0
      %v1826 = vadd.f32 0.0, %v1825
      %v1827 = vpop.f32.mrf.mxu0
      %v1828 = vadd.f32 0.0, %v1827
      %1829 = vmatmul.bf16.gmra.mxu0 %v1686
      %v1830 = vpop.f32.mrf.mxu0
      %v1831 = vadd.f32 0.0, %v1830
      %v1832 = vpop.f32.mrf.mxu0
      %v1833 = vadd.f32 0.0, %v1832
      %1834 = vmatmul.bf16.gmra.mxu0 %v1687
      %v1835 = vpop.f32.mrf.mxu0
      %v1836 = vadd.f32 0.0, %v1835
      %v1837 = vpop.f32.mrf.mxu0
      %v1838 = vadd.f32 0.0, %v1837
      %1839 = vmatmul.bf16.gmra.mxu0 %v1688
      %v1840 = vpop.f32.mrf.mxu0
      %v1841 = vadd.f32 0.0, %v1840
      %v1842 = vpop.f32.mrf.mxu0
      %v1843 = vadd.f32 0.0, %v1842
      %1844 = vmatmul.bf16.gmra.mxu0 %v1689
      %v1845 = vpop.f32.mrf.mxu0
      %v1846 = vadd.f32 0.0, %v1845
      %v1847 = vpop.f32.mrf.mxu0
      %v1848 = vadd.f32 0.0, %v1847
      %1849 = vmatmul.bf16.gmra.mxu0 %v1690
      %v1850 = vpop.f32.mrf.mxu0
      %v1851 = vadd.f32 0.0, %v1850
      %v1852 = vpop.f32.mrf.mxu0
      %v1853 = vadd.f32 0.0, %v1852
      %1854 = vdwg.mxu0
      %v1855 = vadd.f32 %v1601, %v1766
      %v1856 = vadd.f32 %v1602, %v1768
      %v1857 = vadd.f32 %v1603, %v1771
      %v1858 = vadd.f32 %v1604, %v1773
      %v1859 = vadd.f32 %v1605, %v1776
      %v1860 = vadd.f32 %v1606, %v1778
      %v1861 = vadd.f32 %v1607, %v1781
      %v1862 = vadd.f32 %v1608, %v1783
      %v1863 = vadd.f32 %v1609, %v1786
      %v1864 = vadd.f32 %v1610, %v1788
      %v1865 = vadd.f32 %v1611, %v1791
      %v1866 = vadd.f32 %v1612, %v1793
      %v1867 = vadd.f32 %v1613, %v1796
      %v1868 = vadd.f32 %v1614, %v1798
      %v1869 = vadd.f32 %v1615, %v1801
      %v1870 = vadd.f32 %v1616, %v1803
      %v1871 = vadd.f32 %v1617, %v1806
      %v1872 = vadd.f32 %v1618, %v1808
      %v1873 = vadd.f32 %v1619, %v1811
      %v1874 = vadd.f32 %v1620, %v1813
      %v1875 = vadd.f32 %v1621, %v1816
      %v1876 = vadd.f32 %v1622, %v1818
      %v1877 = vadd.f32 %v1623, %v1821
      %v1878 = vadd.f32 %v1624, %v1823
      %v1879 = vadd.f32 %v1625, %v1826
      %v1880 = vadd.f32 %v1626, %v1828
      %v1881 = vadd.f32 %v1627, %v1831
      %v1882 = vadd.f32 %v1628, %v1833
      %v1883 = vadd.f32 %v1629, %v1836
      %v1884 = vadd.f32 %v1630, %v1838
      %v1885 = vadd.f32 %v1631, %v1841
      %v1886 = vadd.f32 %v1632, %v1843
      %v1887 = vadd.f32 %v1633, %v1846
      %v1888 = vadd.f32 %v1634, %v1848
      %v1889 = vadd.f32 %v1635, %v1851
      %v1890 = vadd.f32 %v1636, %v1853
      %v1891 = vld [vmem:[%s381 + $0x24] sm:$0xff]
      %v1892 = vld [vmem:[%s381 + $0x2c] sm:$0xff]
      %v1893 = vld [vmem:[%s381 + $0x34] sm:$0xff]
      %v1894 = vld [vmem:[%s381 + $0x3c] sm:$0xff]
      %v1895 = vld [vmem:[%s381 + $0x44] sm:$0xff]
      %v1896 = vld [vmem:[%s381 + $0x4c] sm:$0xff]
      %v1897 = vld [vmem:[%s381 + $0x54] sm:$0xff]
      %v1898 = vld [vmem:[%s381 + $0x5c] sm:$0xff]
      %v1899 = vld [vmem:[%s381 + $0x64] sm:$0xff]
      %v1900 = vld [vmem:[%s381 + $0x6c] sm:$0xff]
      %v1901 = vld [vmem:[%s381 + $0x74] sm:$0xff]
      %v1902 = vld [vmem:[%s381 + $0x7c] sm:$0xff]
      %v1903 = vld [vmem:[%s381 + $0x84] sm:$0xff]
      %v1904 = vld [vmem:[%s381 + $0x8c] sm:$0xff]
      %v1905 = vld [vmem:[%s381 + $0x94] sm:$0xff]
      %v1906 = vld [vmem:[%s381 + $0x9c] sm:$0xff]
      %v1907 = vld [vmem:[%s381 + $0xa4] sm:$0xff]
      %v1908 = vld [vmem:[%s381 + $0xac] sm:$0xff]
      %v1909 = vld [vmem:[%s381 + $0xb4] sm:$0xff]
      %v1910 = vld [vmem:[%s381 + $0xbc] sm:$0xff]
      %v1911 = vld [vmem:[%s381 + $0xc4] sm:$0xff]
      %v1912 = vld [vmem:[%s381 + $0xcc] sm:$0xff]
      %v1913 = vld [vmem:[%s381 + $0xd4] sm:$0xff]
      %v1914 = vld [vmem:[%s381 + $0xdc] sm:$0xff]
      %v1915 = vld [vmem:[%s381 + $0xe4] sm:$0xff]
      %v1916 = vld [vmem:[%s381 + $0xec] sm:$0xff]
      %v1917 = vld [vmem:[%s381 + $0xf4] sm:$0xff]
      %v1918 = vld [vmem:[%s381 + $0xfc] sm:$0xff]
      %v1919 = vld [vmem:[%s381 + $0x104] sm:$0xff]
      %v1920 = vld [vmem:[%s381 + $0x10c] sm:$0xff]
      %v1921 = vld [vmem:[%s381 + $0x114] sm:$0xff]
      %v1922 = vld [vmem:[%s381 + $0x11c] sm:$0xff]
      %v1923 = vld [vmem:[%s381 + $0x124] sm:$0xff]
      %v1924 = vld [vmem:[%s381 + $0x12c] sm:$0xff]
      %v1925 = vld [vmem:[%s381 + $0x134] sm:$0xff]
      %v1926 = vld [vmem:[%s381 + $0x13c] sm:$0x3f]
      %v1927 = vpack.c.bf16 %v1892, %v1891
      %v1928 = vpack.c.bf16 %v1894, %v1893
      %v1929 = vpack.c.bf16 %v1896, %v1895
      %v1930 = vpack.c.bf16 %v1898, %v1897
      %v1931 = vpack.c.bf16 %v1900, %v1899
      %v1932 = vpack.c.bf16 %v1902, %v1901
      %v1933 = vpack.c.bf16 %v1904, %v1903
      %v1934 = vpack.c.bf16 %v1906, %v1905
      %v1935 = vpack.c.bf16 %v1908, %v1907
      %v1936 = vpack.c.bf16 %v1910, %v1909
      %v1937 = vpack.c.bf16 %v1912, %v1911
      %v1938 = vpack.c.bf16 %v1914, %v1913
      %v1939 = vpack.c.bf16 %v1916, %v1915
      %v1940 = vpack.c.bf16 %v1918, %v1917
      %v1941 = vpack.c.bf16 %v1920, %v1919
      %v1942 = vpack.c.bf16 %v1922, %v1921
      %v1943 = vpack.c.bf16 %v1924, %v1923
      %v1944 = vpack.c.bf16 %v1926, %v1925
      %s1945 = scalar_lea.vmem %s3, 384
      %v1946 = vld [vmem:[%s1945] sm:$0xf]
      %v1947 = vld [vmem:[%s1945 + $0x4] sm:$0xf]
      %v1948 = vld [vmem:[%s1945 + $0x8] sm:$0xf]
      %v1949 = vld [vmem:[%s1945 + $0xc] sm:$0xf]
      %v1950 = vld [vmem:[%s1945 + $0x10] sm:$0xf]
      %v1951 = vld [vmem:[%s1945 + $0x14] sm:$0xf]
      %v1952 = vld [vmem:[%s1945 + $0x18] sm:$0xf]
      %v1953 = vld [vmem:[%s1945 + $0x1c] sm:$0xf]
      %v1954 = vld [vmem:[%s1945 + $0x20] sm:$0xf]
      %v1955 = vld [vmem:[%s1945 + $0x24] sm:$0xf]
      %v1956 = vld [vmem:[%s1945 + $0x28] sm:$0xf]
      %v1957 = vld [vmem:[%s1945 + $0x2c] sm:$0xf]
      %v1958 = vld [vmem:[%s1945 + $0x30] sm:$0xf]
      %v1959 = vld [vmem:[%s1945 + $0x34] sm:$0xf]
      %v1960 = vld [vmem:[%s1945 + $0x38] sm:$0xf]
      %v1961 = vld [vmem:[%s1945 + $0x3c] sm:$0xf]
      %v1978 = vunpack.c.l.b16 %v1946
      %v1979 = vunpack.c.l.b16 %v1947
      %v1980 = vunpack.c.l.b16 %v1948
      %v1981 = vunpack.c.l.b16 %v1949
      %v1982 = vunpack.c.l.b16 %v1950
      %v1983 = vunpack.c.l.b16 %v1951
      %v1984 = vunpack.c.l.b16 %v1952
      %v1985 = vunpack.c.l.b16 %v1953
      %v1986 = vunpack.c.l.b16 %v1954
      %v1987 = vunpack.c.l.b16 %v1955
      %v1988 = vunpack.c.l.b16 %v1956
      %v1989 = vunpack.c.l.b16 %v1957
      %v1990 = vunpack.c.l.b16 %v1958
      %v1991 = vunpack.c.l.b16 %v1959
      %v1992 = vunpack.c.l.b16 %v1960
      %v1993 = vunpack.c.l.b16 %v1961
      %v1994 = vpack.c.b16 %v1979, %v1978
      %v1995 = vpack.c.b16 %v1981, %v1980
      %v1996 = vpack.c.b16 %v1983, %v1982
      %v1997 = vpack.c.b16 %v1985, %v1984
      %v1998 = vpack.c.b16 %v1987, %v1986
      %v1999 = vpack.c.b16 %v1989, %v1988
      %v2000 = vpack.c.b16 %v1991, %v1990
      %v2001 = vpack.c.b16 %v1993, %v1992
      %2010 = vmatpush.bf16.msra.mxu0 %v2001
      %2011 = vmatpush.bf16.msra.mxu0 %v2000
      %2012 = vmatpush.bf16.msra.mxu0 %v1999
      %2013 = vmatpush.bf16.msra.mxu0 %v1998
      %2014 = vmatpush.bf16.msra.mxu0 %v1997
      %2015 = vmatpush.bf16.msra.mxu0 %v1996
      %2016 = vmatpush.bf16.msra.mxu0 %v1995
      %2017 = vmatpush.bf16.msra.mxu0 %v1994
      %2018 = vmatmul.bf16.gmra.mxu0 %v1927
      %v2019 = vpop.f32.mrf.mxu0
      %v2020 = vadd.f32 0.0, %v2019
      %v2021 = vpop.f32.mrf.mxu0
      %v2022 = vadd.f32 0.0, %v2021
      %2023 = vmatmul.bf16.gmra.mxu0 %v1928
      %v2024 = vpop.f32.mrf.mxu0
      %v2025 = vadd.f32 0.0, %v2024
      %v2026 = vpop.f32.mrf.mxu0
      %v2027 = vadd.f32 0.0, %v2026
      %2028 = vmatmul.bf16.gmra.mxu0 %v1929
      %v2029 = vpop.f32.mrf.mxu0
      %v2030 = vadd.f32 0.0, %v2029
      %v2031 = vpop.f32.mrf.mxu0
      %v2032 = vadd.f32 0.0, %v2031
      %2033 = vmatmul.bf16.gmra.mxu0 %v1930
      %v2034 = vpop.f32.mrf.mxu0
      %v2035 = vadd.f32 0.0, %v2034
      %v2036 = vpop.f32.mrf.mxu0
      %v2037 = vadd.f32 0.0, %v2036
      %2038 = vmatmul.bf16.gmra.mxu0 %v1931
      %v2039 = vpop.f32.mrf.mxu0
      %v2040 = vadd.f32 0.0, %v2039
      %v2041 = vpop.f32.mrf.mxu0
      %v2042 = vadd.f32 0.0, %v2041
      %2043 = vmatmul.bf16.gmra.mxu0 %v1932
      %v2044 = vpop.f32.mrf.mxu0
      %v2045 = vadd.f32 0.0, %v2044
      %v2046 = vpop.f32.mrf.mxu0
      %v2047 = vadd.f32 0.0, %v2046
      %2048 = vmatmul.bf16.gmra.mxu0 %v1933
      %v2049 = vpop.f32.mrf.mxu0
      %v2050 = vadd.f32 0.0, %v2049
      %v2051 = vpop.f32.mrf.mxu0
      %v2052 = vadd.f32 0.0, %v2051
      %2053 = vmatmul.bf16.gmra.mxu0 %v1934
      %v2054 = vpop.f32.mrf.mxu0
      %v2055 = vadd.f32 0.0, %v2054
      %v2056 = vpop.f32.mrf.mxu0
      %v2057 = vadd.f32 0.0, %v2056
      %2058 = vmatmul.bf16.gmra.mxu0 %v1935
      %v2059 = vpop.f32.mrf.mxu0
      %v2060 = vadd.f32 0.0, %v2059
      %v2061 = vpop.f32.mrf.mxu0
      %v2062 = vadd.f32 0.0, %v2061
      %2063 = vmatmul.bf16.gmra.mxu0 %v1936
      %v2064 = vpop.f32.mrf.mxu0
      %v2065 = vadd.f32 0.0, %v2064
      %v2066 = vpop.f32.mrf.mxu0
      %v2067 = vadd.f32 0.0, %v2066
      %2068 = vmatmul.bf16.gmra.mxu0 %v1937
      %v2069 = vpop.f32.mrf.mxu0
      %v2070 = vadd.f32 0.0, %v2069
      %v2071 = vpop.f32.mrf.mxu0
      %v2072 = vadd.f32 0.0, %v2071
      %2073 = vmatmul.bf16.gmra.mxu0 %v1938
      %v2074 = vpop.f32.mrf.mxu0
      %v2075 = vadd.f32 0.0, %v2074
      %v2076 = vpop.f32.mrf.mxu0
      %v2077 = vadd.f32 0.0, %v2076
      %2078 = vmatmul.bf16.gmra.mxu0 %v1939
      %v2079 = vpop.f32.mrf.mxu0
      %v2080 = vadd.f32 0.0, %v2079
      %v2081 = vpop.f32.mrf.mxu0
      %v2082 = vadd.f32 0.0, %v2081
      %2083 = vmatmul.bf16.gmra.mxu0 %v1940
      %v2084 = vpop.f32.mrf.mxu0
      %v2085 = vadd.f32 0.0, %v2084
      %v2086 = vpop.f32.mrf.mxu0
      %v2087 = vadd.f32 0.0, %v2086
      %2088 = vmatmul.bf16.gmra.mxu0 %v1941
      %v2089 = vpop.f32.mrf.mxu0
      %v2090 = vadd.f32 0.0, %v2089
      %v2091 = vpop.f32.mrf.mxu0
      %v2092 = vadd.f32 0.0, %v2091
      %2093 = vmatmul.bf16.gmra.mxu0 %v1942
      %v2094 = vpop.f32.mrf.mxu0
      %v2095 = vadd.f32 0.0, %v2094
      %v2096 = vpop.f32.mrf.mxu0
      %v2097 = vadd.f32 0.0, %v2096
      %2098 = vmatmul.bf16.gmra.mxu0 %v1943
      %v2099 = vpop.f32.mrf.mxu0
      %v2100 = vadd.f32 0.0, %v2099
      %v2101 = vpop.f32.mrf.mxu0
      %v2102 = vadd.f32 0.0, %v2101
      %2103 = vmatmul.bf16.gmra.mxu0 %v1944
      %v2104 = vpop.f32.mrf.mxu0
      %v2105 = vadd.f32 0.0, %v2104
      %v2106 = vpop.f32.mrf.mxu0
      %v2107 = vadd.f32 0.0, %v2106
      %2108 = vdwg.mxu0
      %v2109 = vadd.f32 %v1855, %v2020
      %v2110 = vadd.f32 %v1856, %v2022
      %v2111 = vadd.f32 %v1857, %v2025
      %v2112 = vadd.f32 %v1858, %v2027
      %v2113 = vadd.f32 %v1859, %v2030
      %v2114 = vadd.f32 %v1860, %v2032
      %v2115 = vadd.f32 %v1861, %v2035
      %v2116 = vadd.f32 %v1862, %v2037
      %v2117 = vadd.f32 %v1863, %v2040
      %v2118 = vadd.f32 %v1864, %v2042
      %v2119 = vadd.f32 %v1865, %v2045
      %v2120 = vadd.f32 %v1866, %v2047
      %v2121 = vadd.f32 %v1867, %v2050
      %v2122 = vadd.f32 %v1868, %v2052
      %v2123 = vadd.f32 %v1869, %v2055
      %v2124 = vadd.f32 %v1870, %v2057
      %v2125 = vadd.f32 %v1871, %v2060
      %v2126 = vadd.f32 %v1872, %v2062
      %v2127 = vadd.f32 %v1873, %v2065
      %v2128 = vadd.f32 %v1874, %v2067
      %v2129 = vadd.f32 %v1875, %v2070
      %v2130 = vadd.f32 %v1876, %v2072
      %v2131 = vadd.f32 %v1877, %v2075
      %v2132 = vadd.f32 %v1878, %v2077
      %v2133 = vadd.f32 %v1879, %v2080
      %v2134 = vadd.f32 %v1880, %v2082
      %v2135 = vadd.f32 %v1881, %v2085
      %v2136 = vadd.f32 %v1882, %v2087
      %v2137 = vadd.f32 %v1883, %v2090
      %v2138 = vadd.f32 %v1884, %v2092
      %v2139 = vadd.f32 %v1885, %v2095
      %v2140 = vadd.f32 %v1886, %v2097
      %v2141 = vadd.f32 %v1887, %v2100
      %v2142 = vadd.f32 %v1888, %v2102
      %v2143 = vadd.f32 %v1889, %v2105
      %v2144 = vadd.f32 %v1890, %v2107
      %v2145 = vld [vmem:[%s381 + $0x25] sm:$0xff]
      %v2146 = vld [vmem:[%s381 + $0x2d] sm:$0xff]
      %v2147 = vld [vmem:[%s381 + $0x35] sm:$0xff]
      %v2148 = vld [vmem:[%s381 + $0x3d] sm:$0xff]
      %v2149 = vld [vmem:[%s381 + $0x45] sm:$0xff]
      %v2150 = vld [vmem:[%s381 + $0x4d] sm:$0xff]
      %v2151 = vld [vmem:[%s381 + $0x55] sm:$0xff]
      %v2152 = vld [vmem:[%s381 + $0x5d] sm:$0xff]
      %v2153 = vld [vmem:[%s381 + $0x65] sm:$0xff]
      %v2154 = vld [vmem:[%s381 + $0x6d] sm:$0xff]
      %v2155 = vld [vmem:[%s381 + $0x75] sm:$0xff]
      %v2156 = vld [vmem:[%s381 + $0x7d] sm:$0xff]
      %v2157 = vld [vmem:[%s381 + $0x85] sm:$0xff]
      %v2158 = vld [vmem:[%s381 + $0x8d] sm:$0xff]
      %v2159 = vld [vmem:[%s381 + $0x95] sm:$0xff]
      %v2160 = vld [vmem:[%s381 + $0x9d] sm:$0xff]
      %v2161 = vld [vmem:[%s381 + $0xa5] sm:$0xff]
      %v2162 = vld [vmem:[%s381 + $0xad] sm:$0xff]
      %v2163 = vld [vmem:[%s381 + $0xb5] sm:$0xff]
      %v2164 = vld [vmem:[%s381 + $0xbd] sm:$0xff]
      %v2165 = vld [vmem:[%s381 + $0xc5] sm:$0xff]
      %v2166 = vld [vmem:[%s381 + $0xcd] sm:$0xff]
      %v2167 = vld [vmem:[%s381 + $0xd5] sm:$0xff]
      %v2168 = vld [vmem:[%s381 + $0xdd] sm:$0xff]
      %v2169 = vld [vmem:[%s381 + $0xe5] sm:$0xff]
      %v2170 = vld [vmem:[%s381 + $0xed] sm:$0xff]
      %v2171 = vld [vmem:[%s381 + $0xf5] sm:$0xff]
      %v2172 = vld [vmem:[%s381 + $0xfd] sm:$0xff]
      %v2173 = vld [vmem:[%s381 + $0x105] sm:$0xff]
      %v2174 = vld [vmem:[%s381 + $0x10d] sm:$0xff]
      %v2175 = vld [vmem:[%s381 + $0x115] sm:$0xff]
      %v2176 = vld [vmem:[%s381 + $0x11d] sm:$0xff]
      %v2177 = vld [vmem:[%s381 + $0x125] sm:$0xff]
      %v2178 = vld [vmem:[%s381 + $0x12d] sm:$0xff]
      %v2179 = vld [vmem:[%s381 + $0x135] sm:$0xff]
      %v2180 = vld [vmem:[%s381 + $0x13d] sm:$0x3f]
      %v2181 = vpack.c.bf16 %v2146, %v2145
      %v2182 = vpack.c.bf16 %v2148, %v2147
      %v2183 = vpack.c.bf16 %v2150, %v2149
      %v2184 = vpack.c.bf16 %v2152, %v2151
      %v2185 = vpack.c.bf16 %v2154, %v2153
      %v2186 = vpack.c.bf16 %v2156, %v2155
      %v2187 = vpack.c.bf16 %v2158, %v2157
      %v2188 = vpack.c.bf16 %v2160, %v2159
      %v2189 = vpack.c.bf16 %v2162, %v2161
      %v2190 = vpack.c.bf16 %v2164, %v2163
      %v2191 = vpack.c.bf16 %v2166, %v2165
      %v2192 = vpack.c.bf16 %v2168, %v2167
      %v2193 = vpack.c.bf16 %v2170, %v2169
      %v2194 = vpack.c.bf16 %v2172, %v2171
      %v2195 = vpack.c.bf16 %v2174, %v2173
      %v2196 = vpack.c.bf16 %v2176, %v2175
      %v2197 = vpack.c.bf16 %v2178, %v2177
      %v2198 = vpack.c.bf16 %v2180, %v2179
      %s2199 = scalar_lea.vmem %s3, 448
      %v2200 = vld [vmem:[%s2199] sm:$0xf]
      %v2201 = vld [vmem:[%s2199 + $0x4] sm:$0xf]
      %v2202 = vld [vmem:[%s2199 + $0x8] sm:$0xf]
      %v2203 = vld [vmem:[%s2199 + $0xc] sm:$0xf]
      %v2204 = vld [vmem:[%s2199 + $0x10] sm:$0xf]
      %v2205 = vld [vmem:[%s2199 + $0x14] sm:$0xf]
      %v2206 = vld [vmem:[%s2199 + $0x18] sm:$0xf]
      %v2207 = vld [vmem:[%s2199 + $0x1c] sm:$0xf]
      %v2208 = vld [vmem:[%s2199 + $0x20] sm:$0xf]
      %v2209 = vld [vmem:[%s2199 + $0x24] sm:$0xf]
      %v2210 = vld [vmem:[%s2199 + $0x28] sm:$0xf]
      %v2211 = vld [vmem:[%s2199 + $0x2c] sm:$0xf]
      %v2212 = vld [vmem:[%s2199 + $0x30] sm:$0xf]
      %v2213 = vld [vmem:[%s2199 + $0x34] sm:$0xf]
      %v2214 = vld [vmem:[%s2199 + $0x38] sm:$0xf]
      %v2215 = vld [vmem:[%s2199 + $0x3c] sm:$0xf]
      %v2232 = vunpack.c.l.b16 %v2200
      %v2233 = vunpack.c.l.b16 %v2201
      %v2234 = vunpack.c.l.b16 %v2202
      %v2235 = vunpack.c.l.b16 %v2203
      %v2236 = vunpack.c.l.b16 %v2204
      %v2237 = vunpack.c.l.b16 %v2205
      %v2238 = vunpack.c.l.b16 %v2206
      %v2239 = vunpack.c.l.b16 %v2207
      %v2240 = vunpack.c.l.b16 %v2208
      %v2241 = vunpack.c.l.b16 %v2209
      %v2242 = vunpack.c.l.b16 %v2210
      %v2243 = vunpack.c.l.b16 %v2211
      %v2244 = vunpack.c.l.b16 %v2212
      %v2245 = vunpack.c.l.b16 %v2213
      %v2246 = vunpack.c.l.b16 %v2214
      %v2247 = vunpack.c.l.b16 %v2215
      %v2248 = vpack.c.b16 %v2233, %v2232
      %v2249 = vpack.c.b16 %v2235, %v2234
      %v2250 = vpack.c.b16 %v2237, %v2236
      %v2251 = vpack.c.b16 %v2239, %v2238
      %v2252 = vpack.c.b16 %v2241, %v2240
      %v2253 = vpack.c.b16 %v2243, %v2242
      %v2254 = vpack.c.b16 %v2245, %v2244
      %v2255 = vpack.c.b16 %v2247, %v2246
      %2264 = vmatpush.bf16.msra.mxu0 %v2255
      %2265 = vmatpush.bf16.msra.mxu0 %v2254
      %2266 = vmatpush.bf16.msra.mxu0 %v2253
      %2267 = vmatpush.bf16.msra.mxu0 %v2252
      %2268 = vmatpush.bf16.msra.mxu0 %v2251
      %2269 = vmatpush.bf16.msra.mxu0 %v2250
      %2270 = vmatpush.bf16.msra.mxu0 %v2249
      %2271 = vmatpush.bf16.msra.mxu0 %v2248
      %2272 = vmatmul.bf16.gmra.mxu0 %v2181
      %v2273 = vpop.f32.mrf.mxu0
      %v2274 = vadd.f32 0.0, %v2273
      %v2275 = vpop.f32.mrf.mxu0
      %v2276 = vadd.f32 0.0, %v2275
      %2277 = vmatmul.bf16.gmra.mxu0 %v2182
      %v2278 = vpop.f32.mrf.mxu0
      %v2279 = vadd.f32 0.0, %v2278
      %v2280 = vpop.f32.mrf.mxu0
      %v2281 = vadd.f32 0.0, %v2280
      %2282 = vmatmul.bf16.gmra.mxu0 %v2183
      %v2283 = vpop.f32.mrf.mxu0
      %v2284 = vadd.f32 0.0, %v2283
      %v2285 = vpop.f32.mrf.mxu0
      %v2286 = vadd.f32 0.0, %v2285
      %2287 = vmatmul.bf16.gmra.mxu0 %v2184
      %v2288 = vpop.f32.mrf.mxu0
      %v2289 = vadd.f32 0.0, %v2288
      %v2290 = vpop.f32.mrf.mxu0
      %v2291 = vadd.f32 0.0, %v2290
      %2292 = vmatmul.bf16.gmra.mxu0 %v2185
      %v2293 = vpop.f32.mrf.mxu0
      %v2294 = vadd.f32 0.0, %v2293
      %v2295 = vpop.f32.mrf.mxu0
      %v2296 = vadd.f32 0.0, %v2295
      %2297 = vmatmul.bf16.gmra.mxu0 %v2186
      %v2298 = vpop.f32.mrf.mxu0
      %v2299 = vadd.f32 0.0, %v2298
      %v2300 = vpop.f32.mrf.mxu0
      %v2301 = vadd.f32 0.0, %v2300
      %2302 = vmatmul.bf16.gmra.mxu0 %v2187
      %v2303 = vpop.f32.mrf.mxu0
      %v2304 = vadd.f32 0.0, %v2303
      %v2305 = vpop.f32.mrf.mxu0
      %v2306 = vadd.f32 0.0, %v2305
      %2307 = vmatmul.bf16.gmra.mxu0 %v2188
      %v2308 = vpop.f32.mrf.mxu0
      %v2309 = vadd.f32 0.0, %v2308
      %v2310 = vpop.f32.mrf.mxu0
      %v2311 = vadd.f32 0.0, %v2310
      %2312 = vmatmul.bf16.gmra.mxu0 %v2189
      %v2313 = vpop.f32.mrf.mxu0
      %v2314 = vadd.f32 0.0, %v2313
      %v2315 = vpop.f32.mrf.mxu0
      %v2316 = vadd.f32 0.0, %v2315
      %2317 = vmatmul.bf16.gmra.mxu0 %v2190
      %v2318 = vpop.f32.mrf.mxu0
      %v2319 = vadd.f32 0.0, %v2318
      %v2320 = vpop.f32.mrf.mxu0
      %v2321 = vadd.f32 0.0, %v2320
      %2322 = vmatmul.bf16.gmra.mxu0 %v2191
      %v2323 = vpop.f32.mrf.mxu0
      %v2324 = vadd.f32 0.0, %v2323
      %v2325 = vpop.f32.mrf.mxu0
      %v2326 = vadd.f32 0.0, %v2325
      %2327 = vmatmul.bf16.gmra.mxu0 %v2192
      %v2328 = vpop.f32.mrf.mxu0
      %v2329 = vadd.f32 0.0, %v2328
      %v2330 = vpop.f32.mrf.mxu0
      %v2331 = vadd.f32 0.0, %v2330
      %2332 = vmatmul.bf16.gmra.mxu0 %v2193
      %v2333 = vpop.f32.mrf.mxu0
      %v2334 = vadd.f32 0.0, %v2333
      %v2335 = vpop.f32.mrf.mxu0
      %v2336 = vadd.f32 0.0, %v2335
      %2337 = vmatmul.bf16.gmra.mxu0 %v2194
      %v2338 = vpop.f32.mrf.mxu0
      %v2339 = vadd.f32 0.0, %v2338
      %v2340 = vpop.f32.mrf.mxu0
      %v2341 = vadd.f32 0.0, %v2340
      %2342 = vmatmul.bf16.gmra.mxu0 %v2195
      %v2343 = vpop.f32.mrf.mxu0
      %v2344 = vadd.f32 0.0, %v2343
      %v2345 = vpop.f32.mrf.mxu0
      %v2346 = vadd.f32 0.0, %v2345
      %2347 = vmatmul.bf16.gmra.mxu0 %v2196
      %v2348 = vpop.f32.mrf.mxu0
      %v2349 = vadd.f32 0.0, %v2348
      %v2350 = vpop.f32.mrf.mxu0
      %v2351 = vadd.f32 0.0, %v2350
      %2352 = vmatmul.bf16.gmra.mxu0 %v2197
      %v2353 = vpop.f32.mrf.mxu0
      %v2354 = vadd.f32 0.0, %v2353
      %v2355 = vpop.f32.mrf.mxu0
      %v2356 = vadd.f32 0.0, %v2355
      %2357 = vmatmul.bf16.gmra.mxu0 %v2198
      %v2358 = vpop.f32.mrf.mxu0
      %v2359 = vadd.f32 0.0, %v2358
      %v2360 = vpop.f32.mrf.mxu0
      %v2361 = vadd.f32 0.0, %v2360
      %2362 = vdwg.mxu0
      %v2363 = vadd.f32 %v2109, %v2274
      %v2364 = vadd.f32 %v2110, %v2276
      %v2365 = vadd.f32 %v2111, %v2279
      %v2366 = vadd.f32 %v2112, %v2281
      %v2367 = vadd.f32 %v2113, %v2284
      %v2368 = vadd.f32 %v2114, %v2286
      %v2369 = vadd.f32 %v2115, %v2289
      %v2370 = vadd.f32 %v2116, %v2291
      %v2371 = vadd.f32 %v2117, %v2294
      %v2372 = vadd.f32 %v2118, %v2296
      %v2373 = vadd.f32 %v2119, %v2299
      %v2374 = vadd.f32 %v2120, %v2301
      %v2375 = vadd.f32 %v2121, %v2304
      %v2376 = vadd.f32 %v2122, %v2306
      %v2377 = vadd.f32 %v2123, %v2309
      %v2378 = vadd.f32 %v2124, %v2311
      %v2379 = vadd.f32 %v2125, %v2314
      %v2380 = vadd.f32 %v2126, %v2316
      %v2381 = vadd.f32 %v2127, %v2319
      %v2382 = vadd.f32 %v2128, %v2321
      %v2383 = vadd.f32 %v2129, %v2324
      %v2384 = vadd.f32 %v2130, %v2326
      %v2385 = vadd.f32 %v2131, %v2329
      %v2386 = vadd.f32 %v2132, %v2331
      %v2387 = vadd.f32 %v2133, %v2334
      %v2388 = vadd.f32 %v2134, %v2336
      %v2389 = vadd.f32 %v2135, %v2339
      %v2390 = vadd.f32 %v2136, %v2341
      %v2391 = vadd.f32 %v2137, %v2344
      %v2392 = vadd.f32 %v2138, %v2346
      %v2393 = vadd.f32 %v2139, %v2349
      %v2394 = vadd.f32 %v2140, %v2351
      %v2395 = vadd.f32 %v2141, %v2354
      %v2396 = vadd.f32 %v2142, %v2356
      %v2397 = vadd.f32 %v2143, %v2359
      %v2398 = vadd.f32 %v2144, %v2361
      %v2399 = vld [vmem:[%s381 + $0x26] sm:$0xff]
      %v2400 = vld [vmem:[%s381 + $0x2e] sm:$0xff]
      %v2401 = vld [vmem:[%s381 + $0x36] sm:$0xff]
      %v2402 = vld [vmem:[%s381 + $0x3e] sm:$0xff]
      %v2403 = vld [vmem:[%s381 + $0x46] sm:$0xff]
      %v2404 = vld [vmem:[%s381 + $0x4e] sm:$0xff]
      %v2405 = vld [vmem:[%s381 + $0x56] sm:$0xff]
      %v2406 = vld [vmem:[%s381 + $0x5e] sm:$0xff]
      %v2407 = vld [vmem:[%s381 + $0x66] sm:$0xff]
      %v2408 = vld [vmem:[%s381 + $0x6e] sm:$0xff]
      %v2409 = vld [vmem:[%s381 + $0x76] sm:$0xff]
      %v2410 = vld [vmem:[%s381 + $0x7e] sm:$0xff]
      %v2411 = vld [vmem:[%s381 + $0x86] sm:$0xff]
      %v2412 = vld [vmem:[%s381 + $0x8e] sm:$0xff]
      %v2413 = vld [vmem:[%s381 + $0x96] sm:$0xff]
      %v2414 = vld [vmem:[%s381 + $0x9e] sm:$0xff]
      %v2415 = vld [vmem:[%s381 + $0xa6] sm:$0xff]
      %v2416 = vld [vmem:[%s381 + $0xae] sm:$0xff]
      %v2417 = vld [vmem:[%s381 + $0xb6] sm:$0xff]
      %v2418 = vld [vmem:[%s381 + $0xbe] sm:$0xff]
      %v2419 = vld [vmem:[%s381 + $0xc6] sm:$0xff]
      %v2420 = vld [vmem:[%s381 + $0xce] sm:$0xff]
      %v2421 = vld [vmem:[%s381 + $0xd6] sm:$0xff]
      %v2422 = vld [vmem:[%s381 + $0xde] sm:$0xff]
      %v2423 = vld [vmem:[%s381 + $0xe6] sm:$0xff]
      %v2424 = vld [vmem:[%s381 + $0xee] sm:$0xff]
      %v2425 = vld [vmem:[%s381 + $0xf6] sm:$0xff]
      %v2426 = vld [vmem:[%s381 + $0xfe] sm:$0xff]
      %v2427 = vld [vmem:[%s381 + $0x106] sm:$0xff]
      %v2428 = vld [vmem:[%s381 + $0x10e] sm:$0xff]
      %v2429 = vld [vmem:[%s381 + $0x116] sm:$0xff]
      %v2430 = vld [vmem:[%s381 + $0x11e] sm:$0xff]
      %v2431 = vld [vmem:[%s381 + $0x126] sm:$0xff]
      %v2432 = vld [vmem:[%s381 + $0x12e] sm:$0xff]
      %v2433 = vld [vmem:[%s381 + $0x136] sm:$0xff]
      %v2434 = vld [vmem:[%s381 + $0x13e] sm:$0x3f]
      %v2435 = vpack.c.bf16 %v2400, %v2399
      %v2436 = vpack.c.bf16 %v2402, %v2401
      %v2437 = vpack.c.bf16 %v2404, %v2403
      %v2438 = vpack.c.bf16 %v2406, %v2405
      %v2439 = vpack.c.bf16 %v2408, %v2407
      %v2440 = vpack.c.bf16 %v2410, %v2409
      %v2441 = vpack.c.bf16 %v2412, %v2411
      %v2442 = vpack.c.bf16 %v2414, %v2413
      %v2443 = vpack.c.bf16 %v2416, %v2415
      %v2444 = vpack.c.bf16 %v2418, %v2417
      %v2445 = vpack.c.bf16 %v2420, %v2419
      %v2446 = vpack.c.bf16 %v2422, %v2421
      %v2447 = vpack.c.bf16 %v2424, %v2423
      %v2448 = vpack.c.bf16 %v2426, %v2425
      %v2449 = vpack.c.bf16 %v2428, %v2427
      %v2450 = vpack.c.bf16 %v2430, %v2429
      %v2451 = vpack.c.bf16 %v2432, %v2431
      %v2452 = vpack.c.bf16 %v2434, %v2433
      %s2453 = scalar_lea.vmem %s3, 512
      %v2454 = vld [vmem:[%s2453] sm:$0xf]
      %v2455 = vld [vmem:[%s2453 + $0x4] sm:$0xf]
      %v2456 = vld [vmem:[%s2453 + $0x8] sm:$0xf]
      %v2457 = vld [vmem:[%s2453 + $0xc] sm:$0xf]
      %v2458 = vld [vmem:[%s2453 + $0x10] sm:$0xf]
      %v2459 = vld [vmem:[%s2453 + $0x14] sm:$0xf]
      %v2460 = vld [vmem:[%s2453 + $0x18] sm:$0xf]
      %v2461 = vld [vmem:[%s2453 + $0x1c] sm:$0xf]
      %v2462 = vld [vmem:[%s2453 + $0x20] sm:$0xf]
      %v2463 = vld [vmem:[%s2453 + $0x24] sm:$0xf]
      %v2464 = vld [vmem:[%s2453 + $0x28] sm:$0xf]
      %v2465 = vld [vmem:[%s2453 + $0x2c] sm:$0xf]
      %v2466 = vld [vmem:[%s2453 + $0x30] sm:$0xf]
      %v2467 = vld [vmem:[%s2453 + $0x34] sm:$0xf]
      %v2468 = vld [vmem:[%s2453 + $0x38] sm:$0xf]
      %v2469 = vld [vmem:[%s2453 + $0x3c] sm:$0xf]
      %v2486 = vunpack.c.l.b16 %v2454
      %v2487 = vunpack.c.l.b16 %v2455
      %v2488 = vunpack.c.l.b16 %v2456
      %v2489 = vunpack.c.l.b16 %v2457
      %v2490 = vunpack.c.l.b16 %v2458
      %v2491 = vunpack.c.l.b16 %v2459
      %v2492 = vunpack.c.l.b16 %v2460
      %v2493 = vunpack.c.l.b16 %v2461
      %v2494 = vunpack.c.l.b16 %v2462
      %v2495 = vunpack.c.l.b16 %v2463
      %v2496 = vunpack.c.l.b16 %v2464
      %v2497 = vunpack.c.l.b16 %v2465
      %v2498 = vunpack.c.l.b16 %v2466
      %v2499 = vunpack.c.l.b16 %v2467
      %v2500 = vunpack.c.l.b16 %v2468
      %v2501 = vunpack.c.l.b16 %v2469
      %v2502 = vpack.c.b16 %v2487, %v2486
      %v2503 = vpack.c.b16 %v2489, %v2488
      %v2504 = vpack.c.b16 %v2491, %v2490
      %v2505 = vpack.c.b16 %v2493, %v2492
      %v2506 = vpack.c.b16 %v2495, %v2494
      %v2507 = vpack.c.b16 %v2497, %v2496
      %v2508 = vpack.c.b16 %v2499, %v2498
      %v2509 = vpack.c.b16 %v2501, %v2500
      %2518 = vmatpush.bf16.msra.mxu0 %v2509
      %2519 = vmatpush.bf16.msra.mxu0 %v2508
      %2520 = vmatpush.bf16.msra.mxu0 %v2507
      %2521 = vmatpush.bf16.msra.mxu0 %v2506
      %2522 = vmatpush.bf16.msra.mxu0 %v2505
      %2523 = vmatpush.bf16.msra.mxu0 %v2504
      %2524 = vmatpush.bf16.msra.mxu0 %v2503
      %2525 = vmatpush.bf16.msra.mxu0 %v2502
      %2526 = vmatmul.bf16.gmra.mxu0 %v2435
      %v2527 = vpop.f32.mrf.mxu0
      %v2528 = vadd.f32 0.0, %v2527
      %v2529 = vpop.f32.mrf.mxu0
      %v2530 = vadd.f32 0.0, %v2529
      %2531 = vmatmul.bf16.gmra.mxu0 %v2436
      %v2532 = vpop.f32.mrf.mxu0
      %v2533 = vadd.f32 0.0, %v2532
      %v2534 = vpop.f32.mrf.mxu0
      %v2535 = vadd.f32 0.0, %v2534
      %2536 = vmatmul.bf16.gmra.mxu0 %v2437
      %v2537 = vpop.f32.mrf.mxu0
      %v2538 = vadd.f32 0.0, %v2537
      %v2539 = vpop.f32.mrf.mxu0
      %v2540 = vadd.f32 0.0, %v2539
      %2541 = vmatmul.bf16.gmra.mxu0 %v2438
      %v2542 = vpop.f32.mrf.mxu0
      %v2543 = vadd.f32 0.0, %v2542
      %v2544 = vpop.f32.mrf.mxu0
      %v2545 = vadd.f32 0.0, %v2544
      %2546 = vmatmul.bf16.gmra.mxu0 %v2439
      %v2547 = vpop.f32.mrf.mxu0
      %v2548 = vadd.f32 0.0, %v2547
      %v2549 = vpop.f32.mrf.mxu0
      %v2550 = vadd.f32 0.0, %v2549
      %2551 = vmatmul.bf16.gmra.mxu0 %v2440
      %v2552 = vpop.f32.mrf.mxu0
      %v2553 = vadd.f32 0.0, %v2552
      %v2554 = vpop.f32.mrf.mxu0
      %v2555 = vadd.f32 0.0, %v2554
      %2556 = vmatmul.bf16.gmra.mxu0 %v2441
      %v2557 = vpop.f32.mrf.mxu0
      %v2558 = vadd.f32 0.0, %v2557
      %v2559 = vpop.f32.mrf.mxu0
      %v2560 = vadd.f32 0.0, %v2559
      %2561 = vmatmul.bf16.gmra.mxu0 %v2442
      %v2562 = vpop.f32.mrf.mxu0
      %v2563 = vadd.f32 0.0, %v2562
      %v2564 = vpop.f32.mrf.mxu0
      %v2565 = vadd.f32 0.0, %v2564
      %2566 = vmatmul.bf16.gmra.mxu0 %v2443
      %v2567 = vpop.f32.mrf.mxu0
      %v2568 = vadd.f32 0.0, %v2567
      %v2569 = vpop.f32.mrf.mxu0
      %v2570 = vadd.f32 0.0, %v2569
      %2571 = vmatmul.bf16.gmra.mxu0 %v2444
      %v2572 = vpop.f32.mrf.mxu0
      %v2573 = vadd.f32 0.0, %v2572
      %v2574 = vpop.f32.mrf.mxu0
      %v2575 = vadd.f32 0.0, %v2574
      %2576 = vmatmul.bf16.gmra.mxu0 %v2445
      %v2577 = vpop.f32.mrf.mxu0
      %v2578 = vadd.f32 0.0, %v2577
      %v2579 = vpop.f32.mrf.mxu0
      %v2580 = vadd.f32 0.0, %v2579
      %2581 = vmatmul.bf16.gmra.mxu0 %v2446
      %v2582 = vpop.f32.mrf.mxu0
      %v2583 = vadd.f32 0.0, %v2582
      %v2584 = vpop.f32.mrf.mxu0
      %v2585 = vadd.f32 0.0, %v2584
      %2586 = vmatmul.bf16.gmra.mxu0 %v2447
      %v2587 = vpop.f32.mrf.mxu0
      %v2588 = vadd.f32 0.0, %v2587
      %v2589 = vpop.f32.mrf.mxu0
      %v2590 = vadd.f32 0.0, %v2589
      %2591 = vmatmul.bf16.gmra.mxu0 %v2448
      %v2592 = vpop.f32.mrf.mxu0
      %v2593 = vadd.f32 0.0, %v2592
      %v2594 = vpop.f32.mrf.mxu0
      %v2595 = vadd.f32 0.0, %v2594
      %2596 = vmatmul.bf16.gmra.mxu0 %v2449
      %v2597 = vpop.f32.mrf.mxu0
      %v2598 = vadd.f32 0.0, %v2597
      %v2599 = vpop.f32.mrf.mxu0
      %v2600 = vadd.f32 0.0, %v2599
      %2601 = vmatmul.bf16.gmra.mxu0 %v2450
      %v2602 = vpop.f32.mrf.mxu0
      %v2603 = vadd.f32 0.0, %v2602
      %v2604 = vpop.f32.mrf.mxu0
      %v2605 = vadd.f32 0.0, %v2604
      %2606 = vmatmul.bf16.gmra.mxu0 %v2451
      %v2607 = vpop.f32.mrf.mxu0
      %v2608 = vadd.f32 0.0, %v2607
      %v2609 = vpop.f32.mrf.mxu0
      %v2610 = vadd.f32 0.0, %v2609
      %2611 = vmatmul.bf16.gmra.mxu0 %v2452
      %v2612 = vpop.f32.mrf.mxu0
      %v2613 = vadd.f32 0.0, %v2612
      %v2614 = vpop.f32.mrf.mxu0
      %v2615 = vadd.f32 0.0, %v2614
      %2616 = vdwg.mxu0
      %v2617 = vadd.f32 %v2363, %v2528
      %v2618 = vadd.f32 %v2364, %v2530
      %v2619 = vadd.f32 %v2365, %v2533
      %v2620 = vadd.f32 %v2366, %v2535
      %v2621 = vadd.f32 %v2367, %v2538
      %v2622 = vadd.f32 %v2368, %v2540
      %v2623 = vadd.f32 %v2369, %v2543
      %v2624 = vadd.f32 %v2370, %v2545
      %v2625 = vadd.f32 %v2371, %v2548
      %v2626 = vadd.f32 %v2372, %v2550
      %v2627 = vadd.f32 %v2373, %v2553
      %v2628 = vadd.f32 %v2374, %v2555
      %v2629 = vadd.f32 %v2375, %v2558
      %v2630 = vadd.f32 %v2376, %v2560
      %v2631 = vadd.f32 %v2377, %v2563
      %v2632 = vadd.f32 %v2378, %v2565
      %v2633 = vadd.f32 %v2379, %v2568
      %v2634 = vadd.f32 %v2380, %v2570
      %v2635 = vadd.f32 %v2381, %v2573
      %v2636 = vadd.f32 %v2382, %v2575
      %v2637 = vadd.f32 %v2383, %v2578
      %v2638 = vadd.f32 %v2384, %v2580
      %v2639 = vadd.f32 %v2385, %v2583
      %v2640 = vadd.f32 %v2386, %v2585
      %v2641 = vadd.f32 %v2387, %v2588
      %v2642 = vadd.f32 %v2388, %v2590
      %v2643 = vadd.f32 %v2389, %v2593
      %v2644 = vadd.f32 %v2390, %v2595
      %v2645 = vadd.f32 %v2391, %v2598
      %v2646 = vadd.f32 %v2392, %v2600
      %v2647 = vadd.f32 %v2393, %v2603
      %v2648 = vadd.f32 %v2394, %v2605
      %v2649 = vadd.f32 %v2395, %v2608
      %v2650 = vadd.f32 %v2396, %v2610
      %v2651 = vadd.f32 %v2397, %v2613
      %v2652 = vadd.f32 %v2398, %v2615
      %v2653 = vld [vmem:[%s4] sm:$0x1]
      %v2655 = vperm.slane %v2653, 0
      %v2657 = vadd.f32 %v2617, %v2655
      %v2658 = vadd.f32 %v2618, %v2655
      %v2659 = vadd.f32 %v2619, %v2655
      %v2660 = vadd.f32 %v2620, %v2655
      %v2661 = vadd.f32 %v2621, %v2655
      %v2662 = vadd.f32 %v2622, %v2655
      %v2663 = vadd.f32 %v2623, %v2655
      %v2664 = vadd.f32 %v2624, %v2655
      %v2665 = vadd.f32 %v2625, %v2655
      %v2666 = vadd.f32 %v2626, %v2655
      %v2667 = vadd.f32 %v2627, %v2655
      %v2668 = vadd.f32 %v2628, %v2655
      %v2669 = vadd.f32 %v2629, %v2655
      %v2670 = vadd.f32 %v2630, %v2655
      %v2671 = vadd.f32 %v2631, %v2655
      %v2672 = vadd.f32 %v2632, %v2655
      %v2673 = vadd.f32 %v2633, %v2655
      %v2674 = vadd.f32 %v2634, %v2655
      %v2675 = vadd.f32 %v2635, %v2655
      %v2676 = vadd.f32 %v2636, %v2655
      %v2677 = vadd.f32 %v2637, %v2655
      %v2678 = vadd.f32 %v2638, %v2655
      %v2679 = vadd.f32 %v2639, %v2655
      %v2680 = vadd.f32 %v2640, %v2655
      %v2681 = vadd.f32 %v2641, %v2655
      %v2682 = vadd.f32 %v2642, %v2655
      %v2683 = vadd.f32 %v2643, %v2655
      %v2684 = vadd.f32 %v2644, %v2655
      %v2685 = vadd.f32 %v2645, %v2655
      %v2686 = vadd.f32 %v2646, %v2655
      %v2687 = vadd.f32 %v2647, %v2655
      %v2688 = vadd.f32 %v2648, %v2655
      %v2689 = vadd.f32 %v2649, %v2655
      %v2690 = vadd.f32 %v2650, %v2655
      %v2691 = vadd.f32 %v2651, %v2655
      %v2692 = vadd.f32 %v2652, %v2655
      %2694 = vset.pattern.permute.xlu0 0
      %2695 = vperm.xlu0 %2694, %v388
      %v2696 = vpop.permute.xlu0 %2695
      %2699 = vset.pattern.permute.xlu0 0
      %2700 = vperm.xlu0 %2699, %v389
      %v2701 = vpop.permute.xlu0 %2700
      %2704 = vset.pattern.permute.xlu0 0
      %2705 = vperm.xlu0 %2704, %v390
      %v2706 = vpop.permute.xlu0 %2705
      %2709 = vset.pattern.permute.xlu0 0
      %2710 = vperm.xlu0 %2709, %v391
      %v2711 = vpop.permute.xlu0 %2710
      %2714 = vset.pattern.permute.xlu0 0
      %2715 = vperm.xlu0 %2714, %v392
      %v2716 = vpop.permute.xlu0 %2715
      %2719 = vset.pattern.permute.xlu0 0
      %2720 = vperm.xlu0 %2719, %v393
      %v2721 = vpop.permute.xlu0 %2720
      %2724 = vset.pattern.permute.xlu0 0
      %2725 = vperm.xlu0 %2724, %v394
      %v2726 = vpop.permute.xlu0 %2725
      %2729 = vset.pattern.permute.xlu0 0
      %2730 = vperm.xlu0 %2729, %v395
      %v2731 = vpop.permute.xlu0 %2730
      %2734 = vset.pattern.permute.xlu0 0
      %2735 = vperm.xlu0 %2734, %v396
      %v2736 = vpop.permute.xlu0 %2735
      %2739 = vset.pattern.permute.xlu0 0
      %2740 = vperm.xlu0 %2739, %v397
      %v2741 = vpop.permute.xlu0 %2740
      %2744 = vset.pattern.permute.xlu0 0
      %2745 = vperm.xlu0 %2744, %v398
      %v2746 = vpop.permute.xlu0 %2745
      %2749 = vset.pattern.permute.xlu0 0
      %2750 = vperm.xlu0 %2749, %v399
      %v2751 = vpop.permute.xlu0 %2750
      %2754 = vset.pattern.permute.xlu0 0
      %2755 = vperm.xlu0 %2754, %v400
      %v2756 = vpop.permute.xlu0 %2755
      %2759 = vset.pattern.permute.xlu0 0
      %2760 = vperm.xlu0 %2759, %v401
      %v2761 = vpop.permute.xlu0 %2760
      %2764 = vset.pattern.permute.xlu0 0
      %2765 = vperm.xlu0 %2764, %v402
      %v2766 = vpop.permute.xlu0 %2765
      %2769 = vset.pattern.permute.xlu0 0
      %2770 = vperm.xlu0 %2769, %v403
      %v2771 = vpop.permute.xlu0 %2770
      %2774 = vset.pattern.permute.xlu0 0
      %2775 = vperm.xlu0 %2774, %v404
      %v2776 = vpop.permute.xlu0 %2775
      %2779 = vset.pattern.permute.xlu0 0
      %2780 = vperm.xlu0 %2779, %v405
      %v2781 = vpop.permute.xlu0 %2780
      %2784 = vset.pattern.permute.xlu0 0
      %2785 = vperm.xlu0 %2784, %v406
      %v2786 = vpop.permute.xlu0 %2785
      %2789 = vset.pattern.permute.xlu0 0
      %2790 = vperm.xlu0 %2789, %v407
      %v2791 = vpop.permute.xlu0 %2790
      %2794 = vset.pattern.permute.xlu0 0
      %2795 = vperm.xlu0 %2794, %v408
      %v2796 = vpop.permute.xlu0 %2795
      %2799 = vset.pattern.permute.xlu0 0
      %2800 = vperm.xlu0 %2799, %v409
      %v2801 = vpop.permute.xlu0 %2800
      %2804 = vset.pattern.permute.xlu0 0
      %2805 = vperm.xlu0 %2804, %v410
      %v2806 = vpop.permute.xlu0 %2805
      %2809 = vset.pattern.permute.xlu0 0
      %2810 = vperm.xlu0 %2809, %v411
      %v2811 = vpop.permute.xlu0 %2810
      %2814 = vset.pattern.permute.xlu0 0
      %2815 = vperm.xlu0 %2814, %v412
      %v2816 = vpop.permute.xlu0 %2815
      %2819 = vset.pattern.permute.xlu0 0
      %2820 = vperm.xlu0 %2819, %v413
      %v2821 = vpop.permute.xlu0 %2820
      %2824 = vset.pattern.permute.xlu0 0
      %2825 = vperm.xlu0 %2824, %v414
      %v2826 = vpop.permute.xlu0 %2825
      %2829 = vset.pattern.permute.xlu0 0
      %2830 = vperm.xlu0 %2829, %v415
      %v2831 = vpop.permute.xlu0 %2830
      %2834 = vset.pattern.permute.xlu0 0
      %2835 = vperm.xlu0 %2834, %v416
      %v2836 = vpop.permute.xlu0 %2835
      %2839 = vset.pattern.permute.xlu0 0
      %2840 = vperm.xlu0 %2839, %v417
      %v2841 = vpop.permute.xlu0 %2840
      %2844 = vset.pattern.permute.xlu0 0
      %2845 = vperm.xlu0 %2844, %v418
      %v2846 = vpop.permute.xlu0 %2845
      %2849 = vset.pattern.permute.xlu0 0
      %2850 = vperm.xlu0 %2849, %v419
      %v2851 = vpop.permute.xlu0 %2850
      %2854 = vset.pattern.permute.xlu0 0
      %2855 = vperm.xlu0 %2854, %v420
      %v2856 = vpop.permute.xlu0 %2855
      %2859 = vset.pattern.permute.xlu0 0
      %2860 = vperm.xlu0 %2859, %v421
      %v2861 = vpop.permute.xlu0 %2860
      %2864 = vset.pattern.permute.xlu0 0
      %2865 = vperm.xlu0 %2864, %v422
      %v2866 = vpop.permute.xlu0 %2865
      %2869 = vset.pattern.permute.xlu0 0
      %2870 = vperm.xlu0 %2869, %v423
      %v2871 = vpop.permute.xlu0 %2870
      %v2873 = vmul.f32 %v2657, %v2696
      %v2874 = vmul.f32 %v2658, %v2701
      %v2875 = vmul.f32 %v2659, %v2706
      %v2876 = vmul.f32 %v2660, %v2711
      %v2877 = vmul.f32 %v2661, %v2716
      %v2878 = vmul.f32 %v2662, %v2721
      %v2879 = vmul.f32 %v2663, %v2726
      %v2880 = vmul.f32 %v2664, %v2731
      %v2881 = vmul.f32 %v2665, %v2736
      %v2882 = vmul.f32 %v2666, %v2741
      %v2883 = vmul.f32 %v2667, %v2746
      %v2884 = vmul.f32 %v2668, %v2751
      %v2885 = vmul.f32 %v2669, %v2756
      %v2886 = vmul.f32 %v2670, %v2761
      %v2887 = vmul.f32 %v2671, %v2766
      %v2888 = vmul.f32 %v2672, %v2771
      %v2889 = vmul.f32 %v2673, %v2776
      %v2890 = vmul.f32 %v2674, %v2781
      %v2891 = vmul.f32 %v2675, %v2786
      %v2892 = vmul.f32 %v2676, %v2791
      %v2893 = vmul.f32 %v2677, %v2796
      %v2894 = vmul.f32 %v2678, %v2801
      %v2895 = vmul.f32 %v2679, %v2806
      %v2896 = vmul.f32 %v2680, %v2811
      %v2897 = vmul.f32 %v2681, %v2816
      %v2898 = vmul.f32 %v2682, %v2821
      %v2899 = vmul.f32 %v2683, %v2826
      %v2900 = vmul.f32 %v2684, %v2831
      %v2901 = vmul.f32 %v2685, %v2836
      %v2902 = vmul.f32 %v2686, %v2841
      %v2903 = vmul.f32 %v2687, %v2846
      %v2904 = vmul.f32 %v2688, %v2851
      %v2905 = vmul.f32 %v2689, %v2856
      %v2906 = vmul.f32 %v2690, %v2861
      %v2907 = vmul.f32 %v2691, %v2866
      %v2908 = vmul.f32 %v2692, %v2871
      %v2909 = vadd.f32 %v2873, %v2874
      %v2910 = vadd.f32 %v2909, %v2875
      %v2911 = vadd.f32 %v2910, %v2876
      %v2912 = vadd.f32 %v2911, %v2877
      %v2913 = vadd.f32 %v2912, %v2878
      %v2914 = vadd.f32 %v2913, %v2879
      %v2915 = vadd.f32 %v2914, %v2880
      %v2916 = vadd.f32 %v2915, %v2881
      %v2917 = vadd.f32 %v2916, %v2882
      %v2918 = vadd.f32 %v2917, %v2883
      %v2919 = vadd.f32 %v2918, %v2884
      %v2920 = vadd.f32 %v2919, %v2885
      %v2921 = vadd.f32 %v2920, %v2886
      %v2922 = vadd.f32 %v2921, %v2887
      %v2923 = vadd.f32 %v2922, %v2888
      %v2924 = vadd.f32 %v2923, %v2889
      %v2925 = vadd.f32 %v2924, %v2890
      %v2926 = vadd.f32 %v2925, %v2891
      %v2927 = vadd.f32 %v2926, %v2892
      %v2928 = vadd.f32 %v2927, %v2893
      %v2929 = vadd.f32 %v2928, %v2894
      %v2930 = vadd.f32 %v2929, %v2895
      %v2931 = vadd.f32 %v2930, %v2896
      %v2932 = vadd.f32 %v2931, %v2897
      %v2933 = vadd.f32 %v2932, %v2898
      %v2934 = vadd.f32 %v2933, %v2899
      %v2935 = vadd.f32 %v2934, %v2900
      %v2936 = vadd.f32 %v2935, %v2901
      %v2937 = vadd.f32 %v2936, %v2902
      %v2938 = vadd.f32 %v2937, %v2903
      %v2939 = vadd.f32 %v2938, %v2904
      %v2940 = vadd.f32 %v2939, %v2905
      %v2941 = vadd.f32 %v2940, %v2906
      %v2942 = vadd.f32 %v2941, %v2907
      %vm2943 = vcmask 1045504
      %v2944 = vsel %vm2943, %v2908, 0.0
      %v2945 = vadd.f32 %v2942, %v2944
      %v2946 = vrot.slane %v2945, 4
      %v2947 = vadd.f32 %v2945, %v2946
      %v2948 = vrot.slane %v2947, 2
      %v2949 = vadd.f32 %v2947, %v2948
      %v2950 = vrot.slane %v2949, 1
      %v2951 = vadd.f32 %v2949, %v2950
      %v2952 = vmul.f32 %v2873, %v2873
      %v2953 = vmul.f32 %v2874, %v2874
      %v2954 = vmul.f32 %v2875, %v2875
      %v2955 = vmul.f32 %v2876, %v2876
      %v2956 = vmul.f32 %v2877, %v2877
      %v2957 = vmul.f32 %v2878, %v2878
      %v2958 = vmul.f32 %v2879, %v2879
      %v2959 = vmul.f32 %v2880, %v2880
      %v2960 = vmul.f32 %v2881, %v2881
      %v2961 = vmul.f32 %v2882, %v2882
      %v2962 = vmul.f32 %v2883, %v2883
      %v2963 = vmul.f32 %v2884, %v2884
      %v2964 = vmul.f32 %v2885, %v2885
      %v2965 = vmul.f32 %v2886, %v2886
      %v2966 = vmul.f32 %v2887, %v2887
      %v2967 = vmul.f32 %v2888, %v2888
      %v2968 = vmul.f32 %v2889, %v2889
      %v2969 = vmul.f32 %v2890, %v2890
      %v2970 = vmul.f32 %v2891, %v2891
      %v2971 = vmul.f32 %v2892, %v2892
      %v2972 = vmul.f32 %v2893, %v2893
      %v2973 = vmul.f32 %v2894, %v2894
      %v2974 = vmul.f32 %v2895, %v2895
      %v2975 = vmul.f32 %v2896, %v2896
      %v2976 = vmul.f32 %v2897, %v2897
      %v2977 = vmul.f32 %v2898, %v2898
      %v2978 = vmul.f32 %v2899, %v2899
      %v2979 = vmul.f32 %v2900, %v2900
      %v2980 = vmul.f32 %v2901, %v2901
      %v2981 = vmul.f32 %v2902, %v2902
      %v2982 = vmul.f32 %v2903, %v2903
      %v2983 = vmul.f32 %v2904, %v2904
      %v2984 = vmul.f32 %v2905, %v2905
      %v2985 = vmul.f32 %v2906, %v2906
      %v2986 = vmul.f32 %v2907, %v2907
      %v2987 = vmul.f32 %v2908, %v2908
      %v2988 = vadd.f32 %v2952, %v2953
      %v2989 = vadd.f32 %v2988, %v2954
      %v2990 = vadd.f32 %v2989, %v2955
      %v2991 = vadd.f32 %v2990, %v2956
      %v2992 = vadd.f32 %v2991, %v2957
      %v2993 = vadd.f32 %v2992, %v2958
      %v2994 = vadd.f32 %v2993, %v2959
      %v2995 = vadd.f32 %v2994, %v2960
      %v2996 = vadd.f32 %v2995, %v2961
      %v2997 = vadd.f32 %v2996, %v2962
      %v2998 = vadd.f32 %v2997, %v2963
      %v2999 = vadd.f32 %v2998, %v2964
      %v3000 = vadd.f32 %v2999, %v2965
      %v3001 = vadd.f32 %v3000, %v2966
      %v3002 = vadd.f32 %v3001, %v2967
      %v3003 = vadd.f32 %v3002, %v2968
      %v3004 = vadd.f32 %v3003, %v2969
      %v3005 = vadd.f32 %v3004, %v2970
      %v3006 = vadd.f32 %v3005, %v2971
      %v3007 = vadd.f32 %v3006, %v2972
      %v3008 = vadd.f32 %v3007, %v2973
      %v3009 = vadd.f32 %v3008, %v2974
      %v3010 = vadd.f32 %v3009, %v2975
      %v3011 = vadd.f32 %v3010, %v2976
      %v3012 = vadd.f32 %v3011, %v2977
      %v3013 = vadd.f32 %v3012, %v2978
      %v3014 = vadd.f32 %v3013, %v2979
      %v3015 = vadd.f32 %v3014, %v2980
      %v3016 = vadd.f32 %v3015, %v2981
      %v3017 = vadd.f32 %v3016, %v2982
      %v3018 = vadd.f32 %v3017, %v2983
      %v3019 = vadd.f32 %v3018, %v2984
      %v3020 = vadd.f32 %v3019, %v2985
      %v3021 = vadd.f32 %v3020, %v2986
      %v3022 = vsel %vm2943, %v2987, 0.0
      %v3023 = vadd.f32 %v3021, %v3022
      %v3024 = vrot.slane %v3023, 4
      %v3025 = vadd.f32 %v3023, %v3024
      %v3026 = vrot.slane %v3025, 2
      %v3027 = vadd.f32 %v3025, %v3026
      %v3028 = vrot.slane %v3027, 1
      %v3029 = vadd.f32 %v3027, %v3028
      %v3030 = vand.u32 %v439, 4294901760
      %3031 = vmatpush.msra.mxu0 %v3030
      %v3032 = vand.u32 %v438, 4294901760
      %3033 = vmatpush.msra.mxu0 %v3032
      %v3034 = vand.u32 %v437, 4294901760
      %3035 = vmatpush.msra.mxu0 %v3034
      %v3036 = vand.u32 %v436, 4294901760
      %3037 = vmatpush.msra.mxu0 %v3036
      %v3038 = vand.u32 %v435, 4294901760
      %3039 = vmatpush.msra.mxu0 %v3038
      %v3040 = vand.u32 %v434, 4294901760
      %3041 = vmatpush.msra.mxu0 %v3040
      %v3042 = vand.u32 %v433, 4294901760
      %3043 = vmatpush.msra.mxu0 %v3042
      %v3044 = vand.u32 %v432, 4294901760
      %3045 = vmatpush.msra.mxu0 %v3044
      %v3046 = vand.u32 %v431, 4294901760
      %3047 = vmatpush.msra.mxu0 %v3046
      %v3048 = vand.u32 %v430, 4294901760
      %3049 = vmatpush.msra.mxu0 %v3048
      %v3050 = vand.u32 %v429, 4294901760
      %3051 = vmatpush.msra.mxu0 %v3050
      %v3052 = vand.u32 %v428, 4294901760
      %3053 = vmatpush.msra.mxu0 %v3052
      %v3054 = vand.u32 %v427, 4294901760
      %3055 = vmatpush.msra.mxu0 %v3054
      %v3056 = vand.u32 %v426, 4294901760
      %3057 = vmatpush.msra.mxu0 %v3056
      %v3058 = vand.u32 %v425, 4294901760
      %3059 = vmatpush.msra.mxu0 %v3058
      %v3060 = vand.u32 %v424, 4294901760
      %3061 = vmatpush.msra.mxu0 %v3060
      %v3062 = vand.u32 %v2951, 4294901760
      %v3063 = vsub.f32 %v2951, %v3062
      %v3064 = vand.u32 %v3063, 4294901760
      %v3065 = vsub.f32 %v3063, %v3064
      %v3066 = vand.u32 %v3065, 4294901760
      %3067 = vmatmul.f32.gmra.mxu0 %v3066
      %v3068 = vpop.f32.mrf.mxu0
      %v3069 = vadd.f32 0.0, %v3068
      %3070 = vdwg.mxu0
      %v3071 = vand.u32 %v439, 4294901760
      %v3072 = vsub.f32 %v439, %v3071
      %v3073 = vand.u32 %v3072, 4294901760
      %v3074 = vsub.f32 %v3072, %v3073
      %v3075 = vand.u32 %v3074, 4294901760
      %3076 = vmatpush.msra.mxu0 %v3075
      %v3077 = vand.u32 %v438, 4294901760
      %v3078 = vsub.f32 %v438, %v3077
      %v3079 = vand.u32 %v3078, 4294901760
      %v3080 = vsub.f32 %v3078, %v3079
      %v3081 = vand.u32 %v3080, 4294901760
      %3082 = vmatpush.msra.mxu0 %v3081
      %v3083 = vand.u32 %v437, 4294901760
      %v3084 = vsub.f32 %v437, %v3083
      %v3085 = vand.u32 %v3084, 4294901760
      %v3086 = vsub.f32 %v3084, %v3085
      %v3087 = vand.u32 %v3086, 4294901760
      %3088 = vmatpush.msra.mxu0 %v3087
      %v3089 = vand.u32 %v436, 4294901760
      %v3090 = vsub.f32 %v436, %v3089
      %v3091 = vand.u32 %v3090, 4294901760
      %v3092 = vsub.f32 %v3090, %v3091
      %v3093 = vand.u32 %v3092, 4294901760
      %3094 = vmatpush.msra.mxu0 %v3093
      %v3095 = vand.u32 %v435, 4294901760
      %v3096 = vsub.f32 %v435, %v3095
      %v3097 = vand.u32 %v3096, 4294901760
      %v3098 = vsub.f32 %v3096, %v3097
      %v3099 = vand.u32 %v3098, 4294901760
      %3100 = vmatpush.msra.mxu0 %v3099
      %v3101 = vand.u32 %v434, 4294901760
      %v3102 = vsub.f32 %v434, %v3101
      %v3103 = vand.u32 %v3102, 4294901760
      %v3104 = vsub.f32 %v3102, %v3103
      %v3105 = vand.u32 %v3104, 4294901760
      %3106 = vmatpush.msra.mxu0 %v3105
      %v3107 = vand.u32 %v433, 4294901760
      %v3108 = vsub.f32 %v433, %v3107
      %v3109 = vand.u32 %v3108, 4294901760
      %v3110 = vsub.f32 %v3108, %v3109
      %v3111 = vand.u32 %v3110, 4294901760
      %3112 = vmatpush.msra.mxu0 %v3111
      %v3113 = vand.u32 %v432, 4294901760
      %v3114 = vsub.f32 %v432, %v3113
      %v3115 = vand.u32 %v3114, 4294901760
      %v3116 = vsub.f32 %v3114, %v3115
      %v3117 = vand.u32 %v3116, 4294901760
      %3118 = vmatpush.msra.mxu0 %v3117
      %v3119 = vand.u32 %v431, 4294901760
      %v3120 = vsub.f32 %v431, %v3119
      %v3121 = vand.u32 %v3120, 4294901760
      %v3122 = vsub.f32 %v3120, %v3121
      %v3123 = vand.u32 %v3122, 4294901760
      %3124 = vmatpush.msra.mxu0 %v3123
      %v3125 = vand.u32 %v430, 4294901760
      %v3126 = vsub.f32 %v430, %v3125
      %v3127 = vand.u32 %v3126, 4294901760
      %v3128 = vsub.f32 %v3126, %v3127
      %v3129 = vand.u32 %v3128, 4294901760
      %3130 = vmatpush.msra.mxu0 %v3129
      %v3131 = vand.u32 %v429, 4294901760
      %v3132 = vsub.f32 %v429, %v3131
      %v3133 = vand.u32 %v3132, 4294901760
      %v3134 = vsub.f32 %v3132, %v3133
      %v3135 = vand.u32 %v3134, 4294901760
      %3136 = vmatpush.msra.mxu0 %v3135
      %v3137 = vand.u32 %v428, 4294901760
      %v3138 = vsub.f32 %v428, %v3137
      %v3139 = vand.u32 %v3138, 4294901760
      %v3140 = vsub.f32 %v3138, %v3139
      %v3141 = vand.u32 %v3140, 4294901760
      %3142 = vmatpush.msra.mxu0 %v3141
      %v3143 = vand.u32 %v427, 4294901760
      %v3144 = vsub.f32 %v427, %v3143
      %v3145 = vand.u32 %v3144, 4294901760
      %v3146 = vsub.f32 %v3144, %v3145
      %v3147 = vand.u32 %v3146, 4294901760
      %3148 = vmatpush.msra.mxu0 %v3147
      %v3149 = vand.u32 %v426, 4294901760
      %v3150 = vsub.f32 %v426, %v3149
      %v3151 = vand.u32 %v3150, 4294901760
      %v3152 = vsub.f32 %v3150, %v3151
      %v3153 = vand.u32 %v3152, 4294901760
      %3154 = vmatpush.msra.mxu0 %v3153
      %v3155 = vand.u32 %v425, 4294901760
      %v3156 = vsub.f32 %v425, %v3155
      %v3157 = vand.u32 %v3156, 4294901760
      %v3158 = vsub.f32 %v3156, %v3157
      %v3159 = vand.u32 %v3158, 4294901760
      %3160 = vmatpush.msra.mxu0 %v3159
      %v3161 = vand.u32 %v424, 4294901760
      %v3162 = vsub.f32 %v424, %v3161
      %v3163 = vand.u32 %v3162, 4294901760
      %v3164 = vsub.f32 %v3162, %v3163
      %v3165 = vand.u32 %v3164, 4294901760
      %3166 = vmatpush.msra.mxu0 %v3165
      %v3167 = vand.u32 %v2951, 4294901760
      %3168 = vmatmul.f32.gmra.mxu0 %v3167
      %v3169 = vpop.f32.mrf.mxu0
      %v3170 = vadd.f32 %v3069, %v3169
      %3171 = vdwg.mxu0
      %v3172 = vand.u32 %v439, 4294901760
      %v3173 = vsub.f32 %v439, %v3172
      %3174 = vmatpush.msra.mxu0 %v3173
      %v3175 = vand.u32 %v438, 4294901760
      %v3176 = vsub.f32 %v438, %v3175
      %3177 = vmatpush.msra.mxu0 %v3176
      %v3178 = vand.u32 %v437, 4294901760
      %v3179 = vsub.f32 %v437, %v3178
      %3180 = vmatpush.msra.mxu0 %v3179
      %v3181 = vand.u32 %v436, 4294901760
      %v3182 = vsub.f32 %v436, %v3181
      %3183 = vmatpush.msra.mxu0 %v3182
      %v3184 = vand.u32 %v435, 4294901760
      %v3185 = vsub.f32 %v435, %v3184
      %3186 = vmatpush.msra.mxu0 %v3185
      %v3187 = vand.u32 %v434, 4294901760
      %v3188 = vsub.f32 %v434, %v3187
      %3189 = vmatpush.msra.mxu0 %v3188
      %v3190 = vand.u32 %v433, 4294901760
      %v3191 = vsub.f32 %v433, %v3190
      %3192 = vmatpush.msra.mxu0 %v3191
      %v3193 = vand.u32 %v432, 4294901760
      %v3194 = vsub.f32 %v432, %v3193
      %3195 = vmatpush.msra.mxu0 %v3194
      %v3196 = vand.u32 %v431, 4294901760
      %v3197 = vsub.f32 %v431, %v3196
      %3198 = vmatpush.msra.mxu0 %v3197
      %v3199 = vand.u32 %v430, 4294901760
      %v3200 = vsub.f32 %v430, %v3199
      %3201 = vmatpush.msra.mxu0 %v3200
      %v3202 = vand.u32 %v429, 4294901760
      %v3203 = vsub.f32 %v429, %v3202
      %3204 = vmatpush.msra.mxu0 %v3203
      %v3205 = vand.u32 %v428, 4294901760
      %v3206 = vsub.f32 %v428, %v3205
      %3207 = vmatpush.msra.mxu0 %v3206
      %v3208 = vand.u32 %v427, 4294901760
      %v3209 = vsub.f32 %v427, %v3208
      %3210 = vmatpush.msra.mxu0 %v3209
      %v3211 = vand.u32 %v426, 4294901760
      %v3212 = vsub.f32 %v426, %v3211
      %3213 = vmatpush.msra.mxu0 %v3212
      %v3214 = vand.u32 %v425, 4294901760
      %v3215 = vsub.f32 %v425, %v3214
      %3216 = vmatpush.msra.mxu0 %v3215
      %v3217 = vand.u32 %v424, 4294901760
      %v3218 = vsub.f32 %v424, %v3217
      %3219 = vmatpush.msra.mxu0 %v3218
      %v3220 = vand.u32 %v2951, 4294901760
      %v3221 = vsub.f32 %v2951, %v3220
      %3222 = vmatmul.f32.gmra.mxu0 %v3221
      %v3223 = vpop.f32.mrf.mxu0
      %v3224 = vadd.f32 %v3170, %v3223
      %3225 = vdwg.mxu0
      %v3226 = vand.u32 %v439, 4294901760
      %3227 = vmatpush.msra.mxu0 %v3226
      %v3228 = vand.u32 %v438, 4294901760
      %3229 = vmatpush.msra.mxu0 %v3228
      %v3230 = vand.u32 %v437, 4294901760
      %3231 = vmatpush.msra.mxu0 %v3230
      %v3232 = vand.u32 %v436, 4294901760
      %3233 = vmatpush.msra.mxu0 %v3232
      %v3234 = vand.u32 %v435, 4294901760
      %3235 = vmatpush.msra.mxu0 %v3234
      %v3236 = vand.u32 %v434, 4294901760
      %3237 = vmatpush.msra.mxu0 %v3236
      %v3238 = vand.u32 %v433, 4294901760
      %3239 = vmatpush.msra.mxu0 %v3238
      %v3240 = vand.u32 %v432, 4294901760
      %3241 = vmatpush.msra.mxu0 %v3240
      %v3242 = vand.u32 %v431, 4294901760
      %3243 = vmatpush.msra.mxu0 %v3242
      %v3244 = vand.u32 %v430, 4294901760
      %3245 = vmatpush.msra.mxu0 %v3244
      %v3246 = vand.u32 %v429, 4294901760
      %3247 = vmatpush.msra.mxu0 %v3246
      %v3248 = vand.u32 %v428, 4294901760
      %3249 = vmatpush.msra.mxu0 %v3248
      %v3250 = vand.u32 %v427, 4294901760
      %3251 = vmatpush.msra.mxu0 %v3250
      %v3252 = vand.u32 %v426, 4294901760
      %3253 = vmatpush.msra.mxu0 %v3252
      %v3254 = vand.u32 %v425, 4294901760
      %3255 = vmatpush.msra.mxu0 %v3254
      %v3256 = vand.u32 %v424, 4294901760
      %3257 = vmatpush.msra.mxu0 %v3256
      %v3258 = vand.u32 %v2951, 4294901760
      %v3259 = vsub.f32 %v2951, %v3258
      %v3260 = vand.u32 %v3259, 4294901760
      %3261 = vmatmul.f32.gmra.mxu0 %v3260
      %v3262 = vpop.f32.mrf.mxu0
      %v3263 = vadd.f32 %v3224, %v3262
      %3264 = vdwg.mxu0
      %v3265 = vand.u32 %v439, 4294901760
      %v3266 = vsub.f32 %v439, %v3265
      %v3267 = vand.u32 %v3266, 4294901760
      %3268 = vmatpush.msra.mxu0 %v3267
      %v3269 = vand.u32 %v438, 4294901760
      %v3270 = vsub.f32 %v438, %v3269
      %v3271 = vand.u32 %v3270, 4294901760
      %3272 = vmatpush.msra.mxu0 %v3271
      %v3273 = vand.u32 %v437, 4294901760
      %v3274 = vsub.f32 %v437, %v3273
      %v3275 = vand.u32 %v3274, 4294901760
      %3276 = vmatpush.msra.mxu0 %v3275
      %v3277 = vand.u32 %v436, 4294901760
      %v3278 = vsub.f32 %v436, %v3277
      %v3279 = vand.u32 %v3278, 4294901760
      %3280 = vmatpush.msra.mxu0 %v3279
      %v3281 = vand.u32 %v435, 4294901760
      %v3282 = vsub.f32 %v435, %v3281
      %v3283 = vand.u32 %v3282, 4294901760
      %3284 = vmatpush.msra.mxu0 %v3283
      %v3285 = vand.u32 %v434, 4294901760
      %v3286 = vsub.f32 %v434, %v3285
      %v3287 = vand.u32 %v3286, 4294901760
      %3288 = vmatpush.msra.mxu0 %v3287
      %v3289 = vand.u32 %v433, 4294901760
      %v3290 = vsub.f32 %v433, %v3289
      %v3291 = vand.u32 %v3290, 4294901760
      %3292 = vmatpush.msra.mxu0 %v3291
      %v3293 = vand.u32 %v432, 4294901760
      %v3294 = vsub.f32 %v432, %v3293
      %v3295 = vand.u32 %v3294, 4294901760
      %3296 = vmatpush.msra.mxu0 %v3295
      %v3297 = vand.u32 %v431, 4294901760
      %v3298 = vsub.f32 %v431, %v3297
      %v3299 = vand.u32 %v3298, 4294901760
      %3300 = vmatpush.msra.mxu0 %v3299
      %v3301 = vand.u32 %v430, 4294901760
      %v3302 = vsub.f32 %v430, %v3301
      %v3303 = vand.u32 %v3302, 4294901760
      %3304 = vmatpush.msra.mxu0 %v3303
      %v3305 = vand.u32 %v429, 4294901760
      %v3306 = vsub.f32 %v429, %v3305
      %v3307 = vand.u32 %v3306, 4294901760
      %3308 = vmatpush.msra.mxu0 %v3307
      %v3309 = vand.u32 %v428, 4294901760
      %v3310 = vsub.f32 %v428, %v3309
      %v3311 = vand.u32 %v3310, 4294901760
      %3312 = vmatpush.msra.mxu0 %v3311
      %v3313 = vand.u32 %v427, 4294901760
      %v3314 = vsub.f32 %v427, %v3313
      %v3315 = vand.u32 %v3314, 4294901760
      %3316 = vmatpush.msra.mxu0 %v3315
      %v3317 = vand.u32 %v426, 4294901760
      %v3318 = vsub.f32 %v426, %v3317
      %v3319 = vand.u32 %v3318, 4294901760
      %3320 = vmatpush.msra.mxu0 %v3319
      %v3321 = vand.u32 %v425, 4294901760
      %v3322 = vsub.f32 %v425, %v3321
      %v3323 = vand.u32 %v3322, 4294901760
      %3324 = vmatpush.msra.mxu0 %v3323
      %v3325 = vand.u32 %v424, 4294901760
      %v3326 = vsub.f32 %v424, %v3325
      %v3327 = vand.u32 %v3326, 4294901760
      %3328 = vmatpush.msra.mxu0 %v3327
      %v3329 = vand.u32 %v2951, 4294901760
      %3330 = vmatmul.f32.gmra.mxu0 %v3329
      %v3331 = vpop.f32.mrf.mxu0
      %v3332 = vadd.f32 %v3263, %v3331
      %3333 = vdwg.mxu0
      %v3334 = vand.u32 %v439, 4294901760
      %3335 = vmatpush.msra.mxu0 %v3334
      %v3336 = vand.u32 %v438, 4294901760
      %3337 = vmatpush.msra.mxu0 %v3336
      %v3338 = vand.u32 %v437, 4294901760
      %3339 = vmatpush.msra.mxu0 %v3338
      %v3340 = vand.u32 %v436, 4294901760
      %3341 = vmatpush.msra.mxu0 %v3340
      %v3342 = vand.u32 %v435, 4294901760
      %3343 = vmatpush.msra.mxu0 %v3342
      %v3344 = vand.u32 %v434, 4294901760
      %3345 = vmatpush.msra.mxu0 %v3344
      %v3346 = vand.u32 %v433, 4294901760
      %3347 = vmatpush.msra.mxu0 %v3346
      %v3348 = vand.u32 %v432, 4294901760
      %3349 = vmatpush.msra.mxu0 %v3348
      %v3350 = vand.u32 %v431, 4294901760
      %3351 = vmatpush.msra.mxu0 %v3350
      %v3352 = vand.u32 %v430, 4294901760
      %3353 = vmatpush.msra.mxu0 %v3352
      %v3354 = vand.u32 %v429, 4294901760
      %3355 = vmatpush.msra.mxu0 %v3354
      %v3356 = vand.u32 %v428, 4294901760
      %3357 = vmatpush.msra.mxu0 %v3356
      %v3358 = vand.u32 %v427, 4294901760
      %3359 = vmatpush.msra.mxu0 %v3358
      %v3360 = vand.u32 %v426, 4294901760
      %3361 = vmatpush.msra.mxu0 %v3360
      %v3362 = vand.u32 %v425, 4294901760
      %3363 = vmatpush.msra.mxu0 %v3362
      %v3364 = vand.u32 %v424, 4294901760
      %3365 = vmatpush.msra.mxu0 %v3364
      %v3366 = vand.u32 %v2951, 4294901760
      %3367 = vmatmul.f32.gmra.mxu0 %v3366
      %v3368 = vpop.f32.mrf.mxu0
      %v3369 = vadd.f32 %v3332, %v3368
      %3370 = vdwg.mxu0
      %v3371 = vand.u32 %v439, 4294901760
      %3372 = vmatpush.msra.mxu0 %v3371
      %v3373 = vand.u32 %v438, 4294901760
      %3374 = vmatpush.msra.mxu0 %v3373
      %v3375 = vand.u32 %v437, 4294901760
      %3376 = vmatpush.msra.mxu0 %v3375
      %v3377 = vand.u32 %v436, 4294901760
      %3378 = vmatpush.msra.mxu0 %v3377
      %v3379 = vand.u32 %v435, 4294901760
      %3380 = vmatpush.msra.mxu0 %v3379
      %v3381 = vand.u32 %v434, 4294901760
      %3382 = vmatpush.msra.mxu0 %v3381
      %v3383 = vand.u32 %v433, 4294901760
      %3384 = vmatpush.msra.mxu0 %v3383
      %v3385 = vand.u32 %v432, 4294901760
      %3386 = vmatpush.msra.mxu0 %v3385
      %v3387 = vand.u32 %v431, 4294901760
      %3388 = vmatpush.msra.mxu0 %v3387
      %v3389 = vand.u32 %v430, 4294901760
      %3390 = vmatpush.msra.mxu0 %v3389
      %v3391 = vand.u32 %v429, 4294901760
      %3392 = vmatpush.msra.mxu0 %v3391
      %v3393 = vand.u32 %v428, 4294901760
      %3394 = vmatpush.msra.mxu0 %v3393
      %v3395 = vand.u32 %v427, 4294901760
      %3396 = vmatpush.msra.mxu0 %v3395
      %v3397 = vand.u32 %v426, 4294901760
      %3398 = vmatpush.msra.mxu0 %v3397
      %v3399 = vand.u32 %v425, 4294901760
      %3400 = vmatpush.msra.mxu0 %v3399
      %v3401 = vand.u32 %v424, 4294901760
      %3402 = vmatpush.msra.mxu0 %v3401
      %v3403 = vand.u32 %v3029, 4294901760
      %v3404 = vsub.f32 %v3029, %v3403
      %v3405 = vand.u32 %v3404, 4294901760
      %v3406 = vsub.f32 %v3404, %v3405
      %v3407 = vand.u32 %v3406, 4294901760
      %3408 = vmatmul.f32.gmra.mxu0 %v3407
      %v3409 = vpop.f32.mrf.mxu0
      %v3410 = vadd.f32 0.0, %v3409
      %3411 = vdwg.mxu0
      %v3412 = vand.u32 %v439, 4294901760
      %v3413 = vsub.f32 %v439, %v3412
      %v3414 = vand.u32 %v3413, 4294901760
      %v3415 = vsub.f32 %v3413, %v3414
      %v3416 = vand.u32 %v3415, 4294901760
      %3417 = vmatpush.msra.mxu0 %v3416
      %v3418 = vand.u32 %v438, 4294901760
      %v3419 = vsub.f32 %v438, %v3418
      %v3420 = vand.u32 %v3419, 4294901760
      %v3421 = vsub.f32 %v3419, %v3420
      %v3422 = vand.u32 %v3421, 4294901760
      %3423 = vmatpush.msra.mxu0 %v3422
      %v3424 = vand.u32 %v437, 4294901760
      %v3425 = vsub.f32 %v437, %v3424
      %v3426 = vand.u32 %v3425, 4294901760
      %v3427 = vsub.f32 %v3425, %v3426
      %v3428 = vand.u32 %v3427, 4294901760
      %3429 = vmatpush.msra.mxu0 %v3428
      %v3430 = vand.u32 %v436, 4294901760
      %v3431 = vsub.f32 %v436, %v3430
      %v3432 = vand.u32 %v3431, 4294901760
      %v3433 = vsub.f32 %v3431, %v3432
      %v3434 = vand.u32 %v3433, 4294901760
      %3435 = vmatpush.msra.mxu0 %v3434
      %v3436 = vand.u32 %v435, 4294901760
      %v3437 = vsub.f32 %v435, %v3436
      %v3438 = vand.u32 %v3437, 4294901760
      %v3439 = vsub.f32 %v3437, %v3438
      %v3440 = vand.u32 %v3439, 4294901760
      %3441 = vmatpush.msra.mxu0 %v3440
      %v3442 = vand.u32 %v434, 4294901760
      %v3443 = vsub.f32 %v434, %v3442
      %v3444 = vand.u32 %v3443, 4294901760
      %v3445 = vsub.f32 %v3443, %v3444
      %v3446 = vand.u32 %v3445, 4294901760
      %3447 = vmatpush.msra.mxu0 %v3446
      %v3448 = vand.u32 %v433, 4294901760
      %v3449 = vsub.f32 %v433, %v3448
      %v3450 = vand.u32 %v3449, 4294901760
      %v3451 = vsub.f32 %v3449, %v3450
      %v3452 = vand.u32 %v3451, 4294901760
      %3453 = vmatpush.msra.mxu0 %v3452
      %v3454 = vand.u32 %v432, 4294901760
      %v3455 = vsub.f32 %v432, %v3454
      %v3456 = vand.u32 %v3455, 4294901760
      %v3457 = vsub.f32 %v3455, %v3456
      %v3458 = vand.u32 %v3457, 4294901760
      %3459 = vmatpush.msra.mxu0 %v3458
      %v3460 = vand.u32 %v431, 4294901760
      %v3461 = vsub.f32 %v431, %v3460
      %v3462 = vand.u32 %v3461, 4294901760
      %v3463 = vsub.f32 %v3461, %v3462
      %v3464 = vand.u32 %v3463, 4294901760
      %3465 = vmatpush.msra.mxu0 %v3464
      %v3466 = vand.u32 %v430, 4294901760
      %v3467 = vsub.f32 %v430, %v3466
      %v3468 = vand.u32 %v3467, 4294901760
      %v3469 = vsub.f32 %v3467, %v3468
      %v3470 = vand.u32 %v3469, 4294901760
      %3471 = vmatpush.msra.mxu0 %v3470
      %v3472 = vand.u32 %v429, 4294901760
      %v3473 = vsub.f32 %v429, %v3472
      %v3474 = vand.u32 %v3473, 4294901760
      %v3475 = vsub.f32 %v3473, %v3474
      %v3476 = vand.u32 %v3475, 4294901760
      %3477 = vmatpush.msra.mxu0 %v3476
      %v3478 = vand.u32 %v428, 4294901760
      %v3479 = vsub.f32 %v428, %v3478
      %v3480 = vand.u32 %v3479, 4294901760
      %v3481 = vsub.f32 %v3479, %v3480
      %v3482 = vand.u32 %v3481, 4294901760
      %3483 = vmatpush.msra.mxu0 %v3482
      %v3484 = vand.u32 %v427, 4294901760
      %v3485 = vsub.f32 %v427, %v3484
      %v3486 = vand.u32 %v3485, 4294901760
      %v3487 = vsub.f32 %v3485, %v3486
      %v3488 = vand.u32 %v3487, 4294901760
      %3489 = vmatpush.msra.mxu0 %v3488
      %v3490 = vand.u32 %v426, 4294901760
      %v3491 = vsub.f32 %v426, %v3490
      %v3492 = vand.u32 %v3491, 4294901760
      %v3493 = vsub.f32 %v3491, %v3492
      %v3494 = vand.u32 %v3493, 4294901760
      %3495 = vmatpush.msra.mxu0 %v3494
      %v3496 = vand.u32 %v425, 4294901760
      %v3497 = vsub.f32 %v425, %v3496
      %v3498 = vand.u32 %v3497, 4294901760
      %v3499 = vsub.f32 %v3497, %v3498
      %v3500 = vand.u32 %v3499, 4294901760
      %3501 = vmatpush.msra.mxu0 %v3500
      %v3502 = vand.u32 %v424, 4294901760
      %v3503 = vsub.f32 %v424, %v3502
      %v3504 = vand.u32 %v3503, 4294901760
      %v3505 = vsub.f32 %v3503, %v3504
      %v3506 = vand.u32 %v3505, 4294901760
      %3507 = vmatpush.msra.mxu0 %v3506
      %v3508 = vand.u32 %v3029, 4294901760
      %3509 = vmatmul.f32.gmra.mxu0 %v3508
      %v3510 = vpop.f32.mrf.mxu0
      %v3511 = vadd.f32 %v3410, %v3510
      %3512 = vdwg.mxu0
      %v3513 = vand.u32 %v439, 4294901760
      %v3514 = vsub.f32 %v439, %v3513
      %3515 = vmatpush.msra.mxu0 %v3514
      %v3516 = vand.u32 %v438, 4294901760
      %v3517 = vsub.f32 %v438, %v3516
      %3518 = vmatpush.msra.mxu0 %v3517
      %v3519 = vand.u32 %v437, 4294901760
      %v3520 = vsub.f32 %v437, %v3519
      %3521 = vmatpush.msra.mxu0 %v3520
      %v3522 = vand.u32 %v436, 4294901760
      %v3523 = vsub.f32 %v436, %v3522
      %3524 = vmatpush.msra.mxu0 %v3523
      %v3525 = vand.u32 %v435, 4294901760
      %v3526 = vsub.f32 %v435, %v3525
      %3527 = vmatpush.msra.mxu0 %v3526
      %v3528 = vand.u32 %v434, 4294901760
      %v3529 = vsub.f32 %v434, %v3528
      %3530 = vmatpush.msra.mxu0 %v3529
      %v3531 = vand.u32 %v433, 4294901760
      %v3532 = vsub.f32 %v433, %v3531
      %3533 = vmatpush.msra.mxu0 %v3532
      %v3534 = vand.u32 %v432, 4294901760
      %v3535 = vsub.f32 %v432, %v3534
      %3536 = vmatpush.msra.mxu0 %v3535
      %v3537 = vand.u32 %v431, 4294901760
      %v3538 = vsub.f32 %v431, %v3537
      %3539 = vmatpush.msra.mxu0 %v3538
      %v3540 = vand.u32 %v430, 4294901760
      %v3541 = vsub.f32 %v430, %v3540
      %3542 = vmatpush.msra.mxu0 %v3541
      %v3543 = vand.u32 %v429, 4294901760
      %v3544 = vsub.f32 %v429, %v3543
      %3545 = vmatpush.msra.mxu0 %v3544
      %v3546 = vand.u32 %v428, 4294901760
      %v3547 = vsub.f32 %v428, %v3546
      %3548 = vmatpush.msra.mxu0 %v3547
      %v3549 = vand.u32 %v427, 4294901760
      %v3550 = vsub.f32 %v427, %v3549
      %3551 = vmatpush.msra.mxu0 %v3550
      %v3552 = vand.u32 %v426, 4294901760
      %v3553 = vsub.f32 %v426, %v3552
      %3554 = vmatpush.msra.mxu0 %v3553
      %v3555 = vand.u32 %v425, 4294901760
      %v3556 = vsub.f32 %v425, %v3555
      %3557 = vmatpush.msra.mxu0 %v3556
      %v3558 = vand.u32 %v424, 4294901760
      %v3559 = vsub.f32 %v424, %v3558
      %3560 = vmatpush.msra.mxu0 %v3559
      %v3561 = vand.u32 %v3029, 4294901760
      %v3562 = vsub.f32 %v3029, %v3561
      %3563 = vmatmul.f32.gmra.mxu0 %v3562
      %v3564 = vpop.f32.mrf.mxu0
      %v3565 = vadd.f32 %v3511, %v3564
      %3566 = vdwg.mxu0
      %v3567 = vand.u32 %v439, 4294901760
      %3568 = vmatpush.msra.mxu0 %v3567
      %v3569 = vand.u32 %v438, 4294901760
      %3570 = vmatpush.msra.mxu0 %v3569
      %v3571 = vand.u32 %v437, 4294901760
      %3572 = vmatpush.msra.mxu0 %v3571
      %v3573 = vand.u32 %v436, 4294901760
      %3574 = vmatpush.msra.mxu0 %v3573
      %v3575 = vand.u32 %v435, 4294901760
      %3576 = vmatpush.msra.mxu0 %v3575
      %v3577 = vand.u32 %v434, 4294901760
      %3578 = vmatpush.msra.mxu0 %v3577
      %v3579 = vand.u32 %v433, 4294901760
      %3580 = vmatpush.msra.mxu0 %v3579
      %v3581 = vand.u32 %v432, 4294901760
      %3582 = vmatpush.msra.mxu0 %v3581
      %v3583 = vand.u32 %v431, 4294901760
      %3584 = vmatpush.msra.mxu0 %v3583
      %v3585 = vand.u32 %v430, 4294901760
      %3586 = vmatpush.msra.mxu0 %v3585
      %v3587 = vand.u32 %v429, 4294901760
      %3588 = vmatpush.msra.mxu0 %v3587
      %v3589 = vand.u32 %v428, 4294901760
      %3590 = vmatpush.msra.mxu0 %v3589
      %v3591 = vand.u32 %v427, 4294901760
      %3592 = vmatpush.msra.mxu0 %v3591
      %v3593 = vand.u32 %v426, 4294901760
      %3594 = vmatpush.msra.mxu0 %v3593
      %v3595 = vand.u32 %v425, 4294901760
      %3596 = vmatpush.msra.mxu0 %v3595
      %v3597 = vand.u32 %v424, 4294901760
      %3598 = vmatpush.msra.mxu0 %v3597
      %v3599 = vand.u32 %v3029, 4294901760
      %v3600 = vsub.f32 %v3029, %v3599
      %v3601 = vand.u32 %v3600, 4294901760
      %3602 = vmatmul.f32.gmra.mxu0 %v3601
      %v3603 = vpop.f32.mrf.mxu0
      %v3604 = vadd.f32 %v3565, %v3603
      %3605 = vdwg.mxu0
      %v3606 = vand.u32 %v439, 4294901760
      %v3607 = vsub.f32 %v439, %v3606
      %v3608 = vand.u32 %v3607, 4294901760
      %3609 = vmatpush.msra.mxu0 %v3608
      %v3610 = vand.u32 %v438, 4294901760
      %v3611 = vsub.f32 %v438, %v3610
      %v3612 = vand.u32 %v3611, 4294901760
      %3613 = vmatpush.msra.mxu0 %v3612
      %v3614 = vand.u32 %v437, 4294901760
      %v3615 = vsub.f32 %v437, %v3614
      %v3616 = vand.u32 %v3615, 4294901760
      %3617 = vmatpush.msra.mxu0 %v3616
      %v3618 = vand.u32 %v436, 4294901760
      %v3619 = vsub.f32 %v436, %v3618
      %v3620 = vand.u32 %v3619, 4294901760
      %3621 = vmatpush.msra.mxu0 %v3620
      %v3622 = vand.u32 %v435, 4294901760
      %v3623 = vsub.f32 %v435, %v3622
      %v3624 = vand.u32 %v3623, 4294901760
      %3625 = vmatpush.msra.mxu0 %v3624
      %v3626 = vand.u32 %v434, 4294901760
      %v3627 = vsub.f32 %v434, %v3626
      %v3628 = vand.u32 %v3627, 4294901760
      %3629 = vmatpush.msra.mxu0 %v3628
      %v3630 = vand.u32 %v433, 4294901760
      %v3631 = vsub.f32 %v433, %v3630
      %v3632 = vand.u32 %v3631, 4294901760
      %3633 = vmatpush.msra.mxu0 %v3632
      %v3634 = vand.u32 %v432, 4294901760
      %v3635 = vsub.f32 %v432, %v3634
      %v3636 = vand.u32 %v3635, 4294901760
      %3637 = vmatpush.msra.mxu0 %v3636
      %v3638 = vand.u32 %v431, 4294901760
      %v3639 = vsub.f32 %v431, %v3638
      %v3640 = vand.u32 %v3639, 4294901760
      %3641 = vmatpush.msra.mxu0 %v3640
      %v3642 = vand.u32 %v430, 4294901760
      %v3643 = vsub.f32 %v430, %v3642
      %v3644 = vand.u32 %v3643, 4294901760
      %3645 = vmatpush.msra.mxu0 %v3644
      %v3646 = vand.u32 %v429, 4294901760
      %v3647 = vsub.f32 %v429, %v3646
      %v3648 = vand.u32 %v3647, 4294901760
      %3649 = vmatpush.msra.mxu0 %v3648
      %v3650 = vand.u32 %v428, 4294901760
      %v3651 = vsub.f32 %v428, %v3650
      %v3652 = vand.u32 %v3651, 4294901760
      %3653 = vmatpush.msra.mxu0 %v3652
      %v3654 = vand.u32 %v427, 4294901760
      %v3655 = vsub.f32 %v427, %v3654
      %v3656 = vand.u32 %v3655, 4294901760
      %3657 = vmatpush.msra.mxu0 %v3656
      %v3658 = vand.u32 %v426, 4294901760
      %v3659 = vsub.f32 %v426, %v3658
      %v3660 = vand.u32 %v3659, 4294901760
      %3661 = vmatpush.msra.mxu0 %v3660
      %v3662 = vand.u32 %v425, 4294901760
      %v3663 = vsub.f32 %v425, %v3662
      %v3664 = vand.u32 %v3663, 4294901760
      %3665 = vmatpush.msra.mxu0 %v3664
      %v3666 = vand.u32 %v424, 4294901760
      %v3667 = vsub.f32 %v424, %v3666
      %v3668 = vand.u32 %v3667, 4294901760
      %3669 = vmatpush.msra.mxu0 %v3668
      %v3670 = vand.u32 %v3029, 4294901760
      %3671 = vmatmul.f32.gmra.mxu0 %v3670
      %v3672 = vpop.f32.mrf.mxu0
      %v3673 = vadd.f32 %v3604, %v3672
      %3674 = vdwg.mxu0
      %v3675 = vand.u32 %v439, 4294901760
      %3676 = vmatpush.msra.mxu0 %v3675
      %v3677 = vand.u32 %v438, 4294901760
      %3678 = vmatpush.msra.mxu0 %v3677
      %v3679 = vand.u32 %v437, 4294901760
      %3680 = vmatpush.msra.mxu0 %v3679
      %v3681 = vand.u32 %v436, 4294901760
      %3682 = vmatpush.msra.mxu0 %v3681
      %v3683 = vand.u32 %v435, 4294901760
      %3684 = vmatpush.msra.mxu0 %v3683
      %v3685 = vand.u32 %v434, 4294901760
      %3686 = vmatpush.msra.mxu0 %v3685
      %v3687 = vand.u32 %v433, 4294901760
      %3688 = vmatpush.msra.mxu0 %v3687
      %v3689 = vand.u32 %v432, 4294901760
      %3690 = vmatpush.msra.mxu0 %v3689
      %v3691 = vand.u32 %v431, 4294901760
      %3692 = vmatpush.msra.mxu0 %v3691
      %v3693 = vand.u32 %v430, 4294901760
      %3694 = vmatpush.msra.mxu0 %v3693
      %v3695 = vand.u32 %v429, 4294901760
      %3696 = vmatpush.msra.mxu0 %v3695
      %v3697 = vand.u32 %v428, 4294901760
      %3698 = vmatpush.msra.mxu0 %v3697
      %v3699 = vand.u32 %v427, 4294901760
      %3700 = vmatpush.msra.mxu0 %v3699
      %v3701 = vand.u32 %v426, 4294901760
      %3702 = vmatpush.msra.mxu0 %v3701
      %v3703 = vand.u32 %v425, 4294901760
      %3704 = vmatpush.msra.mxu0 %v3703
      %v3705 = vand.u32 %v424, 4294901760
      %3706 = vmatpush.msra.mxu0 %v3705
      %v3707 = vand.u32 %v3029, 4294901760
      %3708 = vmatmul.f32.gmra.mxu0 %v3707
      %v3709 = vpop.f32.mrf.mxu0
      %v3710 = vadd.f32 %v3673, %v3709
      %3711 = vdwg.mxu0
      %v3712 = vrcp.pop 4096.0
      %v3713 = vmul.f32 4096.0, %v3712
      %v3714 = vsub.f32 1.0, %v3713
      %v3715 = vmul.f32 %v3712, %v3714
      %v3716 = vadd.f32 %v3712, %v3715
      %vm3717 = vweird.f32 %v3712
      %v3718 = vsel %vm3717, %v3712, %v3716
      %v3719 = vmul.f32 %v3369, %v3718
      %v3720 = vmul.f32 %v3710, %v3718
      %v3721 = vmul.f32 %v3719, %v3719
      %v3722 = vsub.f32 %v3720, %v3721
      %v3723 = vadd.f32 %v3722, 1e-05
      %v3724 = vrsqrt.pop %v3723
      %v3725 = vmul.f32 %v3724, %v3723
      %v3726 = vmul.f32 %v3725, %v3724
      %v3727 = vmul.f32 0.5, %v3726
      %v3728 = vsub.f32 1.5, %v3727
      %v3729 = vmul.f32 %v3724, %v3728
      %vm3730 = vweird.f32 %v3723
      %vm3731 = vweird.f32 %v3724
      %vm3732 = vmor %vm3730, %vm3731
      %v3733 = vsel %vm3732, %v3724, %v3729
      %v3734 = vperm.slane %v3719, 0
      %v3735 = vsub.f32 %v2873, %v3734
      %v3736 = vsub.f32 %v2874, %v3734
      %v3737 = vsub.f32 %v2875, %v3734
      %v3738 = vsub.f32 %v2876, %v3734
      %v3739 = vsub.f32 %v2877, %v3734
      %v3740 = vsub.f32 %v2878, %v3734
      %v3741 = vsub.f32 %v2879, %v3734
      %v3742 = vsub.f32 %v2880, %v3734
      %v3743 = vsub.f32 %v2881, %v3734
      %v3744 = vsub.f32 %v2882, %v3734
      %v3745 = vsub.f32 %v2883, %v3734
      %v3746 = vsub.f32 %v2884, %v3734
      %v3747 = vsub.f32 %v2885, %v3734
      %v3748 = vsub.f32 %v2886, %v3734
      %v3749 = vsub.f32 %v2887, %v3734
      %v3750 = vsub.f32 %v2888, %v3734
      %v3751 = vsub.f32 %v2889, %v3734
      %v3752 = vsub.f32 %v2890, %v3734
      %v3753 = vsub.f32 %v2891, %v3734
      %v3754 = vsub.f32 %v2892, %v3734
      %v3755 = vsub.f32 %v2893, %v3734
      %v3756 = vsub.f32 %v2894, %v3734
      %v3757 = vsub.f32 %v2895, %v3734
      %v3758 = vsub.f32 %v2896, %v3734
      %v3759 = vsub.f32 %v2897, %v3734
      %v3760 = vsub.f32 %v2898, %v3734
      %v3761 = vsub.f32 %v2899, %v3734
      %v3762 = vsub.f32 %v2900, %v3734
      %v3763 = vsub.f32 %v2901, %v3734
      %v3764 = vsub.f32 %v2902, %v3734
      %v3765 = vsub.f32 %v2903, %v3734
      %v3766 = vsub.f32 %v2904, %v3734
      %v3767 = vsub.f32 %v2905, %v3734
      %v3768 = vsub.f32 %v2906, %v3734
      %v3769 = vsub.f32 %v2907, %v3734
      %v3770 = vsub.f32 %v2908, %v3734
      %v3771 = vld [vmem:[%s5] sm:$0x1]
      %v3772 = vmul.f32 %v3733, %v3771
      %v3773 = vperm.slane %v3772, 0
      %v3774 = vmul.f32 %v3735, %v3773
      %v3775 = vmul.f32 %v3736, %v3773
      %v3776 = vmul.f32 %v3737, %v3773
      %v3777 = vmul.f32 %v3738, %v3773
      %v3778 = vmul.f32 %v3739, %v3773
      %v3779 = vmul.f32 %v3740, %v3773
      %v3780 = vmul.f32 %v3741, %v3773
      %v3781 = vmul.f32 %v3742, %v3773
      %v3782 = vmul.f32 %v3743, %v3773
      %v3783 = vmul.f32 %v3744, %v3773
      %v3784 = vmul.f32 %v3745, %v3773
      %v3785 = vmul.f32 %v3746, %v3773
      %v3786 = vmul.f32 %v3747, %v3773
      %v3787 = vmul.f32 %v3748, %v3773
      %v3788 = vmul.f32 %v3749, %v3773
      %v3789 = vmul.f32 %v3750, %v3773
      %v3790 = vmul.f32 %v3751, %v3773
      %v3791 = vmul.f32 %v3752, %v3773
      %v3792 = vmul.f32 %v3753, %v3773
      %v3793 = vmul.f32 %v3754, %v3773
      %v3794 = vmul.f32 %v3755, %v3773
      %v3795 = vmul.f32 %v3756, %v3773
      %v3796 = vmul.f32 %v3757, %v3773
      %v3797 = vmul.f32 %v3758, %v3773
      %v3798 = vmul.f32 %v3759, %v3773
      %v3799 = vmul.f32 %v3760, %v3773
      %v3800 = vmul.f32 %v3761, %v3773
      %v3801 = vmul.f32 %v3762, %v3773
      %v3802 = vmul.f32 %v3763, %v3773
      %v3803 = vmul.f32 %v3764, %v3773
      %v3804 = vmul.f32 %v3765, %v3773
      %v3805 = vmul.f32 %v3766, %v3773
      %v3806 = vmul.f32 %v3767, %v3773
      %v3807 = vmul.f32 %v3768, %v3773
      %v3808 = vmul.f32 %v3769, %v3773
      %v3809 = vmul.f32 %v3770, %v3773
      %v3810 = vld [vmem:[%s6] sm:$0x1]
      %v3812 = vperm.slane %v3810, 0
      %v3814 = vadd.f32 %v3774, %v3812
      %v3815 = vadd.f32 %v3775, %v3812
      %v3816 = vadd.f32 %v3776, %v3812
      %v3817 = vadd.f32 %v3777, %v3812
      %v3818 = vadd.f32 %v3778, %v3812
      %v3819 = vadd.f32 %v3779, %v3812
      %v3820 = vadd.f32 %v3780, %v3812
      %v3821 = vadd.f32 %v3781, %v3812
      %v3822 = vadd.f32 %v3782, %v3812
      %v3823 = vadd.f32 %v3783, %v3812
      %v3824 = vadd.f32 %v3784, %v3812
      %v3825 = vadd.f32 %v3785, %v3812
      %v3826 = vadd.f32 %v3786, %v3812
      %v3827 = vadd.f32 %v3787, %v3812
      %v3828 = vadd.f32 %v3788, %v3812
      %v3829 = vadd.f32 %v3789, %v3812
      %v3830 = vadd.f32 %v3790, %v3812
      %v3831 = vadd.f32 %v3791, %v3812
      %v3832 = vadd.f32 %v3792, %v3812
      %v3833 = vadd.f32 %v3793, %v3812
      %v3834 = vadd.f32 %v3794, %v3812
      %v3835 = vadd.f32 %v3795, %v3812
      %v3836 = vadd.f32 %v3796, %v3812
      %v3837 = vadd.f32 %v3797, %v3812
      %v3838 = vadd.f32 %v3798, %v3812
      %v3839 = vadd.f32 %v3799, %v3812
      %v3840 = vadd.f32 %v3800, %v3812
      %v3841 = vadd.f32 %v3801, %v3812
      %v3842 = vadd.f32 %v3802, %v3812
      %v3843 = vadd.f32 %v3803, %v3812
      %v3844 = vadd.f32 %v3804, %v3812
      %v3845 = vadd.f32 %v3805, %v3812
      %v3846 = vadd.f32 %v3806, %v3812
      %v3847 = vadd.f32 %v3807, %v3812
      %v3848 = vadd.f32 %v3808, %v3812
      %v3849 = vadd.f32 %v3809, %v3812
      %v3850 = vmax.f32 %v3814, 0.0
      %v3851 = vmax.f32 %v3815, 0.0
      %v3852 = vmax.f32 %v3816, 0.0
      %v3853 = vmax.f32 %v3817, 0.0
      %v3854 = vmax.f32 %v3818, 0.0
      %v3855 = vmax.f32 %v3819, 0.0
      %v3856 = vmax.f32 %v3820, 0.0
      %v3857 = vmax.f32 %v3821, 0.0
      %v3858 = vmax.f32 %v3822, 0.0
      %v3859 = vmax.f32 %v3823, 0.0
      %v3860 = vmax.f32 %v3824, 0.0
      %v3861 = vmax.f32 %v3825, 0.0
      %v3862 = vmax.f32 %v3826, 0.0
      %v3863 = vmax.f32 %v3827, 0.0
      %v3864 = vmax.f32 %v3828, 0.0
      %v3865 = vmax.f32 %v3829, 0.0
      %v3866 = vmax.f32 %v3830, 0.0
      %v3867 = vmax.f32 %v3831, 0.0
      %v3868 = vmax.f32 %v3832, 0.0
      %v3869 = vmax.f32 %v3833, 0.0
      %v3870 = vmax.f32 %v3834, 0.0
      %v3871 = vmax.f32 %v3835, 0.0
      %v3872 = vmax.f32 %v3836, 0.0
      %v3873 = vmax.f32 %v3837, 0.0
      %v3874 = vmax.f32 %v3838, 0.0
      %v3875 = vmax.f32 %v3839, 0.0
      %v3876 = vmax.f32 %v3840, 0.0
      %v3877 = vmax.f32 %v3841, 0.0
      %v3878 = vmax.f32 %v3842, 0.0
      %v3879 = vmax.f32 %v3843, 0.0
      %v3880 = vmax.f32 %v3844, 0.0
      %v3881 = vmax.f32 %v3845, 0.0
      %v3882 = vmax.f32 %v3846, 0.0
      %v3883 = vmax.f32 %v3847, 0.0
      %v3884 = vmax.f32 %v3848, 0.0
      %v3885 = vmax.f32 %v3849, 0.0
      %v3886 = vmul.f32 %v3850, %v2696
      %v3887 = vmul.f32 %v3851, %v2701
      %v3888 = vmul.f32 %v3852, %v2706
      %v3889 = vmul.f32 %v3853, %v2711
      %v3890 = vmul.f32 %v3854, %v2716
      %v3891 = vmul.f32 %v3855, %v2721
      %v3892 = vmul.f32 %v3856, %v2726
      %v3893 = vmul.f32 %v3857, %v2731
      %v3894 = vmul.f32 %v3858, %v2736
      %v3895 = vmul.f32 %v3859, %v2741
      %v3896 = vmul.f32 %v3860, %v2746
      %v3897 = vmul.f32 %v3861, %v2751
      %v3898 = vmul.f32 %v3862, %v2756
      %v3899 = vmul.f32 %v3863, %v2761
      %v3900 = vmul.f32 %v3864, %v2766
      %v3901 = vmul.f32 %v3865, %v2771
      %v3902 = vmul.f32 %v3866, %v2776
      %v3903 = vmul.f32 %v3867, %v2781
      %v3904 = vmul.f32 %v3868, %v2786
      %v3905 = vmul.f32 %v3869, %v2791
      %v3906 = vmul.f32 %v3870, %v2796
      %v3907 = vmul.f32 %v3871, %v2801
      %v3908 = vmul.f32 %v3872, %v2806
      %v3909 = vmul.f32 %v3873, %v2811
      %v3910 = vmul.f32 %v3874, %v2816
      %v3911 = vmul.f32 %v3875, %v2821
      %v3912 = vmul.f32 %v3876, %v2826
      %v3913 = vmul.f32 %v3877, %v2831
      %v3914 = vmul.f32 %v3878, %v2836
      %v3915 = vmul.f32 %v3879, %v2841
      %v3916 = vmul.f32 %v3880, %v2846
      %v3917 = vmul.f32 %v3881, %v2851
      %v3918 = vmul.f32 %v3882, %v2856
      %v3919 = vmul.f32 %v3883, %v2861
      %v3920 = vmul.f32 %v3884, %v2866
      %v3921 = vmul.f32 %v3885, %v2871
      %3922 = vst [vmem:[#allocation2] sm:$0xf] 0
      %3923 = vst [vmem:[#allocation2 + $0x4] sm:$0xf] 0
      %3924 = vst [vmem:[#allocation2 + $0x8] sm:$0xf] 0
      %3925 = vst [vmem:[#allocation2 + $0xc] sm:$0xf] 0
      %3926 = vst [vmem:[#allocation2 + $0x10] sm:$0xf] 0
      %3927 = vst [vmem:[#allocation2 + $0x14] sm:$0xf] 0
      %3928 = vst [vmem:[#allocation2 + $0x18] sm:$0xf] 0
      %3929 = vst [vmem:[#allocation2 + $0x1c] sm:$0xf] 0
      %3930 = vst [vmem:[#allocation2 + $0x20] sm:$0xf] 0
      %3931 = vst [vmem:[#allocation2 + $0x24] sm:$0xf] 0
      %3932 = vst [vmem:[#allocation2 + $0x28] sm:$0xf] 0
      %3933 = vst [vmem:[#allocation2 + $0x2c] sm:$0xf] 0
      %3934 = vst [vmem:[#allocation2 + $0x30] sm:$0xf] 0
      %3935 = vst [vmem:[#allocation2 + $0x34] sm:$0xf] 0
      %3936 = vst [vmem:[#allocation2 + $0x38] sm:$0xf] 0
      %3937 = vst [vmem:[#allocation2 + $0x3c] sm:$0xf] 0
      %3938 = vst [vmem:[#allocation2 + $0x40] sm:$0xf] 0
      %3939 = vst [vmem:[#allocation2 + $0x44] sm:$0xf] 0
      %3940 = vst [vmem:[#allocation2 + $0x48] sm:$0xf] 0
      %3941 = vst [vmem:[#allocation2 + $0x4c] sm:$0xf] 0
      %3942 = vst [vmem:[#allocation2 + $0x50] sm:$0xf] 0
      %3943 = vst [vmem:[#allocation2 + $0x54] sm:$0xf] 0
      %3944 = vst [vmem:[#allocation2 + $0x58] sm:$0xf] 0
      %3945 = vst [vmem:[#allocation2 + $0x5c] sm:$0xf] 0
      %3946 = vst [vmem:[#allocation2 + $0x60] sm:$0xf] 0
      %3947 = vst [vmem:[#allocation2 + $0x64] sm:$0xf] 0
      %3948 = vst [vmem:[#allocation2 + $0x68] sm:$0xf] 0
      %3949 = vst [vmem:[#allocation2 + $0x6c] sm:$0xf] 0
      %3950 = vst [vmem:[#allocation2 + $0x70] sm:$0xf] 0
      %3951 = vst [vmem:[#allocation2 + $0x74] sm:$0xf] 0
      %3952 = vst [vmem:[#allocation2 + $0x78] sm:$0xf] 0
      %3953 = vst [vmem:[#allocation2 + $0x7c] sm:$0xf] 0
      %3954 = vst [vmem:[#allocation2 + $0x80] sm:$0xf] 0
      %3955 = vst [vmem:[#allocation2 + $0x84] sm:$0xf] 0
      %3956 = vst [vmem:[#allocation2 + $0x88] sm:$0xf] 0
      %3957 = vst [vmem:[#allocation2 + $0x8c] sm:$0xf] 0
      %3958 = vst [vmem:[#allocation2 + $0x90] sm:$0xf] 0
      %3959 = vst [vmem:[#allocation2 + $0x94] sm:$0xf] 0
      %3960 = vst [vmem:[#allocation2 + $0x98] sm:$0xf] 0
      %3961 = vst [vmem:[#allocation2 + $0x9c] sm:$0xf] 0
      %3962 = vst [vmem:[#allocation2 + $0xa0] sm:$0x3] 0
      %v3963 = vpack.c.bf16 %v3886, %v3886
      %v3964 = vpack.c.bf16 %v3887, %v3887
      %v3965 = vpack.c.bf16 %v3888, %v3888
      %v3966 = vpack.c.bf16 %v3889, %v3889
      %v3967 = vpack.c.bf16 %v3890, %v3890
      %v3968 = vpack.c.bf16 %v3891, %v3891
      %v3969 = vpack.c.bf16 %v3892, %v3892
      %v3970 = vpack.c.bf16 %v3893, %v3893
      %v3971 = vpack.c.bf16 %v3894, %v3894
      %v3972 = vpack.c.bf16 %v3895, %v3895
      %v3973 = vpack.c.bf16 %v3896, %v3896
      %v3974 = vpack.c.bf16 %v3897, %v3897
      %v3975 = vpack.c.bf16 %v3898, %v3898
      %v3976 = vpack.c.bf16 %v3899, %v3899
      %v3977 = vpack.c.bf16 %v3900, %v3900
      %v3978 = vpack.c.bf16 %v3901, %v3901
      %v3979 = vpack.c.bf16 %v3902, %v3902
      %v3980 = vpack.c.bf16 %v3903, %v3903
      %v3981 = vpack.c.bf16 %v3904, %v3904
      %v3982 = vpack.c.bf16 %v3905, %v3905
      %v3983 = vpack.c.bf16 %v3906, %v3906
      %v3984 = vpack.c.bf16 %v3907, %v3907
      %v3985 = vpack.c.bf16 %v3908, %v3908
      %v3986 = vpack.c.bf16 %v3909, %v3909
      %v3987 = vpack.c.bf16 %v3910, %v3910
      %v3988 = vpack.c.bf16 %v3911, %v3911
      %v3989 = vpack.c.bf16 %v3912, %v3912
      %v3990 = vpack.c.bf16 %v3913, %v3913
      %v3991 = vpack.c.bf16 %v3914, %v3914
      %v3992 = vpack.c.bf16 %v3915, %v3915
      %v3993 = vpack.c.bf16 %v3916, %v3916
      %v3994 = vpack.c.bf16 %v3917, %v3917
      %v3995 = vpack.c.bf16 %v3918, %v3918
      %v3996 = vpack.c.bf16 %v3919, %v3919
      %v3997 = vpack.c.bf16 %v3920, %v3920
      %v3998 = vpack.c.bf16 %v3921, %v3921
      %vm3999 = vsmask.f32 1280
      %vm4000 = vsmask.f32 5392
      %vm4001 = vmor %vm3999, %vm4000
      %v4003 = vshrl.u32 %v3963, 16
      %v4005 = vrot.slane %v4003, 6
      %v4006 = vshll.u32 %v3963, 16
      %v4008 = vrot.slane %v4006, 7
      %v4009 = vor.u32 %v4005, %v4008
      %v4010 = vrot.slane %v4009, 4
      %v4012 = vshrl.u32 %v3964, 16
      %v4014 = vrot.slane %v4012, 6
      %v4015 = vshll.u32 %v3964, 16
      %v4017 = vrot.slane %v4015, 7
      %v4018 = vor.u32 %v4014, %v4017
      %v4019 = vsel %vm4001, %v4010, %v4018
      %v4020 = vrot.slane %v4018, 4
      %v4022 = vshrl.u32 %v3965, 16
      %v4024 = vrot.slane %v4022, 6
      %v4025 = vshll.u32 %v3965, 16
      %v4027 = vrot.slane %v4025, 7
      %v4028 = vor.u32 %v4024, %v4027
      %v4029 = vsel %vm4001, %v4020, %v4028
      %v4030 = vrot.slane %v4028, 4
      %v4032 = vshrl.u32 %v3966, 16
      %v4034 = vrot.slane %v4032, 6
      %v4035 = vshll.u32 %v3966, 16
      %v4037 = vrot.slane %v4035, 7
      %v4038 = vor.u32 %v4034, %v4037
      %v4039 = vsel %vm4001, %v4030, %v4038
      %v4040 = vrot.slane %v4038, 4
      %v4042 = vshrl.u32 %v3967, 16
      %v4044 = vrot.slane %v4042, 6
      %v4045 = vshll.u32 %v3967, 16
      %v4047 = vrot.slane %v4045, 7
      %v4048 = vor.u32 %v4044, %v4047
      %v4049 = vsel %vm4001, %v4040, %v4048
      %v4050 = vrot.slane %v4048, 4
      %v4052 = vshrl.u32 %v3968, 16
      %v4054 = vrot.slane %v4052, 6
      %v4055 = vshll.u32 %v3968, 16
      %v4057 = vrot.slane %v4055, 7
      %v4058 = vor.u32 %v4054, %v4057
      %v4059 = vsel %vm4001, %v4050, %v4058
      %v4060 = vrot.slane %v4058, 4
      %v4062 = vshrl.u32 %v3969, 16
      %v4064 = vrot.slane %v4062, 6
      %v4065 = vshll.u32 %v3969, 16
      %v4067 = vrot.slane %v4065, 7
      %v4068 = vor.u32 %v4064, %v4067
      %v4069 = vsel %vm4001, %v4060, %v4068
      %v4070 = vrot.slane %v4068, 4
      %v4072 = vshrl.u32 %v3970, 16
      %v4074 = vrot.slane %v4072, 6
      %v4075 = vshll.u32 %v3970, 16
      %v4077 = vrot.slane %v4075, 7
      %v4078 = vor.u32 %v4074, %v4077
      %v4079 = vsel %vm4001, %v4070, %v4078
      %v4080 = vrot.slane %v4078, 4
      %v4082 = vshrl.u32 %v3971, 16
      %v4084 = vrot.slane %v4082, 6
      %v4085 = vshll.u32 %v3971, 16
      %v4087 = vrot.slane %v4085, 7
      %v4088 = vor.u32 %v4084, %v4087
      %v4089 = vsel %vm4001, %v4080, %v4088
      %v4090 = vrot.slane %v4088, 4
      %v4092 = vshrl.u32 %v3972, 16
      %v4094 = vrot.slane %v4092, 6
      %v4095 = vshll.u32 %v3972, 16
      %v4097 = vrot.slane %v4095, 7
      %v4098 = vor.u32 %v4094, %v4097
      %v4099 = vsel %vm4001, %v4090, %v4098
      %v4100 = vrot.slane %v4098, 4
      %v4102 = vshrl.u32 %v3973, 16
      %v4104 = vrot.slane %v4102, 6
      %v4105 = vshll.u32 %v3973, 16
      %v4107 = vrot.slane %v4105, 7
      %v4108 = vor.u32 %v4104, %v4107
      %v4109 = vsel %vm4001, %v4100, %v4108
      %v4110 = vrot.slane %v4108, 4
      %v4112 = vshrl.u32 %v3974, 16
      %v4114 = vrot.slane %v4112, 6
      %v4115 = vshll.u32 %v3974, 16
      %v4117 = vrot.slane %v4115, 7
      %v4118 = vor.u32 %v4114, %v4117
      %v4119 = vsel %vm4001, %v4110, %v4118
      %v4120 = vrot.slane %v4118, 4
      %v4122 = vshrl.u32 %v3975, 16
      %v4124 = vrot.slane %v4122, 6
      %v4125 = vshll.u32 %v3975, 16
      %v4127 = vrot.slane %v4125, 7
      %v4128 = vor.u32 %v4124, %v4127
      %v4129 = vsel %vm4001, %v4120, %v4128
      %v4130 = vrot.slane %v4128, 4
      %v4132 = vshrl.u32 %v3976, 16
      %v4134 = vrot.slane %v4132, 6
      %v4135 = vshll.u32 %v3976, 16
      %v4137 = vrot.slane %v4135, 7
      %v4138 = vor.u32 %v4134, %v4137
      %v4139 = vsel %vm4001, %v4130, %v4138
      %v4140 = vrot.slane %v4138, 4
      %v4142 = vshrl.u32 %v3977, 16
      %v4144 = vrot.slane %v4142, 6
      %v4145 = vshll.u32 %v3977, 16
      %v4147 = vrot.slane %v4145, 7
      %v4148 = vor.u32 %v4144, %v4147
      %v4149 = vsel %vm4001, %v4140, %v4148
      %v4150 = vrot.slane %v4148, 4
      %v4152 = vshrl.u32 %v3978, 16
      %v4154 = vrot.slane %v4152, 6
      %v4155 = vshll.u32 %v3978, 16
      %v4157 = vrot.slane %v4155, 7
      %v4158 = vor.u32 %v4154, %v4157
      %v4159 = vsel %vm4001, %v4150, %v4158
      %v4160 = vrot.slane %v4158, 4
      %v4162 = vshrl.u32 %v3979, 16
      %v4164 = vrot.slane %v4162, 6
      %v4165 = vshll.u32 %v3979, 16
      %v4167 = vrot.slane %v4165, 7
      %v4168 = vor.u32 %v4164, %v4167
      %v4169 = vsel %vm4001, %v4160, %v4168
      %v4170 = vrot.slane %v4168, 4
      %v4172 = vshrl.u32 %v3980, 16
      %v4174 = vrot.slane %v4172, 6
      %v4175 = vshll.u32 %v3980, 16
      %v4177 = vrot.slane %v4175, 7
      %v4178 = vor.u32 %v4174, %v4177
      %v4179 = vsel %vm4001, %v4170, %v4178
      %v4180 = vrot.slane %v4178, 4
      %v4182 = vshrl.u32 %v3981, 16
      %v4184 = vrot.slane %v4182, 6
      %v4185 = vshll.u32 %v3981, 16
      %v4187 = vrot.slane %v4185, 7
      %v4188 = vor.u32 %v4184, %v4187
      %v4189 = vsel %vm4001, %v4180, %v4188
      %v4190 = vrot.slane %v4188, 4
      %v4192 = vshrl.u32 %v3982, 16
      %v4194 = vrot.slane %v4192, 6
      %v4195 = vshll.u32 %v3982, 16
      %v4197 = vrot.slane %v4195, 7
      %v4198 = vor.u32 %v4194, %v4197
      %v4199 = vsel %vm4001, %v4190, %v4198
      %v4200 = vrot.slane %v4198, 4
      %v4202 = vshrl.u32 %v3983, 16
      %v4204 = vrot.slane %v4202, 6
      %v4205 = vshll.u32 %v3983, 16
      %v4207 = vrot.slane %v4205, 7
      %v4208 = vor.u32 %v4204, %v4207
      %v4209 = vsel %vm4001, %v4200, %v4208
      %v4210 = vrot.slane %v4208, 4
      %v4212 = vshrl.u32 %v3984, 16
      %v4214 = vrot.slane %v4212, 6
      %v4215 = vshll.u32 %v3984, 16
      %v4217 = vrot.slane %v4215, 7
      %v4218 = vor.u32 %v4214, %v4217
      %v4219 = vsel %vm4001, %v4210, %v4218
      %v4220 = vrot.slane %v4218, 4
      %v4222 = vshrl.u32 %v3985, 16
      %v4224 = vrot.slane %v4222, 6
      %v4225 = vshll.u32 %v3985, 16
      %v4227 = vrot.slane %v4225, 7
      %v4228 = vor.u32 %v4224, %v4227
      %v4229 = vsel %vm4001, %v4220, %v4228
      %v4230 = vrot.slane %v4228, 4
      %v4232 = vshrl.u32 %v3986, 16
      %v4234 = vrot.slane %v4232, 6
      %v4235 = vshll.u32 %v3986, 16
      %v4237 = vrot.slane %v4235, 7
      %v4238 = vor.u32 %v4234, %v4237
      %v4239 = vsel %vm4001, %v4230, %v4238
      %v4240 = vrot.slane %v4238, 4
      %v4242 = vshrl.u32 %v3987, 16
      %v4244 = vrot.slane %v4242, 6
      %v4245 = vshll.u32 %v3987, 16
      %v4247 = vrot.slane %v4245, 7
      %v4248 = vor.u32 %v4244, %v4247
      %v4249 = vsel %vm4001, %v4240, %v4248
      %v4250 = vrot.slane %v4248, 4
      %v4252 = vshrl.u32 %v3988, 16
      %v4254 = vrot.slane %v4252, 6
      %v4255 = vshll.u32 %v3988, 16
      %v4257 = vrot.slane %v4255, 7
      %v4258 = vor.u32 %v4254, %v4257
      %v4259 = vsel %vm4001, %v4250, %v4258
      %v4260 = vrot.slane %v4258, 4
      %v4262 = vshrl.u32 %v3989, 16
      %v4264 = vrot.slane %v4262, 6
      %v4265 = vshll.u32 %v3989, 16
      %v4267 = vrot.slane %v4265, 7
      %v4268 = vor.u32 %v4264, %v4267
      %v4269 = vsel %vm4001, %v4260, %v4268
      %v4270 = vrot.slane %v4268, 4
      %v4272 = vshrl.u32 %v3990, 16
      %v4274 = vrot.slane %v4272, 6
      %v4275 = vshll.u32 %v3990, 16
      %v4277 = vrot.slane %v4275, 7
      %v4278 = vor.u32 %v4274, %v4277
      %v4279 = vsel %vm4001, %v4270, %v4278
      %v4280 = vrot.slane %v4278, 4
      %v4282 = vshrl.u32 %v3991, 16
      %v4284 = vrot.slane %v4282, 6
      %v4285 = vshll.u32 %v3991, 16
      %v4287 = vrot.slane %v4285, 7
      %v4288 = vor.u32 %v4284, %v4287
      %v4289 = vsel %vm4001, %v4280, %v4288
      %v4290 = vrot.slane %v4288, 4
      %v4292 = vshrl.u32 %v3992, 16
      %v4294 = vrot.slane %v4292, 6
      %v4295 = vshll.u32 %v3992, 16
      %v4297 = vrot.slane %v4295, 7
      %v4298 = vor.u32 %v4294, %v4297
      %v4299 = vsel %vm4001, %v4290, %v4298
      %v4300 = vrot.slane %v4298, 4
      %v4302 = vshrl.u32 %v3993, 16
      %v4304 = vrot.slane %v4302, 6
      %v4305 = vshll.u32 %v3993, 16
      %v4307 = vrot.slane %v4305, 7
      %v4308 = vor.u32 %v4304, %v4307
      %v4309 = vsel %vm4001, %v4300, %v4308
      %v4310 = vrot.slane %v4308, 4
      %v4312 = vshrl.u32 %v3994, 16
      %v4314 = vrot.slane %v4312, 6
      %v4315 = vshll.u32 %v3994, 16
      %v4317 = vrot.slane %v4315, 7
      %v4318 = vor.u32 %v4314, %v4317
      %v4319 = vsel %vm4001, %v4310, %v4318
      %v4320 = vrot.slane %v4318, 4
      %v4322 = vshrl.u32 %v3995, 16
      %v4324 = vrot.slane %v4322, 6
      %v4325 = vshll.u32 %v3995, 16
      %v4327 = vrot.slane %v4325, 7
      %v4328 = vor.u32 %v4324, %v4327
      %v4329 = vsel %vm4001, %v4320, %v4328
      %v4330 = vrot.slane %v4328, 4
      %v4332 = vshrl.u32 %v3996, 16
      %v4334 = vrot.slane %v4332, 6
      %v4335 = vshll.u32 %v3996, 16
      %v4337 = vrot.slane %v4335, 7
      %v4338 = vor.u32 %v4334, %v4337
      %v4339 = vsel %vm4001, %v4330, %v4338
      %v4340 = vrot.slane %v4338, 4
      %v4342 = vshrl.u32 %v3997, 16
      %v4344 = vrot.slane %v4342, 6
      %v4345 = vshll.u32 %v3997, 16
      %v4347 = vrot.slane %v4345, 7
      %v4348 = vor.u32 %v4344, %v4347
      %v4349 = vsel %vm4001, %v4340, %v4348
      %v4350 = vrot.slane %v4348, 4
      %v4352 = vshrl.u32 %v3998, 16
      %v4354 = vrot.slane %v4352, 6
      %v4355 = vshll.u32 %v3998, 16
      %v4357 = vrot.slane %v4355, 7
      %v4358 = vor.u32 %v4354, %v4357
      %v4359 = vsel %vm4001, %v4350, %v4358
      %v4360 = vrot.slane %v4354, 4
      %vm4398 = vcmask 1043457
      %vm4399 = vsmask.f32 7942
      %vm4400 = vmand %vm4398, %vm4399
      %v4401 = vld [vmem:[#allocation2 + $0x8] sm:$0xe]
      %v4402 = vsel %vm4400, %v4009, %v4401
      %4403 = vst [vmem:[#allocation2 + $0x8] sm:$0xe] %v4402
      %4404 = vst [vmem:[#allocation2 + $0xc] sm:$0xf] %v4019
      %4405 = vst [vmem:[#allocation2 + $0x10] sm:$0xf] %v4029
      %4406 = vst [vmem:[#allocation2 + $0x14] sm:$0xf] %v4039
      %4407 = vst [vmem:[#allocation2 + $0x18] sm:$0xf] %v4049
      %4408 = vst [vmem:[#allocation2 + $0x1c] sm:$0xf] %v4059
      %4409 = vst [vmem:[#allocation2 + $0x20] sm:$0xf] %v4069
      %4410 = vst [vmem:[#allocation2 + $0x24] sm:$0xf] %v4079
      %4411 = vst [vmem:[#allocation2 + $0x28] sm:$0xf] %v4089
      %4412 = vst [vmem:[#allocation2 + $0x2c] sm:$0xf] %v4099
      %4413 = vst [vmem:[#allocation2 + $0x30] sm:$0xf] %v4109
      %4414 = vst [vmem:[#allocation2 + $0x34] sm:$0xf] %v4119
      %4415 = vst [vmem:[#allocation2 + $0x38] sm:$0xf] %v4129
      %4416 = vst [vmem:[#allocation2 + $0x3c] sm:$0xf] %v4139
      %4417 = vst [vmem:[#allocation2 + $0x40] sm:$0xf] %v4149
      %4418 = vst [vmem:[#allocation2 + $0x44] sm:$0xf] %v4159
      %4419 = vst [vmem:[#allocation2 + $0x48] sm:$0xf] %v4169
      %4420 = vst [vmem:[#allocation2 + $0x4c] sm:$0xf] %v4179
      %4421 = vst [vmem:[#allocation2 + $0x50] sm:$0xf] %v4189
      %4422 = vst [vmem:[#allocation2 + $0x54] sm:$0xf] %v4199
      %4423 = vst [vmem:[#allocation2 + $0x58] sm:$0xf] %v4209
      %4424 = vst [vmem:[#allocation2 + $0x5c] sm:$0xf] %v4219
      %4425 = vst [vmem:[#allocation2 + $0x60] sm:$0xf] %v4229
      %4426 = vst [vmem:[#allocation2 + $0x64] sm:$0xf] %v4239
      %4427 = vst [vmem:[#allocation2 + $0x68] sm:$0xf] %v4249
      %4428 = vst [vmem:[#allocation2 + $0x6c] sm:$0xf] %v4259
      %4429 = vst [vmem:[#allocation2 + $0x70] sm:$0xf] %v4269
      %4430 = vst [vmem:[#allocation2 + $0x74] sm:$0xf] %v4279
      %4431 = vst [vmem:[#allocation2 + $0x78] sm:$0xf] %v4289
      %4432 = vst [vmem:[#allocation2 + $0x7c] sm:$0xf] %v4299
      %4433 = vst [vmem:[#allocation2 + $0x80] sm:$0xf] %v4309
      %4434 = vst [vmem:[#allocation2 + $0x84] sm:$0xf] %v4319
      %4435 = vst [vmem:[#allocation2 + $0x88] sm:$0xf] %v4329
      %4436 = vst [vmem:[#allocation2 + $0x8c] sm:$0xf] %v4339
      %4437 = vst [vmem:[#allocation2 + $0x90] sm:$0xf] %v4349
      %4438 = vst [vmem:[#allocation2 + $0x94] sm:$0xf] %v4359
      %vm4439 = vcmask 1040384
      %vm4440 = vsmask.f32 256
      %vm4441 = vmand %vm4439, %vm4440
      %v4442 = vld [vmem:[#allocation2 + $0x98] sm:$0x1]
      %v4443 = vsel %vm4441, %v4360, %v4442
      %4444 = vst [vmem:[#allocation2 + $0x98] sm:$0x1] %v4443
      %v4445 = vld [vmem:[#allocation2] sm:$0xf]
      %v4446 = vld [vmem:[#allocation2 + $0x4] sm:$0xf]
      %v4447 = vld [vmem:[#allocation2 + $0x8] sm:$0xf]
      %v4448 = vld [vmem:[#allocation2 + $0xc] sm:$0xf]
      %v4449 = vld [vmem:[#allocation2 + $0x10] sm:$0xf]
      %v4450 = vld [vmem:[#allocation2 + $0x14] sm:$0xf]
      %v4451 = vld [vmem:[#allocation2 + $0x18] sm:$0xf]
      %v4452 = vld [vmem:[#allocation2 + $0x1c] sm:$0xf]
      %v4453 = vld [vmem:[#allocation2 + $0x20] sm:$0xf]
      %v4454 = vld [vmem:[#allocation2 + $0x24] sm:$0xf]
      %v4455 = vld [vmem:[#allocation2 + $0x28] sm:$0xf]
      %v4456 = vld [vmem:[#allocation2 + $0x2c] sm:$0xf]
      %v4457 = vld [vmem:[#allocation2 + $0x30] sm:$0xf]
      %v4458 = vld [vmem:[#allocation2 + $0x34] sm:$0xf]
      %v4459 = vld [vmem:[#allocation2 + $0x38] sm:$0xf]
      %v4460 = vld [vmem:[#allocation2 + $0x3c] sm:$0xf]
      %v4461 = vld [vmem:[#allocation2 + $0x40] sm:$0xf]
      %v4462 = vld [vmem:[#allocation2 + $0x44] sm:$0xf]
      %v4463 = vld [vmem:[#allocation2 + $0x48] sm:$0xf]
      %v4464 = vld [vmem:[#allocation2 + $0x4c] sm:$0xf]
      %v4465 = vld [vmem:[#allocation2 + $0x50] sm:$0xf]
      %v4466 = vld [vmem:[#allocation2 + $0x54] sm:$0xf]
      %v4467 = vld [vmem:[#allocation2 + $0x58] sm:$0xf]
      %v4468 = vld [vmem:[#allocation2 + $0x5c] sm:$0xf]
      %v4469 = vld [vmem:[#allocation2 + $0x60] sm:$0xf]
      %v4470 = vld [vmem:[#allocation2 + $0x64] sm:$0xf]
      %v4471 = vld [vmem:[#allocation2 + $0x68] sm:$0xf]
      %v4472 = vld [vmem:[#allocation2 + $0x6c] sm:$0xf]
      %v4473 = vld [vmem:[#allocation2 + $0x70] sm:$0xf]
      %v4474 = vld [vmem:[#allocation2 + $0x74] sm:$0xf]
      %v4475 = vld [vmem:[#allocation2 + $0x78] sm:$0xf]
      %v4476 = vld [vmem:[#allocation2 + $0x7c] sm:$0xf]
      %v4477 = vld [vmem:[#allocation2 + $0x80] sm:$0xf]
      %v4478 = vld [vmem:[#allocation2 + $0x84] sm:$0xf]
      %v4479 = vld [vmem:[#allocation2 + $0x88] sm:$0xf]
      %v4480 = vld [vmem:[#allocation2 + $0x8c] sm:$0x7]
      %v4481 = vld [vmem:[%s7] sm:$0xf]
      %v4482 = vld [vmem:[%s7 + $0x4] sm:$0xf]
      %v4483 = vld [vmem:[%s7 + $0x8] sm:$0xf]
      %v4484 = vld [vmem:[%s7 + $0xc] sm:$0xf]
      %v4485 = vld [vmem:[%s7 + $0x10] sm:$0xf]
      %v4486 = vld [vmem:[%s7 + $0x14] sm:$0xf]
      %v4487 = vld [vmem:[%s7 + $0x18] sm:$0xf]
      %v4488 = vld [vmem:[%s7 + $0x1c] sm:$0xf]
      %v4489 = vld [vmem:[%s7 + $0x20] sm:$0xf]
      %v4490 = vld [vmem:[%s7 + $0x24] sm:$0xf]
      %v4491 = vld [vmem:[%s7 + $0x28] sm:$0xf]
      %v4492 = vld [vmem:[%s7 + $0x2c] sm:$0xf]
      %v4493 = vld [vmem:[%s7 + $0x30] sm:$0xf]
      %v4494 = vld [vmem:[%s7 + $0x34] sm:$0xf]
      %v4495 = vld [vmem:[%s7 + $0x38] sm:$0xf]
      %v4496 = vld [vmem:[%s7 + $0x3c] sm:$0xf]
      %v4497 = vld [vmem:[#allocation2 + $0x8c] sm:$0xf]
      %s4498 = scalar_lea.vmem %s7, 64
      %v4499 = vld [vmem:[%s4498] sm:$0xf]
      %v4500 = vld [vmem:[%s4498 + $0x4] sm:$0xf]
      %v4501 = vld [vmem:[%s4498 + $0x8] sm:$0xf]
      %v4502 = vld [vmem:[%s4498 + $0xc] sm:$0xf]
      %v4503 = vld [vmem:[%s4498 + $0x10] sm:$0xf]
      %v4504 = vld [vmem:[%s4498 + $0x14] sm:$0xf]
      %v4505 = vld [vmem:[%s4498 + $0x18] sm:$0xf]
      %v4506 = vld [vmem:[%s4498 + $0x1c] sm:$0xf]
      %v4507 = vld [vmem:[%s4498 + $0x20] sm:$0xf]
      %v4508 = vld [vmem:[%s4498 + $0x24] sm:$0xf]
      %v4509 = vld [vmem:[%s4498 + $0x28] sm:$0xf]
      %v4510 = vld [vmem:[%s4498 + $0x2c] sm:$0xf]
      %v4511 = vld [vmem:[%s4498 + $0x30] sm:$0xf]
      %v4512 = vld [vmem:[%s4498 + $0x34] sm:$0xf]
      %v4513 = vld [vmem:[%s4498 + $0x38] sm:$0xf]
      %v4514 = vld [vmem:[%s4498 + $0x3c] sm:$0xf]
      %v4551 = vunpack.c.l.b16 %v4445
      %v4552 = vunpack.c.l.b16 %v4446
      %v4553 = vunpack.c.l.b16 %v4447
      %v4554 = vunpack.c.l.b16 %v4448
      %v4555 = vunpack.c.l.b16 %v4449
      %v4556 = vunpack.c.l.b16 %v4450
      %v4557 = vunpack.c.l.b16 %v4451
      %v4558 = vunpack.c.l.b16 %v4452
      %v4559 = vunpack.c.l.b16 %v4453
      %v4560 = vunpack.c.l.b16 %v4454
      %v4561 = vunpack.c.l.b16 %v4455
      %v4562 = vunpack.c.l.b16 %v4456
      %v4563 = vunpack.c.l.b16 %v4457
      %v4564 = vunpack.c.l.b16 %v4458
      %v4565 = vunpack.c.l.b16 %v4459
      %v4566 = vunpack.c.l.b16 %v4460
      %v4567 = vunpack.c.l.b16 %v4461
      %v4568 = vunpack.c.l.b16 %v4462
      %v4569 = vunpack.c.l.b16 %v4463
      %v4570 = vunpack.c.l.b16 %v4464
      %v4571 = vunpack.c.l.b16 %v4465
      %v4572 = vunpack.c.l.b16 %v4466
      %v4573 = vunpack.c.l.b16 %v4467
      %v4574 = vunpack.c.l.b16 %v4468
      %v4575 = vunpack.c.l.b16 %v4469
      %v4576 = vunpack.c.l.b16 %v4470
      %v4577 = vunpack.c.l.b16 %v4471
      %v4578 = vunpack.c.l.b16 %v4472
      %v4579 = vunpack.c.l.b16 %v4473
      %v4580 = vunpack.c.l.b16 %v4474
      %v4581 = vunpack.c.l.b16 %v4475
      %v4582 = vunpack.c.l.b16 %v4476
      %v4583 = vunpack.c.l.b16 %v4477
      %v4584 = vunpack.c.l.b16 %v4478
      %v4585 = vunpack.c.l.b16 %v4479
      %v4586 = vunpack.c.l.b16 %v4497
      %v4587 = vpack.c.b16 %v4552, %v4551
      %v4588 = vpack.c.b16 %v4554, %v4553
      %v4589 = vpack.c.b16 %v4556, %v4555
      %v4590 = vpack.c.b16 %v4558, %v4557
      %v4591 = vpack.c.b16 %v4560, %v4559
      %v4592 = vpack.c.b16 %v4562, %v4561
      %v4593 = vpack.c.b16 %v4564, %v4563
      %v4594 = vpack.c.b16 %v4566, %v4565
      %v4595 = vpack.c.b16 %v4568, %v4567
      %v4596 = vpack.c.b16 %v4570, %v4569
      %v4597 = vpack.c.b16 %v4572, %v4571
      %v4598 = vpack.c.b16 %v4574, %v4573
      %v4599 = vpack.c.b16 %v4576, %v4575
      %v4600 = vpack.c.b16 %v4578, %v4577
      %v4601 = vpack.c.b16 %v4580, %v4579
      %v4602 = vpack.c.b16 %v4582, %v4581
      %v4603 = vpack.c.b16 %v4584, %v4583
      %v4604 = vpack.c.b16 %v4586, %v4585
      %vm4605 = vsmask.f32 7424
      %v4607 = vshrl.u32 %v4587, 16
      %v4609 = vshll.u32 %v4587, 16
      %v4611 = vrot.slane %v4609, 1
      %v4612 = vor.u32 %v4607, %v4611
      %v4614 = vshll.u32 %v4588, 16
      %v4616 = vrot.slane %v4614, 1
      %v4617 = vsel %vm4605, %v4612, %v4616
      %v4618 = vshrl.u32 %v4588, 16
      %v4620 = vor.u32 %v4618, %v4616
      %v4622 = vshll.u32 %v4589, 16
      %v4624 = vrot.slane %v4622, 1
      %v4625 = vsel %vm4605, %v4620, %v4624
      %v4626 = vshrl.u32 %v4589, 16
      %v4628 = vor.u32 %v4626, %v4624
      %v4630 = vshll.u32 %v4590, 16
      %v4632 = vrot.slane %v4630, 1
      %v4633 = vsel %vm4605, %v4628, %v4632
      %v4634 = vshrl.u32 %v4590, 16
      %v4636 = vor.u32 %v4634, %v4632
      %v4638 = vshll.u32 %v4591, 16
      %v4640 = vrot.slane %v4638, 1
      %v4641 = vsel %vm4605, %v4636, %v4640
      %v4642 = vshrl.u32 %v4591, 16
      %v4644 = vor.u32 %v4642, %v4640
      %v4646 = vshll.u32 %v4592, 16
      %v4648 = vrot.slane %v4646, 1
      %v4649 = vsel %vm4605, %v4644, %v4648
      %v4650 = vshrl.u32 %v4592, 16
      %v4652 = vor.u32 %v4650, %v4648
      %v4654 = vshll.u32 %v4593, 16
      %v4656 = vrot.slane %v4654, 1
      %v4657 = vsel %vm4605, %v4652, %v4656
      %v4658 = vshrl.u32 %v4593, 16
      %v4660 = vor.u32 %v4658, %v4656
      %v4662 = vshll.u32 %v4594, 16
      %v4664 = vrot.slane %v4662, 1
      %v4665 = vsel %vm4605, %v4660, %v4664
      %v4666 = vshrl.u32 %v4594, 16
      %v4668 = vor.u32 %v4666, %v4664
      %v4670 = vshll.u32 %v4595, 16
      %v4672 = vrot.slane %v4670, 1
      %v4673 = vsel %vm4605, %v4668, %v4672
      %v4674 = vshrl.u32 %v4595, 16
      %v4676 = vor.u32 %v4674, %v4672
      %v4678 = vshll.u32 %v4596, 16
      %v4680 = vrot.slane %v4678, 1
      %v4681 = vsel %vm4605, %v4676, %v4680
      %v4682 = vshrl.u32 %v4596, 16
      %v4684 = vor.u32 %v4682, %v4680
      %v4686 = vshll.u32 %v4597, 16
      %v4688 = vrot.slane %v4686, 1
      %v4689 = vsel %vm4605, %v4684, %v4688
      %v4690 = vshrl.u32 %v4597, 16
      %v4692 = vor.u32 %v4690, %v4688
      %v4694 = vshll.u32 %v4598, 16
      %v4696 = vrot.slane %v4694, 1
      %v4697 = vsel %vm4605, %v4692, %v4696
      %v4698 = vshrl.u32 %v4598, 16
      %v4700 = vor.u32 %v4698, %v4696
      %v4702 = vshll.u32 %v4599, 16
      %v4704 = vrot.slane %v4702, 1
      %v4705 = vsel %vm4605, %v4700, %v4704
      %v4706 = vshrl.u32 %v4599, 16
      %v4708 = vor.u32 %v4706, %v4704
      %v4710 = vshll.u32 %v4600, 16
      %v4712 = vrot.slane %v4710, 1
      %v4713 = vsel %vm4605, %v4708, %v4712
      %v4714 = vshrl.u32 %v4600, 16
      %v4716 = vor.u32 %v4714, %v4712
      %v4718 = vshll.u32 %v4601, 16
      %v4720 = vrot.slane %v4718, 1
      %v4721 = vsel %vm4605, %v4716, %v4720
      %v4722 = vshrl.u32 %v4601, 16
      %v4724 = vor.u32 %v4722, %v4720
      %v4726 = vshll.u32 %v4602, 16
      %v4728 = vrot.slane %v4726, 1
      %v4729 = vsel %vm4605, %v4724, %v4728
      %v4730 = vshrl.u32 %v4602, 16
      %v4732 = vor.u32 %v4730, %v4728
      %v4734 = vshll.u32 %v4603, 16
      %v4736 = vrot.slane %v4734, 1
      %v4737 = vsel %vm4605, %v4732, %v4736
      %v4738 = vshrl.u32 %v4603, 16
      %v4740 = vor.u32 %v4738, %v4736
      %v4742 = vshll.u32 %v4604, 16
      %v4744 = vrot.slane %v4742, 1
      %v4745 = vsel %vm4605, %v4740, %v4744
      %v4746 = vshrl.u32 %v4604, 16
      %v4748 = vor.u32 %v4746, %v4744
      %v4783 = vunpack.c.l.b16 %v4499
      %v4784 = vunpack.c.l.b16 %v4500
      %v4785 = vunpack.c.l.b16 %v4501
      %v4786 = vunpack.c.l.b16 %v4502
      %v4787 = vunpack.c.l.b16 %v4503
      %v4788 = vunpack.c.l.b16 %v4504
      %v4789 = vunpack.c.l.b16 %v4505
      %v4790 = vunpack.c.l.b16 %v4506
      %v4791 = vunpack.c.l.b16 %v4507
      %v4792 = vunpack.c.l.b16 %v4508
      %v4793 = vunpack.c.l.b16 %v4509
      %v4794 = vunpack.c.l.b16 %v4510
      %v4795 = vunpack.c.l.b16 %v4511
      %v4796 = vunpack.c.l.b16 %v4512
      %v4797 = vunpack.c.l.b16 %v4513
      %v4798 = vunpack.c.l.b16 %v4514
      %v4799 = vpack.c.b16 %v4784, %v4783
      %v4800 = vpack.c.b16 %v4786, %v4785
      %v4801 = vpack.c.b16 %v4788, %v4787
      %v4802 = vpack.c.b16 %v4790, %v4789
      %v4803 = vpack.c.b16 %v4792, %v4791
      %v4804 = vpack.c.b16 %v4794, %v4793
      %v4805 = vpack.c.b16 %v4796, %v4795
      %v4806 = vpack.c.b16 %v4798, %v4797
      %4815 = vmatpush.bf16.msra.mxu0 %v4806
      %4816 = vmatpush.bf16.msra.mxu0 %v4805
      %4817 = vmatpush.bf16.msra.mxu0 %v4804
      %4818 = vmatpush.bf16.msra.mxu0 %v4803
      %4819 = vmatpush.bf16.msra.mxu0 %v4802
      %4820 = vmatpush.bf16.msra.mxu0 %v4801
      %4821 = vmatpush.bf16.msra.mxu0 %v4800
      %4822 = vmatpush.bf16.msra.mxu0 %v4799
      %4823 = vmatmul.bf16.gmra.mxu0 %v4617
      %v4824 = vpop.f32.mrf.mxu0
      %v4825 = vadd.f32 0.0, %v4824
      %v4826 = vpop.f32.mrf.mxu0
      %v4827 = vadd.f32 0.0, %v4826
      %4828 = vmatmul.bf16.gmra.mxu0 %v4625
      %v4829 = vpop.f32.mrf.mxu0
      %v4830 = vadd.f32 0.0, %v4829
      %v4831 = vpop.f32.mrf.mxu0
      %v4832 = vadd.f32 0.0, %v4831
      %4833 = vmatmul.bf16.gmra.mxu0 %v4633
      %v4834 = vpop.f32.mrf.mxu0
      %v4835 = vadd.f32 0.0, %v4834
      %v4836 = vpop.f32.mrf.mxu0
      %v4837 = vadd.f32 0.0, %v4836
      %4838 = vmatmul.bf16.gmra.mxu0 %v4641
      %v4839 = vpop.f32.mrf.mxu0
      %v4840 = vadd.f32 0.0, %v4839
      %v4841 = vpop.f32.mrf.mxu0
      %v4842 = vadd.f32 0.0, %v4841
      %4843 = vmatmul.bf16.gmra.mxu0 %v4649
      %v4844 = vpop.f32.mrf.mxu0
      %v4845 = vadd.f32 0.0, %v4844
      %v4846 = vpop.f32.mrf.mxu0
      %v4847 = vadd.f32 0.0, %v4846
      %4848 = vmatmul.bf16.gmra.mxu0 %v4657
      %v4849 = vpop.f32.mrf.mxu0
      %v4850 = vadd.f32 0.0, %v4849
      %v4851 = vpop.f32.mrf.mxu0
      %v4852 = vadd.f32 0.0, %v4851
      %4853 = vmatmul.bf16.gmra.mxu0 %v4665
      %v4854 = vpop.f32.mrf.mxu0
      %v4855 = vadd.f32 0.0, %v4854
      %v4856 = vpop.f32.mrf.mxu0
      %v4857 = vadd.f32 0.0, %v4856
      %4858 = vmatmul.bf16.gmra.mxu0 %v4673
      %v4859 = vpop.f32.mrf.mxu0
      %v4860 = vadd.f32 0.0, %v4859
      %v4861 = vpop.f32.mrf.mxu0
      %v4862 = vadd.f32 0.0, %v4861
      %4863 = vmatmul.bf16.gmra.mxu0 %v4681
      %v4864 = vpop.f32.mrf.mxu0
      %v4865 = vadd.f32 0.0, %v4864
      %v4866 = vpop.f32.mrf.mxu0
      %v4867 = vadd.f32 0.0, %v4866
      %4868 = vmatmul.bf16.gmra.mxu0 %v4689
      %v4869 = vpop.f32.mrf.mxu0
      %v4870 = vadd.f32 0.0, %v4869
      %v4871 = vpop.f32.mrf.mxu0
      %v4872 = vadd.f32 0.0, %v4871
      %4873 = vmatmul.bf16.gmra.mxu0 %v4697
      %v4874 = vpop.f32.mrf.mxu0
      %v4875 = vadd.f32 0.0, %v4874
      %v4876 = vpop.f32.mrf.mxu0
      %v4877 = vadd.f32 0.0, %v4876
      %4878 = vmatmul.bf16.gmra.mxu0 %v4705
      %v4879 = vpop.f32.mrf.mxu0
      %v4880 = vadd.f32 0.0, %v4879
      %v4881 = vpop.f32.mrf.mxu0
      %v4882 = vadd.f32 0.0, %v4881
      %4883 = vmatmul.bf16.gmra.mxu0 %v4713
      %v4884 = vpop.f32.mrf.mxu0
      %v4885 = vadd.f32 0.0, %v4884
      %v4886 = vpop.f32.mrf.mxu0
      %v4887 = vadd.f32 0.0, %v4886
      %4888 = vmatmul.bf16.gmra.mxu0 %v4721
      %v4889 = vpop.f32.mrf.mxu0
      %v4890 = vadd.f32 0.0, %v4889
      %v4891 = vpop.f32.mrf.mxu0
      %v4892 = vadd.f32 0.0, %v4891
      %4893 = vmatmul.bf16.gmra.mxu0 %v4729
      %v4894 = vpop.f32.mrf.mxu0
      %v4895 = vadd.f32 0.0, %v4894
      %v4896 = vpop.f32.mrf.mxu0
      %v4897 = vadd.f32 0.0, %v4896
      %4898 = vmatmul.bf16.gmra.mxu0 %v4737
      %v4899 = vpop.f32.mrf.mxu0
      %v4900 = vadd.f32 0.0, %v4899
      %v4901 = vpop.f32.mrf.mxu0
      %v4902 = vadd.f32 0.0, %v4901
      %4903 = vmatmul.bf16.gmra.mxu0 %v4745
      %v4904 = vpop.f32.mrf.mxu0
      %v4905 = vadd.f32 0.0, %v4904
      %v4906 = vpop.f32.mrf.mxu0
      %v4907 = vadd.f32 0.0, %v4906
      %4908 = vmatmul.bf16.gmra.mxu0 %v4748
      %v4909 = vpop.f32.mrf.mxu0
      %v4910 = vadd.f32 0.0, %v4909
      %v4911 = vpop.f32.mrf.mxu0
      %v4912 = vadd.f32 0.0, %v4911
      %4913 = vdwg.mxu0
      %v4915 = vunpack.c.l.b16 %v4480
      %v4916 = vpack.c.b16 %v4915, %v4585
      %v4951 = vunpack.c.l.b16 %v4481
      %v4952 = vunpack.c.l.b16 %v4482
      %v4953 = vunpack.c.l.b16 %v4483
      %v4954 = vunpack.c.l.b16 %v4484
      %v4955 = vunpack.c.l.b16 %v4485
      %v4956 = vunpack.c.l.b16 %v4486
      %v4957 = vunpack.c.l.b16 %v4487
      %v4958 = vunpack.c.l.b16 %v4488
      %v4959 = vunpack.c.l.b16 %v4489
      %v4960 = vunpack.c.l.b16 %v4490
      %v4961 = vunpack.c.l.b16 %v4491
      %v4962 = vunpack.c.l.b16 %v4492
      %v4963 = vunpack.c.l.b16 %v4493
      %v4964 = vunpack.c.l.b16 %v4494
      %v4965 = vunpack.c.l.b16 %v4495
      %v4966 = vunpack.c.l.b16 %v4496
      %v4967 = vpack.c.b16 %v4952, %v4951
      %v4968 = vpack.c.b16 %v4954, %v4953
      %v4969 = vpack.c.b16 %v4956, %v4955
      %v4970 = vpack.c.b16 %v4958, %v4957
      %v4971 = vpack.c.b16 %v4960, %v4959
      %v4972 = vpack.c.b16 %v4962, %v4961
      %v4973 = vpack.c.b16 %v4964, %v4963
      %v4974 = vpack.c.b16 %v4966, %v4965
      %4983 = vmatpush.bf16.msra.mxu0 %v4974
      %4984 = vmatpush.bf16.msra.mxu0 %v4973
      %4985 = vmatpush.bf16.msra.mxu0 %v4972
      %4986 = vmatpush.bf16.msra.mxu0 %v4971
      %4987 = vmatpush.bf16.msra.mxu0 %v4970
      %4988 = vmatpush.bf16.msra.mxu0 %v4969
      %4989 = vmatpush.bf16.msra.mxu0 %v4968
      %4990 = vmatpush.bf16.msra.mxu0 %v4967
      %4991 = vmatmul.bf16.gmra.mxu0 %v4587
      %v4992 = vpop.f32.mrf.mxu0
      %v4993 = vadd.f32 %v4825, %v4992
      %v4994 = vpop.f32.mrf.mxu0
      %v4995 = vadd.f32 %v4827, %v4994
      %4996 = vmatmul.bf16.gmra.mxu0 %v4588
      %v4997 = vpop.f32.mrf.mxu0
      %v4998 = vadd.f32 %v4830, %v4997
      %v4999 = vpop.f32.mrf.mxu0
      %v5000 = vadd.f32 %v4832, %v4999
      %5001 = vmatmul.bf16.gmra.mxu0 %v4589
      %v5002 = vpop.f32.mrf.mxu0
      %v5003 = vadd.f32 %v4835, %v5002
      %v5004 = vpop.f32.mrf.mxu0
      %v5005 = vadd.f32 %v4837, %v5004
      %5006 = vmatmul.bf16.gmra.mxu0 %v4590
      %v5007 = vpop.f32.mrf.mxu0
      %v5008 = vadd.f32 %v4840, %v5007
      %v5009 = vpop.f32.mrf.mxu0
      %v5010 = vadd.f32 %v4842, %v5009
      %5011 = vmatmul.bf16.gmra.mxu0 %v4591
      %v5012 = vpop.f32.mrf.mxu0
      %v5013 = vadd.f32 %v4845, %v5012
      %v5014 = vpop.f32.mrf.mxu0
      %v5015 = vadd.f32 %v4847, %v5014
      %5016 = vmatmul.bf16.gmra.mxu0 %v4592
      %v5017 = vpop.f32.mrf.mxu0
      %v5018 = vadd.f32 %v4850, %v5017
      %v5019 = vpop.f32.mrf.mxu0
      %v5020 = vadd.f32 %v4852, %v5019
      %5021 = vmatmul.bf16.gmra.mxu0 %v4593
      %v5022 = vpop.f32.mrf.mxu0
      %v5023 = vadd.f32 %v4855, %v5022
      %v5024 = vpop.f32.mrf.mxu0
      %v5025 = vadd.f32 %v4857, %v5024
      %5026 = vmatmul.bf16.gmra.mxu0 %v4594
      %v5027 = vpop.f32.mrf.mxu0
      %v5028 = vadd.f32 %v4860, %v5027
      %v5029 = vpop.f32.mrf.mxu0
      %v5030 = vadd.f32 %v4862, %v5029
      %5031 = vmatmul.bf16.gmra.mxu0 %v4595
      %v5032 = vpop.f32.mrf.mxu0
      %v5033 = vadd.f32 %v4865, %v5032
      %v5034 = vpop.f32.mrf.mxu0
      %v5035 = vadd.f32 %v4867, %v5034
      %5036 = vmatmul.bf16.gmra.mxu0 %v4596
      %v5037 = vpop.f32.mrf.mxu0
      %v5038 = vadd.f32 %v4870, %v5037
      %v5039 = vpop.f32.mrf.mxu0
      %v5040 = vadd.f32 %v4872, %v5039
      %5041 = vmatmul.bf16.gmra.mxu0 %v4597
      %v5042 = vpop.f32.mrf.mxu0
      %v5043 = vadd.f32 %v4875, %v5042
      %v5044 = vpop.f32.mrf.mxu0
      %v5045 = vadd.f32 %v4877, %v5044
      %5046 = vmatmul.bf16.gmra.mxu0 %v4598
      %v5047 = vpop.f32.mrf.mxu0
      %v5048 = vadd.f32 %v4880, %v5047
      %v5049 = vpop.f32.mrf.mxu0
      %v5050 = vadd.f32 %v4882, %v5049
      %5051 = vmatmul.bf16.gmra.mxu0 %v4599
      %v5052 = vpop.f32.mrf.mxu0
      %v5053 = vadd.f32 %v4885, %v5052
      %v5054 = vpop.f32.mrf.mxu0
      %v5055 = vadd.f32 %v4887, %v5054
      %5056 = vmatmul.bf16.gmra.mxu0 %v4600
      %v5057 = vpop.f32.mrf.mxu0
      %v5058 = vadd.f32 %v4890, %v5057
      %v5059 = vpop.f32.mrf.mxu0
      %v5060 = vadd.f32 %v4892, %v5059
      %5061 = vmatmul.bf16.gmra.mxu0 %v4601
      %v5062 = vpop.f32.mrf.mxu0
      %v5063 = vadd.f32 %v4895, %v5062
      %v5064 = vpop.f32.mrf.mxu0
      %v5065 = vadd.f32 %v4897, %v5064
      %5066 = vmatmul.bf16.gmra.mxu0 %v4602
      %v5067 = vpop.f32.mrf.mxu0
      %v5068 = vadd.f32 %v4900, %v5067
      %v5069 = vpop.f32.mrf.mxu0
      %v5070 = vadd.f32 %v4902, %v5069
      %5071 = vmatmul.bf16.gmra.mxu0 %v4603
      %v5072 = vpop.f32.mrf.mxu0
      %v5073 = vadd.f32 %v4905, %v5072
      %v5074 = vpop.f32.mrf.mxu0
      %v5075 = vadd.f32 %v4907, %v5074
      %5076 = vmatmul.bf16.gmra.mxu0 %v4916
      %v5077 = vpop.f32.mrf.mxu0
      %v5078 = vadd.f32 %v4910, %v5077
      %v5079 = vpop.f32.mrf.mxu0
      %v5080 = vadd.f32 %v4912, %v5079
      %5081 = vdwg.mxu0
      %v5082 = vld [vmem:[#allocation2] sm:$0xe]
      %s5083 = scalar_lea.vmem %s7, 128
      %v5084 = vld [vmem:[%s5083] sm:$0xf]
      %v5085 = vld [vmem:[%s5083 + $0x4] sm:$0xf]
      %v5086 = vld [vmem:[%s5083 + $0x8] sm:$0xf]
      %v5087 = vld [vmem:[%s5083 + $0xc] sm:$0xf]
      %v5088 = vld [vmem:[%s5083 + $0x10] sm:$0xf]
      %v5089 = vld [vmem:[%s5083 + $0x14] sm:$0xf]
      %v5090 = vld [vmem:[%s5083 + $0x18] sm:$0xf]
      %v5091 = vld [vmem:[%s5083 + $0x1c] sm:$0xf]
      %v5092 = vld [vmem:[%s5083 + $0x20] sm:$0xf]
      %v5093 = vld [vmem:[%s5083 + $0x24] sm:$0xf]
      %v5094 = vld [vmem:[%s5083 + $0x28] sm:$0xf]
      %v5095 = vld [vmem:[%s5083 + $0x2c] sm:$0xf]
      %v5096 = vld [vmem:[%s5083 + $0x30] sm:$0xf]
      %v5097 = vld [vmem:[%s5083 + $0x34] sm:$0xf]
      %v5098 = vld [vmem:[%s5083 + $0x38] sm:$0xf]
      %v5099 = vld [vmem:[%s5083 + $0x3c] sm:$0xf]
      %v5101 = vunpack.c.l.b16 %v5082
      %v5102 = vpack.c.b16 %v4552, %v5101
      %vm5103 = vcmask 1046528
      %v5104 = vrot.slane %v5102, 1
      %v5105 = vrot.slane %v4588, 1
      %v5106 = vsel %vm5103, %v5104, %v5105
      %v5107 = vrot.slane %v4589, 1
      %v5108 = vsel %vm5103, %v5105, %v5107
      %v5109 = vrot.slane %v4590, 1
      %v5110 = vsel %vm5103, %v5107, %v5109
      %v5111 = vrot.slane %v4591, 1
      %v5112 = vsel %vm5103, %v5109, %v5111
      %v5113 = vrot.slane %v4592, 1
      %v5114 = vsel %vm5103, %v5111, %v5113
      %v5115 = vrot.slane %v4593, 1
      %v5116 = vsel %vm5103, %v5113, %v5115
      %v5117 = vrot.slane %v4594, 1
      %v5118 = vsel %vm5103, %v5115, %v5117
      %v5119 = vrot.slane %v4595, 1
      %v5120 = vsel %vm5103, %v5117, %v5119
      %v5121 = vrot.slane %v4596, 1
      %v5122 = vsel %vm5103, %v5119, %v5121
      %v5123 = vrot.slane %v4597, 1
      %v5124 = vsel %vm5103, %v5121, %v5123
      %v5125 = vrot.slane %v4598, 1
      %v5126 = vsel %vm5103, %v5123, %v5125
      %v5127 = vrot.slane %v4599, 1
      %v5128 = vsel %vm5103, %v5125, %v5127
      %v5129 = vrot.slane %v4600, 1
      %v5130 = vsel %vm5103, %v5127, %v5129
      %v5131 = vrot.slane %v4601, 1
      %v5132 = vsel %vm5103, %v5129, %v5131
      %v5133 = vrot.slane %v4602, 1
      %v5134 = vsel %vm5103, %v5131, %v5133
      %v5135 = vrot.slane %v4603, 1
      %v5136 = vsel %vm5103, %v5133, %v5135
      %v5137 = vrot.slane %v4604, 1
      %v5138 = vsel %vm5103, %v5135, %v5137
      %v5173 = vunpack.c.l.b16 %v5084
      %v5174 = vunpack.c.l.b16 %v5085
      %v5175 = vunpack.c.l.b16 %v5086
      %v5176 = vunpack.c.l.b16 %v5087
      %v5177 = vunpack.c.l.b16 %v5088
      %v5178 = vunpack.c.l.b16 %v5089
      %v5179 = vunpack.c.l.b16 %v5090
      %v5180 = vunpack.c.l.b16 %v5091
      %v5181 = vunpack.c.l.b16 %v5092
      %v5182 = vunpack.c.l.b16 %v5093
      %v5183 = vunpack.c.l.b16 %v5094
      %v5184 = vunpack.c.l.b16 %v5095
      %v5185 = vunpack.c.l.b16 %v5096
      %v5186 = vunpack.c.l.b16 %v5097
      %v5187 = vunpack.c.l.b16 %v5098
      %v5188 = vunpack.c.l.b16 %v5099
      %v5189 = vpack.c.b16 %v5174, %v5173
      %v5190 = vpack.c.b16 %v5176, %v5175
      %v5191 = vpack.c.b16 %v5178, %v5177
      %v5192 = vpack.c.b16 %v5180, %v5179
      %v5193 = vpack.c.b16 %v5182, %v5181
      %v5194 = vpack.c.b16 %v5184, %v5183
      %v5195 = vpack.c.b16 %v5186, %v5185
      %v5196 = vpack.c.b16 %v5188, %v5187
      %5205 = vmatpush.bf16.msra.mxu0 %v5196
      %5206 = vmatpush.bf16.msra.mxu0 %v5195
      %5207 = vmatpush.bf16.msra.mxu0 %v5194
      %5208 = vmatpush.bf16.msra.mxu0 %v5193
      %5209 = vmatpush.bf16.msra.mxu0 %v5192
      %5210 = vmatpush.bf16.msra.mxu0 %v5191
      %5211 = vmatpush.bf16.msra.mxu0 %v5190
      %5212 = vmatpush.bf16.msra.mxu0 %v5189
      %5213 = vmatmul.bf16.gmra.mxu0 %v5106
      %v5214 = vpop.f32.mrf.mxu0
      %v5215 = vadd.f32 0.0, %v5214
      %v5216 = vpop.f32.mrf.mxu0
      %v5217 = vadd.f32 0.0, %v5216
      %5218 = vmatmul.bf16.gmra.mxu0 %v5108
      %v5219 = vpop.f32.mrf.mxu0
      %v5220 = vadd.f32 0.0, %v5219
      %v5221 = vpop.f32.mrf.mxu0
      %v5222 = vadd.f32 0.0, %v5221
      %5223 = vmatmul.bf16.gmra.mxu0 %v5110
      %v5224 = vpop.f32.mrf.mxu0
      %v5225 = vadd.f32 0.0, %v5224
      %v5226 = vpop.f32.mrf.mxu0
      %v5227 = vadd.f32 0.0, %v5226
      %5228 = vmatmul.bf16.gmra.mxu0 %v5112
      %v5229 = vpop.f32.mrf.mxu0
      %v5230 = vadd.f32 0.0, %v5229
      %v5231 = vpop.f32.mrf.mxu0
      %v5232 = vadd.f32 0.0, %v5231
      %5233 = vmatmul.bf16.gmra.mxu0 %v5114
      %v5234 = vpop.f32.mrf.mxu0
      %v5235 = vadd.f32 0.0, %v5234
      %v5236 = vpop.f32.mrf.mxu0
      %v5237 = vadd.f32 0.0, %v5236
      %5238 = vmatmul.bf16.gmra.mxu0 %v5116
      %v5239 = vpop.f32.mrf.mxu0
      %v5240 = vadd.f32 0.0, %v5239
      %v5241 = vpop.f32.mrf.mxu0
      %v5242 = vadd.f32 0.0, %v5241
      %5243 = vmatmul.bf16.gmra.mxu0 %v5118
      %v5244 = vpop.f32.mrf.mxu0
      %v5245 = vadd.f32 0.0, %v5244
      %v5246 = vpop.f32.mrf.mxu0
      %v5247 = vadd.f32 0.0, %v5246
      %5248 = vmatmul.bf16.gmra.mxu0 %v5120
      %v5249 = vpop.f32.mrf.mxu0
      %v5250 = vadd.f32 0.0, %v5249
      %v5251 = vpop.f32.mrf.mxu0
      %v5252 = vadd.f32 0.0, %v5251
      %5253 = vmatmul.bf16.gmra.mxu0 %v5122
      %v5254 = vpop.f32.mrf.mxu0
      %v5255 = vadd.f32 0.0, %v5254
      %v5256 = vpop.f32.mrf.mxu0
      %v5257 = vadd.f32 0.0, %v5256
      %5258 = vmatmul.bf16.gmra.mxu0 %v5124
      %v5259 = vpop.f32.mrf.mxu0
      %v5260 = vadd.f32 0.0, %v5259
      %v5261 = vpop.f32.mrf.mxu0
      %v5262 = vadd.f32 0.0, %v5261
      %5263 = vmatmul.bf16.gmra.mxu0 %v5126
      %v5264 = vpop.f32.mrf.mxu0
      %v5265 = vadd.f32 0.0, %v5264
      %v5266 = vpop.f32.mrf.mxu0
      %v5267 = vadd.f32 0.0, %v5266
      %5268 = vmatmul.bf16.gmra.mxu0 %v5128
      %v5269 = vpop.f32.mrf.mxu0
      %v5270 = vadd.f32 0.0, %v5269
      %v5271 = vpop.f32.mrf.mxu0
      %v5272 = vadd.f32 0.0, %v5271
      %5273 = vmatmul.bf16.gmra.mxu0 %v5130
      %v5274 = vpop.f32.mrf.mxu0
      %v5275 = vadd.f32 0.0, %v5274
      %v5276 = vpop.f32.mrf.mxu0
      %v5277 = vadd.f32 0.0, %v5276
      %5278 = vmatmul.bf16.gmra.mxu0 %v5132
      %v5279 = vpop.f32.mrf.mxu0
      %v5280 = vadd.f32 0.0, %v5279
      %v5281 = vpop.f32.mrf.mxu0
      %v5282 = vadd.f32 0.0, %v5281
      %5283 = vmatmul.bf16.gmra.mxu0 %v5134
      %v5284 = vpop.f32.mrf.mxu0
      %v5285 = vadd.f32 0.0, %v5284
      %v5286 = vpop.f32.mrf.mxu0
      %v5287 = vadd.f32 0.0, %v5286
      %5288 = vmatmul.bf16.gmra.mxu0 %v5136
      %v5289 = vpop.f32.mrf.mxu0
      %v5290 = vadd.f32 0.0, %v5289
      %v5291 = vpop.f32.mrf.mxu0
      %v5292 = vadd.f32 0.0, %v5291
      %5293 = vmatmul.bf16.gmra.mxu0 %v5138
      %v5294 = vpop.f32.mrf.mxu0
      %v5295 = vadd.f32 0.0, %v5294
      %v5296 = vpop.f32.mrf.mxu0
      %v5297 = vadd.f32 0.0, %v5296
      %5298 = vmatmul.bf16.gmra.mxu0 %v5137
      %v5299 = vpop.f32.mrf.mxu0
      %v5300 = vadd.f32 0.0, %v5299
      %v5301 = vpop.f32.mrf.mxu0
      %v5302 = vadd.f32 0.0, %v5301
      %5303 = vdwg.mxu0
      %v5304 = vadd.f32 %v4993, %v5215
      %v5305 = vadd.f32 %v4995, %v5217
      %v5306 = vadd.f32 %v4998, %v5220
      %v5307 = vadd.f32 %v5000, %v5222
      %v5308 = vadd.f32 %v5003, %v5225
      %v5309 = vadd.f32 %v5005, %v5227
      %v5310 = vadd.f32 %v5008, %v5230
      %v5311 = vadd.f32 %v5010, %v5232
      %v5312 = vadd.f32 %v5013, %v5235
      %v5313 = vadd.f32 %v5015, %v5237
      %v5314 = vadd.f32 %v5018, %v5240
      %v5315 = vadd.f32 %v5020, %v5242
      %v5316 = vadd.f32 %v5023, %v5245
      %v5317 = vadd.f32 %v5025, %v5247
      %v5318 = vadd.f32 %v5028, %v5250
      %v5319 = vadd.f32 %v5030, %v5252
      %v5320 = vadd.f32 %v5033, %v5255
      %v5321 = vadd.f32 %v5035, %v5257
      %v5322 = vadd.f32 %v5038, %v5260
      %v5323 = vadd.f32 %v5040, %v5262
      %v5324 = vadd.f32 %v5043, %v5265
      %v5325 = vadd.f32 %v5045, %v5267
      %v5326 = vadd.f32 %v5048, %v5270
      %v5327 = vadd.f32 %v5050, %v5272
      %v5328 = vadd.f32 %v5053, %v5275
      %v5329 = vadd.f32 %v5055, %v5277
      %v5330 = vadd.f32 %v5058, %v5280
      %v5331 = vadd.f32 %v5060, %v5282
      %v5332 = vadd.f32 %v5063, %v5285
      %v5333 = vadd.f32 %v5065, %v5287
      %v5334 = vadd.f32 %v5068, %v5290
      %v5335 = vadd.f32 %v5070, %v5292
      %v5336 = vadd.f32 %v5073, %v5295
      %v5337 = vadd.f32 %v5075, %v5297
      %v5338 = vadd.f32 %v5078, %v5300
      %v5339 = vadd.f32 %v5080, %v5302
      %v5340 = vld [vmem:[#allocation2 + $0x8] sm:$0xe]
      %v5341 = vld [vmem:[#allocation2 + $0xc] sm:$0xf]
      %v5342 = vld [vmem:[#allocation2 + $0x10] sm:$0xf]
      %v5343 = vld [vmem:[#allocation2 + $0x14] sm:$0xf]
      %v5344 = vld [vmem:[#allocation2 + $0x18] sm:$0xf]
      %v5345 = vld [vmem:[#allocation2 + $0x1c] sm:$0xf]
      %v5346 = vld [vmem:[#allocation2 + $0x20] sm:$0xf]
      %v5347 = vld [vmem:[#allocation2 + $0x24] sm:$0xf]
      %v5348 = vld [vmem:[#allocation2 + $0x28] sm:$0xf]
      %v5349 = vld [vmem:[#allocation2 + $0x2c] sm:$0xf]
      %v5350 = vld [vmem:[#allocation2 + $0x30] sm:$0xf]
      %v5351 = vld [vmem:[#allocation2 + $0x34] sm:$0xf]
      %v5352 = vld [vmem:[#allocation2 + $0x38] sm:$0xf]
      %v5353 = vld [vmem:[#allocation2 + $0x3c] sm:$0xf]
      %v5354 = vld [vmem:[#allocation2 + $0x40] sm:$0xf]
      %v5355 = vld [vmem:[#allocation2 + $0x44] sm:$0xf]
      %v5356 = vld [vmem:[#allocation2 + $0x48] sm:$0xf]
      %v5357 = vld [vmem:[#allocation2 + $0x4c] sm:$0xf]
      %v5358 = vld [vmem:[#allocation2 + $0x50] sm:$0xf]
      %v5359 = vld [vmem:[#allocation2 + $0x54] sm:$0xf]
      %v5360 = vld [vmem:[#allocation2 + $0x58] sm:$0xf]
      %v5361 = vld [vmem:[#allocation2 + $0x5c] sm:$0xf]
      %v5362 = vld [vmem:[#allocation2 + $0x60] sm:$0xf]
      %v5363 = vld [vmem:[#allocation2 + $0x64] sm:$0xf]
      %v5364 = vld [vmem:[#allocation2 + $0x68] sm:$0xf]
      %v5365 = vld [vmem:[#allocation2 + $0x6c] sm:$0xf]
      %v5366 = vld [vmem:[#allocation2 + $0x70] sm:$0xf]
      %v5367 = vld [vmem:[#allocation2 + $0x74] sm:$0xf]
      %v5368 = vld [vmem:[#allocation2 + $0x78] sm:$0xf]
      %v5369 = vld [vmem:[#allocation2 + $0x7c] sm:$0xf]
      %v5370 = vld [vmem:[#allocation2 + $0x80] sm:$0xf]
      %v5371 = vld [vmem:[#allocation2 + $0x84] sm:$0xf]
      %v5372 = vld [vmem:[#allocation2 + $0x88] sm:$0xf]
      %v5373 = vld [vmem:[#allocation2 + $0x8c] sm:$0xf]
      %v5374 = vld [vmem:[#allocation2 + $0x90] sm:$0xf]
      %v5375 = vld [vmem:[#allocation2 + $0x94] sm:$0xf]
      %s5376 = scalar_lea.vmem %s7, 192
      %v5377 = vld [vmem:[%s5376] sm:$0xf]
      %v5378 = vld [vmem:[%s5376 + $0x4] sm:$0xf]
      %v5379 = vld [vmem:[%s5376 + $0x8] sm:$0xf]
      %v5380 = vld [vmem:[%s5376 + $0xc] sm:$0xf]
      %v5381 = vld [vmem:[%s5376 + $0x10] sm:$0xf]
      %v5382 = vld [vmem:[%s5376 + $0x14] sm:$0xf]
      %v5383 = vld [vmem:[%s5376 + $0x18] sm:$0xf]
      %v5384 = vld [vmem:[%s5376 + $0x1c] sm:$0xf]
      %v5385 = vld [vmem:[%s5376 + $0x20] sm:$0xf]
      %v5386 = vld [vmem:[%s5376 + $0x24] sm:$0xf]
      %v5387 = vld [vmem:[%s5376 + $0x28] sm:$0xf]
      %v5388 = vld [vmem:[%s5376 + $0x2c] sm:$0xf]
      %v5389 = vld [vmem:[%s5376 + $0x30] sm:$0xf]
      %v5390 = vld [vmem:[%s5376 + $0x34] sm:$0xf]
      %v5391 = vld [vmem:[%s5376 + $0x38] sm:$0xf]
      %v5392 = vld [vmem:[%s5376 + $0x3c] sm:$0xf]
      %v5429 = vunpack.c.l.b16 %v5340
      %v5430 = vunpack.c.l.b16 %v5341
      %v5431 = vunpack.c.l.b16 %v5342
      %v5432 = vunpack.c.l.b16 %v5343
      %v5433 = vunpack.c.l.b16 %v5344
      %v5434 = vunpack.c.l.b16 %v5345
      %v5435 = vunpack.c.l.b16 %v5346
      %v5436 = vunpack.c.l.b16 %v5347
      %v5437 = vunpack.c.l.b16 %v5348
      %v5438 = vunpack.c.l.b16 %v5349
      %v5439 = vunpack.c.l.b16 %v5350
      %v5440 = vunpack.c.l.b16 %v5351
      %v5441 = vunpack.c.l.b16 %v5352
      %v5442 = vunpack.c.l.b16 %v5353
      %v5443 = vunpack.c.l.b16 %v5354
      %v5444 = vunpack.c.l.b16 %v5355
      %v5445 = vunpack.c.l.b16 %v5356
      %v5446 = vunpack.c.l.b16 %v5357
      %v5447 = vunpack.c.l.b16 %v5358
      %v5448 = vunpack.c.l.b16 %v5359
      %v5449 = vunpack.c.l.b16 %v5360
      %v5450 = vunpack.c.l.b16 %v5361
      %v5451 = vunpack.c.l.b16 %v5362
      %v5452 = vunpack.c.l.b16 %v5363
      %v5453 = vunpack.c.l.b16 %v5364
      %v5454 = vunpack.c.l.b16 %v5365
      %v5455 = vunpack.c.l.b16 %v5366
      %v5456 = vunpack.c.l.b16 %v5367
      %v5457 = vunpack.c.l.b16 %v5368
      %v5458 = vunpack.c.l.b16 %v5369
      %v5459 = vunpack.c.l.b16 %v5370
      %v5460 = vunpack.c.l.b16 %v5371
      %v5461 = vunpack.c.l.b16 %v5372
      %v5462 = vunpack.c.l.b16 %v5373
      %v5463 = vunpack.c.l.b16 %v5374
      %v5464 = vunpack.c.l.b16 %v5375
      %v5465 = vpack.c.b16 %v5430, %v5429
      %v5466 = vpack.c.b16 %v5432, %v5431
      %v5467 = vpack.c.b16 %v5434, %v5433
      %v5468 = vpack.c.b16 %v5436, %v5435
      %v5469 = vpack.c.b16 %v5438, %v5437
      %v5470 = vpack.c.b16 %v5440, %v5439
      %v5471 = vpack.c.b16 %v5442, %v5441
      %v5472 = vpack.c.b16 %v5444, %v5443
      %v5473 = vpack.c.b16 %v5446, %v5445
      %v5474 = vpack.c.b16 %v5448, %v5447
      %v5475 = vpack.c.b16 %v5450, %v5449
      %v5476 = vpack.c.b16 %v5452, %v5451
      %v5477 = vpack.c.b16 %v5454, %v5453
      %v5478 = vpack.c.b16 %v5456, %v5455
      %v5479 = vpack.c.b16 %v5458, %v5457
      %v5480 = vpack.c.b16 %v5460, %v5459
      %v5481 = vpack.c.b16 %v5462, %v5461
      %v5482 = vpack.c.b16 %v5464, %v5463
      %v5483 = vrot.slane %v5465, 1
      %v5484 = vrot.slane %v5466, 1
      %v5485 = vsel %vm5103, %v5483, %v5484
      %v5486 = vrot.slane %v5467, 1
      %v5487 = vsel %vm5103, %v5484, %v5486
      %v5488 = vrot.slane %v5468, 1
      %v5489 = vsel %vm5103, %v5486, %v5488
      %v5490 = vrot.slane %v5469, 1
      %v5491 = vsel %vm5103, %v5488, %v5490
      %v5492 = vrot.slane %v5470, 1
      %v5493 = vsel %vm5103, %v5490, %v5492
      %v5494 = vrot.slane %v5471, 1
      %v5495 = vsel %vm5103, %v5492, %v5494
      %v5496 = vrot.slane %v5472, 1
      %v5497 = vsel %vm5103, %v5494, %v5496
      %v5498 = vrot.slane %v5473, 1
      %v5499 = vsel %vm5103, %v5496, %v5498
      %v5500 = vrot.slane %v5474, 1
      %v5501 = vsel %vm5103, %v5498, %v5500
      %v5502 = vrot.slane %v5475, 1
      %v5503 = vsel %vm5103, %v5500, %v5502
      %v5504 = vrot.slane %v5476, 1
      %v5505 = vsel %vm5103, %v5502, %v5504
      %v5506 = vrot.slane %v5477, 1
      %v5507 = vsel %vm5103, %v5504, %v5506
      %v5508 = vrot.slane %v5478, 1
      %v5509 = vsel %vm5103, %v5506, %v5508
      %v5510 = vrot.slane %v5479, 1
      %v5511 = vsel %vm5103, %v5508, %v5510
      %v5512 = vrot.slane %v5480, 1
      %v5513 = vsel %vm5103, %v5510, %v5512
      %v5514 = vrot.slane %v5481, 1
      %v5515 = vsel %vm5103, %v5512, %v5514
      %v5516 = vrot.slane %v5482, 1
      %v5517 = vsel %vm5103, %v5514, %v5516
      %v5552 = vunpack.c.l.b16 %v5377
      %v5553 = vunpack.c.l.b16 %v5378
      %v5554 = vunpack.c.l.b16 %v5379
      %v5555 = vunpack.c.l.b16 %v5380
      %v5556 = vunpack.c.l.b16 %v5381
      %v5557 = vunpack.c.l.b16 %v5382
      %v5558 = vunpack.c.l.b16 %v5383
      %v5559 = vunpack.c.l.b16 %v5384
      %v5560 = vunpack.c.l.b16 %v5385
      %v5561 = vunpack.c.l.b16 %v5386
      %v5562 = vunpack.c.l.b16 %v5387
      %v5563 = vunpack.c.l.b16 %v5388
      %v5564 = vunpack.c.l.b16 %v5389
      %v5565 = vunpack.c.l.b16 %v5390
      %v5566 = vunpack.c.l.b16 %v5391
      %v5567 = vunpack.c.l.b16 %v5392
      %v5568 = vpack.c.b16 %v5553, %v5552
      %v5569 = vpack.c.b16 %v5555, %v5554
      %v5570 = vpack.c.b16 %v5557, %v5556
      %v5571 = vpack.c.b16 %v5559, %v5558
      %v5572 = vpack.c.b16 %v5561, %v5560
      %v5573 = vpack.c.b16 %v5563, %v5562
      %v5574 = vpack.c.b16 %v5565, %v5564
      %v5575 = vpack.c.b16 %v5567, %v5566
      %5584 = vmatpush.bf16.msra.mxu0 %v5575
      %5585 = vmatpush.bf16.msra.mxu0 %v5574
      %5586 = vmatpush.bf16.msra.mxu0 %v5573
      %5587 = vmatpush.bf16.msra.mxu0 %v5572
      %5588 = vmatpush.bf16.msra.mxu0 %v5571
      %5589 = vmatpush.bf16.msra.mxu0 %v5570
      %5590 = vmatpush.bf16.msra.mxu0 %v5569
      %5591 = vmatpush.bf16.msra.mxu0 %v5568
      %5592 = vmatmul.bf16.gmra.mxu0 %v5485
      %v5593 = vpop.f32.mrf.mxu0
      %v5594 = vadd.f32 0.0, %v5593
      %v5595 = vpop.f32.mrf.mxu0
      %v5596 = vadd.f32 0.0, %v5595
      %5597 = vmatmul.bf16.gmra.mxu0 %v5487
      %v5598 = vpop.f32.mrf.mxu0
      %v5599 = vadd.f32 0.0, %v5598
      %v5600 = vpop.f32.mrf.mxu0
      %v5601 = vadd.f32 0.0, %v5600
      %5602 = vmatmul.bf16.gmra.mxu0 %v5489
      %v5603 = vpop.f32.mrf.mxu0
      %v5604 = vadd.f32 0.0, %v5603
      %v5605 = vpop.f32.mrf.mxu0
      %v5606 = vadd.f32 0.0, %v5605
      %5607 = vmatmul.bf16.gmra.mxu0 %v5491
      %v5608 = vpop.f32.mrf.mxu0
      %v5609 = vadd.f32 0.0, %v5608
      %v5610 = vpop.f32.mrf.mxu0
      %v5611 = vadd.f32 0.0, %v5610
      %5612 = vmatmul.bf16.gmra.mxu0 %v5493
      %v5613 = vpop.f32.mrf.mxu0
      %v5614 = vadd.f32 0.0, %v5613
      %v5615 = vpop.f32.mrf.mxu0
      %v5616 = vadd.f32 0.0, %v5615
      %5617 = vmatmul.bf16.gmra.mxu0 %v5495
      %v5618 = vpop.f32.mrf.mxu0
      %v5619 = vadd.f32 0.0, %v5618
      %v5620 = vpop.f32.mrf.mxu0
      %v5621 = vadd.f32 0.0, %v5620
      %5622 = vmatmul.bf16.gmra.mxu0 %v5497
      %v5623 = vpop.f32.mrf.mxu0
      %v5624 = vadd.f32 0.0, %v5623
      %v5625 = vpop.f32.mrf.mxu0
      %v5626 = vadd.f32 0.0, %v5625
      %5627 = vmatmul.bf16.gmra.mxu0 %v5499
      %v5628 = vpop.f32.mrf.mxu0
      %v5629 = vadd.f32 0.0, %v5628
      %v5630 = vpop.f32.mrf.mxu0
      %v5631 = vadd.f32 0.0, %v5630
      %5632 = vmatmul.bf16.gmra.mxu0 %v5501
      %v5633 = vpop.f32.mrf.mxu0
      %v5634 = vadd.f32 0.0, %v5633
      %v5635 = vpop.f32.mrf.mxu0
      %v5636 = vadd.f32 0.0, %v5635
      %5637 = vmatmul.bf16.gmra.mxu0 %v5503
      %v5638 = vpop.f32.mrf.mxu0
      %v5639 = vadd.f32 0.0, %v5638
      %v5640 = vpop.f32.mrf.mxu0
      %v5641 = vadd.f32 0.0, %v5640
      %5642 = vmatmul.bf16.gmra.mxu0 %v5505
      %v5643 = vpop.f32.mrf.mxu0
      %v5644 = vadd.f32 0.0, %v5643
      %v5645 = vpop.f32.mrf.mxu0
      %v5646 = vadd.f32 0.0, %v5645
      %5647 = vmatmul.bf16.gmra.mxu0 %v5507
      %v5648 = vpop.f32.mrf.mxu0
      %v5649 = vadd.f32 0.0, %v5648
      %v5650 = vpop.f32.mrf.mxu0
      %v5651 = vadd.f32 0.0, %v5650
      %5652 = vmatmul.bf16.gmra.mxu0 %v5509
      %v5653 = vpop.f32.mrf.mxu0
      %v5654 = vadd.f32 0.0, %v5653
      %v5655 = vpop.f32.mrf.mxu0
      %v5656 = vadd.f32 0.0, %v5655
      %5657 = vmatmul.bf16.gmra.mxu0 %v5511
      %v5658 = vpop.f32.mrf.mxu0
      %v5659 = vadd.f32 0.0, %v5658
      %v5660 = vpop.f32.mrf.mxu0
      %v5661 = vadd.f32 0.0, %v5660
      %5662 = vmatmul.bf16.gmra.mxu0 %v5513
      %v5663 = vpop.f32.mrf.mxu0
      %v5664 = vadd.f32 0.0, %v5663
      %v5665 = vpop.f32.mrf.mxu0
      %v5666 = vadd.f32 0.0, %v5665
      %5667 = vmatmul.bf16.gmra.mxu0 %v5515
      %v5668 = vpop.f32.mrf.mxu0
      %v5669 = vadd.f32 0.0, %v5668
      %v5670 = vpop.f32.mrf.mxu0
      %v5671 = vadd.f32 0.0, %v5670
      %5672 = vmatmul.bf16.gmra.mxu0 %v5517
      %v5673 = vpop.f32.mrf.mxu0
      %v5674 = vadd.f32 0.0, %v5673
      %v5675 = vpop.f32.mrf.mxu0
      %v5676 = vadd.f32 0.0, %v5675
      %5677 = vmatmul.bf16.gmra.mxu0 %v5516
      %v5678 = vpop.f32.mrf.mxu0
      %v5679 = vadd.f32 0.0, %v5678
      %v5680 = vpop.f32.mrf.mxu0
      %v5681 = vadd.f32 0.0, %v5680
      %5682 = vdwg.mxu0
      %v5683 = vadd.f32 %v5304, %v5594
      %v5684 = vadd.f32 %v5305, %v5596
      %v5685 = vadd.f32 %v5306, %v5599
      %v5686 = vadd.f32 %v5307, %v5601
      %v5687 = vadd.f32 %v5308, %v5604
      %v5688 = vadd.f32 %v5309, %v5606
      %v5689 = vadd.f32 %v5310, %v5609
      %v5690 = vadd.f32 %v5311, %v5611
      %v5691 = vadd.f32 %v5312, %v5614
      %v5692 = vadd.f32 %v5313, %v5616
      %v5693 = vadd.f32 %v5314, %v5619
      %v5694 = vadd.f32 %v5315, %v5621
      %v5695 = vadd.f32 %v5316, %v5624
      %v5696 = vadd.f32 %v5317, %v5626
      %v5697 = vadd.f32 %v5318, %v5629
      %v5698 = vadd.f32 %v5319, %v5631
      %v5699 = vadd.f32 %v5320, %v5634
      %v5700 = vadd.f32 %v5321, %v5636
      %v5701 = vadd.f32 %v5322, %v5639
      %v5702 = vadd.f32 %v5323, %v5641
      %v5703 = vadd.f32 %v5324, %v5644
      %v5704 = vadd.f32 %v5325, %v5646
      %v5705 = vadd.f32 %v5326, %v5649
      %v5706 = vadd.f32 %v5327, %v5651
      %v5707 = vadd.f32 %v5328, %v5654
      %v5708 = vadd.f32 %v5329, %v5656
      %v5709 = vadd.f32 %v5330, %v5659
      %v5710 = vadd.f32 %v5331, %v5661
      %v5711 = vadd.f32 %v5332, %v5664
      %v5712 = vadd.f32 %v5333, %v5666
      %v5713 = vadd.f32 %v5334, %v5669
      %v5714 = vadd.f32 %v5335, %v5671
      %v5715 = vadd.f32 %v5336, %v5674
      %v5716 = vadd.f32 %v5337, %v5676
      %v5717 = vadd.f32 %v5338, %v5679
      %v5718 = vadd.f32 %v5339, %v5681
      %v5719 = vld [vmem:[#allocation2 + $0x8] sm:$0xe]
      %v5720 = vld [vmem:[#allocation2 + $0xc] sm:$0xf]
      %v5721 = vld [vmem:[#allocation2 + $0x10] sm:$0xf]
      %v5722 = vld [vmem:[#allocation2 + $0x14] sm:$0xf]
      %v5723 = vld [vmem:[#allocation2 + $0x18] sm:$0xf]
      %v5724 = vld [vmem:[#allocation2 + $0x1c] sm:$0xf]
      %v5725 = vld [vmem:[#allocation2 + $0x20] sm:$0xf]
      %v5726 = vld [vmem:[#allocation2 + $0x24] sm:$0xf]
      %v5727 = vld [vmem:[#allocation2 + $0x28] sm:$0xf]
      %v5728 = vld [vmem:[#allocation2 + $0x2c] sm:$0xf]
      %v5729 = vld [vmem:[#allocation2 + $0x30] sm:$0xf]
      %v5730 = vld [vmem:[#allocation2 + $0x34] sm:$0xf]
      %v5731 = vld [vmem:[#allocation2 + $0x38] sm:$0xf]
      %v5732 = vld [vmem:[#allocation2 + $0x3c] sm:$0xf]
      %v5733 = vld [vmem:[#allocation2 + $0x40] sm:$0xf]
      %v5734 = vld [vmem:[#allocation2 + $0x44] sm:$0xf]
      %v5735 = vld [vmem:[#allocation2 + $0x48] sm:$0xf]
      %v5736 = vld [vmem:[#allocation2 + $0x4c] sm:$0xf]
      %v5737 = vld [vmem:[#allocation2 + $0x50] sm:$0xf]
      %v5738 = vld [vmem:[#allocation2 + $0x54] sm:$0xf]
      %v5739 = vld [vmem:[#allocation2 + $0x58] sm:$0xf]
      %v5740 = vld [vmem:[#allocation2 + $0x5c] sm:$0xf]
      %v5741 = vld [vmem:[#allocation2 + $0x60] sm:$0xf]
      %v5742 = vld [vmem:[#allocation2 + $0x64] sm:$0xf]
      %v5743 = vld [vmem:[#allocation2 + $0x68] sm:$0xf]
      %v5744 = vld [vmem:[#allocation2 + $0x6c] sm:$0xf]
      %v5745 = vld [vmem:[#allocation2 + $0x70] sm:$0xf]
      %v5746 = vld [vmem:[#allocation2 + $0x74] sm:$0xf]
      %v5747 = vld [vmem:[#allocation2 + $0x78] sm:$0xf]
      %v5748 = vld [vmem:[#allocation2 + $0x7c] sm:$0xf]
      %v5749 = vld [vmem:[#allocation2 + $0x80] sm:$0xf]
      %v5750 = vld [vmem:[#allocation2 + $0x84] sm:$0xf]
      %v5751 = vld [vmem:[#allocation2 + $0x88] sm:$0xf]
      %v5752 = vld [vmem:[#allocation2 + $0x8c] sm:$0xf]
      %v5753 = vld [vmem:[#allocation2 + $0x90] sm:$0xf]
      %v5754 = vld [vmem:[#allocation2 + $0x94] sm:$0xf]
      %v5755 = vld [vmem:[#allocation2 + $0x98] sm:$0x1]
      %s5756 = scalar_lea.vmem %s7, 256
      %v5757 = vld [vmem:[%s5756] sm:$0xf]
      %v5758 = vld [vmem:[%s5756 + $0x4] sm:$0xf]
      %v5759 = vld [vmem:[%s5756 + $0x8] sm:$0xf]
      %v5760 = vld [vmem:[%s5756 + $0xc] sm:$0xf]
      %v5761 = vld [vmem:[%s5756 + $0x10] sm:$0xf]
      %v5762 = vld [vmem:[%s5756 + $0x14] sm:$0xf]
      %v5763 = vld [vmem:[%s5756 + $0x18] sm:$0xf]
      %v5764 = vld [vmem:[%s5756 + $0x1c] sm:$0xf]
      %v5765 = vld [vmem:[%s5756 + $0x20] sm:$0xf]
      %v5766 = vld [vmem:[%s5756 + $0x24] sm:$0xf]
      %v5767 = vld [vmem:[%s5756 + $0x28] sm:$0xf]
      %v5768 = vld [vmem:[%s5756 + $0x2c] sm:$0xf]
      %v5769 = vld [vmem:[%s5756 + $0x30] sm:$0xf]
      %v5770 = vld [vmem:[%s5756 + $0x34] sm:$0xf]
      %v5771 = vld [vmem:[%s5756 + $0x38] sm:$0xf]
      %v5772 = vld [vmem:[%s5756 + $0x3c] sm:$0xf]
      %v5810 = vunpack.c.l.b16 %v5719
      %v5811 = vunpack.c.l.b16 %v5720
      %v5812 = vunpack.c.l.b16 %v5721
      %v5813 = vunpack.c.l.b16 %v5722
      %v5814 = vunpack.c.l.b16 %v5723
      %v5815 = vunpack.c.l.b16 %v5724
      %v5816 = vunpack.c.l.b16 %v5725
      %v5817 = vunpack.c.l.b16 %v5726
      %v5818 = vunpack.c.l.b16 %v5727
      %v5819 = vunpack.c.l.b16 %v5728
      %v5820 = vunpack.c.l.b16 %v5729
      %v5821 = vunpack.c.l.b16 %v5730
      %v5822 = vunpack.c.l.b16 %v5731
      %v5823 = vunpack.c.l.b16 %v5732
      %v5824 = vunpack.c.l.b16 %v5733
      %v5825 = vunpack.c.l.b16 %v5734
      %v5826 = vunpack.c.l.b16 %v5735
      %v5827 = vunpack.c.l.b16 %v5736
      %v5828 = vunpack.c.l.b16 %v5737
      %v5829 = vunpack.c.l.b16 %v5738
      %v5830 = vunpack.c.l.b16 %v5739
      %v5831 = vunpack.c.l.b16 %v5740
      %v5832 = vunpack.c.l.b16 %v5741
      %v5833 = vunpack.c.l.b16 %v5742
      %v5834 = vunpack.c.l.b16 %v5743
      %v5835 = vunpack.c.l.b16 %v5744
      %v5836 = vunpack.c.l.b16 %v5745
      %v5837 = vunpack.c.l.b16 %v5746
      %v5838 = vunpack.c.l.b16 %v5747
      %v5839 = vunpack.c.l.b16 %v5748
      %v5840 = vunpack.c.l.b16 %v5749
      %v5841 = vunpack.c.l.b16 %v5750
      %v5842 = vunpack.c.l.b16 %v5751
      %v5843 = vunpack.c.l.b16 %v5752
      %v5844 = vunpack.c.l.b16 %v5753
      %v5845 = vunpack.c.l.b16 %v5754
      %v5846 = vunpack.c.l.b16 %v5755
      %v5847 = vpack.c.b16 %v5811, %v5810
      %v5848 = vpack.c.b16 %v5813, %v5812
      %v5849 = vpack.c.b16 %v5815, %v5814
      %v5850 = vpack.c.b16 %v5817, %v5816
      %v5851 = vpack.c.b16 %v5819, %v5818
      %v5852 = vpack.c.b16 %v5821, %v5820
      %v5853 = vpack.c.b16 %v5823, %v5822
      %v5854 = vpack.c.b16 %v5825, %v5824
      %v5855 = vpack.c.b16 %v5827, %v5826
      %v5856 = vpack.c.b16 %v5829, %v5828
      %v5857 = vpack.c.b16 %v5831, %v5830
      %v5858 = vpack.c.b16 %v5833, %v5832
      %v5859 = vpack.c.b16 %v5835, %v5834
      %v5860 = vpack.c.b16 %v5837, %v5836
      %v5861 = vpack.c.b16 %v5839, %v5838
      %v5862 = vpack.c.b16 %v5841, %v5840
      %v5863 = vpack.c.b16 %v5843, %v5842
      %v5864 = vpack.c.b16 %v5845, %v5844
      %v5865 = vpack.c.b16 %v5846, %v5846
      %vm5866 = vsmask.f32 6400
      %v5868 = vshrl.u32 %v5847, 16
      %v5870 = vrot.slane %v5868, 1
      %v5871 = vshll.u32 %v5847, 16
      %v5873 = vrot.slane %v5871, 2
      %v5874 = vor.u32 %v5870, %v5873
      %v5876 = vshrl.u32 %v5848, 16
      %v5878 = vrot.slane %v5876, 1
      %v5879 = vshll.u32 %v5848, 16
      %v5881 = vrot.slane %v5879, 2
      %v5882 = vor.u32 %v5878, %v5881
      %v5883 = vsel %vm5866, %v5874, %v5882
      %v5885 = vshrl.u32 %v5849, 16
      %v5887 = vrot.slane %v5885, 1
      %v5888 = vshll.u32 %v5849, 16
      %v5890 = vrot.slane %v5888, 2
      %v5891 = vor.u32 %v5887, %v5890
      %v5892 = vsel %vm5866, %v5882, %v5891
      %v5894 = vshrl.u32 %v5850, 16
      %v5896 = vrot.slane %v5894, 1
      %v5897 = vshll.u32 %v5850, 16
      %v5899 = vrot.slane %v5897, 2
      %v5900 = vor.u32 %v5896, %v5899
      %v5901 = vsel %vm5866, %v5891, %v5900
      %v5903 = vshrl.u32 %v5851, 16
      %v5905 = vrot.slane %v5903, 1
      %v5906 = vshll.u32 %v5851, 16
      %v5908 = vrot.slane %v5906, 2
      %v5909 = vor.u32 %v5905, %v5908
      %v5910 = vsel %vm5866, %v5900, %v5909
      %v5912 = vshrl.u32 %v5852, 16
      %v5914 = vrot.slane %v5912, 1
      %v5915 = vshll.u32 %v5852, 16
      %v5917 = vrot.slane %v5915, 2
      %v5918 = vor.u32 %v5914, %v5917
      %v5919 = vsel %vm5866, %v5909, %v5918
      %v5921 = vshrl.u32 %v5853, 16
      %v5923 = vrot.slane %v5921, 1
      %v5924 = vshll.u32 %v5853, 16
      %v5926 = vrot.slane %v5924, 2
      %v5927 = vor.u32 %v5923, %v5926
      %v5928 = vsel %vm5866, %v5918, %v5927
      %v5930 = vshrl.u32 %v5854, 16
      %v5932 = vrot.slane %v5930, 1
      %v5933 = vshll.u32 %v5854, 16
      %v5935 = vrot.slane %v5933, 2
      %v5936 = vor.u32 %v5932, %v5935
      %v5937 = vsel %vm5866, %v5927, %v5936
      %v5939 = vshrl.u32 %v5855, 16
      %v5941 = vrot.slane %v5939, 1
      %v5942 = vshll.u32 %v5855, 16
      %v5944 = vrot.slane %v5942, 2
      %v5945 = vor.u32 %v5941, %v5944
      %v5946 = vsel %vm5866, %v5936, %v5945
      %v5948 = vshrl.u32 %v5856, 16
      %v5950 = vrot.slane %v5948, 1
      %v5951 = vshll.u32 %v5856, 16
      %v5953 = vrot.slane %v5951, 2
      %v5954 = vor.u32 %v5950, %v5953
      %v5955 = vsel %vm5866, %v5945, %v5954
      %v5957 = vshrl.u32 %v5857, 16
      %v5959 = vrot.slane %v5957, 1
      %v5960 = vshll.u32 %v5857, 16
      %v5962 = vrot.slane %v5960, 2
      %v5963 = vor.u32 %v5959, %v5962
      %v5964 = vsel %vm5866, %v5954, %v5963
      %v5966 = vshrl.u32 %v5858, 16
      %v5968 = vrot.slane %v5966, 1
      %v5969 = vshll.u32 %v5858, 16
      %v5971 = vrot.slane %v5969, 2
      %v5972 = vor.u32 %v5968, %v5971
      %v5973 = vsel %vm5866, %v5963, %v5972
      %v5975 = vshrl.u32 %v5859, 16
      %v5977 = vrot.slane %v5975, 1
      %v5978 = vshll.u32 %v5859, 16
      %v5980 = vrot.slane %v5978, 2
      %v5981 = vor.u32 %v5977, %v5980
      %v5982 = vsel %vm5866, %v5972, %v5981
      %v5984 = vshrl.u32 %v5860, 16
      %v5986 = vrot.slane %v5984, 1
      %v5987 = vshll.u32 %v5860, 16
      %v5989 = vrot.slane %v5987, 2
      %v5990 = vor.u32 %v5986, %v5989
      %v5991 = vsel %vm5866, %v5981, %v5990
      %v5993 = vshrl.u32 %v5861, 16
      %v5995 = vrot.slane %v5993, 1
      %v5996 = vshll.u32 %v5861, 16
      %v5998 = vrot.slane %v5996, 2
      %v5999 = vor.u32 %v5995, %v5998
      %v6000 = vsel %vm5866, %v5990, %v5999
      %v6002 = vshrl.u32 %v5862, 16
      %v6004 = vrot.slane %v6002, 1
      %v6005 = vshll.u32 %v5862, 16
      %v6007 = vrot.slane %v6005, 2
      %v6008 = vor.u32 %v6004, %v6007
      %v6009 = vsel %vm5866, %v5999, %v6008
      %v6011 = vshrl.u32 %v5863, 16
      %v6013 = vrot.slane %v6011, 1
      %v6014 = vshll.u32 %v5863, 16
      %v6016 = vrot.slane %v6014, 2
      %v6017 = vor.u32 %v6013, %v6016
      %v6018 = vsel %vm5866, %v6008, %v6017
      %v6020 = vshrl.u32 %v5864, 16
      %v6022 = vrot.slane %v6020, 1
      %v6023 = vshll.u32 %v5864, 16
      %v6025 = vrot.slane %v6023, 2
      %v6026 = vor.u32 %v6022, %v6025
      %v6027 = vsel %vm5866, %v6017, %v6026
      %v6029 = vshll.u32 %v5865, 16
      %v6031 = vrot.slane %v6029, 2
      %v6032 = vsel %vm5866, %v6026, %v6031
      %v6067 = vunpack.c.l.b16 %v5757
      %v6068 = vunpack.c.l.b16 %v5758
      %v6069 = vunpack.c.l.b16 %v5759
      %v6070 = vunpack.c.l.b16 %v5760
      %v6071 = vunpack.c.l.b16 %v5761
      %v6072 = vunpack.c.l.b16 %v5762
      %v6073 = vunpack.c.l.b16 %v5763
      %v6074 = vunpack.c.l.b16 %v5764
      %v6075 = vunpack.c.l.b16 %v5765
      %v6076 = vunpack.c.l.b16 %v5766
      %v6077 = vunpack.c.l.b16 %v5767
      %v6078 = vunpack.c.l.b16 %v5768
      %v6079 = vunpack.c.l.b16 %v5769
      %v6080 = vunpack.c.l.b16 %v5770
      %v6081 = vunpack.c.l.b16 %v5771
      %v6082 = vunpack.c.l.b16 %v5772
      %v6083 = vpack.c.b16 %v6068, %v6067
      %v6084 = vpack.c.b16 %v6070, %v6069
      %v6085 = vpack.c.b16 %v6072, %v6071
      %v6086 = vpack.c.b16 %v6074, %v6073
      %v6087 = vpack.c.b16 %v6076, %v6075
      %v6088 = vpack.c.b16 %v6078, %v6077
      %v6089 = vpack.c.b16 %v6080, %v6079
      %v6090 = vpack.c.b16 %v6082, %v6081
      %6099 = vmatpush.bf16.msra.mxu0 %v6090
      %6100 = vmatpush.bf16.msra.mxu0 %v6089
      %6101 = vmatpush.bf16.msra.mxu0 %v6088
      %6102 = vmatpush.bf16.msra.mxu0 %v6087
      %6103 = vmatpush.bf16.msra.mxu0 %v6086
      %6104 = vmatpush.bf16.msra.mxu0 %v6085
      %6105 = vmatpush.bf16.msra.mxu0 %v6084
      %6106 = vmatpush.bf16.msra.mxu0 %v6083
      %6107 = vmatmul.bf16.gmra.mxu0 %v5883
      %v6108 = vpop.f32.mrf.mxu0
      %v6109 = vadd.f32 0.0, %v6108
      %v6110 = vpop.f32.mrf.mxu0
      %v6111 = vadd.f32 0.0, %v6110
      %6112 = vmatmul.bf16.gmra.mxu0 %v5892
      %v6113 = vpop.f32.mrf.mxu0
      %v6114 = vadd.f32 0.0, %v6113
      %v6115 = vpop.f32.mrf.mxu0
      %v6116 = vadd.f32 0.0, %v6115
      %6117 = vmatmul.bf16.gmra.mxu0 %v5901
      %v6118 = vpop.f32.mrf.mxu0
      %v6119 = vadd.f32 0.0, %v6118
      %v6120 = vpop.f32.mrf.mxu0
      %v6121 = vadd.f32 0.0, %v6120
      %6122 = vmatmul.bf16.gmra.mxu0 %v5910
      %v6123 = vpop.f32.mrf.mxu0
      %v6124 = vadd.f32 0.0, %v6123
      %v6125 = vpop.f32.mrf.mxu0
      %v6126 = vadd.f32 0.0, %v6125
      %6127 = vmatmul.bf16.gmra.mxu0 %v5919
      %v6128 = vpop.f32.mrf.mxu0
      %v6129 = vadd.f32 0.0, %v6128
      %v6130 = vpop.f32.mrf.mxu0
      %v6131 = vadd.f32 0.0, %v6130
      %6132 = vmatmul.bf16.gmra.mxu0 %v5928
      %v6133 = vpop.f32.mrf.mxu0
      %v6134 = vadd.f32 0.0, %v6133
      %v6135 = vpop.f32.mrf.mxu0
      %v6136 = vadd.f32 0.0, %v6135
      %6137 = vmatmul.bf16.gmra.mxu0 %v5937
      %v6138 = vpop.f32.mrf.mxu0
      %v6139 = vadd.f32 0.0, %v6138
      %v6140 = vpop.f32.mrf.mxu0
      %v6141 = vadd.f32 0.0, %v6140
      %6142 = vmatmul.bf16.gmra.mxu0 %v5946
      %v6143 = vpop.f32.mrf.mxu0
      %v6144 = vadd.f32 0.0, %v6143
      %v6145 = vpop.f32.mrf.mxu0
      %v6146 = vadd.f32 0.0, %v6145
      %6147 = vmatmul.bf16.gmra.mxu0 %v5955
      %v6148 = vpop.f32.mrf.mxu0
      %v6149 = vadd.f32 0.0, %v6148
      %v6150 = vpop.f32.mrf.mxu0
      %v6151 = vadd.f32 0.0, %v6150
      %6152 = vmatmul.bf16.gmra.mxu0 %v5964
      %v6153 = vpop.f32.mrf.mxu0
      %v6154 = vadd.f32 0.0, %v6153
      %v6155 = vpop.f32.mrf.mxu0
      %v6156 = vadd.f32 0.0, %v6155
      %6157 = vmatmul.bf16.gmra.mxu0 %v5973
      %v6158 = vpop.f32.mrf.mxu0
      %v6159 = vadd.f32 0.0, %v6158
      %v6160 = vpop.f32.mrf.mxu0
      %v6161 = vadd.f32 0.0, %v6160
      %6162 = vmatmul.bf16.gmra.mxu0 %v5982
      %v6163 = vpop.f32.mrf.mxu0
      %v6164 = vadd.f32 0.0, %v6163
      %v6165 = vpop.f32.mrf.mxu0
      %v6166 = vadd.f32 0.0, %v6165
      %6167 = vmatmul.bf16.gmra.mxu0 %v5991
      %v6168 = vpop.f32.mrf.mxu0
      %v6169 = vadd.f32 0.0, %v6168
      %v6170 = vpop.f32.mrf.mxu0
      %v6171 = vadd.f32 0.0, %v6170
      %6172 = vmatmul.bf16.gmra.mxu0 %v6000
      %v6173 = vpop.f32.mrf.mxu0
      %v6174 = vadd.f32 0.0, %v6173
      %v6175 = vpop.f32.mrf.mxu0
      %v6176 = vadd.f32 0.0, %v6175
      %6177 = vmatmul.bf16.gmra.mxu0 %v6009
      %v6178 = vpop.f32.mrf.mxu0
      %v6179 = vadd.f32 0.0, %v6178
      %v6180 = vpop.f32.mrf.mxu0
      %v6181 = vadd.f32 0.0, %v6180
      %6182 = vmatmul.bf16.gmra.mxu0 %v6018
      %v6183 = vpop.f32.mrf.mxu0
      %v6184 = vadd.f32 0.0, %v6183
      %v6185 = vpop.f32.mrf.mxu0
      %v6186 = vadd.f32 0.0, %v6185
      %6187 = vmatmul.bf16.gmra.mxu0 %v6027
      %v6188 = vpop.f32.mrf.mxu0
      %v6189 = vadd.f32 0.0, %v6188
      %v6190 = vpop.f32.mrf.mxu0
      %v6191 = vadd.f32 0.0, %v6190
      %6192 = vmatmul.bf16.gmra.mxu0 %v6032
      %v6193 = vpop.f32.mrf.mxu0
      %v6194 = vadd.f32 0.0, %v6193
      %v6195 = vpop.f32.mrf.mxu0
      %v6196 = vadd.f32 0.0, %v6195
      %6197 = vdwg.mxu0
      %v6198 = vadd.f32 %v5683, %v6109
      %v6199 = vadd.f32 %v5684, %v6111
      %v6200 = vadd.f32 %v5685, %v6114
      %v6201 = vadd.f32 %v5686, %v6116
      %v6202 = vadd.f32 %v5687, %v6119
      %v6203 = vadd.f32 %v5688, %v6121
      %v6204 = vadd.f32 %v5689, %v6124
      %v6205 = vadd.f32 %v5690, %v6126
      %v6206 = vadd.f32 %v5691, %v6129
      %v6207 = vadd.f32 %v5692, %v6131
      %v6208 = vadd.f32 %v5693, %v6134
      %v6209 = vadd.f32 %v5694, %v6136
      %v6210 = vadd.f32 %v5695, %v6139
      %v6211 = vadd.f32 %v5696, %v6141
      %v6212 = vadd.f32 %v5697, %v6144
      %v6213 = vadd.f32 %v5698, %v6146
      %v6214 = vadd.f32 %v5699, %v6149
      %v6215 = vadd.f32 %v5700, %v6151
      %v6216 = vadd.f32 %v5701, %v6154
      %v6217 = vadd.f32 %v5702, %v6156
      %v6218 = vadd.f32 %v5703, %v6159
      %v6219 = vadd.f32 %v5704, %v6161
      %v6220 = vadd.f32 %v5705, %v6164
      %v6221 = vadd.f32 %v5706, %v6166
      %v6222 = vadd.f32 %v5707, %v6169
      %v6223 = vadd.f32 %v5708, %v6171
      %v6224 = vadd.f32 %v5709, %v6174
      %v6225 = vadd.f32 %v5710, %v6176
      %v6226 = vadd.f32 %v5711, %v6179
      %v6227 = vadd.f32 %v5712, %v6181
      %v6228 = vadd.f32 %v5713, %v6184
      %v6229 = vadd.f32 %v5714, %v6186
      %v6230 = vadd.f32 %v5715, %v6189
      %v6231 = vadd.f32 %v5716, %v6191
      %v6232 = vadd.f32 %v5717, %v6194
      %v6233 = vadd.f32 %v5718, %v6196
      %v6234 = vld [vmem:[#allocation2 + $0x8] sm:$0xc]
      %s6235 = scalar_lea.vmem %s7, 320
      %v6236 = vld [vmem:[%s6235] sm:$0xf]
      %v6237 = vld [vmem:[%s6235 + $0x4] sm:$0xf]
      %v6238 = vld [vmem:[%s6235 + $0x8] sm:$0xf]
      %v6239 = vld [vmem:[%s6235 + $0xc] sm:$0xf]
      %v6240 = vld [vmem:[%s6235 + $0x10] sm:$0xf]
      %v6241 = vld [vmem:[%s6235 + $0x14] sm:$0xf]
      %v6242 = vld [vmem:[%s6235 + $0x18] sm:$0xf]
      %v6243 = vld [vmem:[%s6235 + $0x1c] sm:$0xf]
      %v6244 = vld [vmem:[%s6235 + $0x20] sm:$0xf]
      %v6245 = vld [vmem:[%s6235 + $0x24] sm:$0xf]
      %v6246 = vld [vmem:[%s6235 + $0x28] sm:$0xf]
      %v6247 = vld [vmem:[%s6235 + $0x2c] sm:$0xf]
      %v6248 = vld [vmem:[%s6235 + $0x30] sm:$0xf]
      %v6249 = vld [vmem:[%s6235 + $0x34] sm:$0xf]
      %v6250 = vld [vmem:[%s6235 + $0x38] sm:$0xf]
      %v6251 = vld [vmem:[%s6235 + $0x3c] sm:$0xf]
      %v6253 = vunpack.c.l.b16 %v6234
      %v6254 = vpack.c.b16 %v5811, %v6253
      %vm6255 = vcmask 1045504
      %v6256 = vrot.slane %v6254, 2
      %v6257 = vrot.slane %v5848, 2
      %v6258 = vsel %vm6255, %v6256, %v6257
      %v6259 = vrot.slane %v5849, 2
      %v6260 = vsel %vm6255, %v6257, %v6259
      %v6261 = vrot.slane %v5850, 2
      %v6262 = vsel %vm6255, %v6259, %v6261
      %v6263 = vrot.slane %v5851, 2
      %v6264 = vsel %vm6255, %v6261, %v6263
      %v6265 = vrot.slane %v5852, 2
      %v6266 = vsel %vm6255, %v6263, %v6265
      %v6267 = vrot.slane %v5853, 2
      %v6268 = vsel %vm6255, %v6265, %v6267
      %v6269 = vrot.slane %v5854, 2
      %v6270 = vsel %vm6255, %v6267, %v6269
      %v6271 = vrot.slane %v5855, 2
      %v6272 = vsel %vm6255, %v6269, %v6271
      %v6273 = vrot.slane %v5856, 2
      %v6274 = vsel %vm6255, %v6271, %v6273
      %v6275 = vrot.slane %v5857, 2
      %v6276 = vsel %vm6255, %v6273, %v6275
      %v6277 = vrot.slane %v5858, 2
      %v6278 = vsel %vm6255, %v6275, %v6277
      %v6279 = vrot.slane %v5859, 2
      %v6280 = vsel %vm6255, %v6277, %v6279
      %v6281 = vrot.slane %v5860, 2
      %v6282 = vsel %vm6255, %v6279, %v6281
      %v6283 = vrot.slane %v5861, 2
      %v6284 = vsel %vm6255, %v6281, %v6283
      %v6285 = vrot.slane %v5862, 2
      %v6286 = vsel %vm6255, %v6283, %v6285
      %v6287 = vrot.slane %v5863, 2
      %v6288 = vsel %vm6255, %v6285, %v6287
      %v6289 = vrot.slane %v5864, 2
      %v6290 = vsel %vm6255, %v6287, %v6289
      %v6291 = vrot.slane %v5865, 2
      %v6292 = vsel %vm6255, %v6289, %v6291
      %v6327 = vunpack.c.l.b16 %v6236
      %v6328 = vunpack.c.l.b16 %v6237
      %v6329 = vunpack.c.l.b16 %v6238
      %v6330 = vunpack.c.l.b16 %v6239
      %v6331 = vunpack.c.l.b16 %v6240
      %v6332 = vunpack.c.l.b16 %v6241
      %v6333 = vunpack.c.l.b16 %v6242
      %v6334 = vunpack.c.l.b16 %v6243
      %v6335 = vunpack.c.l.b16 %v6244
      %v6336 = vunpack.c.l.b16 %v6245
      %v6337 = vunpack.c.l.b16 %v6246
      %v6338 = vunpack.c.l.b16 %v6247
      %v6339 = vunpack.c.l.b16 %v6248
      %v6340 = vunpack.c.l.b16 %v6249
      %v6341 = vunpack.c.l.b16 %v6250
      %v6342 = vunpack.c.l.b16 %v6251
      %v6343 = vpack.c.b16 %v6328, %v6327
      %v6344 = vpack.c.b16 %v6330, %v6329
      %v6345 = vpack.c.b16 %v6332, %v6331
      %v6346 = vpack.c.b16 %v6334, %v6333
      %v6347 = vpack.c.b16 %v6336, %v6335
      %v6348 = vpack.c.b16 %v6338, %v6337
      %v6349 = vpack.c.b16 %v6340, %v6339
      %v6350 = vpack.c.b16 %v6342, %v6341
      %6359 = vmatpush.bf16.msra.mxu0 %v6350
      %6360 = vmatpush.bf16.msra.mxu0 %v6349
      %6361 = vmatpush.bf16.msra.mxu0 %v6348
      %6362 = vmatpush.bf16.msra.mxu0 %v6347
      %6363 = vmatpush.bf16.msra.mxu0 %v6346
      %6364 = vmatpush.bf16.msra.mxu0 %v6345
      %6365 = vmatpush.bf16.msra.mxu0 %v6344
      %6366 = vmatpush.bf16.msra.mxu0 %v6343
      %6367 = vmatmul.bf16.gmra.mxu0 %v6258
      %v6368 = vpop.f32.mrf.mxu0
      %v6369 = vadd.f32 0.0, %v6368
      %v6370 = vpop.f32.mrf.mxu0
      %v6371 = vadd.f32 0.0, %v6370
      %6372 = vmatmul.bf16.gmra.mxu0 %v6260
      %v6373 = vpop.f32.mrf.mxu0
      %v6374 = vadd.f32 0.0, %v6373
      %v6375 = vpop.f32.mrf.mxu0
      %v6376 = vadd.f32 0.0, %v6375
      %6377 = vmatmul.bf16.gmra.mxu0 %v6262
      %v6378 = vpop.f32.mrf.mxu0
      %v6379 = vadd.f32 0.0, %v6378
      %v6380 = vpop.f32.mrf.mxu0
      %v6381 = vadd.f32 0.0, %v6380
      %6382 = vmatmul.bf16.gmra.mxu0 %v6264
      %v6383 = vpop.f32.mrf.mxu0
      %v6384 = vadd.f32 0.0, %v6383
      %v6385 = vpop.f32.mrf.mxu0
      %v6386 = vadd.f32 0.0, %v6385
      %6387 = vmatmul.bf16.gmra.mxu0 %v6266
      %v6388 = vpop.f32.mrf.mxu0
      %v6389 = vadd.f32 0.0, %v6388
      %v6390 = vpop.f32.mrf.mxu0
      %v6391 = vadd.f32 0.0, %v6390
      %6392 = vmatmul.bf16.gmra.mxu0 %v6268
      %v6393 = vpop.f32.mrf.mxu0
      %v6394 = vadd.f32 0.0, %v6393
      %v6395 = vpop.f32.mrf.mxu0
      %v6396 = vadd.f32 0.0, %v6395
      %6397 = vmatmul.bf16.gmra.mxu0 %v6270
      %v6398 = vpop.f32.mrf.mxu0
      %v6399 = vadd.f32 0.0, %v6398
      %v6400 = vpop.f32.mrf.mxu0
      %v6401 = vadd.f32 0.0, %v6400
      %6402 = vmatmul.bf16.gmra.mxu0 %v6272
      %v6403 = vpop.f32.mrf.mxu0
      %v6404 = vadd.f32 0.0, %v6403
      %v6405 = vpop.f32.mrf.mxu0
      %v6406 = vadd.f32 0.0, %v6405
      %6407 = vmatmul.bf16.gmra.mxu0 %v6274
      %v6408 = vpop.f32.mrf.mxu0
      %v6409 = vadd.f32 0.0, %v6408
      %v6410 = vpop.f32.mrf.mxu0
      %v6411 = vadd.f32 0.0, %v6410
      %6412 = vmatmul.bf16.gmra.mxu0 %v6276
      %v6413 = vpop.f32.mrf.mxu0
      %v6414 = vadd.f32 0.0, %v6413
      %v6415 = vpop.f32.mrf.mxu0
      %v6416 = vadd.f32 0.0, %v6415
      %6417 = vmatmul.bf16.gmra.mxu0 %v6278
      %v6418 = vpop.f32.mrf.mxu0
      %v6419 = vadd.f32 0.0, %v6418
      %v6420 = vpop.f32.mrf.mxu0
      %v6421 = vadd.f32 0.0, %v6420
      %6422 = vmatmul.bf16.gmra.mxu0 %v6280
      %v6423 = vpop.f32.mrf.mxu0
      %v6424 = vadd.f32 0.0, %v6423
      %v6425 = vpop.f32.mrf.mxu0
      %v6426 = vadd.f32 0.0, %v6425
      %6427 = vmatmul.bf16.gmra.mxu0 %v6282
      %v6428 = vpop.f32.mrf.mxu0
      %v6429 = vadd.f32 0.0, %v6428
      %v6430 = vpop.f32.mrf.mxu0
      %v6431 = vadd.f32 0.0, %v6430
      %6432 = vmatmul.bf16.gmra.mxu0 %v6284
      %v6433 = vpop.f32.mrf.mxu0
      %v6434 = vadd.f32 0.0, %v6433
      %v6435 = vpop.f32.mrf.mxu0
      %v6436 = vadd.f32 0.0, %v6435
      %6437 = vmatmul.bf16.gmra.mxu0 %v6286
      %v6438 = vpop.f32.mrf.mxu0
      %v6439 = vadd.f32 0.0, %v6438
      %v6440 = vpop.f32.mrf.mxu0
      %v6441 = vadd.f32 0.0, %v6440
      %6442 = vmatmul.bf16.gmra.mxu0 %v6288
      %v6443 = vpop.f32.mrf.mxu0
      %v6444 = vadd.f32 0.0, %v6443
      %v6445 = vpop.f32.mrf.mxu0
      %v6446 = vadd.f32 0.0, %v6445
      %6447 = vmatmul.bf16.gmra.mxu0 %v6290
      %v6448 = vpop.f32.mrf.mxu0
      %v6449 = vadd.f32 0.0, %v6448
      %v6450 = vpop.f32.mrf.mxu0
      %v6451 = vadd.f32 0.0, %v6450
      %6452 = vmatmul.bf16.gmra.mxu0 %v6292
      %v6453 = vpop.f32.mrf.mxu0
      %v6454 = vadd.f32 0.0, %v6453
      %v6455 = vpop.f32.mrf.mxu0
      %v6456 = vadd.f32 0.0, %v6455
      %6457 = vdwg.mxu0
      %v6458 = vadd.f32 %v6198, %v6369
      %v6459 = vadd.f32 %v6199, %v6371
      %v6460 = vadd.f32 %v6200, %v6374
      %v6461 = vadd.f32 %v6201, %v6376
      %v6462 = vadd.f32 %v6202, %v6379
      %v6463 = vadd.f32 %v6203, %v6381
      %v6464 = vadd.f32 %v6204, %v6384
      %v6465 = vadd.f32 %v6205, %v6386
      %v6466 = vadd.f32 %v6206, %v6389
      %v6467 = vadd.f32 %v6207, %v6391
      %v6468 = vadd.f32 %v6208, %v6394
      %v6469 = vadd.f32 %v6209, %v6396
      %v6470 = vadd.f32 %v6210, %v6399
      %v6471 = vadd.f32 %v6211, %v6401
      %v6472 = vadd.f32 %v6212, %v6404
      %v6473 = vadd.f32 %v6213, %v6406
      %v6474 = vadd.f32 %v6214, %v6409
      %v6475 = vadd.f32 %v6215, %v6411
      %v6476 = vadd.f32 %v6216, %v6414
      %v6477 = vadd.f32 %v6217, %v6416
      %v6478 = vadd.f32 %v6218, %v6419
      %v6479 = vadd.f32 %v6219, %v6421
      %v6480 = vadd.f32 %v6220, %v6424
      %v6481 = vadd.f32 %v6221, %v6426
      %v6482 = vadd.f32 %v6222, %v6429
      %v6483 = vadd.f32 %v6223, %v6431
      %v6484 = vadd.f32 %v6224, %v6434
      %v6485 = vadd.f32 %v6225, %v6436
      %v6486 = vadd.f32 %v6226, %v6439
      %v6487 = vadd.f32 %v6227, %v6441
      %v6488 = vadd.f32 %v6228, %v6444
      %v6489 = vadd.f32 %v6229, %v6446
      %v6490 = vadd.f32 %v6230, %v6449
      %v6491 = vadd.f32 %v6231, %v6451
      %v6492 = vadd.f32 %v6232, %v6454
      %v6493 = vadd.f32 %v6233, %v6456
      %v6494 = vld [vmem:[#allocation2 + $0x10] sm:$0xc]
      %v6495 = vld [vmem:[#allocation2 + $0x14] sm:$0xf]
      %v6496 = vld [vmem:[#allocation2 + $0x18] sm:$0xf]
      %v6497 = vld [vmem:[#allocation2 + $0x1c] sm:$0xf]
      %v6498 = vld [vmem:[#allocation2 + $0x20] sm:$0xf]
      %v6499 = vld [vmem:[#allocation2 + $0x24] sm:$0xf]
      %v6500 = vld [vmem:[#allocation2 + $0x28] sm:$0xf]
      %v6501 = vld [vmem:[#allocation2 + $0x2c] sm:$0xf]
      %v6502 = vld [vmem:[#allocation2 + $0x30] sm:$0xf]
      %v6503 = vld [vmem:[#allocation2 + $0x34] sm:$0xf]
      %v6504 = vld [vmem:[#allocation2 + $0x38] sm:$0xf]
      %v6505 = vld [vmem:[#allocation2 + $0x3c] sm:$0xf]
      %v6506 = vld [vmem:[#allocation2 + $0x40] sm:$0xf]
      %v6507 = vld [vmem:[#allocation2 + $0x44] sm:$0xf]
      %v6508 = vld [vmem:[#allocation2 + $0x48] sm:$0xf]
      %v6509 = vld [vmem:[#allocation2 + $0x4c] sm:$0xf]
      %v6510 = vld [vmem:[#allocation2 + $0x50] sm:$0xf]
      %v6511 = vld [vmem:[#allocation2 + $0x54] sm:$0xf]
      %v6512 = vld [vmem:[#allocation2 + $0x58] sm:$0xf]
      %v6513 = vld [vmem:[#allocation2 + $0x5c] sm:$0xf]
      %v6514 = vld [vmem:[#allocation2 + $0x60] sm:$0xf]
      %v6515 = vld [vmem:[#allocation2 + $0x64] sm:$0xf]
      %v6516 = vld [vmem:[#allocation2 + $0x68] sm:$0xf]
      %v6517 = vld [vmem:[#allocation2 + $0x6c] sm:$0xf]
      %v6518 = vld [vmem:[#allocation2 + $0x70] sm:$0xf]
      %v6519 = vld [vmem:[#allocation2 + $0x74] sm:$0xf]
      %v6520 = vld [vmem:[#allocation2 + $0x78] sm:$0xf]
      %v6521 = vld [vmem:[#allocation2 + $0x7c] sm:$0xf]
      %v6522 = vld [vmem:[#allocation2 + $0x80] sm:$0xf]
      %v6523 = vld [vmem:[#allocation2 + $0x84] sm:$0xf]
      %v6524 = vld [vmem:[#allocation2 + $0x88] sm:$0xf]
      %v6525 = vld [vmem:[#allocation2 + $0x8c] sm:$0xf]
      %v6526 = vld [vmem:[#allocation2 + $0x90] sm:$0xf]
      %v6527 = vld [vmem:[#allocation2 + $0x94] sm:$0xf]
      %v6528 = vld [vmem:[#allocation2 + $0x98] sm:$0xf]
      %v6529 = vld [vmem:[#allocation2 + $0x9c] sm:$0xf]
      %v6530 = vld [vmem:[#allocation2 + $0xa0] sm:$0x1]
      %s6531 = scalar_lea.vmem %s7, 384
      %v6532 = vld [vmem:[%s6531] sm:$0xf]
      %v6533 = vld [vmem:[%s6531 + $0x4] sm:$0xf]
      %v6534 = vld [vmem:[%s6531 + $0x8] sm:$0xf]
      %v6535 = vld [vmem:[%s6531 + $0xc] sm:$0xf]
      %v6536 = vld [vmem:[%s6531 + $0x10] sm:$0xf]
      %v6537 = vld [vmem:[%s6531 + $0x14] sm:$0xf]
      %v6538 = vld [vmem:[%s6531 + $0x18] sm:$0xf]
      %v6539 = vld [vmem:[%s6531 + $0x1c] sm:$0xf]
      %v6540 = vld [vmem:[%s6531 + $0x20] sm:$0xf]
      %v6541 = vld [vmem:[%s6531 + $0x24] sm:$0xf]
      %v6542 = vld [vmem:[%s6531 + $0x28] sm:$0xf]
      %v6543 = vld [vmem:[%s6531 + $0x2c] sm:$0xf]
      %v6544 = vld [vmem:[%s6531 + $0x30] sm:$0xf]
      %v6545 = vld [vmem:[%s6531 + $0x34] sm:$0xf]
      %v6546 = vld [vmem:[%s6531 + $0x38] sm:$0xf]
      %v6547 = vld [vmem:[%s6531 + $0x3c] sm:$0xf]
      %v6585 = vunpack.c.l.b16 %v6494
      %v6586 = vunpack.c.l.b16 %v6495
      %v6587 = vunpack.c.l.b16 %v6496
      %v6588 = vunpack.c.l.b16 %v6497
      %v6589 = vunpack.c.l.b16 %v6498
      %v6590 = vunpack.c.l.b16 %v6499
      %v6591 = vunpack.c.l.b16 %v6500
      %v6592 = vunpack.c.l.b16 %v6501
      %v6593 = vunpack.c.l.b16 %v6502
      %v6594 = vunpack.c.l.b16 %v6503
      %v6595 = vunpack.c.l.b16 %v6504
      %v6596 = vunpack.c.l.b16 %v6505
      %v6597 = vunpack.c.l.b16 %v6506
      %v6598 = vunpack.c.l.b16 %v6507
      %v6599 = vunpack.c.l.b16 %v6508
      %v6600 = vunpack.c.l.b16 %v6509
      %v6601 = vunpack.c.l.b16 %v6510
      %v6602 = vunpack.c.l.b16 %v6511
      %v6603 = vunpack.c.l.b16 %v6512
      %v6604 = vunpack.c.l.b16 %v6513
      %v6605 = vunpack.c.l.b16 %v6514
      %v6606 = vunpack.c.l.b16 %v6515
      %v6607 = vunpack.c.l.b16 %v6516
      %v6608 = vunpack.c.l.b16 %v6517
      %v6609 = vunpack.c.l.b16 %v6518
      %v6610 = vunpack.c.l.b16 %v6519
      %v6611 = vunpack.c.l.b16 %v6520
      %v6612 = vunpack.c.l.b16 %v6521
      %v6613 = vunpack.c.l.b16 %v6522
      %v6614 = vunpack.c.l.b16 %v6523
      %v6615 = vunpack.c.l.b16 %v6524
      %v6616 = vunpack.c.l.b16 %v6525
      %v6617 = vunpack.c.l.b16 %v6526
      %v6618 = vunpack.c.l.b16 %v6527
      %v6619 = vunpack.c.l.b16 %v6528
      %v6620 = vunpack.c.l.b16 %v6529
      %v6621 = vunpack.c.l.b16 %v6530
      %v6622 = vpack.c.b16 %v6586, %v6585
      %v6623 = vpack.c.b16 %v6588, %v6587
      %v6624 = vpack.c.b16 %v6590, %v6589
      %v6625 = vpack.c.b16 %v6592, %v6591
      %v6626 = vpack.c.b16 %v6594, %v6593
      %v6627 = vpack.c.b16 %v6596, %v6595
      %v6628 = vpack.c.b16 %v6598, %v6597
      %v6629 = vpack.c.b16 %v6600, %v6599
      %v6630 = vpack.c.b16 %v6602, %v6601
      %v6631 = vpack.c.b16 %v6604, %v6603
      %v6632 = vpack.c.b16 %v6606, %v6605
      %v6633 = vpack.c.b16 %v6608, %v6607
      %v6634 = vpack.c.b16 %v6610, %v6609
      %v6635 = vpack.c.b16 %v6612, %v6611
      %v6636 = vpack.c.b16 %v6614, %v6613
      %v6637 = vpack.c.b16 %v6616, %v6615
      %v6638 = vpack.c.b16 %v6618, %v6617
      %v6639 = vpack.c.b16 %v6620, %v6619
      %v6640 = vpack.c.b16 %v6621, %v6621
      %v6641 = vrot.slane %v6622, 2
      %v6642 = vrot.slane %v6623, 2
      %v6643 = vsel %vm6255, %v6641, %v6642
      %v6644 = vrot.slane %v6624, 2
      %v6645 = vsel %vm6255, %v6642, %v6644
      %v6646 = vrot.slane %v6625, 2
      %v6647 = vsel %vm6255, %v6644, %v6646
      %v6648 = vrot.slane %v6626, 2
      %v6649 = vsel %vm6255, %v6646, %v6648
      %v6650 = vrot.slane %v6627, 2
      %v6651 = vsel %vm6255, %v6648, %v6650
      %v6652 = vrot.slane %v6628, 2
      %v6653 = vsel %vm6255, %v6650, %v6652
      %v6654 = vrot.slane %v6629, 2
      %v6655 = vsel %vm6255, %v6652, %v6654
      %v6656 = vrot.slane %v6630, 2
      %v6657 = vsel %vm6255, %v6654, %v6656
      %v6658 = vrot.slane %v6631, 2
      %v6659 = vsel %vm6255, %v6656, %v6658
      %v6660 = vrot.slane %v6632, 2
      %v6661 = vsel %vm6255, %v6658, %v6660
      %v6662 = vrot.slane %v6633, 2
      %v6663 = vsel %vm6255, %v6660, %v6662
      %v6664 = vrot.slane %v6634, 2
      %v6665 = vsel %vm6255, %v6662, %v6664
      %v6666 = vrot.slane %v6635, 2
      %v6667 = vsel %vm6255, %v6664, %v6666
      %v6668 = vrot.slane %v6636, 2
      %v6669 = vsel %vm6255, %v6666, %v6668
      %v6670 = vrot.slane %v6637, 2
      %v6671 = vsel %vm6255, %v6668, %v6670
      %v6672 = vrot.slane %v6638, 2
      %v6673 = vsel %vm6255, %v6670, %v6672
      %v6674 = vrot.slane %v6639, 2
      %v6675 = vsel %vm6255, %v6672, %v6674
      %v6676 = vrot.slane %v6640, 2
      %v6677 = vsel %vm6255, %v6674, %v6676
      %v6712 = vunpack.c.l.b16 %v6532
      %v6713 = vunpack.c.l.b16 %v6533
      %v6714 = vunpack.c.l.b16 %v6534
      %v6715 = vunpack.c.l.b16 %v6535
      %v6716 = vunpack.c.l.b16 %v6536
      %v6717 = vunpack.c.l.b16 %v6537
      %v6718 = vunpack.c.l.b16 %v6538
      %v6719 = vunpack.c.l.b16 %v6539
      %v6720 = vunpack.c.l.b16 %v6540
      %v6721 = vunpack.c.l.b16 %v6541
      %v6722 = vunpack.c.l.b16 %v6542
      %v6723 = vunpack.c.l.b16 %v6543
      %v6724 = vunpack.c.l.b16 %v6544
      %v6725 = vunpack.c.l.b16 %v6545
      %v6726 = vunpack.c.l.b16 %v6546
      %v6727 = vunpack.c.l.b16 %v6547
      %v6728 = vpack.c.b16 %v6713, %v6712
      %v6729 = vpack.c.b16 %v6715, %v6714
      %v6730 = vpack.c.b16 %v6717, %v6716
      %v6731 = vpack.c.b16 %v6719, %v6718
      %v6732 = vpack.c.b16 %v6721, %v6720
      %v6733 = vpack.c.b16 %v6723, %v6722
      %v6734 = vpack.c.b16 %v6725, %v6724
      %v6735 = vpack.c.b16 %v6727, %v6726
      %6744 = vmatpush.bf16.msra.mxu0 %v6735
      %6745 = vmatpush.bf16.msra.mxu0 %v6734
      %6746 = vmatpush.bf16.msra.mxu0 %v6733
      %6747 = vmatpush.bf16.msra.mxu0 %v6732
      %6748 = vmatpush.bf16.msra.mxu0 %v6731
      %6749 = vmatpush.bf16.msra.mxu0 %v6730
      %6750 = vmatpush.bf16.msra.mxu0 %v6729
      %6751 = vmatpush.bf16.msra.mxu0 %v6728
      %6752 = vmatmul.bf16.gmra.mxu0 %v6643
      %v6753 = vpop.f32.mrf.mxu0
      %v6754 = vadd.f32 0.0, %v6753
      %v6755 = vpop.f32.mrf.mxu0
      %v6756 = vadd.f32 0.0, %v6755
      %6757 = vmatmul.bf16.gmra.mxu0 %v6645
      %v6758 = vpop.f32.mrf.mxu0
      %v6759 = vadd.f32 0.0, %v6758
      %v6760 = vpop.f32.mrf.mxu0
      %v6761 = vadd.f32 0.0, %v6760
      %6762 = vmatmul.bf16.gmra.mxu0 %v6647
      %v6763 = vpop.f32.mrf.mxu0
      %v6764 = vadd.f32 0.0, %v6763
      %v6765 = vpop.f32.mrf.mxu0
      %v6766 = vadd.f32 0.0, %v6765
      %6767 = vmatmul.bf16.gmra.mxu0 %v6649
      %v6768 = vpop.f32.mrf.mxu0
      %v6769 = vadd.f32 0.0, %v6768
      %v6770 = vpop.f32.mrf.mxu0
      %v6771 = vadd.f32 0.0, %v6770
      %6772 = vmatmul.bf16.gmra.mxu0 %v6651
      %v6773 = vpop.f32.mrf.mxu0
      %v6774 = vadd.f32 0.0, %v6773
      %v6775 = vpop.f32.mrf.mxu0
      %v6776 = vadd.f32 0.0, %v6775
      %6777 = vmatmul.bf16.gmra.mxu0 %v6653
      %v6778 = vpop.f32.mrf.mxu0
      %v6779 = vadd.f32 0.0, %v6778
      %v6780 = vpop.f32.mrf.mxu0
      %v6781 = vadd.f32 0.0, %v6780
      %6782 = vmatmul.bf16.gmra.mxu0 %v6655
      %v6783 = vpop.f32.mrf.mxu0
      %v6784 = vadd.f32 0.0, %v6783
      %v6785 = vpop.f32.mrf.mxu0
      %v6786 = vadd.f32 0.0, %v6785
      %6787 = vmatmul.bf16.gmra.mxu0 %v6657
      %v6788 = vpop.f32.mrf.mxu0
      %v6789 = vadd.f32 0.0, %v6788
      %v6790 = vpop.f32.mrf.mxu0
      %v6791 = vadd.f32 0.0, %v6790
      %6792 = vmatmul.bf16.gmra.mxu0 %v6659
      %v6793 = vpop.f32.mrf.mxu0
      %v6794 = vadd.f32 0.0, %v6793
      %v6795 = vpop.f32.mrf.mxu0
      %v6796 = vadd.f32 0.0, %v6795
      %6797 = vmatmul.bf16.gmra.mxu0 %v6661
      %v6798 = vpop.f32.mrf.mxu0
      %v6799 = vadd.f32 0.0, %v6798
      %v6800 = vpop.f32.mrf.mxu0
      %v6801 = vadd.f32 0.0, %v6800
      %6802 = vmatmul.bf16.gmra.mxu0 %v6663
      %v6803 = vpop.f32.mrf.mxu0
      %v6804 = vadd.f32 0.0, %v6803
      %v6805 = vpop.f32.mrf.mxu0
      %v6806 = vadd.f32 0.0, %v6805
      %6807 = vmatmul.bf16.gmra.mxu0 %v6665
      %v6808 = vpop.f32.mrf.mxu0
      %v6809 = vadd.f32 0.0, %v6808
      %v6810 = vpop.f32.mrf.mxu0
      %v6811 = vadd.f32 0.0, %v6810
      %6812 = vmatmul.bf16.gmra.mxu0 %v6667
      %v6813 = vpop.f32.mrf.mxu0
      %v6814 = vadd.f32 0.0, %v6813
      %v6815 = vpop.f32.mrf.mxu0
      %v6816 = vadd.f32 0.0, %v6815
      %6817 = vmatmul.bf16.gmra.mxu0 %v6669
      %v6818 = vpop.f32.mrf.mxu0
      %v6819 = vadd.f32 0.0, %v6818
      %v6820 = vpop.f32.mrf.mxu0
      %v6821 = vadd.f32 0.0, %v6820
      %6822 = vmatmul.bf16.gmra.mxu0 %v6671
      %v6823 = vpop.f32.mrf.mxu0
      %v6824 = vadd.f32 0.0, %v6823
      %v6825 = vpop.f32.mrf.mxu0
      %v6826 = vadd.f32 0.0, %v6825
      %6827 = vmatmul.bf16.gmra.mxu0 %v6673
      %v6828 = vpop.f32.mrf.mxu0
      %v6829 = vadd.f32 0.0, %v6828
      %v6830 = vpop.f32.mrf.mxu0
      %v6831 = vadd.f32 0.0, %v6830
      %6832 = vmatmul.bf16.gmra.mxu0 %v6675
      %v6833 = vpop.f32.mrf.mxu0
      %v6834 = vadd.f32 0.0, %v6833
      %v6835 = vpop.f32.mrf.mxu0
      %v6836 = vadd.f32 0.0, %v6835
      %6837 = vmatmul.bf16.gmra.mxu0 %v6677
      %v6838 = vpop.f32.mrf.mxu0
      %v6839 = vadd.f32 0.0, %v6838
      %v6840 = vpop.f32.mrf.mxu0
      %v6841 = vadd.f32 0.0, %v6840
      %6842 = vdwg.mxu0
      %v6843 = vadd.f32 %v6458, %v6754
      %v6844 = vadd.f32 %v6459, %v6756
      %v6845 = vadd.f32 %v6460, %v6759
      %v6846 = vadd.f32 %v6461, %v6761
      %v6847 = vadd.f32 %v6462, %v6764
      %v6848 = vadd.f32 %v6463, %v6766
      %v6849 = vadd.f32 %v6464, %v6769
      %v6850 = vadd.f32 %v6465, %v6771
      %v6851 = vadd.f32 %v6466, %v6774
      %v6852 = vadd.f32 %v6467, %v6776
      %v6853 = vadd.f32 %v6468, %v6779
      %v6854 = vadd.f32 %v6469, %v6781
      %v6855 = vadd.f32 %v6470, %v6784
      %v6856 = vadd.f32 %v6471, %v6786
      %v6857 = vadd.f32 %v6472, %v6789
      %v6858 = vadd.f32 %v6473, %v6791
      %v6859 = vadd.f32 %v6474, %v6794
      %v6860 = vadd.f32 %v6475, %v6796
      %v6861 = vadd.f32 %v6476, %v6799
      %v6862 = vadd.f32 %v6477, %v6801
      %v6863 = vadd.f32 %v6478, %v6804
      %v6864 = vadd.f32 %v6479, %v6806
      %v6865 = vadd.f32 %v6480, %v6809
      %v6866 = vadd.f32 %v6481, %v6811
      %v6867 = vadd.f32 %v6482, %v6814
      %v6868 = vadd.f32 %v6483, %v6816
      %v6869 = vadd.f32 %v6484, %v6819
      %v6870 = vadd.f32 %v6485, %v6821
      %v6871 = vadd.f32 %v6486, %v6824
      %v6872 = vadd.f32 %v6487, %v6826
      %v6873 = vadd.f32 %v6488, %v6829
      %v6874 = vadd.f32 %v6489, %v6831
      %v6875 = vadd.f32 %v6490, %v6834
      %v6876 = vadd.f32 %v6491, %v6836
      %v6877 = vadd.f32 %v6492, %v6839
      %v6878 = vadd.f32 %v6493, %v6841
      %v6879 = vld [vmem:[#allocation2 + $0xa0] sm:$0x3]
      %s6880 = scalar_lea.vmem %s7, 448
      %v6881 = vld [vmem:[%s6880] sm:$0xf]
      %v6882 = vld [vmem:[%s6880 + $0x4] sm:$0xf]
      %v6883 = vld [vmem:[%s6880 + $0x8] sm:$0xf]
      %v6884 = vld [vmem:[%s6880 + $0xc] sm:$0xf]
      %v6885 = vld [vmem:[%s6880 + $0x10] sm:$0xf]
      %v6886 = vld [vmem:[%s6880 + $0x14] sm:$0xf]
      %v6887 = vld [vmem:[%s6880 + $0x18] sm:$0xf]
      %v6888 = vld [vmem:[%s6880 + $0x1c] sm:$0xf]
      %v6889 = vld [vmem:[%s6880 + $0x20] sm:$0xf]
      %v6890 = vld [vmem:[%s6880 + $0x24] sm:$0xf]
      %v6891 = vld [vmem:[%s6880 + $0x28] sm:$0xf]
      %v6892 = vld [vmem:[%s6880 + $0x2c] sm:$0xf]
      %v6893 = vld [vmem:[%s6880 + $0x30] sm:$0xf]
      %v6894 = vld [vmem:[%s6880 + $0x34] sm:$0xf]
      %v6895 = vld [vmem:[%s6880 + $0x38] sm:$0xf]
      %v6896 = vld [vmem:[%s6880 + $0x3c] sm:$0xf]
      %v6898 = vunpack.c.l.b16 %v6879
      %v6899 = vpack.c.b16 %v6898, %v6898
      %vm6900 = vsmask.f32 5376
      %v6902 = vshrl.u32 %v6622, 16
      %v6904 = vrot.slane %v6902, 2
      %v6905 = vshll.u32 %v6622, 16
      %v6907 = vrot.slane %v6905, 3
      %v6908 = vor.u32 %v6904, %v6907
      %v6910 = vshrl.u32 %v6623, 16
      %v6912 = vrot.slane %v6910, 2
      %v6913 = vshll.u32 %v6623, 16
      %v6915 = vrot.slane %v6913, 3
      %v6916 = vor.u32 %v6912, %v6915
      %v6917 = vsel %vm6900, %v6908, %v6916
      %v6919 = vshrl.u32 %v6624, 16
      %v6921 = vrot.slane %v6919, 2
      %v6922 = vshll.u32 %v6624, 16
      %v6924 = vrot.slane %v6922, 3
      %v6925 = vor.u32 %v6921, %v6924
      %v6926 = vsel %vm6900, %v6916, %v6925
      %v6928 = vshrl.u32 %v6625, 16
      %v6930 = vrot.slane %v6928, 2
      %v6931 = vshll.u32 %v6625, 16
      %v6933 = vrot.slane %v6931, 3
      %v6934 = vor.u32 %v6930, %v6933
      %v6935 = vsel %vm6900, %v6925, %v6934
      %v6937 = vshrl.u32 %v6626, 16
      %v6939 = vrot.slane %v6937, 2
      %v6940 = vshll.u32 %v6626, 16
      %v6942 = vrot.slane %v6940, 3
      %v6943 = vor.u32 %v6939, %v6942
      %v6944 = vsel %vm6900, %v6934, %v6943
      %v6946 = vshrl.u32 %v6627, 16
      %v6948 = vrot.slane %v6946, 2
      %v6949 = vshll.u32 %v6627, 16
      %v6951 = vrot.slane %v6949, 3
      %v6952 = vor.u32 %v6948, %v6951
      %v6953 = vsel %vm6900, %v6943, %v6952
      %v6955 = vshrl.u32 %v6628, 16
      %v6957 = vrot.slane %v6955, 2
      %v6958 = vshll.u32 %v6628, 16
      %v6960 = vrot.slane %v6958, 3
      %v6961 = vor.u32 %v6957, %v6960
      %v6962 = vsel %vm6900, %v6952, %v6961
      %v6964 = vshrl.u32 %v6629, 16
      %v6966 = vrot.slane %v6964, 2
      %v6967 = vshll.u32 %v6629, 16
      %v6969 = vrot.slane %v6967, 3
      %v6970 = vor.u32 %v6966, %v6969
      %v6971 = vsel %vm6900, %v6961, %v6970
      %v6973 = vshrl.u32 %v6630, 16
      %v6975 = vrot.slane %v6973, 2
      %v6976 = vshll.u32 %v6630, 16
      %v6978 = vrot.slane %v6976, 3
      %v6979 = vor.u32 %v6975, %v6978
      %v6980 = vsel %vm6900, %v6970, %v6979
      %v6982 = vshrl.u32 %v6631, 16
      %v6984 = vrot.slane %v6982, 2
      %v6985 = vshll.u32 %v6631, 16
      %v6987 = vrot.slane %v6985, 3
      %v6988 = vor.u32 %v6984, %v6987
      %v6989 = vsel %vm6900, %v6979, %v6988
      %v6991 = vshrl.u32 %v6632, 16
      %v6993 = vrot.slane %v6991, 2
      %v6994 = vshll.u32 %v6632, 16
      %v6996 = vrot.slane %v6994, 3
      %v6997 = vor.u32 %v6993, %v6996
      %v6998 = vsel %vm6900, %v6988, %v6997
      %v7000 = vshrl.u32 %v6633, 16
      %v7002 = vrot.slane %v7000, 2
      %v7003 = vshll.u32 %v6633, 16
      %v7005 = vrot.slane %v7003, 3
      %v7006 = vor.u32 %v7002, %v7005
      %v7007 = vsel %vm6900, %v6997, %v7006
      %v7009 = vshrl.u32 %v6634, 16
      %v7011 = vrot.slane %v7009, 2
      %v7012 = vshll.u32 %v6634, 16
      %v7014 = vrot.slane %v7012, 3
      %v7015 = vor.u32 %v7011, %v7014
      %v7016 = vsel %vm6900, %v7006, %v7015
      %v7018 = vshrl.u32 %v6635, 16
      %v7020 = vrot.slane %v7018, 2
      %v7021 = vshll.u32 %v6635, 16
      %v7023 = vrot.slane %v7021, 3
      %v7024 = vor.u32 %v7020, %v7023
      %v7025 = vsel %vm6900, %v7015, %v7024
      %v7027 = vshrl.u32 %v6636, 16
      %v7029 = vrot.slane %v7027, 2
      %v7030 = vshll.u32 %v6636, 16
      %v7032 = vrot.slane %v7030, 3
      %v7033 = vor.u32 %v7029, %v7032
      %v7034 = vsel %vm6900, %v7024, %v7033
      %v7036 = vshrl.u32 %v6637, 16
      %v7038 = vrot.slane %v7036, 2
      %v7039 = vshll.u32 %v6637, 16
      %v7041 = vrot.slane %v7039, 3
      %v7042 = vor.u32 %v7038, %v7041
      %v7043 = vsel %vm6900, %v7033, %v7042
      %v7045 = vshrl.u32 %v6638, 16
      %v7047 = vrot.slane %v7045, 2
      %v7048 = vshll.u32 %v6638, 16
      %v7050 = vrot.slane %v7048, 3
      %v7051 = vor.u32 %v7047, %v7050
      %v7052 = vsel %vm6900, %v7042, %v7051
      %v7054 = vshrl.u32 %v6639, 16
      %v7056 = vrot.slane %v7054, 2
      %v7057 = vshll.u32 %v6639, 16
      %v7059 = vrot.slane %v7057, 3
      %v7060 = vor.u32 %v7056, %v7059
      %v7061 = vsel %vm6900, %v7051, %v7060
      %v7063 = vshrl.u32 %v6899, 16
      %v7065 = vrot.slane %v7063, 2
      %v7066 = vshll.u32 %v6899, 16
      %v7068 = vrot.slane %v7066, 3
      %v7069 = vor.u32 %v7065, %v7068
      %v7070 = vsel %vm6900, %v7060, %v7069
      %v7105 = vunpack.c.l.b16 %v6881
      %v7106 = vunpack.c.l.b16 %v6882
      %v7107 = vunpack.c.l.b16 %v6883
      %v7108 = vunpack.c.l.b16 %v6884
      %v7109 = vunpack.c.l.b16 %v6885
      %v7110 = vunpack.c.l.b16 %v6886
      %v7111 = vunpack.c.l.b16 %v6887
      %v7112 = vunpack.c.l.b16 %v6888
      %v7113 = vunpack.c.l.b16 %v6889
      %v7114 = vunpack.c.l.b16 %v6890
      %v7115 = vunpack.c.l.b16 %v6891
      %v7116 = vunpack.c.l.b16 %v6892
      %v7117 = vunpack.c.l.b16 %v6893
      %v7118 = vunpack.c.l.b16 %v6894
      %v7119 = vunpack.c.l.b16 %v6895
      %v7120 = vunpack.c.l.b16 %v6896
      %v7121 = vpack.c.b16 %v7106, %v7105
      %v7122 = vpack.c.b16 %v7108, %v7107
      %v7123 = vpack.c.b16 %v7110, %v7109
      %v7124 = vpack.c.b16 %v7112, %v7111
      %v7125 = vpack.c.b16 %v7114, %v7113
      %v7126 = vpack.c.b16 %v7116, %v7115
      %v7127 = vpack.c.b16 %v7118, %v7117
      %v7128 = vpack.c.b16 %v7120, %v7119
      %7137 = vmatpush.bf16.msra.mxu0 %v7128
      %7138 = vmatpush.bf16.msra.mxu0 %v7127
      %7139 = vmatpush.bf16.msra.mxu0 %v7126
      %7140 = vmatpush.bf16.msra.mxu0 %v7125
      %7141 = vmatpush.bf16.msra.mxu0 %v7124
      %7142 = vmatpush.bf16.msra.mxu0 %v7123
      %7143 = vmatpush.bf16.msra.mxu0 %v7122
      %7144 = vmatpush.bf16.msra.mxu0 %v7121
      %7145 = vmatmul.bf16.gmra.mxu0 %v6917
      %v7146 = vpop.f32.mrf.mxu0
      %v7147 = vadd.f32 0.0, %v7146
      %v7148 = vpop.f32.mrf.mxu0
      %v7149 = vadd.f32 0.0, %v7148
      %7150 = vmatmul.bf16.gmra.mxu0 %v6926
      %v7151 = vpop.f32.mrf.mxu0
      %v7152 = vadd.f32 0.0, %v7151
      %v7153 = vpop.f32.mrf.mxu0
      %v7154 = vadd.f32 0.0, %v7153
      %7155 = vmatmul.bf16.gmra.mxu0 %v6935
      %v7156 = vpop.f32.mrf.mxu0
      %v7157 = vadd.f32 0.0, %v7156
      %v7158 = vpop.f32.mrf.mxu0
      %v7159 = vadd.f32 0.0, %v7158
      %7160 = vmatmul.bf16.gmra.mxu0 %v6944
      %v7161 = vpop.f32.mrf.mxu0
      %v7162 = vadd.f32 0.0, %v7161
      %v7163 = vpop.f32.mrf.mxu0
      %v7164 = vadd.f32 0.0, %v7163
      %7165 = vmatmul.bf16.gmra.mxu0 %v6953
      %v7166 = vpop.f32.mrf.mxu0
      %v7167 = vadd.f32 0.0, %v7166
      %v7168 = vpop.f32.mrf.mxu0
      %v7169 = vadd.f32 0.0, %v7168
      %7170 = vmatmul.bf16.gmra.mxu0 %v6962
      %v7171 = vpop.f32.mrf.mxu0
      %v7172 = vadd.f32 0.0, %v7171
      %v7173 = vpop.f32.mrf.mxu0
      %v7174 = vadd.f32 0.0, %v7173
      %7175 = vmatmul.bf16.gmra.mxu0 %v6971
      %v7176 = vpop.f32.mrf.mxu0
      %v7177 = vadd.f32 0.0, %v7176
      %v7178 = vpop.f32.mrf.mxu0
      %v7179 = vadd.f32 0.0, %v7178
      %7180 = vmatmul.bf16.gmra.mxu0 %v6980
      %v7181 = vpop.f32.mrf.mxu0
      %v7182 = vadd.f32 0.0, %v7181
      %v7183 = vpop.f32.mrf.mxu0
      %v7184 = vadd.f32 0.0, %v7183
      %7185 = vmatmul.bf16.gmra.mxu0 %v6989
      %v7186 = vpop.f32.mrf.mxu0
      %v7187 = vadd.f32 0.0, %v7186
      %v7188 = vpop.f32.mrf.mxu0
      %v7189 = vadd.f32 0.0, %v7188
      %7190 = vmatmul.bf16.gmra.mxu0 %v6998
      %v7191 = vpop.f32.mrf.mxu0
      %v7192 = vadd.f32 0.0, %v7191
      %v7193 = vpop.f32.mrf.mxu0
      %v7194 = vadd.f32 0.0, %v7193
      %7195 = vmatmul.bf16.gmra.mxu0 %v7007
      %v7196 = vpop.f32.mrf.mxu0
      %v7197 = vadd.f32 0.0, %v7196
      %v7198 = vpop.f32.mrf.mxu0
      %v7199 = vadd.f32 0.0, %v7198
      %7200 = vmatmul.bf16.gmra.mxu0 %v7016
      %v7201 = vpop.f32.mrf.mxu0
      %v7202 = vadd.f32 0.0, %v7201
      %v7203 = vpop.f32.mrf.mxu0
      %v7204 = vadd.f32 0.0, %v7203
      %7205 = vmatmul.bf16.gmra.mxu0 %v7025
      %v7206 = vpop.f32.mrf.mxu0
      %v7207 = vadd.f32 0.0, %v7206
      %v7208 = vpop.f32.mrf.mxu0
      %v7209 = vadd.f32 0.0, %v7208
      %7210 = vmatmul.bf16.gmra.mxu0 %v7034
      %v7211 = vpop.f32.mrf.mxu0
      %v7212 = vadd.f32 0.0, %v7211
      %v7213 = vpop.f32.mrf.mxu0
      %v7214 = vadd.f32 0.0, %v7213
      %7215 = vmatmul.bf16.gmra.mxu0 %v7043
      %v7216 = vpop.f32.mrf.mxu0
      %v7217 = vadd.f32 0.0, %v7216
      %v7218 = vpop.f32.mrf.mxu0
      %v7219 = vadd.f32 0.0, %v7218
      %7220 = vmatmul.bf16.gmra.mxu0 %v7052
      %v7221 = vpop.f32.mrf.mxu0
      %v7222 = vadd.f32 0.0, %v7221
      %v7223 = vpop.f32.mrf.mxu0
      %v7224 = vadd.f32 0.0, %v7223
      %7225 = vmatmul.bf16.gmra.mxu0 %v7061
      %v7226 = vpop.f32.mrf.mxu0
      %v7227 = vadd.f32 0.0, %v7226
      %v7228 = vpop.f32.mrf.mxu0
      %v7229 = vadd.f32 0.0, %v7228
      %7230 = vmatmul.bf16.gmra.mxu0 %v7070
      %v7231 = vpop.f32.mrf.mxu0
      %v7232 = vadd.f32 0.0, %v7231
      %v7233 = vpop.f32.mrf.mxu0
      %v7234 = vadd.f32 0.0, %v7233
      %7235 = vdwg.mxu0
      %v7236 = vadd.f32 %v6843, %v7147
      %v7237 = vadd.f32 %v6844, %v7149
      %v7238 = vadd.f32 %v6845, %v7152
      %v7239 = vadd.f32 %v6846, %v7154
      %v7240 = vadd.f32 %v6847, %v7157
      %v7241 = vadd.f32 %v6848, %v7159
      %v7242 = vadd.f32 %v6849, %v7162
      %v7243 = vadd.f32 %v6850, %v7164
      %v7244 = vadd.f32 %v6851, %v7167
      %v7245 = vadd.f32 %v6852, %v7169
      %v7246 = vadd.f32 %v6853, %v7172
      %v7247 = vadd.f32 %v6854, %v7174
      %v7248 = vadd.f32 %v6855, %v7177
      %v7249 = vadd.f32 %v6856, %v7179
      %v7250 = vadd.f32 %v6857, %v7182
      %v7251 = vadd.f32 %v6858, %v7184
      %v7252 = vadd.f32 %v6859, %v7187
      %v7253 = vadd.f32 %v6860, %v7189
      %v7254 = vadd.f32 %v6861, %v7192
      %v7255 = vadd.f32 %v6862, %v7194
      %v7256 = vadd.f32 %v6863, %v7197
      %v7257 = vadd.f32 %v6864, %v7199
      %v7258 = vadd.f32 %v6865, %v7202
      %v7259 = vadd.f32 %v6866, %v7204
      %v7260 = vadd.f32 %v6867, %v7207
      %v7261 = vadd.f32 %v6868, %v7209
      %v7262 = vadd.f32 %v6869, %v7212
      %v7263 = vadd.f32 %v6870, %v7214
      %v7264 = vadd.f32 %v6871, %v7217
      %v7265 = vadd.f32 %v6872, %v7219
      %v7266 = vadd.f32 %v6873, %v7222
      %v7267 = vadd.f32 %v6874, %v7224
      %v7268 = vadd.f32 %v6875, %v7227
      %v7269 = vadd.f32 %v6876, %v7229
      %v7270 = vadd.f32 %v6877, %v7232
      %v7271 = vadd.f32 %v6878, %v7234
      %v7272 = vld [vmem:[#allocation2 + $0x10] sm:$0x8]
      %s7273 = scalar_lea.vmem %s7, 512
      %v7274 = vld [vmem:[%s7273] sm:$0xf]
      %v7275 = vld [vmem:[%s7273 + $0x4] sm:$0xf]
      %v7276 = vld [vmem:[%s7273 + $0x8] sm:$0xf]
      %v7277 = vld [vmem:[%s7273 + $0xc] sm:$0xf]
      %v7278 = vld [vmem:[%s7273 + $0x10] sm:$0xf]
      %v7279 = vld [vmem:[%s7273 + $0x14] sm:$0xf]
      %v7280 = vld [vmem:[%s7273 + $0x18] sm:$0xf]
      %v7281 = vld [vmem:[%s7273 + $0x1c] sm:$0xf]
      %v7282 = vld [vmem:[%s7273 + $0x20] sm:$0xf]
      %v7283 = vld [vmem:[%s7273 + $0x24] sm:$0xf]
      %v7284 = vld [vmem:[%s7273 + $0x28] sm:$0xf]
      %v7285 = vld [vmem:[%s7273 + $0x2c] sm:$0xf]
      %v7286 = vld [vmem:[%s7273 + $0x30] sm:$0xf]
      %v7287 = vld [vmem:[%s7273 + $0x34] sm:$0xf]
      %v7288 = vld [vmem:[%s7273 + $0x38] sm:$0xf]
      %v7289 = vld [vmem:[%s7273 + $0x3c] sm:$0xf]
      %v7291 = vunpack.c.l.b16 %v7272
      %v7292 = vpack.c.b16 %v6586, %v7291
      %vm7293 = vcmask 1044480
      %v7294 = vrot.slane %v7292, 3
      %v7295 = vrot.slane %v6623, 3
      %v7296 = vsel %vm7293, %v7294, %v7295
      %v7297 = vrot.slane %v6624, 3
      %v7298 = vsel %vm7293, %v7295, %v7297
      %v7299 = vrot.slane %v6625, 3
      %v7300 = vsel %vm7293, %v7297, %v7299
      %v7301 = vrot.slane %v6626, 3
      %v7302 = vsel %vm7293, %v7299, %v7301
      %v7303 = vrot.slane %v6627, 3
      %v7304 = vsel %vm7293, %v7301, %v7303
      %v7305 = vrot.slane %v6628, 3
      %v7306 = vsel %vm7293, %v7303, %v7305
      %v7307 = vrot.slane %v6629, 3
      %v7308 = vsel %vm7293, %v7305, %v7307
      %v7309 = vrot.slane %v6630, 3
      %v7310 = vsel %vm7293, %v7307, %v7309
      %v7311 = vrot.slane %v6631, 3
      %v7312 = vsel %vm7293, %v7309, %v7311
      %v7313 = vrot.slane %v6632, 3
      %v7314 = vsel %vm7293, %v7311, %v7313
      %v7315 = vrot.slane %v6633, 3
      %v7316 = vsel %vm7293, %v7313, %v7315
      %v7317 = vrot.slane %v6634, 3
      %v7318 = vsel %vm7293, %v7315, %v7317
      %v7319 = vrot.slane %v6635, 3
      %v7320 = vsel %vm7293, %v7317, %v7319
      %v7321 = vrot.slane %v6636, 3
      %v7322 = vsel %vm7293, %v7319, %v7321
      %v7323 = vrot.slane %v6637, 3
      %v7324 = vsel %vm7293, %v7321, %v7323
      %v7325 = vrot.slane %v6638, 3
      %v7326 = vsel %vm7293, %v7323, %v7325
      %v7327 = vrot.slane %v6639, 3
      %v7328 = vsel %vm7293, %v7325, %v7327
      %v7329 = vrot.slane %v6899, 3
      %v7330 = vsel %vm7293, %v7327, %v7329
      %v7365 = vunpack.c.l.b16 %v7274
      %v7366 = vunpack.c.l.b16 %v7275
      %v7367 = vunpack.c.l.b16 %v7276
      %v7368 = vunpack.c.l.b16 %v7277
      %v7369 = vunpack.c.l.b16 %v7278
      %v7370 = vunpack.c.l.b16 %v7279
      %v7371 = vunpack.c.l.b16 %v7280
      %v7372 = vunpack.c.l.b16 %v7281
      %v7373 = vunpack.c.l.b16 %v7282
      %v7374 = vunpack.c.l.b16 %v7283
      %v7375 = vunpack.c.l.b16 %v7284
      %v7376 = vunpack.c.l.b16 %v7285
      %v7377 = vunpack.c.l.b16 %v7286
      %v7378 = vunpack.c.l.b16 %v7287
      %v7379 = vunpack.c.l.b16 %v7288
      %v7380 = vunpack.c.l.b16 %v7289
      %v7381 = vpack.c.b16 %v7366, %v7365
      %v7382 = vpack.c.b16 %v7368, %v7367
      %v7383 = vpack.c.b16 %v7370, %v7369
      %v7384 = vpack.c.b16 %v7372, %v7371
      %v7385 = vpack.c.b16 %v7374, %v7373
      %v7386 = vpack.c.b16 %v7376, %v7375
      %v7387 = vpack.c.b16 %v7378, %v7377
      %v7388 = vpack.c.b16 %v7380, %v7379
      %7397 = vmatpush.bf16.msra.mxu0 %v7388
      %7398 = vmatpush.bf16.msra.mxu0 %v7387
      %7399 = vmatpush.bf16.msra.mxu0 %v7386
      %7400 = vmatpush.bf16.msra.mxu0 %v7385
      %7401 = vmatpush.bf16.msra.mxu0 %v7384
      %7402 = vmatpush.bf16.msra.mxu0 %v7383
      %7403 = vmatpush.bf16.msra.mxu0 %v7382
      %7404 = vmatpush.bf16.msra.mxu0 %v7381
      %7405 = vmatmul.bf16.gmra.mxu0 %v7296
      %v7406 = vpop.f32.mrf.mxu0
      %v7407 = vadd.f32 0.0, %v7406
      %v7408 = vpop.f32.mrf.mxu0
      %v7409 = vadd.f32 0.0, %v7408
      %7410 = vmatmul.bf16.gmra.mxu0 %v7298
      %v7411 = vpop.f32.mrf.mxu0
      %v7412 = vadd.f32 0.0, %v7411
      %v7413 = vpop.f32.mrf.mxu0
      %v7414 = vadd.f32 0.0, %v7413
      %7415 = vmatmul.bf16.gmra.mxu0 %v7300
      %v7416 = vpop.f32.mrf.mxu0
      %v7417 = vadd.f32 0.0, %v7416
      %v7418 = vpop.f32.mrf.mxu0
      %v7419 = vadd.f32 0.0, %v7418
      %7420 = vmatmul.bf16.gmra.mxu0 %v7302
      %v7421 = vpop.f32.mrf.mxu0
      %v7422 = vadd.f32 0.0, %v7421
      %v7423 = vpop.f32.mrf.mxu0
      %v7424 = vadd.f32 0.0, %v7423
      %7425 = vmatmul.bf16.gmra.mxu0 %v7304
      %v7426 = vpop.f32.mrf.mxu0
      %v7427 = vadd.f32 0.0, %v7426
      %v7428 = vpop.f32.mrf.mxu0
      %v7429 = vadd.f32 0.0, %v7428
      %7430 = vmatmul.bf16.gmra.mxu0 %v7306
      %v7431 = vpop.f32.mrf.mxu0
      %v7432 = vadd.f32 0.0, %v7431
      %v7433 = vpop.f32.mrf.mxu0
      %v7434 = vadd.f32 0.0, %v7433
      %7435 = vmatmul.bf16.gmra.mxu0 %v7308
      %v7436 = vpop.f32.mrf.mxu0
      %v7437 = vadd.f32 0.0, %v7436
      %v7438 = vpop.f32.mrf.mxu0
      %v7439 = vadd.f32 0.0, %v7438
      %7440 = vmatmul.bf16.gmra.mxu0 %v7310
      %v7441 = vpop.f32.mrf.mxu0
      %v7442 = vadd.f32 0.0, %v7441
      %v7443 = vpop.f32.mrf.mxu0
      %v7444 = vadd.f32 0.0, %v7443
      %7445 = vmatmul.bf16.gmra.mxu0 %v7312
      %v7446 = vpop.f32.mrf.mxu0
      %v7447 = vadd.f32 0.0, %v7446
      %v7448 = vpop.f32.mrf.mxu0
      %v7449 = vadd.f32 0.0, %v7448
      %7450 = vmatmul.bf16.gmra.mxu0 %v7314
      %v7451 = vpop.f32.mrf.mxu0
      %v7452 = vadd.f32 0.0, %v7451
      %v7453 = vpop.f32.mrf.mxu0
      %v7454 = vadd.f32 0.0, %v7453
      %7455 = vmatmul.bf16.gmra.mxu0 %v7316
      %v7456 = vpop.f32.mrf.mxu0
      %v7457 = vadd.f32 0.0, %v7456
      %v7458 = vpop.f32.mrf.mxu0
      %v7459 = vadd.f32 0.0, %v7458
      %7460 = vmatmul.bf16.gmra.mxu0 %v7318
      %v7461 = vpop.f32.mrf.mxu0
      %v7462 = vadd.f32 0.0, %v7461
      %v7463 = vpop.f32.mrf.mxu0
      %v7464 = vadd.f32 0.0, %v7463
      %7465 = vmatmul.bf16.gmra.mxu0 %v7320
      %v7466 = vpop.f32.mrf.mxu0
      %v7467 = vadd.f32 0.0, %v7466
      %v7468 = vpop.f32.mrf.mxu0
      %v7469 = vadd.f32 0.0, %v7468
      %7470 = vmatmul.bf16.gmra.mxu0 %v7322
      %v7471 = vpop.f32.mrf.mxu0
      %v7472 = vadd.f32 0.0, %v7471
      %v7473 = vpop.f32.mrf.mxu0
      %v7474 = vadd.f32 0.0, %v7473
      %7475 = vmatmul.bf16.gmra.mxu0 %v7324
      %v7476 = vpop.f32.mrf.mxu0
      %v7477 = vadd.f32 0.0, %v7476
      %v7478 = vpop.f32.mrf.mxu0
      %v7479 = vadd.f32 0.0, %v7478
      %7480 = vmatmul.bf16.gmra.mxu0 %v7326
      %v7481 = vpop.f32.mrf.mxu0
      %v7482 = vadd.f32 0.0, %v7481
      %v7483 = vpop.f32.mrf.mxu0
      %v7484 = vadd.f32 0.0, %v7483
      %7485 = vmatmul.bf16.gmra.mxu0 %v7328
      %v7486 = vpop.f32.mrf.mxu0
      %v7487 = vadd.f32 0.0, %v7486
      %v7488 = vpop.f32.mrf.mxu0
      %v7489 = vadd.f32 0.0, %v7488
      %7490 = vmatmul.bf16.gmra.mxu0 %v7330
      %v7491 = vpop.f32.mrf.mxu0
      %v7492 = vadd.f32 0.0, %v7491
      %v7493 = vpop.f32.mrf.mxu0
      %v7494 = vadd.f32 0.0, %v7493
      %7495 = vdwg.mxu0
      %v7496 = vadd.f32 %v7236, %v7407
      %v7497 = vadd.f32 %v7237, %v7409
      %v7498 = vadd.f32 %v7238, %v7412
      %v7499 = vadd.f32 %v7239, %v7414
      %v7500 = vadd.f32 %v7240, %v7417
      %v7501 = vadd.f32 %v7241, %v7419
      %v7502 = vadd.f32 %v7242, %v7422
      %v7503 = vadd.f32 %v7243, %v7424
      %v7504 = vadd.f32 %v7244, %v7427
      %v7505 = vadd.f32 %v7245, %v7429
      %v7506 = vadd.f32 %v7246, %v7432
      %v7507 = vadd.f32 %v7247, %v7434
      %v7508 = vadd.f32 %v7248, %v7437
      %v7509 = vadd.f32 %v7249, %v7439
      %v7510 = vadd.f32 %v7250, %v7442
      %v7511 = vadd.f32 %v7251, %v7444
      %v7512 = vadd.f32 %v7252, %v7447
      %v7513 = vadd.f32 %v7253, %v7449
      %v7514 = vadd.f32 %v7254, %v7452
      %v7515 = vadd.f32 %v7255, %v7454
      %v7516 = vadd.f32 %v7256, %v7457
      %v7517 = vadd.f32 %v7257, %v7459
      %v7518 = vadd.f32 %v7258, %v7462
      %v7519 = vadd.f32 %v7259, %v7464
      %v7520 = vadd.f32 %v7260, %v7467
      %v7521 = vadd.f32 %v7261, %v7469
      %v7522 = vadd.f32 %v7262, %v7472
      %v7523 = vadd.f32 %v7263, %v7474
      %v7524 = vadd.f32 %v7264, %v7477
      %v7525 = vadd.f32 %v7265, %v7479
      %v7526 = vadd.f32 %v7266, %v7482
      %v7527 = vadd.f32 %v7267, %v7484
      %v7528 = vadd.f32 %v7268, %v7487
      %v7529 = vadd.f32 %v7269, %v7489
      %v7530 = vadd.f32 %v7270, %v7492
      %v7531 = vadd.f32 %v7271, %v7494
      %v7532 = vld [vmem:[%s8] sm:$0x1]
      %v7534 = vperm.slane %v7532, 0
      %v7536 = vadd.f32 %v7496, %v7534
      %v7537 = vadd.f32 %v7497, %v7534
      %v7538 = vadd.f32 %v7498, %v7534
      %v7539 = vadd.f32 %v7499, %v7534
      %v7540 = vadd.f32 %v7500, %v7534
      %v7541 = vadd.f32 %v7501, %v7534
      %v7542 = vadd.f32 %v7502, %v7534
      %v7543 = vadd.f32 %v7503, %v7534
      %v7544 = vadd.f32 %v7504, %v7534
      %v7545 = vadd.f32 %v7505, %v7534
      %v7546 = vadd.f32 %v7506, %v7534
      %v7547 = vadd.f32 %v7507, %v7534
      %v7548 = vadd.f32 %v7508, %v7534
      %v7549 = vadd.f32 %v7509, %v7534
      %v7550 = vadd.f32 %v7510, %v7534
      %v7551 = vadd.f32 %v7511, %v7534
      %v7552 = vadd.f32 %v7512, %v7534
      %v7553 = vadd.f32 %v7513, %v7534
      %v7554 = vadd.f32 %v7514, %v7534
      %v7555 = vadd.f32 %v7515, %v7534
      %v7556 = vadd.f32 %v7516, %v7534
      %v7557 = vadd.f32 %v7517, %v7534
      %v7558 = vadd.f32 %v7518, %v7534
      %v7559 = vadd.f32 %v7519, %v7534
      %v7560 = vadd.f32 %v7520, %v7534
      %v7561 = vadd.f32 %v7521, %v7534
      %v7562 = vadd.f32 %v7522, %v7534
      %v7563 = vadd.f32 %v7523, %v7534
      %v7564 = vadd.f32 %v7524, %v7534
      %v7565 = vadd.f32 %v7525, %v7534
      %v7566 = vadd.f32 %v7526, %v7534
      %v7567 = vadd.f32 %v7527, %v7534
      %v7568 = vadd.f32 %v7528, %v7534
      %v7569 = vadd.f32 %v7529, %v7534
      %v7570 = vadd.f32 %v7530, %v7534
      %v7571 = vadd.f32 %v7531, %v7534
      %v7572 = vmul.f32 %v7536, %v2696
      %v7573 = vmul.f32 %v7537, %v2701
      %v7574 = vmul.f32 %v7538, %v2706
      %v7575 = vmul.f32 %v7539, %v2711
      %v7576 = vmul.f32 %v7540, %v2716
      %v7577 = vmul.f32 %v7541, %v2721
      %v7578 = vmul.f32 %v7542, %v2726
      %v7579 = vmul.f32 %v7543, %v2731
      %v7580 = vmul.f32 %v7544, %v2736
      %v7581 = vmul.f32 %v7545, %v2741
      %v7582 = vmul.f32 %v7546, %v2746
      %v7583 = vmul.f32 %v7547, %v2751
      %v7584 = vmul.f32 %v7548, %v2756
      %v7585 = vmul.f32 %v7549, %v2761
      %v7586 = vmul.f32 %v7550, %v2766
      %v7587 = vmul.f32 %v7551, %v2771
      %v7588 = vmul.f32 %v7552, %v2776
      %v7589 = vmul.f32 %v7553, %v2781
      %v7590 = vmul.f32 %v7554, %v2786
      %v7591 = vmul.f32 %v7555, %v2791
      %v7592 = vmul.f32 %v7556, %v2796
      %v7593 = vmul.f32 %v7557, %v2801
      %v7594 = vmul.f32 %v7558, %v2806
      %v7595 = vmul.f32 %v7559, %v2811
      %v7596 = vmul.f32 %v7560, %v2816
      %v7597 = vmul.f32 %v7561, %v2821
      %v7598 = vmul.f32 %v7562, %v2826
      %v7599 = vmul.f32 %v7563, %v2831
      %v7600 = vmul.f32 %v7564, %v2836
      %v7601 = vmul.f32 %v7565, %v2841
      %v7602 = vmul.f32 %v7566, %v2846
      %v7603 = vmul.f32 %v7567, %v2851
      %v7604 = vmul.f32 %v7568, %v2856
      %v7605 = vmul.f32 %v7569, %v2861
      %v7606 = vmul.f32 %v7570, %v2866
      %v7607 = vmul.f32 %v7571, %v2871
      %v7608 = vadd.f32 %v7572, %v7573
      %v7609 = vadd.f32 %v7608, %v7574
      %v7610 = vadd.f32 %v7609, %v7575
      %v7611 = vadd.f32 %v7610, %v7576
      %v7612 = vadd.f32 %v7611, %v7577
      %v7613 = vadd.f32 %v7612, %v7578
      %v7614 = vadd.f32 %v7613, %v7579
      %v7615 = vadd.f32 %v7614, %v7580
      %v7616 = vadd.f32 %v7615, %v7581
      %v7617 = vadd.f32 %v7616, %v7582
      %v7618 = vadd.f32 %v7617, %v7583
      %v7619 = vadd.f32 %v7618, %v7584
      %v7620 = vadd.f32 %v7619, %v7585
      %v7621 = vadd.f32 %v7620, %v7586
      %v7622 = vadd.f32 %v7621, %v7587
      %v7623 = vadd.f32 %v7622, %v7588
      %v7624 = vadd.f32 %v7623, %v7589
      %v7625 = vadd.f32 %v7624, %v7590
      %v7626 = vadd.f32 %v7625, %v7591
      %v7627 = vadd.f32 %v7626, %v7592
      %v7628 = vadd.f32 %v7627, %v7593
      %v7629 = vadd.f32 %v7628, %v7594
      %v7630 = vadd.f32 %v7629, %v7595
      %v7631 = vadd.f32 %v7630, %v7596
      %v7632 = vadd.f32 %v7631, %v7597
      %v7633 = vadd.f32 %v7632, %v7598
      %v7634 = vadd.f32 %v7633, %v7599
      %v7635 = vadd.f32 %v7634, %v7600
      %v7636 = vadd.f32 %v7635, %v7601
      %v7637 = vadd.f32 %v7636, %v7602
      %v7638 = vadd.f32 %v7637, %v7603
      %v7639 = vadd.f32 %v7638, %v7604
      %v7640 = vadd.f32 %v7639, %v7605
      %v7641 = vadd.f32 %v7640, %v7606
      %v7642 = vsel %vm2943, %v7607, 0.0
      %v7643 = vadd.f32 %v7641, %v7642
      %v7644 = vrot.slane %v7643, 4
      %v7645 = vadd.f32 %v7643, %v7644
      %v7646 = vrot.slane %v7645, 2
      %v7647 = vadd.f32 %v7645, %v7646
      %v7648 = vrot.slane %v7647, 1
      %v7649 = vadd.f32 %v7647, %v7648
      %v7650 = vmul.f32 %v7572, %v7572
      %v7651 = vmul.f32 %v7573, %v7573
      %v7652 = vmul.f32 %v7574, %v7574
      %v7653 = vmul.f32 %v7575, %v7575
      %v7654 = vmul.f32 %v7576, %v7576
      %v7655 = vmul.f32 %v7577, %v7577
      %v7656 = vmul.f32 %v7578, %v7578
      %v7657 = vmul.f32 %v7579, %v7579
      %v7658 = vmul.f32 %v7580, %v7580
      %v7659 = vmul.f32 %v7581, %v7581
      %v7660 = vmul.f32 %v7582, %v7582
      %v7661 = vmul.f32 %v7583, %v7583
      %v7662 = vmul.f32 %v7584, %v7584
      %v7663 = vmul.f32 %v7585, %v7585
      %v7664 = vmul.f32 %v7586, %v7586
      %v7665 = vmul.f32 %v7587, %v7587
      %v7666 = vmul.f32 %v7588, %v7588
      %v7667 = vmul.f32 %v7589, %v7589
      %v7668 = vmul.f32 %v7590, %v7590
      %v7669 = vmul.f32 %v7591, %v7591
      %v7670 = vmul.f32 %v7592, %v7592
      %v7671 = vmul.f32 %v7593, %v7593
      %v7672 = vmul.f32 %v7594, %v7594
      %v7673 = vmul.f32 %v7595, %v7595
      %v7674 = vmul.f32 %v7596, %v7596
      %v7675 = vmul.f32 %v7597, %v7597
      %v7676 = vmul.f32 %v7598, %v7598
      %v7677 = vmul.f32 %v7599, %v7599
      %v7678 = vmul.f32 %v7600, %v7600
      %v7679 = vmul.f32 %v7601, %v7601
      %v7680 = vmul.f32 %v7602, %v7602
      %v7681 = vmul.f32 %v7603, %v7603
      %v7682 = vmul.f32 %v7604, %v7604
      %v7683 = vmul.f32 %v7605, %v7605
      %v7684 = vmul.f32 %v7606, %v7606
      %v7685 = vmul.f32 %v7607, %v7607
      %v7686 = vadd.f32 %v7650, %v7651
      %v7687 = vadd.f32 %v7686, %v7652
      %v7688 = vadd.f32 %v7687, %v7653
      %v7689 = vadd.f32 %v7688, %v7654
      %v7690 = vadd.f32 %v7689, %v7655
      %v7691 = vadd.f32 %v7690, %v7656
      %v7692 = vadd.f32 %v7691, %v7657
      %v7693 = vadd.f32 %v7692, %v7658
      %v7694 = vadd.f32 %v7693, %v7659
      %v7695 = vadd.f32 %v7694, %v7660
      %v7696 = vadd.f32 %v7695, %v7661
      %v7697 = vadd.f32 %v7696, %v7662
      %v7698 = vadd.f32 %v7697, %v7663
      %v7699 = vadd.f32 %v7698, %v7664
      %v7700 = vadd.f32 %v7699, %v7665
      %v7701 = vadd.f32 %v7700, %v7666
      %v7702 = vadd.f32 %v7701, %v7667
      %v7703 = vadd.f32 %v7702, %v7668
      %v7704 = vadd.f32 %v7703, %v7669
      %v7705 = vadd.f32 %v7704, %v7670
      %v7706 = vadd.f32 %v7705, %v7671
      %v7707 = vadd.f32 %v7706, %v7672
      %v7708 = vadd.f32 %v7707, %v7673
      %v7709 = vadd.f32 %v7708, %v7674
      %v7710 = vadd.f32 %v7709, %v7675
      %v7711 = vadd.f32 %v7710, %v7676
      %v7712 = vadd.f32 %v7711, %v7677
      %v7713 = vadd.f32 %v7712, %v7678
      %v7714 = vadd.f32 %v7713, %v7679
      %v7715 = vadd.f32 %v7714, %v7680
      %v7716 = vadd.f32 %v7715, %v7681
      %v7717 = vadd.f32 %v7716, %v7682
      %v7718 = vadd.f32 %v7717, %v7683
      %v7719 = vadd.f32 %v7718, %v7684
      %v7720 = vsel %vm2943, %v7685, 0.0
      %v7721 = vadd.f32 %v7719, %v7720
      %v7722 = vrot.slane %v7721, 4
      %v7723 = vadd.f32 %v7721, %v7722
      %v7724 = vrot.slane %v7723, 2
      %v7725 = vadd.f32 %v7723, %v7724
      %v7726 = vrot.slane %v7725, 1
      %v7727 = vadd.f32 %v7725, %v7726
      %v7728 = vand.u32 %v439, 4294901760
      %7729 = vmatpush.msra.mxu0 %v7728
      %v7730 = vand.u32 %v438, 4294901760
      %7731 = vmatpush.msra.mxu0 %v7730
      %v7732 = vand.u32 %v437, 4294901760
      %7733 = vmatpush.msra.mxu0 %v7732
      %v7734 = vand.u32 %v436, 4294901760
      %7735 = vmatpush.msra.mxu0 %v7734
      %v7736 = vand.u32 %v435, 4294901760
      %7737 = vmatpush.msra.mxu0 %v7736
      %v7738 = vand.u32 %v434, 4294901760
      %7739 = vmatpush.msra.mxu0 %v7738
      %v7740 = vand.u32 %v433, 4294901760
      %7741 = vmatpush.msra.mxu0 %v7740
      %v7742 = vand.u32 %v432, 4294901760
      %7743 = vmatpush.msra.mxu0 %v7742
      %v7744 = vand.u32 %v431, 4294901760
      %7745 = vmatpush.msra.mxu0 %v7744
      %v7746 = vand.u32 %v430, 4294901760
      %7747 = vmatpush.msra.mxu0 %v7746
      %v7748 = vand.u32 %v429, 4294901760
      %7749 = vmatpush.msra.mxu0 %v7748
      %v7750 = vand.u32 %v428, 4294901760
      %7751 = vmatpush.msra.mxu0 %v7750
      %v7752 = vand.u32 %v427, 4294901760
      %7753 = vmatpush.msra.mxu0 %v7752
      %v7754 = vand.u32 %v426, 4294901760
      %7755 = vmatpush.msra.mxu0 %v7754
      %v7756 = vand.u32 %v425, 4294901760
      %7757 = vmatpush.msra.mxu0 %v7756
      %v7758 = vand.u32 %v424, 4294901760
      %7759 = vmatpush.msra.mxu0 %v7758
      %v7760 = vand.u32 %v7649, 4294901760
      %v7761 = vsub.f32 %v7649, %v7760
      %v7762 = vand.u32 %v7761, 4294901760
      %v7763 = vsub.f32 %v7761, %v7762
      %v7764 = vand.u32 %v7763, 4294901760
      %7765 = vmatmul.f32.gmra.mxu0 %v7764
      %v7766 = vpop.f32.mrf.mxu0
      %v7767 = vadd.f32 0.0, %v7766
      %7768 = vdwg.mxu0
      %v7769 = vand.u32 %v439, 4294901760
      %v7770 = vsub.f32 %v439, %v7769
      %v7771 = vand.u32 %v7770, 4294901760
      %v7772 = vsub.f32 %v7770, %v7771
      %v7773 = vand.u32 %v7772, 4294901760
      %7774 = vmatpush.msra.mxu0 %v7773
      %v7775 = vand.u32 %v438, 4294901760
      %v7776 = vsub.f32 %v438, %v7775
      %v7777 = vand.u32 %v7776, 4294901760
      %v7778 = vsub.f32 %v7776, %v7777
      %v7779 = vand.u32 %v7778, 4294901760
      %7780 = vmatpush.msra.mxu0 %v7779
      %v7781 = vand.u32 %v437, 4294901760
      %v7782 = vsub.f32 %v437, %v7781
      %v7783 = vand.u32 %v7782, 4294901760
      %v7784 = vsub.f32 %v7782, %v7783
      %v7785 = vand.u32 %v7784, 4294901760
      %7786 = vmatpush.msra.mxu0 %v7785
      %v7787 = vand.u32 %v436, 4294901760
      %v7788 = vsub.f32 %v436, %v7787
      %v7789 = vand.u32 %v7788, 4294901760
      %v7790 = vsub.f32 %v7788, %v7789
      %v7791 = vand.u32 %v7790, 4294901760
      %7792 = vmatpush.msra.mxu0 %v7791
      %v7793 = vand.u32 %v435, 4294901760
      %v7794 = vsub.f32 %v435, %v7793
      %v7795 = vand.u32 %v7794, 4294901760
      %v7796 = vsub.f32 %v7794, %v7795
      %v7797 = vand.u32 %v7796, 4294901760
      %7798 = vmatpush.msra.mxu0 %v7797
      %v7799 = vand.u32 %v434, 4294901760
      %v7800 = vsub.f32 %v434, %v7799
      %v7801 = vand.u32 %v7800, 4294901760
      %v7802 = vsub.f32 %v7800, %v7801
      %v7803 = vand.u32 %v7802, 4294901760
      %7804 = vmatpush.msra.mxu0 %v7803
      %v7805 = vand.u32 %v433, 4294901760
      %v7806 = vsub.f32 %v433, %v7805
      %v7807 = vand.u32 %v7806, 4294901760
      %v7808 = vsub.f32 %v7806, %v7807
      %v7809 = vand.u32 %v7808, 4294901760
      %7810 = vmatpush.msra.mxu0 %v7809
      %v7811 = vand.u32 %v432, 4294901760
      %v7812 = vsub.f32 %v432, %v7811
      %v7813 = vand.u32 %v7812, 4294901760
      %v7814 = vsub.f32 %v7812, %v7813
      %v7815 = vand.u32 %v7814, 4294901760
      %7816 = vmatpush.msra.mxu0 %v7815
      %v7817 = vand.u32 %v431, 4294901760
      %v7818 = vsub.f32 %v431, %v7817
      %v7819 = vand.u32 %v7818, 4294901760
      %v7820 = vsub.f32 %v7818, %v7819
      %v7821 = vand.u32 %v7820, 4294901760
      %7822 = vmatpush.msra.mxu0 %v7821
      %v7823 = vand.u32 %v430, 4294901760
      %v7824 = vsub.f32 %v430, %v7823
      %v7825 = vand.u32 %v7824, 4294901760
      %v7826 = vsub.f32 %v7824, %v7825
      %v7827 = vand.u32 %v7826, 4294901760
      %7828 = vmatpush.msra.mxu0 %v7827
      %v7829 = vand.u32 %v429, 4294901760
      %v7830 = vsub.f32 %v429, %v7829
      %v7831 = vand.u32 %v7830, 4294901760
      %v7832 = vsub.f32 %v7830, %v7831
      %v7833 = vand.u32 %v7832, 4294901760
      %7834 = vmatpush.msra.mxu0 %v7833
      %v7835 = vand.u32 %v428, 4294901760
      %v7836 = vsub.f32 %v428, %v7835
      %v7837 = vand.u32 %v7836, 4294901760
      %v7838 = vsub.f32 %v7836, %v7837
      %v7839 = vand.u32 %v7838, 4294901760
      %7840 = vmatpush.msra.mxu0 %v7839
      %v7841 = vand.u32 %v427, 4294901760
      %v7842 = vsub.f32 %v427, %v7841
      %v7843 = vand.u32 %v7842, 4294901760
      %v7844 = vsub.f32 %v7842, %v7843
      %v7845 = vand.u32 %v7844, 4294901760
      %7846 = vmatpush.msra.mxu0 %v7845
      %v7847 = vand.u32 %v426, 4294901760
      %v7848 = vsub.f32 %v426, %v7847
      %v7849 = vand.u32 %v7848, 4294901760
      %v7850 = vsub.f32 %v7848, %v7849
      %v7851 = vand.u32 %v7850, 4294901760
      %7852 = vmatpush.msra.mxu0 %v7851
      %v7853 = vand.u32 %v425, 4294901760
      %v7854 = vsub.f32 %v425, %v7853
      %v7855 = vand.u32 %v7854, 4294901760
      %v7856 = vsub.f32 %v7854, %v7855
      %v7857 = vand.u32 %v7856, 4294901760
      %7858 = vmatpush.msra.mxu0 %v7857
      %v7859 = vand.u32 %v424, 4294901760
      %v7860 = vsub.f32 %v424, %v7859
      %v7861 = vand.u32 %v7860, 4294901760
      %v7862 = vsub.f32 %v7860, %v7861
      %v7863 = vand.u32 %v7862, 4294901760
      %7864 = vmatpush.msra.mxu0 %v7863
      %v7865 = vand.u32 %v7649, 4294901760
      %7866 = vmatmul.f32.gmra.mxu0 %v7865
      %v7867 = vpop.f32.mrf.mxu0
      %v7868 = vadd.f32 %v7767, %v7867
      %7869 = vdwg.mxu0
      %v7870 = vand.u32 %v439, 4294901760
      %v7871 = vsub.f32 %v439, %v7870
      %7872 = vmatpush.msra.mxu0 %v7871
      %v7873 = vand.u32 %v438, 4294901760
      %v7874 = vsub.f32 %v438, %v7873
      %7875 = vmatpush.msra.mxu0 %v7874
      %v7876 = vand.u32 %v437, 4294901760
      %v7877 = vsub.f32 %v437, %v7876
      %7878 = vmatpush.msra.mxu0 %v7877
      %v7879 = vand.u32 %v436, 4294901760
      %v7880 = vsub.f32 %v436, %v7879
      %7881 = vmatpush.msra.mxu0 %v7880
      %v7882 = vand.u32 %v435, 4294901760
      %v7883 = vsub.f32 %v435, %v7882
      %7884 = vmatpush.msra.mxu0 %v7883
      %v7885 = vand.u32 %v434, 4294901760
      %v7886 = vsub.f32 %v434, %v7885
      %7887 = vmatpush.msra.mxu0 %v7886
      %v7888 = vand.u32 %v433, 4294901760
      %v7889 = vsub.f32 %v433, %v7888
      %7890 = vmatpush.msra.mxu0 %v7889
      %v7891 = vand.u32 %v432, 4294901760
      %v7892 = vsub.f32 %v432, %v7891
      %7893 = vmatpush.msra.mxu0 %v7892
      %v7894 = vand.u32 %v431, 4294901760
      %v7895 = vsub.f32 %v431, %v7894
      %7896 = vmatpush.msra.mxu0 %v7895
      %v7897 = vand.u32 %v430, 4294901760
      %v7898 = vsub.f32 %v430, %v7897
      %7899 = vmatpush.msra.mxu0 %v7898
      %v7900 = vand.u32 %v429, 4294901760
      %v7901 = vsub.f32 %v429, %v7900
      %7902 = vmatpush.msra.mxu0 %v7901
      %v7903 = vand.u32 %v428, 4294901760
      %v7904 = vsub.f32 %v428, %v7903
      %7905 = vmatpush.msra.mxu0 %v7904
      %v7906 = vand.u32 %v427, 4294901760
      %v7907 = vsub.f32 %v427, %v7906
      %7908 = vmatpush.msra.mxu0 %v7907
      %v7909 = vand.u32 %v426, 4294901760
      %v7910 = vsub.f32 %v426, %v7909
      %7911 = vmatpush.msra.mxu0 %v7910
      %v7912 = vand.u32 %v425, 4294901760
      %v7913 = vsub.f32 %v425, %v7912
      %7914 = vmatpush.msra.mxu0 %v7913
      %v7915 = vand.u32 %v424, 4294901760
      %v7916 = vsub.f32 %v424, %v7915
      %7917 = vmatpush.msra.mxu0 %v7916
      %v7918 = vand.u32 %v7649, 4294901760
      %v7919 = vsub.f32 %v7649, %v7918
      %7920 = vmatmul.f32.gmra.mxu0 %v7919
      %v7921 = vpop.f32.mrf.mxu0
      %v7922 = vadd.f32 %v7868, %v7921
      %7923 = vdwg.mxu0
      %v7924 = vand.u32 %v439, 4294901760
      %7925 = vmatpush.msra.mxu0 %v7924
      %v7926 = vand.u32 %v438, 4294901760
      %7927 = vmatpush.msra.mxu0 %v7926
      %v7928 = vand.u32 %v437, 4294901760
      %7929 = vmatpush.msra.mxu0 %v7928
      %v7930 = vand.u32 %v436, 4294901760
      %7931 = vmatpush.msra.mxu0 %v7930
      %v7932 = vand.u32 %v435, 4294901760
      %7933 = vmatpush.msra.mxu0 %v7932
      %v7934 = vand.u32 %v434, 4294901760
      %7935 = vmatpush.msra.mxu0 %v7934
      %v7936 = vand.u32 %v433, 4294901760
      %7937 = vmatpush.msra.mxu0 %v7936
      %v7938 = vand.u32 %v432, 4294901760
      %7939 = vmatpush.msra.mxu0 %v7938
      %v7940 = vand.u32 %v431, 4294901760
      %7941 = vmatpush.msra.mxu0 %v7940
      %v7942 = vand.u32 %v430, 4294901760
      %7943 = vmatpush.msra.mxu0 %v7942
      %v7944 = vand.u32 %v429, 4294901760
      %7945 = vmatpush.msra.mxu0 %v7944
      %v7946 = vand.u32 %v428, 4294901760
      %7947 = vmatpush.msra.mxu0 %v7946
      %v7948 = vand.u32 %v427, 4294901760
      %7949 = vmatpush.msra.mxu0 %v7948
      %v7950 = vand.u32 %v426, 4294901760
      %7951 = vmatpush.msra.mxu0 %v7950
      %v7952 = vand.u32 %v425, 4294901760
      %7953 = vmatpush.msra.mxu0 %v7952
      %v7954 = vand.u32 %v424, 4294901760
      %7955 = vmatpush.msra.mxu0 %v7954
      %v7956 = vand.u32 %v7649, 4294901760
      %v7957 = vsub.f32 %v7649, %v7956
      %v7958 = vand.u32 %v7957, 4294901760
      %7959 = vmatmul.f32.gmra.mxu0 %v7958
      %v7960 = vpop.f32.mrf.mxu0
      %v7961 = vadd.f32 %v7922, %v7960
      %7962 = vdwg.mxu0
      %v7963 = vand.u32 %v439, 4294901760
      %v7964 = vsub.f32 %v439, %v7963
      %v7965 = vand.u32 %v7964, 4294901760
      %7966 = vmatpush.msra.mxu0 %v7965
      %v7967 = vand.u32 %v438, 4294901760
      %v7968 = vsub.f32 %v438, %v7967
      %v7969 = vand.u32 %v7968, 4294901760
      %7970 = vmatpush.msra.mxu0 %v7969
      %v7971 = vand.u32 %v437, 4294901760
      %v7972 = vsub.f32 %v437, %v7971
      %v7973 = vand.u32 %v7972, 4294901760
      %7974 = vmatpush.msra.mxu0 %v7973
      %v7975 = vand.u32 %v436, 4294901760
      %v7976 = vsub.f32 %v436, %v7975
      %v7977 = vand.u32 %v7976, 4294901760
      %7978 = vmatpush.msra.mxu0 %v7977
      %v7979 = vand.u32 %v435, 4294901760
      %v7980 = vsub.f32 %v435, %v7979
      %v7981 = vand.u32 %v7980, 4294901760
      %7982 = vmatpush.msra.mxu0 %v7981
      %v7983 = vand.u32 %v434, 4294901760
      %v7984 = vsub.f32 %v434, %v7983
      %v7985 = vand.u32 %v7984, 4294901760
      %7986 = vmatpush.msra.mxu0 %v7985
      %v7987 = vand.u32 %v433, 4294901760
      %v7988 = vsub.f32 %v433, %v7987
      %v7989 = vand.u32 %v7988, 4294901760
      %7990 = vmatpush.msra.mxu0 %v7989
      %v7991 = vand.u32 %v432, 4294901760
      %v7992 = vsub.f32 %v432, %v7991
      %v7993 = vand.u32 %v7992, 4294901760
      %7994 = vmatpush.msra.mxu0 %v7993
      %v7995 = vand.u32 %v431, 4294901760
      %v7996 = vsub.f32 %v431, %v7995
      %v7997 = vand.u32 %v7996, 4294901760
      %7998 = vmatpush.msra.mxu0 %v7997
      %v7999 = vand.u32 %v430, 4294901760
      %v8000 = vsub.f32 %v430, %v7999
      %v8001 = vand.u32 %v8000, 4294901760
      %8002 = vmatpush.msra.mxu0 %v8001
      %v8003 = vand.u32 %v429, 4294901760
      %v8004 = vsub.f32 %v429, %v8003
      %v8005 = vand.u32 %v8004, 4294901760
      %8006 = vmatpush.msra.mxu0 %v8005
      %v8007 = vand.u32 %v428, 4294901760
      %v8008 = vsub.f32 %v428, %v8007
      %v8009 = vand.u32 %v8008, 4294901760
      %8010 = vmatpush.msra.mxu0 %v8009
      %v8011 = vand.u32 %v427, 4294901760
      %v8012 = vsub.f32 %v427, %v8011
      %v8013 = vand.u32 %v8012, 4294901760
      %8014 = vmatpush.msra.mxu0 %v8013
      %v8015 = vand.u32 %v426, 4294901760
      %v8016 = vsub.f32 %v426, %v8015
      %v8017 = vand.u32 %v8016, 4294901760
      %8018 = vmatpush.msra.mxu0 %v8017
      %v8019 = vand.u32 %v425, 4294901760
      %v8020 = vsub.f32 %v425, %v8019
      %v8021 = vand.u32 %v8020, 4294901760
      %8022 = vmatpush.msra.mxu0 %v8021
      %v8023 = vand.u32 %v424, 4294901760
      %v8024 = vsub.f32 %v424, %v8023
      %v8025 = vand.u32 %v8024, 4294901760
      %8026 = vmatpush.msra.mxu0 %v8025
      %v8027 = vand.u32 %v7649, 4294901760
      %8028 = vmatmul.f32.gmra.mxu0 %v8027
      %v8029 = vpop.f32.mrf.mxu0
      %v8030 = vadd.f32 %v7961, %v8029
      %8031 = vdwg.mxu0
      %v8032 = vand.u32 %v439, 4294901760
      %8033 = vmatpush.msra.mxu0 %v8032
      %v8034 = vand.u32 %v438, 4294901760
      %8035 = vmatpush.msra.mxu0 %v8034
      %v8036 = vand.u32 %v437, 4294901760
      %8037 = vmatpush.msra.mxu0 %v8036
      %v8038 = vand.u32 %v436, 4294901760
      %8039 = vmatpush.msra.mxu0 %v8038
      %v8040 = vand.u32 %v435, 4294901760
      %8041 = vmatpush.msra.mxu0 %v8040
      %v8042 = vand.u32 %v434, 4294901760
      %8043 = vmatpush.msra.mxu0 %v8042
      %v8044 = vand.u32 %v433, 4294901760
      %8045 = vmatpush.msra.mxu0 %v8044
      %v8046 = vand.u32 %v432, 4294901760
      %8047 = vmatpush.msra.mxu0 %v8046
      %v8048 = vand.u32 %v431, 4294901760
      %8049 = vmatpush.msra.mxu0 %v8048
      %v8050 = vand.u32 %v430, 4294901760
      %8051 = vmatpush.msra.mxu0 %v8050
      %v8052 = vand.u32 %v429, 4294901760
      %8053 = vmatpush.msra.mxu0 %v8052
      %v8054 = vand.u32 %v428, 4294901760
      %8055 = vmatpush.msra.mxu0 %v8054
      %v8056 = vand.u32 %v427, 4294901760
      %8057 = vmatpush.msra.mxu0 %v8056
      %v8058 = vand.u32 %v426, 4294901760
      %8059 = vmatpush.msra.mxu0 %v8058
      %v8060 = vand.u32 %v425, 4294901760
      %8061 = vmatpush.msra.mxu0 %v8060
      %v8062 = vand.u32 %v424, 4294901760
      %8063 = vmatpush.msra.mxu0 %v8062
      %v8064 = vand.u32 %v7649, 4294901760
      %8065 = vmatmul.f32.gmra.mxu0 %v8064
      %v8066 = vpop.f32.mrf.mxu0
      %v8067 = vadd.f32 %v8030, %v8066
      %8068 = vdwg.mxu0
      %v8069 = vand.u32 %v439, 4294901760
      %8070 = vmatpush.msra.mxu0 %v8069
      %v8071 = vand.u32 %v438, 4294901760
      %8072 = vmatpush.msra.mxu0 %v8071
      %v8073 = vand.u32 %v437, 4294901760
      %8074 = vmatpush.msra.mxu0 %v8073
      %v8075 = vand.u32 %v436, 4294901760
      %8076 = vmatpush.msra.mxu0 %v8075
      %v8077 = vand.u32 %v435, 4294901760
      %8078 = vmatpush.msra.mxu0 %v8077
      %v8079 = vand.u32 %v434, 4294901760
      %8080 = vmatpush.msra.mxu0 %v8079
      %v8081 = vand.u32 %v433, 4294901760
      %8082 = vmatpush.msra.mxu0 %v8081
      %v8083 = vand.u32 %v432, 4294901760
      %8084 = vmatpush.msra.mxu0 %v8083
      %v8085 = vand.u32 %v431, 4294901760
      %8086 = vmatpush.msra.mxu0 %v8085
      %v8087 = vand.u32 %v430, 4294901760
      %8088 = vmatpush.msra.mxu0 %v8087
      %v8089 = vand.u32 %v429, 4294901760
      %8090 = vmatpush.msra.mxu0 %v8089
      %v8091 = vand.u32 %v428, 4294901760
      %8092 = vmatpush.msra.mxu0 %v8091
      %v8093 = vand.u32 %v427, 4294901760
      %8094 = vmatpush.msra.mxu0 %v8093
      %v8095 = vand.u32 %v426, 4294901760
      %8096 = vmatpush.msra.mxu0 %v8095
      %v8097 = vand.u32 %v425, 4294901760
      %8098 = vmatpush.msra.mxu0 %v8097
      %v8099 = vand.u32 %v424, 4294901760
      %8100 = vmatpush.msra.mxu0 %v8099
      %v8101 = vand.u32 %v7727, 4294901760
      %v8102 = vsub.f32 %v7727, %v8101
      %v8103 = vand.u32 %v8102, 4294901760
      %v8104 = vsub.f32 %v8102, %v8103
      %v8105 = vand.u32 %v8104, 4294901760
      %8106 = vmatmul.f32.gmra.mxu0 %v8105
      %v8107 = vpop.f32.mrf.mxu0
      %v8108 = vadd.f32 0.0, %v8107
      %8109 = vdwg.mxu0
      %v8110 = vand.u32 %v439, 4294901760
      %v8111 = vsub.f32 %v439, %v8110
      %v8112 = vand.u32 %v8111, 4294901760
      %v8113 = vsub.f32 %v8111, %v8112
      %v8114 = vand.u32 %v8113, 4294901760
      %8115 = vmatpush.msra.mxu0 %v8114
      %v8116 = vand.u32 %v438, 4294901760
      %v8117 = vsub.f32 %v438, %v8116
      %v8118 = vand.u32 %v8117, 4294901760
      %v8119 = vsub.f32 %v8117, %v8118
      %v8120 = vand.u32 %v8119, 4294901760
      %8121 = vmatpush.msra.mxu0 %v8120
      %v8122 = vand.u32 %v437, 4294901760
      %v8123 = vsub.f32 %v437, %v8122
      %v8124 = vand.u32 %v8123, 4294901760
      %v8125 = vsub.f32 %v8123, %v8124
      %v8126 = vand.u32 %v8125, 4294901760
      %8127 = vmatpush.msra.mxu0 %v8126
      %v8128 = vand.u32 %v436, 4294901760
      %v8129 = vsub.f32 %v436, %v8128
      %v8130 = vand.u32 %v8129, 4294901760
      %v8131 = vsub.f32 %v8129, %v8130
      %v8132 = vand.u32 %v8131, 4294901760
      %8133 = vmatpush.msra.mxu0 %v8132
      %v8134 = vand.u32 %v435, 4294901760
      %v8135 = vsub.f32 %v435, %v8134
      %v8136 = vand.u32 %v8135, 4294901760
      %v8137 = vsub.f32 %v8135, %v8136
      %v8138 = vand.u32 %v8137, 4294901760
      %8139 = vmatpush.msra.mxu0 %v8138
      %v8140 = vand.u32 %v434, 4294901760
      %v8141 = vsub.f32 %v434, %v8140
      %v8142 = vand.u32 %v8141, 4294901760
      %v8143 = vsub.f32 %v8141, %v8142
      %v8144 = vand.u32 %v8143, 4294901760
      %8145 = vmatpush.msra.mxu0 %v8144
      %v8146 = vand.u32 %v433, 4294901760
      %v8147 = vsub.f32 %v433, %v8146
      %v8148 = vand.u32 %v8147, 4294901760
      %v8149 = vsub.f32 %v8147, %v8148
      %v8150 = vand.u32 %v8149, 4294901760
      %8151 = vmatpush.msra.mxu0 %v8150
      %v8152 = vand.u32 %v432, 4294901760
      %v8153 = vsub.f32 %v432, %v8152
      %v8154 = vand.u32 %v8153, 4294901760
      %v8155 = vsub.f32 %v8153, %v8154
      %v8156 = vand.u32 %v8155, 4294901760
      %8157 = vmatpush.msra.mxu0 %v8156
      %v8158 = vand.u32 %v431, 4294901760
      %v8159 = vsub.f32 %v431, %v8158
      %v8160 = vand.u32 %v8159, 4294901760
      %v8161 = vsub.f32 %v8159, %v8160
      %v8162 = vand.u32 %v8161, 4294901760
      %8163 = vmatpush.msra.mxu0 %v8162
      %v8164 = vand.u32 %v430, 4294901760
      %v8165 = vsub.f32 %v430, %v8164
      %v8166 = vand.u32 %v8165, 4294901760
      %v8167 = vsub.f32 %v8165, %v8166
      %v8168 = vand.u32 %v8167, 4294901760
      %8169 = vmatpush.msra.mxu0 %v8168
      %v8170 = vand.u32 %v429, 4294901760
      %v8171 = vsub.f32 %v429, %v8170
      %v8172 = vand.u32 %v8171, 4294901760
      %v8173 = vsub.f32 %v8171, %v8172
      %v8174 = vand.u32 %v8173, 4294901760
      %8175 = vmatpush.msra.mxu0 %v8174
      %v8176 = vand.u32 %v428, 4294901760
      %v8177 = vsub.f32 %v428, %v8176
      %v8178 = vand.u32 %v8177, 4294901760
      %v8179 = vsub.f32 %v8177, %v8178
      %v8180 = vand.u32 %v8179, 4294901760
      %8181 = vmatpush.msra.mxu0 %v8180
      %v8182 = vand.u32 %v427, 4294901760
      %v8183 = vsub.f32 %v427, %v8182
      %v8184 = vand.u32 %v8183, 4294901760
      %v8185 = vsub.f32 %v8183, %v8184
      %v8186 = vand.u32 %v8185, 4294901760
      %8187 = vmatpush.msra.mxu0 %v8186
      %v8188 = vand.u32 %v426, 4294901760
      %v8189 = vsub.f32 %v426, %v8188
      %v8190 = vand.u32 %v8189, 4294901760
      %v8191 = vsub.f32 %v8189, %v8190
      %v8192 = vand.u32 %v8191, 4294901760
      %8193 = vmatpush.msra.mxu0 %v8192
      %v8194 = vand.u32 %v425, 4294901760
      %v8195 = vsub.f32 %v425, %v8194
      %v8196 = vand.u32 %v8195, 4294901760
      %v8197 = vsub.f32 %v8195, %v8196
      %v8198 = vand.u32 %v8197, 4294901760
      %8199 = vmatpush.msra.mxu0 %v8198
      %v8200 = vand.u32 %v424, 4294901760
      %v8201 = vsub.f32 %v424, %v8200
      %v8202 = vand.u32 %v8201, 4294901760
      %v8203 = vsub.f32 %v8201, %v8202
      %v8204 = vand.u32 %v8203, 4294901760
      %8205 = vmatpush.msra.mxu0 %v8204
      %v8206 = vand.u32 %v7727, 4294901760
      %8207 = vmatmul.f32.gmra.mxu0 %v8206
      %v8208 = vpop.f32.mrf.mxu0
      %v8209 = vadd.f32 %v8108, %v8208
      %8210 = vdwg.mxu0
      %v8211 = vand.u32 %v439, 4294901760
      %v8212 = vsub.f32 %v439, %v8211
      %8213 = vmatpush.msra.mxu0 %v8212
      %v8214 = vand.u32 %v438, 4294901760
      %v8215 = vsub.f32 %v438, %v8214
      %8216 = vmatpush.msra.mxu0 %v8215
      %v8217 = vand.u32 %v437, 4294901760
      %v8218 = vsub.f32 %v437, %v8217
      %8219 = vmatpush.msra.mxu0 %v8218
      %v8220 = vand.u32 %v436, 4294901760
      %v8221 = vsub.f32 %v436, %v8220
      %8222 = vmatpush.msra.mxu0 %v8221
      %v8223 = vand.u32 %v435, 4294901760
      %v8224 = vsub.f32 %v435, %v8223
      %8225 = vmatpush.msra.mxu0 %v8224
      %v8226 = vand.u32 %v434, 4294901760
      %v8227 = vsub.f32 %v434, %v8226
      %8228 = vmatpush.msra.mxu0 %v8227
      %v8229 = vand.u32 %v433, 4294901760
      %v8230 = vsub.f32 %v433, %v8229
      %8231 = vmatpush.msra.mxu0 %v8230
      %v8232 = vand.u32 %v432, 4294901760
      %v8233 = vsub.f32 %v432, %v8232
      %8234 = vmatpush.msra.mxu0 %v8233
      %v8235 = vand.u32 %v431, 4294901760
      %v8236 = vsub.f32 %v431, %v8235
      %8237 = vmatpush.msra.mxu0 %v8236
      %v8238 = vand.u32 %v430, 4294901760
      %v8239 = vsub.f32 %v430, %v8238
      %8240 = vmatpush.msra.mxu0 %v8239
      %v8241 = vand.u32 %v429, 4294901760
      %v8242 = vsub.f32 %v429, %v8241
      %8243 = vmatpush.msra.mxu0 %v8242
      %v8244 = vand.u32 %v428, 4294901760
      %v8245 = vsub.f32 %v428, %v8244
      %8246 = vmatpush.msra.mxu0 %v8245
      %v8247 = vand.u32 %v427, 4294901760
      %v8248 = vsub.f32 %v427, %v8247
      %8249 = vmatpush.msra.mxu0 %v8248
      %v8250 = vand.u32 %v426, 4294901760
      %v8251 = vsub.f32 %v426, %v8250
      %8252 = vmatpush.msra.mxu0 %v8251
      %v8253 = vand.u32 %v425, 4294901760
      %v8254 = vsub.f32 %v425, %v8253
      %8255 = vmatpush.msra.mxu0 %v8254
      %v8256 = vand.u32 %v424, 4294901760
      %v8257 = vsub.f32 %v424, %v8256
      %8258 = vmatpush.msra.mxu0 %v8257
      %v8259 = vand.u32 %v7727, 4294901760
      %v8260 = vsub.f32 %v7727, %v8259
      %8261 = vmatmul.f32.gmra.mxu0 %v8260
      %v8262 = vpop.f32.mrf.mxu0
      %v8263 = vadd.f32 %v8209, %v8262
      %8264 = vdwg.mxu0
      %v8265 = vand.u32 %v439, 4294901760
      %8266 = vmatpush.msra.mxu0 %v8265
      %v8267 = vand.u32 %v438, 4294901760
      %8268 = vmatpush.msra.mxu0 %v8267
      %v8269 = vand.u32 %v437, 4294901760
      %8270 = vmatpush.msra.mxu0 %v8269
      %v8271 = vand.u32 %v436, 4294901760
      %8272 = vmatpush.msra.mxu0 %v8271
      %v8273 = vand.u32 %v435, 4294901760
      %8274 = vmatpush.msra.mxu0 %v8273
      %v8275 = vand.u32 %v434, 4294901760
      %8276 = vmatpush.msra.mxu0 %v8275
      %v8277 = vand.u32 %v433, 4294901760
      %8278 = vmatpush.msra.mxu0 %v8277
      %v8279 = vand.u32 %v432, 4294901760
      %8280 = vmatpush.msra.mxu0 %v8279
      %v8281 = vand.u32 %v431, 4294901760
      %8282 = vmatpush.msra.mxu0 %v8281
      %v8283 = vand.u32 %v430, 4294901760
      %8284 = vmatpush.msra.mxu0 %v8283
      %v8285 = vand.u32 %v429, 4294901760
      %8286 = vmatpush.msra.mxu0 %v8285
      %v8287 = vand.u32 %v428, 4294901760
      %8288 = vmatpush.msra.mxu0 %v8287
      %v8289 = vand.u32 %v427, 4294901760
      %8290 = vmatpush.msra.mxu0 %v8289
      %v8291 = vand.u32 %v426, 4294901760
      %8292 = vmatpush.msra.mxu0 %v8291
      %v8293 = vand.u32 %v425, 4294901760
      %8294 = vmatpush.msra.mxu0 %v8293
      %v8295 = vand.u32 %v424, 4294901760
      %8296 = vmatpush.msra.mxu0 %v8295
      %v8297 = vand.u32 %v7727, 4294901760
      %v8298 = vsub.f32 %v7727, %v8297
      %v8299 = vand.u32 %v8298, 4294901760
      %8300 = vmatmul.f32.gmra.mxu0 %v8299
      %v8301 = vpop.f32.mrf.mxu0
      %v8302 = vadd.f32 %v8263, %v8301
      %8303 = vdwg.mxu0
      %v8304 = vand.u32 %v439, 4294901760
      %v8305 = vsub.f32 %v439, %v8304
      %v8306 = vand.u32 %v8305, 4294901760
      %8307 = vmatpush.msra.mxu0 %v8306
      %v8308 = vand.u32 %v438, 4294901760
      %v8309 = vsub.f32 %v438, %v8308
      %v8310 = vand.u32 %v8309, 4294901760
      %8311 = vmatpush.msra.mxu0 %v8310
      %v8312 = vand.u32 %v437, 4294901760
      %v8313 = vsub.f32 %v437, %v8312
      %v8314 = vand.u32 %v8313, 4294901760
      %8315 = vmatpush.msra.mxu0 %v8314
      %v8316 = vand.u32 %v436, 4294901760
      %v8317 = vsub.f32 %v436, %v8316
      %v8318 = vand.u32 %v8317, 4294901760
      %8319 = vmatpush.msra.mxu0 %v8318
      %v8320 = vand.u32 %v435, 4294901760
      %v8321 = vsub.f32 %v435, %v8320
      %v8322 = vand.u32 %v8321, 4294901760
      %8323 = vmatpush.msra.mxu0 %v8322
      %v8324 = vand.u32 %v434, 4294901760
      %v8325 = vsub.f32 %v434, %v8324
      %v8326 = vand.u32 %v8325, 4294901760
      %8327 = vmatpush.msra.mxu0 %v8326
      %v8328 = vand.u32 %v433, 4294901760
      %v8329 = vsub.f32 %v433, %v8328
      %v8330 = vand.u32 %v8329, 4294901760
      %8331 = vmatpush.msra.mxu0 %v8330
      %v8332 = vand.u32 %v432, 4294901760
      %v8333 = vsub.f32 %v432, %v8332
      %v8334 = vand.u32 %v8333, 4294901760
      %8335 = vmatpush.msra.mxu0 %v8334
      %v8336 = vand.u32 %v431, 4294901760
      %v8337 = vsub.f32 %v431, %v8336
      %v8338 = vand.u32 %v8337, 4294901760
      %8339 = vmatpush.msra.mxu0 %v8338
      %v8340 = vand.u32 %v430, 4294901760
      %v8341 = vsub.f32 %v430, %v8340
      %v8342 = vand.u32 %v8341, 4294901760
      %8343 = vmatpush.msra.mxu0 %v8342
      %v8344 = vand.u32 %v429, 4294901760
      %v8345 = vsub.f32 %v429, %v8344
      %v8346 = vand.u32 %v8345, 4294901760
      %8347 = vmatpush.msra.mxu0 %v8346
      %v8348 = vand.u32 %v428, 4294901760
      %v8349 = vsub.f32 %v428, %v8348
      %v8350 = vand.u32 %v8349, 4294901760
      %8351 = vmatpush.msra.mxu0 %v8350
      %v8352 = vand.u32 %v427, 4294901760
      %v8353 = vsub.f32 %v427, %v8352
      %v8354 = vand.u32 %v8353, 4294901760
      %8355 = vmatpush.msra.mxu0 %v8354
      %v8356 = vand.u32 %v426, 4294901760
      %v8357 = vsub.f32 %v426, %v8356
      %v8358 = vand.u32 %v8357, 4294901760
      %8359 = vmatpush.msra.mxu0 %v8358
      %v8360 = vand.u32 %v425, 4294901760
      %v8361 = vsub.f32 %v425, %v8360
      %v8362 = vand.u32 %v8361, 4294901760
      %8363 = vmatpush.msra.mxu0 %v8362
      %v8364 = vand.u32 %v424, 4294901760
      %v8365 = vsub.f32 %v424, %v8364
      %v8366 = vand.u32 %v8365, 4294901760
      %8367 = vmatpush.msra.mxu0 %v8366
      %v8368 = vand.u32 %v7727, 4294901760
      %8369 = vmatmul.f32.gmra.mxu0 %v8368
      %v8370 = vpop.f32.mrf.mxu0
      %v8371 = vadd.f32 %v8302, %v8370
      %8372 = vdwg.mxu0
      %v8373 = vand.u32 %v439, 4294901760
      %8374 = vmatpush.msra.mxu0 %v8373
      %v8375 = vand.u32 %v438, 4294901760
      %8376 = vmatpush.msra.mxu0 %v8375
      %v8377 = vand.u32 %v437, 4294901760
      %8378 = vmatpush.msra.mxu0 %v8377
      %v8379 = vand.u32 %v436, 4294901760
      %8380 = vmatpush.msra.mxu0 %v8379
      %v8381 = vand.u32 %v435, 4294901760
      %8382 = vmatpush.msra.mxu0 %v8381
      %v8383 = vand.u32 %v434, 4294901760
      %8384 = vmatpush.msra.mxu0 %v8383
      %v8385 = vand.u32 %v433, 4294901760
      %8386 = vmatpush.msra.mxu0 %v8385
      %v8387 = vand.u32 %v432, 4294901760
      %8388 = vmatpush.msra.mxu0 %v8387
      %v8389 = vand.u32 %v431, 4294901760
      %8390 = vmatpush.msra.mxu0 %v8389
      %v8391 = vand.u32 %v430, 4294901760
      %8392 = vmatpush.msra.mxu0 %v8391
      %v8393 = vand.u32 %v429, 4294901760
      %8394 = vmatpush.msra.mxu0 %v8393
      %v8395 = vand.u32 %v428, 4294901760
      %8396 = vmatpush.msra.mxu0 %v8395
      %v8397 = vand.u32 %v427, 4294901760
      %8398 = vmatpush.msra.mxu0 %v8397
      %v8399 = vand.u32 %v426, 4294901760
      %8400 = vmatpush.msra.mxu0 %v8399
      %v8401 = vand.u32 %v425, 4294901760
      %8402 = vmatpush.msra.mxu0 %v8401
      %v8403 = vand.u32 %v424, 4294901760
      %8404 = vmatpush.msra.mxu0 %v8403
      %v8405 = vand.u32 %v7727, 4294901760
      %8406 = vmatmul.f32.gmra.mxu0 %v8405
      %v8407 = vpop.f32.mrf.mxu0
      %v8408 = vadd.f32 %v8371, %v8407
      %8409 = vdwg.mxu0
      %v8410 = vmul.f32 %v8067, %v3718
      %v8411 = vmul.f32 %v8408, %v3718
      %v8412 = vmul.f32 %v8410, %v8410
      %v8413 = vsub.f32 %v8411, %v8412
      %v8414 = vadd.f32 %v8413, 1e-05
      %v8415 = vrsqrt.pop %v8414
      %v8416 = vmul.f32 %v8415, %v8414
      %v8417 = vmul.f32 %v8416, %v8415
      %v8418 = vmul.f32 0.5, %v8417
      %v8419 = vsub.f32 1.5, %v8418
      %v8420 = vmul.f32 %v8415, %v8419
      %vm8421 = vweird.f32 %v8414
      %vm8422 = vweird.f32 %v8415
      %vm8423 = vmor %vm8421, %vm8422
      %v8424 = vsel %vm8423, %v8415, %v8420
      %v8425 = vperm.slane %v8410, 0
      %v8426 = vsub.f32 %v7572, %v8425
      %v8427 = vsub.f32 %v7573, %v8425
      %v8428 = vsub.f32 %v7574, %v8425
      %v8429 = vsub.f32 %v7575, %v8425
      %v8430 = vsub.f32 %v7576, %v8425
      %v8431 = vsub.f32 %v7577, %v8425
      %v8432 = vsub.f32 %v7578, %v8425
      %v8433 = vsub.f32 %v7579, %v8425
      %v8434 = vsub.f32 %v7580, %v8425
      %v8435 = vsub.f32 %v7581, %v8425
      %v8436 = vsub.f32 %v7582, %v8425
      %v8437 = vsub.f32 %v7583, %v8425
      %v8438 = vsub.f32 %v7584, %v8425
      %v8439 = vsub.f32 %v7585, %v8425
      %v8440 = vsub.f32 %v7586, %v8425
      %v8441 = vsub.f32 %v7587, %v8425
      %v8442 = vsub.f32 %v7588, %v8425
      %v8443 = vsub.f32 %v7589, %v8425
      %v8444 = vsub.f32 %v7590, %v8425
      %v8445 = vsub.f32 %v7591, %v8425
      %v8446 = vsub.f32 %v7592, %v8425
      %v8447 = vsub.f32 %v7593, %v8425
      %v8448 = vsub.f32 %v7594, %v8425
      %v8449 = vsub.f32 %v7595, %v8425
      %v8450 = vsub.f32 %v7596, %v8425
      %v8451 = vsub.f32 %v7597, %v8425
      %v8452 = vsub.f32 %v7598, %v8425
      %v8453 = vsub.f32 %v7599, %v8425
      %v8454 = vsub.f32 %v7600, %v8425
      %v8455 = vsub.f32 %v7601, %v8425
      %v8456 = vsub.f32 %v7602, %v8425
      %v8457 = vsub.f32 %v7603, %v8425
      %v8458 = vsub.f32 %v7604, %v8425
      %v8459 = vsub.f32 %v7605, %v8425
      %v8460 = vsub.f32 %v7606, %v8425
      %v8461 = vsub.f32 %v7607, %v8425
      %v8462 = vld [vmem:[%s9] sm:$0x1]
      %v8463 = vmul.f32 %v8424, %v8462
      %v8464 = vperm.slane %v8463, 0
      %v8465 = vmul.f32 %v8426, %v8464
      %v8466 = vmul.f32 %v8427, %v8464
      %v8467 = vmul.f32 %v8428, %v8464
      %v8468 = vmul.f32 %v8429, %v8464
      %v8469 = vmul.f32 %v8430, %v8464
      %v8470 = vmul.f32 %v8431, %v8464
      %v8471 = vmul.f32 %v8432, %v8464
      %v8472 = vmul.f32 %v8433, %v8464
      %v8473 = vmul.f32 %v8434, %v8464
      %v8474 = vmul.f32 %v8435, %v8464
      %v8475 = vmul.f32 %v8436, %v8464
      %v8476 = vmul.f32 %v8437, %v8464
      %v8477 = vmul.f32 %v8438, %v8464
      %v8478 = vmul.f32 %v8439, %v8464
      %v8479 = vmul.f32 %v8440, %v8464
      %v8480 = vmul.f32 %v8441, %v8464
      %v8481 = vmul.f32 %v8442, %v8464
      %v8482 = vmul.f32 %v8443, %v8464
      %v8483 = vmul.f32 %v8444, %v8464
      %v8484 = vmul.f32 %v8445, %v8464
      %v8485 = vmul.f32 %v8446, %v8464
      %v8486 = vmul.f32 %v8447, %v8464
      %v8487 = vmul.f32 %v8448, %v8464
      %v8488 = vmul.f32 %v8449, %v8464
      %v8489 = vmul.f32 %v8450, %v8464
      %v8490 = vmul.f32 %v8451, %v8464
      %v8491 = vmul.f32 %v8452, %v8464
      %v8492 = vmul.f32 %v8453, %v8464
      %v8493 = vmul.f32 %v8454, %v8464
      %v8494 = vmul.f32 %v8455, %v8464
      %v8495 = vmul.f32 %v8456, %v8464
      %v8496 = vmul.f32 %v8457, %v8464
      %v8497 = vmul.f32 %v8458, %v8464
      %v8498 = vmul.f32 %v8459, %v8464
      %v8499 = vmul.f32 %v8460, %v8464
      %v8500 = vmul.f32 %v8461, %v8464
      %v8501 = vld [vmem:[%s10] sm:$0x1]
      %v8503 = vperm.slane %v8501, 0
      %v8505 = vadd.f32 %v8465, %v8503
      %v8506 = vadd.f32 %v8466, %v8503
      %v8507 = vadd.f32 %v8467, %v8503
      %v8508 = vadd.f32 %v8468, %v8503
      %v8509 = vadd.f32 %v8469, %v8503
      %v8510 = vadd.f32 %v8470, %v8503
      %v8511 = vadd.f32 %v8471, %v8503
      %v8512 = vadd.f32 %v8472, %v8503
      %v8513 = vadd.f32 %v8473, %v8503
      %v8514 = vadd.f32 %v8474, %v8503
      %v8515 = vadd.f32 %v8475, %v8503
      %v8516 = vadd.f32 %v8476, %v8503
      %v8517 = vadd.f32 %v8477, %v8503
      %v8518 = vadd.f32 %v8478, %v8503
      %v8519 = vadd.f32 %v8479, %v8503
      %v8520 = vadd.f32 %v8480, %v8503
      %v8521 = vadd.f32 %v8481, %v8503
      %v8522 = vadd.f32 %v8482, %v8503
      %v8523 = vadd.f32 %v8483, %v8503
      %v8524 = vadd.f32 %v8484, %v8503
      %v8525 = vadd.f32 %v8485, %v8503
      %v8526 = vadd.f32 %v8486, %v8503
      %v8527 = vadd.f32 %v8487, %v8503
      %v8528 = vadd.f32 %v8488, %v8503
      %v8529 = vadd.f32 %v8489, %v8503
      %v8530 = vadd.f32 %v8490, %v8503
      %v8531 = vadd.f32 %v8491, %v8503
      %v8532 = vadd.f32 %v8492, %v8503
      %v8533 = vadd.f32 %v8493, %v8503
      %v8534 = vadd.f32 %v8494, %v8503
      %v8535 = vadd.f32 %v8495, %v8503
      %v8536 = vadd.f32 %v8496, %v8503
      %v8537 = vadd.f32 %v8497, %v8503
      %v8538 = vadd.f32 %v8498, %v8503
      %v8539 = vadd.f32 %v8499, %v8503
      %v8540 = vadd.f32 %v8500, %v8503
      %v8541 = vmax.f32 %v8505, 0.0
      %v8542 = vmax.f32 %v8506, 0.0
      %v8543 = vmax.f32 %v8507, 0.0
      %v8544 = vmax.f32 %v8508, 0.0
      %v8545 = vmax.f32 %v8509, 0.0
      %v8546 = vmax.f32 %v8510, 0.0
      %v8547 = vmax.f32 %v8511, 0.0
      %v8548 = vmax.f32 %v8512, 0.0
      %v8549 = vmax.f32 %v8513, 0.0
      %v8550 = vmax.f32 %v8514, 0.0
      %v8551 = vmax.f32 %v8515, 0.0
      %v8552 = vmax.f32 %v8516, 0.0
      %v8553 = vmax.f32 %v8517, 0.0
      %v8554 = vmax.f32 %v8518, 0.0
      %v8555 = vmax.f32 %v8519, 0.0
      %v8556 = vmax.f32 %v8520, 0.0
      %v8557 = vmax.f32 %v8521, 0.0
      %v8558 = vmax.f32 %v8522, 0.0
      %v8559 = vmax.f32 %v8523, 0.0
      %v8560 = vmax.f32 %v8524, 0.0
      %v8561 = vmax.f32 %v8525, 0.0
      %v8562 = vmax.f32 %v8526, 0.0
      %v8563 = vmax.f32 %v8527, 0.0
      %v8564 = vmax.f32 %v8528, 0.0
      %v8565 = vmax.f32 %v8529, 0.0
      %v8566 = vmax.f32 %v8530, 0.0
      %v8567 = vmax.f32 %v8531, 0.0
      %v8568 = vmax.f32 %v8532, 0.0
      %v8569 = vmax.f32 %v8533, 0.0
      %v8570 = vmax.f32 %v8534, 0.0
      %v8571 = vmax.f32 %v8535, 0.0
      %v8572 = vmax.f32 %v8536, 0.0
      %v8573 = vmax.f32 %v8537, 0.0
      %v8574 = vmax.f32 %v8538, 0.0
      %v8575 = vmax.f32 %v8539, 0.0
      %v8576 = vmax.f32 %v8540, 0.0
      %v8577 = vmul.f32 %v8541, %v2696
      %v8578 = vmul.f32 %v8542, %v2701
      %v8579 = vmul.f32 %v8543, %v2706
      %v8580 = vmul.f32 %v8544, %v2711
      %v8581 = vmul.f32 %v8545, %v2716
      %v8582 = vmul.f32 %v8546, %v2721
      %v8583 = vmul.f32 %v8547, %v2726
      %v8584 = vmul.f32 %v8548, %v2731
      %v8585 = vmul.f32 %v8549, %v2736
      %v8586 = vmul.f32 %v8550, %v2741
      %v8587 = vmul.f32 %v8551, %v2746
      %v8588 = vmul.f32 %v8552, %v2751
      %v8589 = vmul.f32 %v8553, %v2756
      %v8590 = vmul.f32 %v8554, %v2761
      %v8591 = vmul.f32 %v8555, %v2766
      %v8592 = vmul.f32 %v8556, %v2771
      %v8593 = vmul.f32 %v8557, %v2776
      %v8594 = vmul.f32 %v8558, %v2781
      %v8595 = vmul.f32 %v8559, %v2786
      %v8596 = vmul.f32 %v8560, %v2791
      %v8597 = vmul.f32 %v8561, %v2796
      %v8598 = vmul.f32 %v8562, %v2801
      %v8599 = vmul.f32 %v8563, %v2806
      %v8600 = vmul.f32 %v8564, %v2811
      %v8601 = vmul.f32 %v8565, %v2816
      %v8602 = vmul.f32 %v8566, %v2821
      %v8603 = vmul.f32 %v8567, %v2826
      %v8604 = vmul.f32 %v8568, %v2831
      %v8605 = vmul.f32 %v8569, %v2836
      %v8606 = vmul.f32 %v8570, %v2841
      %v8607 = vmul.f32 %v8571, %v2846
      %v8608 = vmul.f32 %v8572, %v2851
      %v8609 = vmul.f32 %v8573, %v2856
      %v8610 = vmul.f32 %v8574, %v2861
      %v8611 = vmul.f32 %v8575, %v2866
      %v8612 = vmul.f32 %v8576, %v2871
      %v8613 = vld [vmem:[%s381 + $0x13] sm:$0xff]
      %v8614 = vld [vmem:[%s381 + $0x1b] sm:$0xff]
      %v8615 = vld [vmem:[%s381 + $0x23] sm:$0xff]
      %v8616 = vld [vmem:[%s381 + $0x2b] sm:$0xff]
      %v8617 = vld [vmem:[%s381 + $0x33] sm:$0xff]
      %v8618 = vld [vmem:[%s381 + $0x3b] sm:$0xff]
      %v8619 = vld [vmem:[%s381 + $0x43] sm:$0xff]
      %v8620 = vld [vmem:[%s381 + $0x4b] sm:$0xff]
      %v8621 = vld [vmem:[%s381 + $0x53] sm:$0xff]
      %v8622 = vld [vmem:[%s381 + $0x5b] sm:$0xff]
      %v8623 = vld [vmem:[%s381 + $0x63] sm:$0xff]
      %v8624 = vld [vmem:[%s381 + $0x6b] sm:$0xff]
      %v8625 = vld [vmem:[%s381 + $0x73] sm:$0xff]
      %v8626 = vld [vmem:[%s381 + $0x7b] sm:$0xff]
      %v8627 = vld [vmem:[%s381 + $0x83] sm:$0xff]
      %v8628 = vld [vmem:[%s381 + $0x8b] sm:$0xff]
      %v8629 = vld [vmem:[%s381 + $0x93] sm:$0xff]
      %v8630 = vld [vmem:[%s381 + $0x9b] sm:$0xff]
      %v8631 = vld [vmem:[%s381 + $0xa3] sm:$0xff]
      %v8632 = vld [vmem:[%s381 + $0xab] sm:$0xff]
      %v8633 = vld [vmem:[%s381 + $0xb3] sm:$0xff]
      %v8634 = vld [vmem:[%s381 + $0xbb] sm:$0xff]
      %v8635 = vld [vmem:[%s381 + $0xc3] sm:$0xff]
      %v8636 = vld [vmem:[%s381 + $0xcb] sm:$0xff]
      %v8637 = vld [vmem:[%s381 + $0xd3] sm:$0xff]
      %v8638 = vld [vmem:[%s381 + $0xdb] sm:$0xff]
      %v8639 = vld [vmem:[%s381 + $0xe3] sm:$0xff]
      %v8640 = vld [vmem:[%s381 + $0xeb] sm:$0xff]
      %v8641 = vld [vmem:[%s381 + $0xf3] sm:$0xff]
      %v8642 = vld [vmem:[%s381 + $0xfb] sm:$0xff]
      %v8643 = vld [vmem:[%s381 + $0x103] sm:$0xff]
      %v8644 = vld [vmem:[%s381 + $0x10b] sm:$0xff]
      %v8645 = vld [vmem:[%s381 + $0x113] sm:$0xff]
      %v8646 = vld [vmem:[%s381 + $0x11b] sm:$0xff]
      %v8647 = vld [vmem:[%s381 + $0x123] sm:$0xff]
      %v8648 = vld [vmem:[%s381 + $0x12b] sm:$0x3f]
      %v8649 = vadd.f32 %v8613, %v8577
      %v8650 = vadd.f32 %v8614, %v8578
      %v8651 = vadd.f32 %v8615, %v8579
      %v8652 = vadd.f32 %v8616, %v8580
      %v8653 = vadd.f32 %v8617, %v8581
      %v8654 = vadd.f32 %v8618, %v8582
      %v8655 = vadd.f32 %v8619, %v8583
      %v8656 = vadd.f32 %v8620, %v8584
      %v8657 = vadd.f32 %v8621, %v8585
      %v8658 = vadd.f32 %v8622, %v8586
      %v8659 = vadd.f32 %v8623, %v8587
      %v8660 = vadd.f32 %v8624, %v8588
      %v8661 = vadd.f32 %v8625, %v8589
      %v8662 = vadd.f32 %v8626, %v8590
      %v8663 = vadd.f32 %v8627, %v8591
      %v8664 = vadd.f32 %v8628, %v8592
      %v8665 = vadd.f32 %v8629, %v8593
      %v8666 = vadd.f32 %v8630, %v8594
      %v8667 = vadd.f32 %v8631, %v8595
      %v8668 = vadd.f32 %v8632, %v8596
      %v8669 = vadd.f32 %v8633, %v8597
      %v8670 = vadd.f32 %v8634, %v8598
      %v8671 = vadd.f32 %v8635, %v8599
      %v8672 = vadd.f32 %v8636, %v8600
      %v8673 = vadd.f32 %v8637, %v8601
      %v8674 = vadd.f32 %v8638, %v8602
      %v8675 = vadd.f32 %v8639, %v8603
      %v8676 = vadd.f32 %v8640, %v8604
      %v8677 = vadd.f32 %v8641, %v8605
      %v8678 = vadd.f32 %v8642, %v8606
      %v8679 = vadd.f32 %v8643, %v8607
      %v8680 = vadd.f32 %v8644, %v8608
      %v8681 = vadd.f32 %v8645, %v8609
      %v8682 = vadd.f32 %v8646, %v8610
      %v8683 = vadd.f32 %v8647, %v8611
      %v8684 = vadd.f32 %v8648, %v8612
      %8685 = vst [vmem:[%s386] sm:$0xff] %v8649
      %8686 = vst [vmem:[%s386 + $0x8] sm:$0xff] %v8650
      %8687 = vst [vmem:[%s386 + $0x10] sm:$0xff] %v8651
      %8688 = vst [vmem:[%s386 + $0x18] sm:$0xff] %v8652
      %8689 = vst [vmem:[%s386 + $0x20] sm:$0xff] %v8653
      %8690 = vst [vmem:[%s386 + $0x28] sm:$0xff] %v8654
      %8691 = vst [vmem:[%s386 + $0x30] sm:$0xff] %v8655
      %8692 = vst [vmem:[%s386 + $0x38] sm:$0xff] %v8656
      %8693 = vst [vmem:[%s386 + $0x40] sm:$0xff] %v8657
      %8694 = vst [vmem:[%s386 + $0x48] sm:$0xff] %v8658
      %8695 = vst [vmem:[%s386 + $0x50] sm:$0xff] %v8659
      %8696 = vst [vmem:[%s386 + $0x58] sm:$0xff] %v8660
      %8697 = vst [vmem:[%s386 + $0x60] sm:$0xff] %v8661
      %8698 = vst [vmem:[%s386 + $0x68] sm:$0xff] %v8662
      %8699 = vst [vmem:[%s386 + $0x70] sm:$0xff] %v8663
      %8700 = vst [vmem:[%s386 + $0x78] sm:$0xff] %v8664
      %8701 = vst [vmem:[%s386 + $0x80] sm:$0xff] %v8665
      %8702 = vst [vmem:[%s386 + $0x88] sm:$0xff] %v8666
      %8703 = vst [vmem:[%s386 + $0x90] sm:$0xff] %v8667
      %8704 = vst [vmem:[%s386 + $0x98] sm:$0xff] %v8668
      %8705 = vst [vmem:[%s386 + $0xa0] sm:$0xff] %v8669
      %8706 = vst [vmem:[%s386 + $0xa8] sm:$0xff] %v8670
      %8707 = vst [vmem:[%s386 + $0xb0] sm:$0xff] %v8671
      %8708 = vst [vmem:[%s386 + $0xb8] sm:$0xff] %v8672
      %8709 = vst [vmem:[%s386 + $0xc0] sm:$0xff] %v8673
      %8710 = vst [vmem:[%s386 + $0xc8] sm:$0xff] %v8674
      %8711 = vst [vmem:[%s386 + $0xd0] sm:$0xff] %v8675
      %8712 = vst [vmem:[%s386 + $0xd8] sm:$0xff] %v8676
      %8713 = vst [vmem:[%s386 + $0xe0] sm:$0xff] %v8677
      %8714 = vst [vmem:[%s386 + $0xe8] sm:$0xff] %v8678
      %8715 = vst [vmem:[%s386 + $0xf0] sm:$0xff] %v8679
      %8716 = vst [vmem:[%s386 + $0xf8] sm:$0xff] %v8680
      %8717 = vst [vmem:[%s386 + $0x100] sm:$0xff] %v8681
      %8718 = vst [vmem:[%s386 + $0x108] sm:$0xff] %v8682
      %8719 = vst [vmem:[%s386 + $0x110] sm:$0xff] %v8683
      %8720 = vst [vmem:[%s386 + $0x118] sm:$0x3f] %v8684
      %p8721 = scmp.lt.s32.totalorder %s22, 1
      %s8722 = scalar_select %p8721, %s22, 1
      %s8723 = smul.addr %s8722, 36
      %s8724 = smul.addr %s8723, 8
      %s8725 = scalar_lea.vmem %s11, %s8724
      // Predicated region
      $region65: #{atten_block_pallas.1} parent=63 // pred_check
        %p8726 = pneg %p276
      $region66: #{atten_block_pallas.1} parent=63 // pred_check_branch
        %8728 = sbr.rel (%p8726) target = $region68
      $region67: #{atten_block_pallas.1} parent=63 // pred_region
        _
      $region68: #{atten_block_pallas.1} parent=63 // pred_fallthru
        _
    $region64: #{atten_block_pallas.1} parent=5 // pred_fallthru
      _
    %p8729 = scmp.le.s32.totalorder 2, %s17
    // Predicated region
    $region69: #{atten_block_pallas.1} parent=5 // pred_check
      %p8730 = pneg %p8729
    $region70: #{atten_block_pallas.1} parent=5 // pred_check_branch
      %8732 = sbr.rel (%p8730) target = $region72
    $region71: #{atten_block_pallas.1} parent=5 // pred_region
      %s8733 = ssub.s32 %s17, 2
      // Predicated region
      $region73: #{atten_block_pallas.1} parent=71 // pred_check
        %p8734 = pneg %p282
      $region74: #{atten_block_pallas.1} parent=71 // pred_check_branch
        %8736 = sbr.rel (%p8734) target = $region76
      $region75: #{atten_block_pallas.1} parent=71 // pred_region
        %p8737 = scmp.lt.s32.totalorder %s23, 1
        %s8738 = scalar_select %p8737, %s23, 1
        %s8739 = smul.addr %s8738, 36
        %s8740 = smul.addr %s8739, 8
        %s8741 = scalar_lea.vmem %s11, %s8740
      $region76: #{atten_block_pallas.1} parent=71 // pred_fallthru
        _
    $region72: #{atten_block_pallas.1} parent=5 // pred_fallthru
      _
  $region6: #{atten_block_pallas.1} parent=0 // loop_footer
    %s21 = sadd.s32 1, %s17
  $region7: #{atten_block_pallas.1} parent=0 // loop_footer_branch
    %16 = sbr.rel target = $region3
  $region8: #{atten_block_pallas.1} parent=0 // loop_exit
    _

</llo_original>
